<compile_context>
chip_gen: v7x
topology: tpu7x:2x2x1
jax: 0.10.0
libtpu: 0.0.40
codegen_flags: <defaults>
</compile_context>

<pallas_src>
import jax
import jax.numpy as jnp
import numpy as np
from jax.experimental import pallas as pl
from jax.experimental.pallas import tpu as pltpu

B = 2         # batch
L = 150       # sequence length (fixed by Linear(32*150, 64))
CIN = 4       # input channels
COUT = 32     # conv output channels
H1 = 64       # hidden of first Linear
K = 3         # conv kernel size


# ---------------------------------------------------------------------------
# Fused kernel.
#   x_ref  : (B, L, CIN)        input, same layout the PyTorch module receives
#   wc_ref : (K*CIN, COUT)      conv weight, wc[k*CIN+c, o] = W_pt[o, c, k]
#   bc_ref : (1, COUT)
#   w1_ref : (COUT, L, H1)      w1[c, t, h] = W1_pt[h, c*L + t]  (channel-major flatten)
#   b1_ref : (1, H1)
#   w2_ref : (1, H1)
#   b2_ref : (1, 1)
#   out_ref: (B, 1)
# ---------------------------------------------------------------------------
def discriminator_kernel(x_ref, wc_ref, bc_ref, w1_ref, b1_ref, w2_ref, b2_ref, out_ref):
    outs = []
    for b in range(B):                                   # B is tiny & static -> unrolled
        x_b = x_ref[b]                                   # (L, CIN)

        # --- Conv1d(k=3, pad=1) as one im2col matmul (zero-pad done in-kernel) ---
        zrow = jnp.zeros((1, CIN), jnp.float32)
        xp = jnp.concatenate([zrow, x_b, zrow], axis=0)  # (L+2, CIN)
        x12 = jnp.concatenate(                           # (L, K*CIN) ; col k*CIN+c = xp[t+k, c]
            [xp[0:L, :], xp[1:L + 1, :], xp[2:L + 2, :]], axis=1)
        conv = jnp.dot(x12, wc_ref[...], preferred_element_type=jnp.float32) + bc_ref[...]
        conv = jnp.maximum(conv, 0.0)                    # (L, COUT)

        # --- Flatten + Linear(4800 -> 64) via per-channel broadcast-FMA (no activation reshape) ---
        acc = jnp.zeros((L, H1), jnp.float32)
        for c in range(COUT):                            # static unroll: 32 VPU FMAs of (150, 64)
            acc = acc + conv[:, c:c + 1] * w1_ref[c]     # (L,1) lane-broadcast * (L,H1) slab
        z1 = jnp.sum(acc, axis=0, keepdims=True) + b1_ref[...]   # (1, H1) sublane reduce
        z1 = jnp.maximum(z1, 0.0)

        # --- Linear(64 -> 1) + Sigmoid as VPU multiply + lane reduction ---
        z2 = jnp.sum(z1 * w2_ref[...], axis=1, keepdims=True) + b2_ref[...]   # (1, 1)
        outs.append(jax.nn.sigmoid(z2))

    out_ref[...] = jnp.concatenate(outs, axis=0)         # (B, 1), single store


def _vmem_specs(n):
    return [pl.BlockSpec(memory_space=pltpu.MemorySpace.VMEM) for _ in range(n)]


def prepare_params(params):
    """One-time parameter re-layout (hoisted out of the forward pass)."""
    wc_pt, bc, w1_pt, b1, w2_pt, b2 = params
    wc12 = jnp.transpose(wc_pt, (2, 1, 0)).reshape(K * CIN, COUT)   # [k*CIN+c, o] = wc_pt[o,c,k]
    bc2 = bc.reshape(1, COUT)
    # PyTorch Flatten index is c*L + t (channel-major); store W1 as (COUT, L, H1).
    w1 = jnp.transpose(w1_pt.reshape(H1, COUT, L), (1, 2, 0))       # (COUT, L, H1)
    b1_2 = b1.reshape(1, H1)
    w2row = w2_pt.reshape(1, H1)
    b2_2 = b2.reshape(1, 1)
    return (wc12, bc2, w1, b1_2, w2row, b2_2)


@jax.jit
def discriminator_forward(x, prepared):
    """x: (B, L, CIN) float32 — same layout the PyTorch module receives."""
    wc12, bc2, w1, b1_2, w2row, b2_2 = prepared
    return pl.pallas_call(
        discriminator_kernel,
        out_shape=jax.ShapeDtypeStruct((B, 1), jnp.float32),
        in_specs=_vmem_specs(7),
        out_specs=pl.BlockSpec(memory_space=pltpu.MemorySpace.VMEM),
    )(x, wc12, bc2, w1, b1_2, w2row, b2_2)


def reference_forward(x, params):
    """Pure-JAX mirror of the PyTorch module (NCL conv, channel-major flatten)."""
    wc_pt, bc, w1_pt, b1, w2_pt, b2 = params
    xt = jnp.transpose(x, (0, 2, 1))                     # (B, CIN, L)
    xp = jnp.pad(xt, ((0, 0), (0, 0), (1, 1)))
    conv = jnp.zeros((x.shape[0], COUT, L), jnp.float32)
    for k in range(K):
        conv = conv + jnp.einsum('bcl,oc->bol', xp[:, :, k:k + L], wc_pt[:, :, k])
    conv = jax.nn.relu(conv + bc[None, :, None])
    h = conv.reshape(x.shape[0], -1)                     # channel-major flatten
    z1 = jax.nn.relu(h @ w1_pt.T + b1)
    return jax.nn.sigmoid(z1 @ w2_pt.T + b2)


def init_params(key):
    ks = jax.random.split(key, 6)
    def u(k, shape, fan_in):
        bound = 1.0 / np.sqrt(fan_in)
        return jax.random.uniform(k, shape, jnp.float32, -bound, bound)
    wc_pt = u(ks[0], (COUT, CIN, K), CIN * K)      # Conv1d weight
    bc    = u(ks[1], (COUT,),        CIN * K)      # Conv1d bias
    w1_pt = u(ks[2], (H1, COUT * L), COUT * L)     # Linear(4800, 64) weight
    b1    = u(ks[3], (H1,),          COUT * L)
    w2_pt = u(ks[4], (1, H1),        H1)           # Linear(64, 1) weight
    b2    = u(ks[5], (1,),           H1)
    return (wc_pt, bc, w1_pt, b1, w2_pt, b2)


if __name__ == "__main__":
    key = jax.random.PRNGKey(0)
    k_x, k_p = jax.random.split(key)
    x = jax.random.normal(k_x, (B, L, CIN), jnp.float32)
    params = init_params(k_p)

    # One-time parameter prep (hoisted out of the hot path).
    prepared = jax.block_until_ready(prepare_params(params))

    out = jax.block_until_ready(discriminator_forward(x, prepared))

    ref = jax.block_until_ready(reference_forward(x, params))
    np.testing.assert_allclose(np.asarray(out), np.asarray(ref), rtol=2e-5, atol=2e-5)

    assert out.shape == (B, 1)
    print("KERNEL_OK")
</pallas_src>

<mosaic_0001>
module attributes {stable_mosaic.version = 11 : i64} {
  func.func @discriminator_kernel(%arg0: memref<2x150x4xf32, #tpu.memory_space<vmem>>, %arg1: memref<12x32xf32, #tpu.memory_space<vmem>>, %arg2: memref<1x32xf32, #tpu.memory_space<vmem>>, %arg3: memref<32x150x64xf32, #tpu.memory_space<vmem>>, %arg4: memref<1x64xf32, #tpu.memory_space<vmem>>, %arg5: memref<1x64xf32, #tpu.memory_space<vmem>>, %arg6: memref<1x1xf32, #tpu.memory_space<vmem>>, %arg7: memref<2x1xf32, #tpu.memory_space<vmem>>) attributes {dimension_semantics = [], scalar_prefetch = 0 : i64, scratch_operands = 0 : i64, tpu.core_type = #tpu.core_type<tc>} {
    %c0 = arith.constant 0 : index
    %c0_0 = arith.constant 0 : index
    %c0_1 = arith.constant 0 : index
    %0 = vector.load %arg0[%c0, %c0_0, %c0_1] : memref<2x150x4xf32, #tpu.memory_space<vmem>>, vector<1x150x4xf32>
    %1 = vector.shape_cast %0 : vector<1x150x4xf32> to vector<150x4xf32>
    %cst = arith.constant 0.000000e+00 : f32
    %2 = vector.broadcast %cst : f32 to vector<1x4xf32>
    %3 = tpu.concatenate %2, %1, %2 in 0 : vector<1x4xf32>, vector<150x4xf32>, vector<1x4xf32> -> vector<152x4xf32>
    %4 = vector.extract_strided_slice %3 {offsets = [0, 0], sizes = [150, 4], strides = [1, 1]} : vector<152x4xf32> to vector<150x4xf32>
    %5 = vector.extract_strided_slice %3 {offsets = [1, 0], sizes = [150, 4], strides = [1, 1]} : vector<152x4xf32> to vector<150x4xf32>
    %6 = vector.extract_strided_slice %3 {offsets = [2, 0], sizes = [150, 4], strides = [1, 1]} : vector<152x4xf32> to vector<150x4xf32>
    %7 = tpu.concatenate %4, %5, %6 in 1 : vector<150x4xf32>, vector<150x4xf32>, vector<150x4xf32> -> vector<150x12xf32>
    %c0_2 = arith.constant 0 : index
    %c0_3 = arith.constant 0 : index
    %8 = vector.load %arg1[%c0_2, %c0_3] : memref<12x32xf32, #tpu.memory_space<vmem>>, vector<12x32xf32>
    %cst_4 = arith.constant dense<0.000000e+00> : vector<150x32xf32>
    %9 = tpu.matmul %7, %8, %cst_4 {dimension_numbers = #tpu.dot_dimension_numbers<[1], [0], [0], [1], [0, 0, 1, 1], [], []>} : vector<150x12xf32>, vector<12x32xf32>, vector<150x32xf32> -> vector<150x32xf32>
    %c0_5 = arith.constant 0 : index
    %c0_6 = arith.constant 0 : index
    %10 = vector.load %arg2[%c0_5, %c0_6] : memref<1x32xf32, #tpu.memory_space<vmem>>, vector<1x32xf32>
    %11 = vector.broadcast %10 : vector<1x32xf32> to vector<150x32xf32>
    %12 = arith.addf %9, %11 : vector<150x32xf32>
    %cst_7 = arith.constant 0.000000e+00 : f32
    %13 = vector.broadcast %cst_7 : f32 to vector<150x32xf32>
    %14 = arith.maximumf %12, %13 : vector<150x32xf32>
    %cst_8 = arith.constant 0.000000e+00 : f32
    %15 = vector.broadcast %cst_8 : f32 to vector<150x64xf32>
    %16 = vector.extract_strided_slice %14 {offsets = [0, 0], sizes = [150, 1], strides = [1, 1]} : vector<150x32xf32> to vector<150x1xf32>
    %c0_9 = arith.constant 0 : index
    %c0_10 = arith.constant 0 : index
    %c0_11 = arith.constant 0 : index
    %17 = vector.load %arg3[%c0_9, %c0_10, %c0_11] : memref<32x150x64xf32, #tpu.memory_space<vmem>>, vector<1x150x64xf32>
    %18 = vector.shape_cast %17 : vector<1x150x64xf32> to vector<150x64xf32>
    %19 = vector.broadcast %16 : vector<150x1xf32> to vector<150x64xf32>
    %20 = arith.mulf %19, %18 : vector<150x64xf32>
    %21 = arith.addf %15, %20 : vector<150x64xf32>
    %22 = vector.extract_strided_slice %14 {offsets = [0, 1], sizes = [150, 1], strides = [1, 1]} : vector<150x32xf32> to vector<150x1xf32>
    %c1 = arith.constant 1 : index
    %c0_12 = arith.constant 0 : index
    %c0_13 = arith.constant 0 : index
    %23 = vector.load %arg3[%c1, %c0_12, %c0_13] : memref<32x150x64xf32, #tpu.memory_space<vmem>>, vector<1x150x64xf32>
    %24 = vector.shape_cast %23 : vector<1x150x64xf32> to vector<150x64xf32>
    %25 = vector.broadcast %22 : vector<150x1xf32> to vector<150x64xf32>
    %26 = arith.mulf %25, %24 : vector<150x64xf32>
    %27 = arith.addf %21, %26 : vector<150x64xf32>
    %28 = vector.extract_strided_slice %14 {offsets = [0, 2], sizes = [150, 1], strides = [1, 1]} : vector<150x32xf32> to vector<150x1xf32>
    %c2 = arith.constant 2 : index
    %c0_14 = arith.constant 0 : index
    %c0_15 = arith.constant 0 : index
    %29 = vector.load %arg3[%c2, %c0_14, %c0_15] : memref<32x150x64xf32, #tpu.memory_space<vmem>>, vector<1x150x64xf32>
    %30 = vector.shape_cast %29 : vector<1x150x64xf32> to vector<150x64xf32>
    %31 = vector.broadcast %28 : vector<150x1xf32> to vector<150x64xf32>
    %32 = arith.mulf %31, %30 : vector<150x64xf32>
    %33 = arith.addf %27, %32 : vector<150x64xf32>
    %34 = vector.extract_strided_slice %14 {offsets = [0, 3], sizes = [150, 1], strides = [1, 1]} : vector<150x32xf32> to vector<150x1xf32>
    %c3 = arith.constant 3 : index
    %c0_16 = arith.constant 0 : index
    %c0_17 = arith.constant 0 : index
    %35 = vector.load %arg3[%c3, %c0_16, %c0_17] : memref<32x150x64xf32, #tpu.memory_space<vmem>>, vector<1x150x64xf32>
    %36 = vector.shape_cast %35 : vector<1x150x64xf32> to vector<150x64xf32>
    %37 = vector.broadcast %34 : vector<150x1xf32> to vector<150x64xf32>
    %38 = arith.mulf %37, %36 : vector<150x64xf32>
    %39 = arith.addf %33, %38 : vector<150x64xf32>
    %40 = vector.extract_strided_slice %14 {offsets = [0, 4], sizes = [150, 1], strides = [1, 1]} : vector<150x32xf32> to vector<150x1xf32>
    %c4 = arith.constant 4 : index
    %c0_18 = arith.constant 0 : index
    %c0_19 = arith.constant 0 : index
    %41 = vector.load %arg3[%c4, %c0_18, %c0_19] : memref<32x150x64xf32, #tpu.memory_space<vmem>>, vector<1x150x64xf32>
    %42 = vector.shape_cast %41 : vector<1x150x64xf32> to vector<150x64xf32>
    %43 = vector.broadcast %40 : vector<150x1xf32> to vector<150x64xf32>
    %44 = arith.mulf %43, %42 : vector<150x64xf32>
    %45 = arith.addf %39, %44 : vector<150x64xf32>
    %46 = vector.extract_strided_slice %14 {offsets = [0, 5], sizes = [150, 1], strides = [1, 1]} : vector<150x32xf32> to vector<150x1xf32>
    %c5 = arith.constant 5 : index
    %c0_20 = arith.constant 0 : index
    %c0_21 = arith.constant 0 : index
    %47 = vector.load %arg3[%c5, %c0_20, %c0_21] : memref<32x150x64xf32, #tpu.memory_space<vmem>>, vector<1x150x64xf32>
    %48 = vector.shape_cast %47 : vector<1x150x64xf32> to vector<150x64xf32>
    %49 = vector.broadcast %46 : vector<150x1xf32> to vector<150x64xf32>
    %50 = arith.mulf %49, %48 : vector<150x64xf32>
    %51 = arith.addf %45, %50 : vector<150x64xf32>
    %52 = vector.extract_strided_slice %14 {offsets = [0, 6], sizes = [150, 1], strides = [1, 1]} : vector<150x32xf32> to vector<150x1xf32>
    %c6 = arith.constant 6 : index
    %c0_22 = arith.constant 0 : index
    %c0_23 = arith.constant 0 : index
    %53 = vector.load %arg3[%c6, %c0_22, %c0_23] : memref<32x150x64xf32, #tpu.memory_space<vmem>>, vector<1x150x64xf32>
    %54 = vector.shape_cast %53 : vector<1x150x64xf32> to vector<150x64xf32>
    %55 = vector.broadcast %52 : vector<150x1xf32> to vector<150x64xf32>
    %56 = arith.mulf %55, %54 : vector<150x64xf32>
    %57 = arith.addf %51, %56 : vector<150x64xf32>
    %58 = vector.extract_strided_slice %14 {offsets = [0, 7], sizes = [150, 1], strides = [1, 1]} : vector<150x32xf32> to vector<150x1xf32>
    %c7 = arith.constant 7 : index
    %c0_24 = arith.constant 0 : index
    %c0_25 = arith.constant 0 : index
    %59 = vector.load %arg3[%c7, %c0_24, %c0_25] : memref<32x150x64xf32, #tpu.memory_space<vmem>>, vector<1x150x64xf32>
    %60 = vector.shape_cast %59 : vector<1x150x64xf32> to vector<150x64xf32>
    %61 = vector.broadcast %58 : vector<150x1xf32> to vector<150x64xf32>
    %62 = arith.mulf %61, %60 : vector<150x64xf32>
    %63 = arith.addf %57, %62 : vector<150x64xf32>
    %64 = vector.extract_strided_slice %14 {offsets = [0, 8], sizes = [150, 1], strides = [1, 1]} : vector<150x32xf32> to vector<150x1xf32>
    %c8 = arith.constant 8 : index
    %c0_26 = arith.constant 0 : index
    %c0_27 = arith.constant 0 : index
    %65 = vector.load %arg3[%c8, %c0_26, %c0_27] : memref<32x150x64xf32, #tpu.memory_space<vmem>>, vector<1x150x64xf32>
    %66 = vector.shape_cast %65 : vector<1x150x64xf32> to vector<150x64xf32>
    %67 = vector.broadcast %64 : vector<150x1xf32> to vector<150x64xf32>
    %68 = arith.mulf %67, %66 : vector<150x64xf32>
    %69 = arith.addf %63, %68 : vector<150x64xf32>
    %70 = vector.extract_strided_slice %14 {offsets = [0, 9], sizes = [150, 1], strides = [1, 1]} : vector<150x32xf32> to vector<150x1xf32>
    %c9 = arith.constant 9 : index
    %c0_28 = arith.constant 0 : index
    %c0_29 = arith.constant 0 : index
    %71 = vector.load %arg3[%c9, %c0_28, %c0_29] : memref<32x150x64xf32, #tpu.memory_space<vmem>>, vector<1x150x64xf32>
    %72 = vector.shape_cast %71 : vector<1x150x64xf32> to vector<150x64xf32>
    %73 = vector.broadcast %70 : vector<150x1xf32> to vector<150x64xf32>
    %74 = arith.mulf %73, %72 : vector<150x64xf32>
    %75 = arith.addf %69, %74 : vector<150x64xf32>
    %76 = vector.extract_strided_slice %14 {offsets = [0, 10], sizes = [150, 1], strides = [1, 1]} : vector<150x32xf32> to vector<150x1xf32>
    %c10 = arith.constant 10 : index
    %c0_30 = arith.constant 0 : index
    %c0_31 = arith.constant 0 : index
    %77 = vector.load %arg3[%c10, %c0_30, %c0_31] : memref<32x150x64xf32, #tpu.memory_space<vmem>>, vector<1x150x64xf32>
    %78 = vector.shape_cast %77 : vector<1x150x64xf32> to vector<150x64xf32>
    %79 = vector.broadcast %76 : vector<150x1xf32> to vector<150x64xf32>
    %80 = arith.mulf %79, %78 : vector<150x64xf32>
    %81 = arith.addf %75, %80 : vector<150x64xf32>
    %82 = vector.extract_strided_slice %14 {offsets = [0, 11], sizes = [150, 1], strides = [1, 1]} : vector<150x32xf32> to vector<150x1xf32>
    %c11 = arith.constant 11 : index
    %c0_32 = arith.constant 0 : index
    %c0_33 = arith.constant 0 : index
    %83 = vector.load %arg3[%c11, %c0_32, %c0_33] : memref<32x150x64xf32, #tpu.memory_space<vmem>>, vector<1x150x64xf32>
    %84 = vector.shape_cast %83 : vector<1x150x64xf32> to vector<150x64xf32>
    %85 = vector.broadcast %82 : vector<150x1xf32> to vector<150x64xf32>
    %86 = arith.mulf %85, %84 : vector<150x64xf32>
    %87 = arith.addf %81, %86 : vector<150x64xf32>
    %88 = vector.extract_strided_slice %14 {offsets = [0, 12], sizes = [150, 1], strides = [1, 1]} : vector<150x32xf32> to vector<150x1xf32>
    %c12 = arith.constant 12 : index
    %c0_34 = arith.constant 0 : index
    %c0_35 = arith.constant 0 : index
    %89 = vector.load %arg3[%c12, %c0_34, %c0_35] : memref<32x150x64xf32, #tpu.memory_space<vmem>>, vector<1x150x64xf32>
    %90 = vector.shape_cast %89 : vector<1x150x64xf32> to vector<150x64xf32>
    %91 = vector.broadcast %88 : vector<150x1xf32> to vector<150x64xf32>
    %92 = arith.mulf %91, %90 : vector<150x64xf32>
    %93 = arith.addf %87, %92 : vector<150x64xf32>
    %94 = vector.extract_strided_slice %14 {offsets = [0, 13], sizes = [150, 1], strides = [1, 1]} : vector<150x32xf32> to vector<150x1xf32>
    %c13 = arith.constant 13 : index
    %c0_36 = arith.constant 0 : index
    %c0_37 = arith.constant 0 : index
    %95 = vector.load %arg3[%c13, %c0_36, %c0_37] : memref<32x150x64xf32, #tpu.memory_space<vmem>>, vector<1x150x64xf32>
    %96 = vector.shape_cast %95 : vector<1x150x64xf32> to vector<150x64xf32>
    %97 = vector.broadcast %94 : vector<150x1xf32> to vector<150x64xf32>
    %98 = arith.mulf %97, %96 : vector<150x64xf32>
    %99 = arith.addf %93, %98 : vector<150x64xf32>
    %100 = vector.extract_strided_slice %14 {offsets = [0, 14], sizes = [150, 1], strides = [1, 1]} : vector<150x32xf32> to vector<150x1xf32>
    %c14 = arith.constant 14 : index
    %c0_38 = arith.constant 0 : index
    %c0_39 = arith.constant 0 : index
    %101 = vector.load %arg3[%c14, %c0_38, %c0_39] : memref<32x150x64xf32, #tpu.memory_space<vmem>>, vector<1x150x64xf32>
    %102 = vector.shape_cast %101 : vector<1x150x64xf32> to vector<150x64xf32>
    %103 = vector.broadcast %100 : vector<150x1xf32> to vector<150x64xf32>
    %104 = arith.mulf %103, %102 : vector<150x64xf32>
    %105 = arith.addf %99, %104 : vector<150x64xf32>
    %106 = vector.extract_strided_slice %14 {offsets = [0, 15], sizes = [150, 1], strides = [1, 1]} : vector<150x32xf32> to vector<150x1xf32>
    %c15 = arith.constant 15 : index
    %c0_40 = arith.constant 0 : index
    %c0_41 = arith.constant 0 : index
    %107 = vector.load %arg3[%c15, %c0_40, %c0_41] : memref<32x150x64xf32, #tpu.memory_space<vmem>>, vector<1x150x64xf32>
    %108 = vector.shape_cast %107 : vector<1x150x64xf32> to vector<150x64xf32>
    %109 = vector.broadcast %106 : vector<150x1xf32> to vector<150x64xf32>
    %110 = arith.mulf %109, %108 : vector<150x64xf32>
    %111 = arith.addf %105, %110 : vector<150x64xf32>
    %112 = vector.extract_strided_slice %14 {offsets = [0, 16], sizes = [150, 1], strides = [1, 1]} : vector<150x32xf32> to vector<150x1xf32>
    %c16 = arith.constant 16 : index
    %c0_42 = arith.constant 0 : index
    %c0_43 = arith.constant 0 : index
    %113 = vector.load %arg3[%c16, %c0_42, %c0_43] : memref<32x150x64xf32, #tpu.memory_space<vmem>>, vector<1x150x64xf32>
    %114 = vector.shape_cast %113 : vector<1x150x64xf32> to vector<150x64xf32>
    %115 = vector.broadcast %112 : vector<150x1xf32> to vector<150x64xf32>
    %116 = arith.mulf %115, %114 : vector<150x64xf32>
    %117 = arith.addf %111, %116 : vector<150x64xf32>
    %118 = vector.extract_strided_slice %14 {offsets = [0, 17], sizes = [150, 1], strides = [1, 1]} : vector<150x32xf32> to vector<150x1xf32>
    %c17 = arith.constant 17 : index
    %c0_44 = arith.constant 0 : index
    %c0_45 = arith.constant 0 : index
    %119 = vector.load %arg3[%c17, %c0_44, %c0_45] : memref<32x150x64xf32, #tpu.memory_space<vmem>>, vector<1x150x64xf32>
    %120 = vector.shape_cast %119 : vector<1x150x64xf32> to vector<150x64xf32>
    %121 = vector.broadcast %118 : vector<150x1xf32> to vector<150x64xf32>
    %122 = arith.mulf %121, %120 : vector<150x64xf32>
    %123 = arith.addf %117, %122 : vector<150x64xf32>
    %124 = vector.extract_strided_slice %14 {offsets = [0, 18], sizes = [150, 1], strides = [1, 1]} : vector<150x32xf32> to vector<150x1xf32>
    %c18 = arith.constant 18 : index
    %c0_46 = arith.constant 0 : index
    %c0_47 = arith.constant 0 : index
    %125 = vector.load %arg3[%c18, %c0_46, %c0_47] : memref<32x150x64xf32, #tpu.memory_space<vmem>>, vector<1x150x64xf32>
    %126 = vector.shape_cast %125 : vector<1x150x64xf32> to vector<150x64xf32>
    %127 = vector.broadcast %124 : vector<150x1xf32> to vector<150x64xf32>
    %128 = arith.mulf %127, %126 : vector<150x64xf32>
    %129 = arith.addf %123, %128 : vector<150x64xf32>
    %130 = vector.extract_strided_slice %14 {offsets = [0, 19], sizes = [150, 1], strides = [1, 1]} : vector<150x32xf32> to vector<150x1xf32>
    %c19 = arith.constant 19 : index
    %c0_48 = arith.constant 0 : index
    %c0_49 = arith.constant 0 : index
    %131 = vector.load %arg3[%c19, %c0_48, %c0_49] : memref<32x150x64xf32, #tpu.memory_space<vmem>>, vector<1x150x64xf32>
    %132 = vector.shape_cast %131 : vector<1x150x64xf32> to vector<150x64xf32>
    %133 = vector.broadcast %130 : vector<150x1xf32> to vector<150x64xf32>
    %134 = arith.mulf %133, %132 : vector<150x64xf32>
    %135 = arith.addf %129, %134 : vector<150x64xf32>
    %136 = vector.extract_strided_slice %14 {offsets = [0, 20], sizes = [150, 1], strides = [1, 1]} : vector<150x32xf32> to vector<150x1xf32>
    %c20 = arith.constant 20 : index
    %c0_50 = arith.constant 0 : index
    %c0_51 = arith.constant 0 : index
    %137 = vector.load %arg3[%c20, %c0_50, %c0_51] : memref<32x150x64xf32, #tpu.memory_space<vmem>>, vector<1x150x64xf32>
    %138 = vector.shape_cast %137 : vector<1x150x64xf32> to vector<150x64xf32>
    %139 = vector.broadcast %136 : vector<150x1xf32> to vector<150x64xf32>
    %140 = arith.mulf %139, %138 : vector<150x64xf32>
    %141 = arith.addf %135, %140 : vector<150x64xf32>
    %142 = vector.extract_strided_slice %14 {offsets = [0, 21], sizes = [150, 1], strides = [1, 1]} : vector<150x32xf32> to vector<150x1xf32>
    %c21 = arith.constant 21 : index
    %c0_52 = arith.constant 0 : index
    %c0_53 = arith.constant 0 : index
    %143 = vector.load %arg3[%c21, %c0_52, %c0_53] : memref<32x150x64xf32, #tpu.memory_space<vmem>>, vector<1x150x64xf32>
    %144 = vector.shape_cast %143 : vector<1x150x64xf32> to vector<150x64xf32>
    %145 = vector.broadcast %142 : vector<150x1xf32> to vector<150x64xf32>
    %146 = arith.mulf %145, %144 : vector<150x64xf32>
    %147 = arith.addf %141, %146 : vector<150x64xf32>
    %148 = vector.extract_strided_slice %14 {offsets = [0, 22], sizes = [150, 1], strides = [1, 1]} : vector<150x32xf32> to vector<150x1xf32>
    %c22 = arith.constant 22 : index
    %c0_54 = arith.constant 0 : index
    %c0_55 = arith.constant 0 : index
    %149 = vector.load %arg3[%c22, %c0_54, %c0_55] : memref<32x150x64xf32, #tpu.memory_space<vmem>>, vector<1x150x64xf32>
    %150 = vector.shape_cast %149 : vector<1x150x64xf32> to vector<150x64xf32>
    %151 = vector.broadcast %148 : vector<150x1xf32> to vector<150x64xf32>
    %152 = arith.mulf %151, %150 : vector<150x64xf32>
    %153 = arith.addf %147, %152 : vector<150x64xf32>
    %154 = vector.extract_strided_slice %14 {offsets = [0, 23], sizes = [150, 1], strides = [1, 1]} : vector<150x32xf32> to vector<150x1xf32>
    %c23 = arith.constant 23 : index
    %c0_56 = arith.constant 0 : index
    %c0_57 = arith.constant 0 : index
    %155 = vector.load %arg3[%c23, %c0_56, %c0_57] : memref<32x150x64xf32, #tpu.memory_space<vmem>>, vector<1x150x64xf32>
    %156 = vector.shape_cast %155 : vector<1x150x64xf32> to vector<150x64xf32>
    %157 = vector.broadcast %154 : vector<150x1xf32> to vector<150x64xf32>
    %158 = arith.mulf %157, %156 : vector<150x64xf32>
    %159 = arith.addf %153, %158 : vector<150x64xf32>
    %160 = vector.extract_strided_slice %14 {offsets = [0, 24], sizes = [150, 1], strides = [1, 1]} : vector<150x32xf32> to vector<150x1xf32>
    %c24 = arith.constant 24 : index
    %c0_58 = arith.constant 0 : index
    %c0_59 = arith.constant 0 : index
    %161 = vector.load %arg3[%c24, %c0_58, %c0_59] : memref<32x150x64xf32, #tpu.memory_space<vmem>>, vector<1x150x64xf32>
    %162 = vector.shape_cast %161 : vector<1x150x64xf32> to vector<150x64xf32>
    %163 = vector.broadcast %160 : vector<150x1xf32> to vector<150x64xf32>
    %164 = arith.mulf %163, %162 : vector<150x64xf32>
    %165 = arith.addf %159, %164 : vector<150x64xf32>
    %166 = vector.extract_strided_slice %14 {offsets = [0, 25], sizes = [150, 1], strides = [1, 1]} : vector<150x32xf32> to vector<150x1xf32>
    %c25 = arith.constant 25 : index
    %c0_60 = arith.constant 0 : index
    %c0_61 = arith.constant 0 : index
    %167 = vector.load %arg3[%c25, %c0_60, %c0_61] : memref<32x150x64xf32, #tpu.memory_space<vmem>>, vector<1x150x64xf32>
    %168 = vector.shape_cast %167 : vector<1x150x64xf32> to vector<150x64xf32>
    %169 = vector.broadcast %166 : vector<150x1xf32> to vector<150x64xf32>
    %170 = arith.mulf %169, %168 : vector<150x64xf32>
    %171 = arith.addf %165, %170 : vector<150x64xf32>
    %172 = vector.extract_strided_slice %14 {offsets = [0, 26], sizes = [150, 1], strides = [1, 1]} : vector<150x32xf32> to vector<150x1xf32>
    %c26 = arith.constant 26 : index
    %c0_62 = arith.constant 0 : index
    %c0_63 = arith.constant 0 : index
    %173 = vector.load %arg3[%c26, %c0_62, %c0_63] : memref<32x150x64xf32, #tpu.memory_space<vmem>>, vector<1x150x64xf32>
    %174 = vector.shape_cast %173 : vector<1x150x64xf32> to vector<150x64xf32>
    %175 = vector.broadcast %172 : vector<150x1xf32> to vector<150x64xf32>
    %176 = arith.mulf %175, %174 : vector<150x64xf32>
    %177 = arith.addf %171, %176 : vector<150x64xf32>
    %178 = vector.extract_strided_slice %14 {offsets = [0, 27], sizes = [150, 1], strides = [1, 1]} : vector<150x32xf32> to vector<150x1xf32>
    %c27 = arith.constant 27 : index
    %c0_64 = arith.constant 0 : index
    %c0_65 = arith.constant 0 : index
    %179 = vector.load %arg3[%c27, %c0_64, %c0_65] : memref<32x150x64xf32, #tpu.memory_space<vmem>>, vector<1x150x64xf32>
    %180 = vector.shape_cast %179 : vector<1x150x64xf32> to vector<150x64xf32>
    %181 = vector.broadcast %178 : vector<150x1xf32> to vector<150x64xf32>
    %182 = arith.mulf %181, %180 : vector<150x64xf32>
    %183 = arith.addf %177, %182 : vector<150x64xf32>
    %184 = vector.extract_strided_slice %14 {offsets = [0, 28], sizes = [150, 1], strides = [1, 1]} : vector<150x32xf32> to vector<150x1xf32>
    %c28 = arith.constant 28 : index
    %c0_66 = arith.constant 0 : index
    %c0_67 = arith.constant 0 : index
    %185 = vector.load %arg3[%c28, %c0_66, %c0_67] : memref<32x150x64xf32, #tpu.memory_space<vmem>>, vector<1x150x64xf32>
    %186 = vector.shape_cast %185 : vector<1x150x64xf32> to vector<150x64xf32>
    %187 = vector.broadcast %184 : vector<150x1xf32> to vector<150x64xf32>
    %188 = arith.mulf %187, %186 : vector<150x64xf32>
    %189 = arith.addf %183, %188 : vector<150x64xf32>
    %190 = vector.extract_strided_slice %14 {offsets = [0, 29], sizes = [150, 1], strides = [1, 1]} : vector<150x32xf32> to vector<150x1xf32>
    %c29 = arith.constant 29 : index
    %c0_68 = arith.constant 0 : index
    %c0_69 = arith.constant 0 : index
    %191 = vector.load %arg3[%c29, %c0_68, %c0_69] : memref<32x150x64xf32, #tpu.memory_space<vmem>>, vector<1x150x64xf32>
    %192 = vector.shape_cast %191 : vector<1x150x64xf32> to vector<150x64xf32>
    %193 = vector.broadcast %190 : vector<150x1xf32> to vector<150x64xf32>
    %194 = arith.mulf %193, %192 : vector<150x64xf32>
    %195 = arith.addf %189, %194 : vector<150x64xf32>
    %196 = vector.extract_strided_slice %14 {offsets = [0, 30], sizes = [150, 1], strides = [1, 1]} : vector<150x32xf32> to vector<150x1xf32>
    %c30 = arith.constant 30 : index
    %c0_70 = arith.constant 0 : index
    %c0_71 = arith.constant 0 : index
    %197 = vector.load %arg3[%c30, %c0_70, %c0_71] : memref<32x150x64xf32, #tpu.memory_space<vmem>>, vector<1x150x64xf32>
    %198 = vector.shape_cast %197 : vector<1x150x64xf32> to vector<150x64xf32>
    %199 = vector.broadcast %196 : vector<150x1xf32> to vector<150x64xf32>
    %200 = arith.mulf %199, %198 : vector<150x64xf32>
    %201 = arith.addf %195, %200 : vector<150x64xf32>
    %202 = vector.extract_strided_slice %14 {offsets = [0, 31], sizes = [150, 1], strides = [1, 1]} : vector<150x32xf32> to vector<150x1xf32>
    %c31 = arith.constant 31 : index
    %c0_72 = arith.constant 0 : index
    %c0_73 = arith.constant 0 : index
    %203 = vector.load %arg3[%c31, %c0_72, %c0_73] : memref<32x150x64xf32, #tpu.memory_space<vmem>>, vector<1x150x64xf32>
    %204 = vector.shape_cast %203 : vector<1x150x64xf32> to vector<150x64xf32>
    %205 = vector.broadcast %202 : vector<150x1xf32> to vector<150x64xf32>
    %206 = arith.mulf %205, %204 : vector<150x64xf32>
    %207 = arith.addf %201, %206 : vector<150x64xf32>
    %cst_74 = arith.constant dense<0.000000e+00> : vector<64xf32>
    %208 = vector.multi_reduction <add>, %207, %cst_74 [0] : vector<150x64xf32> to vector<64xf32>
    %209 = vector.shape_cast %208 : vector<64xf32> to vector<1x64xf32>
    %c0_75 = arith.constant 0 : index
    %c0_76 = arith.constant 0 : index
    %210 = vector.load %arg4[%c0_75, %c0_76] : memref<1x64xf32, #tpu.memory_space<vmem>>, vector<1x64xf32>
    %211 = arith.addf %209, %210 : vector<1x64xf32>
    %cst_77 = arith.constant 0.000000e+00 : f32
    %212 = vector.broadcast %cst_77 : f32 to vector<1x64xf32>
    %213 = arith.maximumf %211, %212 : vector<1x64xf32>
    %c0_78 = arith.constant 0 : index
    %c0_79 = arith.constant 0 : index
    %214 = vector.load %arg5[%c0_78, %c0_79] : memref<1x64xf32, #tpu.memory_space<vmem>>, vector<1x64xf32>
    %215 = arith.mulf %213, %214 : vector<1x64xf32>
    %cst_80 = arith.constant dense<0.000000e+00> : vector<1xf32>
    %216 = vector.multi_reduction <add>, %215, %cst_80 [1] : vector<1x64xf32> to vector<1xf32>
    %217 = vector.shape_cast %216 : vector<1xf32> to vector<1x1xf32>
    %c0_81 = arith.constant 0 : index
    %c0_82 = arith.constant 0 : index
    %218 = vector.load %arg6[%c0_81, %c0_82] : memref<1x1xf32, #tpu.memory_space<vmem>>, vector<1x1xf32>
    %219 = arith.addf %217, %218 : vector<1x1xf32>
    %220 = arith.negf %219 : vector<1x1xf32>
    %221 = math.exp %220 : vector<1x1xf32>
    %cst_83 = arith.constant 1.000000e+00 : f32
    %222 = vector.broadcast %cst_83 : f32 to vector<1x1xf32>
    %223 = arith.addf %222, %221 : vector<1x1xf32>
    %224 = arith.divf %222, %223 : vector<1x1xf32>
    %c1_84 = arith.constant 1 : index
    %c0_85 = arith.constant 0 : index
    %c0_86 = arith.constant 0 : index
    %225 = vector.load %arg0[%c1_84, %c0_85, %c0_86] : memref<2x150x4xf32, #tpu.memory_space<vmem>>, vector<1x150x4xf32>
    %226 = vector.shape_cast %225 : vector<1x150x4xf32> to vector<150x4xf32>
    %cst_87 = arith.constant 0.000000e+00 : f32
    %227 = vector.broadcast %cst_87 : f32 to vector<1x4xf32>
    %228 = tpu.concatenate %227, %226, %227 in 0 : vector<1x4xf32>, vector<150x4xf32>, vector<1x4xf32> -> vector<152x4xf32>
    %229 = vector.extract_strided_slice %228 {offsets = [0, 0], sizes = [150, 4], strides = [1, 1]} : vector<152x4xf32> to vector<150x4xf32>
    %230 = vector.extract_strided_slice %228 {offsets = [1, 0], sizes = [150, 4], strides = [1, 1]} : vector<152x4xf32> to vector<150x4xf32>
    %231 = vector.extract_strided_slice %228 {offsets = [2, 0], sizes = [150, 4], strides = [1, 1]} : vector<152x4xf32> to vector<150x4xf32>
    %232 = tpu.concatenate %229, %230, %231 in 1 : vector<150x4xf32>, vector<150x4xf32>, vector<150x4xf32> -> vector<150x12xf32>
    %c0_88 = arith.constant 0 : index
    %c0_89 = arith.constant 0 : index
    %233 = vector.load %arg1[%c0_88, %c0_89] : memref<12x32xf32, #tpu.memory_space<vmem>>, vector<12x32xf32>
    %cst_90 = arith.constant dense<0.000000e+00> : vector<150x32xf32>
    %234 = tpu.matmul %232, %233, %cst_90 {dimension_numbers = #tpu.dot_dimension_numbers<[1], [0], [0], [1], [0, 0, 1, 1], [], []>} : vector<150x12xf32>, vector<12x32xf32>, vector<150x32xf32> -> vector<150x32xf32>
    %c0_91 = arith.constant 0 : index
    %c0_92 = arith.constant 0 : index
    %235 = vector.load %arg2[%c0_91, %c0_92] : memref<1x32xf32, #tpu.memory_space<vmem>>, vector<1x32xf32>
    %236 = vector.broadcast %235 : vector<1x32xf32> to vector<150x32xf32>
    %237 = arith.addf %234, %236 : vector<150x32xf32>
    %cst_93 = arith.constant 0.000000e+00 : f32
    %238 = vector.broadcast %cst_93 : f32 to vector<150x32xf32>
    %239 = arith.maximumf %237, %238 : vector<150x32xf32>
    %cst_94 = arith.constant 0.000000e+00 : f32
    %240 = vector.broadcast %cst_94 : f32 to vector<150x64xf32>
    %241 = vector.extract_strided_slice %239 {offsets = [0, 0], sizes = [150, 1], strides = [1, 1]} : vector<150x32xf32> to vector<150x1xf32>
    %c0_95 = arith.constant 0 : index
    %c0_96 = arith.constant 0 : index
    %c0_97 = arith.constant 0 : index
    %242 = vector.load %arg3[%c0_95, %c0_96, %c0_97] : memref<32x150x64xf32, #tpu.memory_space<vmem>>, vector<1x150x64xf32>
    %243 = vector.shape_cast %242 : vector<1x150x64xf32> to vector<150x64xf32>
    %244 = vector.broadcast %241 : vector<150x1xf32> to vector<150x64xf32>
    %245 = arith.mulf %244, %243 : vector<150x64xf32>
    %246 = arith.addf %240, %245 : vector<150x64xf32>
    %247 = vector.extract_strided_slice %239 {offsets = [0, 1], sizes = [150, 1], strides = [1, 1]} : vector<150x32xf32> to vector<150x1xf32>
    %c1_98 = arith.constant 1 : index
    %c0_99 = arith.constant 0 : index
    %c0_100 = arith.constant 0 : index
    %248 = vector.load %arg3[%c1_98, %c0_99, %c0_100] : memref<32x150x64xf32, #tpu.memory_space<vmem>>, vector<1x150x64xf32>
    %249 = vector.shape_cast %248 : vector<1x150x64xf32> to vector<150x64xf32>
    %250 = vector.broadcast %247 : vector<150x1xf32> to vector<150x64xf32>
    %251 = arith.mulf %250, %249 : vector<150x64xf32>
    %252 = arith.addf %246, %251 : vector<150x64xf32>
    %253 = vector.extract_strided_slice %239 {offsets = [0, 2], sizes = [150, 1], strides = [1, 1]} : vector<150x32xf32> to vector<150x1xf32>
    %c2_101 = arith.constant 2 : index
    %c0_102 = arith.constant 0 : index
    %c0_103 = arith.constant 0 : index
    %254 = vector.load %arg3[%c2_101, %c0_102, %c0_103] : memref<32x150x64xf32, #tpu.memory_space<vmem>>, vector<1x150x64xf32>
    %255 = vector.shape_cast %254 : vector<1x150x64xf32> to vector<150x64xf32>
    %256 = vector.broadcast %253 : vector<150x1xf32> to vector<150x64xf32>
    %257 = arith.mulf %256, %255 : vector<150x64xf32>
    %258 = arith.addf %252, %257 : vector<150x64xf32>
    %259 = vector.extract_strided_slice %239 {offsets = [0, 3], sizes = [150, 1], strides = [1, 1]} : vector<150x32xf32> to vector<150x1xf32>
    %c3_104 = arith.constant 3 : index
    %c0_105 = arith.constant 0 : index
    %c0_106 = arith.constant 0 : index
    %260 = vector.load %arg3[%c3_104, %c0_105, %c0_106] : memref<32x150x64xf32, #tpu.memory_space<vmem>>, vector<1x150x64xf32>
    %261 = vector.shape_cast %260 : vector<1x150x64xf32> to vector<150x64xf32>
    %262 = vector.broadcast %259 : vector<150x1xf32> to vector<150x64xf32>
    %263 = arith.mulf %262, %261 : vector<150x64xf32>
    %264 = arith.addf %258, %263 : vector<150x64xf32>
    %265 = vector.extract_strided_slice %239 {offsets = [0, 4], sizes = [150, 1], strides = [1, 1]} : vector<150x32xf32> to vector<150x1xf32>
    %c4_107 = arith.constant 4 : index
    %c0_108 = arith.constant 0 : index
    %c0_109 = arith.constant 0 : index
    %266 = vector.load %arg3[%c4_107, %c0_108, %c0_109] : memref<32x150x64xf32, #tpu.memory_space<vmem>>, vector<1x150x64xf32>
    %267 = vector.shape_cast %266 : vector<1x150x64xf32> to vector<150x64xf32>
    %268 = vector.broadcast %265 : vector<150x1xf32> to vector<150x64xf32>
    %269 = arith.mulf %268, %267 : vector<150x64xf32>
    %270 = arith.addf %264, %269 : vector<150x64xf32>
    %271 = vector.extract_strided_slice %239 {offsets = [0, 5], sizes = [150, 1], strides = [1, 1]} : vector<150x32xf32> to vector<150x1xf32>
    %c5_110 = arith.constant 5 : index
    %c0_111 = arith.constant 0 : index
    %c0_112 = arith.constant 0 : index
    %272 = vector.load %arg3[%c5_110, %c0_111, %c0_112] : memref<32x150x64xf32, #tpu.memory_space<vmem>>, vector<1x150x64xf32>
    %273 = vector.shape_cast %272 : vector<1x150x64xf32> to vector<150x64xf32>
    %274 = vector.broadcast %271 : vector<150x1xf32> to vector<150x64xf32>
    %275 = arith.mulf %274, %273 : vector<150x64xf32>
    %276 = arith.addf %270, %275 : vector<150x64xf32>
    %277 = vector.extract_strided_slice %239 {offsets = [0, 6], sizes = [150, 1], strides = [1, 1]} : vector<150x32xf32> to vector<150x1xf32>
    %c6_113 = arith.constant 6 : index
    %c0_114 = arith.constant 0 : index
    %c0_115 = arith.constant 0 : index
    %278 = vector.load %arg3[%c6_113, %c0_114, %c0_115] : memref<32x150x64xf32, #tpu.memory_space<vmem>>, vector<1x150x64xf32>
    %279 = vector.shape_cast %278 : vector<1x150x64xf32> to vector<150x64xf32>
    %280 = vector.broadcast %277 : vector<150x1xf32> to vector<150x64xf32>
    %281 = arith.mulf %280, %279 : vector<150x64xf32>
    %282 = arith.addf %276, %281 : vector<150x64xf32>
    %283 = vector.extract_strided_slice %239 {offsets = [0, 7], sizes = [150, 1], strides = [1, 1]} : vector<150x32xf32> to vector<150x1xf32>
    %c7_116 = arith.constant 7 : index
    %c0_117 = arith.constant 0 : index
    %c0_118 = arith.constant 0 : index
    %284 = vector.load %arg3[%c7_116, %c0_117, %c0_118] : memref<32x150x64xf32, #tpu.memory_space<vmem>>, vector<1x150x64xf32>
    %285 = vector.shape_cast %284 : vector<1x150x64xf32> to vector<150x64xf32>
    %286 = vector.broadcast %283 : vector<150x1xf32> to vector<150x64xf32>
    %287 = arith.mulf %286, %285 : vector<150x64xf32>
    %288 = arith.addf %282, %287 : vector<150x64xf32>
    %289 = vector.extract_strided_slice %239 {offsets = [0, 8], sizes = [150, 1], strides = [1, 1]} : vector<150x32xf32> to vector<150x1xf32>
    %c8_119 = arith.constant 8 : index
    %c0_120 = arith.constant 0 : index
    %c0_121 = arith.constant 0 : index
    %290 = vector.load %arg3[%c8_119, %c0_120, %c0_121] : memref<32x150x64xf32, #tpu.memory_space<vmem>>, vector<1x150x64xf32>
    %291 = vector.shape_cast %290 : vector<1x150x64xf32> to vector<150x64xf32>
    %292 = vector.broadcast %289 : vector<150x1xf32> to vector<150x64xf32>
    %293 = arith.mulf %292, %291 : vector<150x64xf32>
    %294 = arith.addf %288, %293 : vector<150x64xf32>
    %295 = vector.extract_strided_slice %239 {offsets = [0, 9], sizes = [150, 1], strides = [1, 1]} : vector<150x32xf32> to vector<150x1xf32>
    %c9_122 = arith.constant 9 : index
    %c0_123 = arith.constant 0 : index
    %c0_124 = arith.constant 0 : index
    %296 = vector.load %arg3[%c9_122, %c0_123, %c0_124] : memref<32x150x64xf32, #tpu.memory_space<vmem>>, vector<1x150x64xf32>
    %297 = vector.shape_cast %296 : vector<1x150x64xf32> to vector<150x64xf32>
    %298 = vector.broadcast %295 : vector<150x1xf32> to vector<150x64xf32>
    %299 = arith.mulf %298, %297 : vector<150x64xf32>
    %300 = arith.addf %294, %299 : vector<150x64xf32>
    %301 = vector.extract_strided_slice %239 {offsets = [0, 10], sizes = [150, 1], strides = [1, 1]} : vector<150x32xf32> to vector<150x1xf32>
    %c10_125 = arith.constant 10 : index
    %c0_126 = arith.constant 0 : index
    %c0_127 = arith.constant 0 : index
    %302 = vector.load %arg3[%c10_125, %c0_126, %c0_127] : memref<32x150x64xf32, #tpu.memory_space<vmem>>, vector<1x150x64xf32>
    %303 = vector.shape_cast %302 : vector<1x150x64xf32> to vector<150x64xf32>
    %304 = vector.broadcast %301 : vector<150x1xf32> to vector<150x64xf32>
    %305 = arith.mulf %304, %303 : vector<150x64xf32>
    %306 = arith.addf %300, %305 : vector<150x64xf32>
    %307 = vector.extract_strided_slice %239 {offsets = [0, 11], sizes = [150, 1], strides = [1, 1]} : vector<150x32xf32> to vector<150x1xf32>
    %c11_128 = arith.constant 11 : index
    %c0_129 = arith.constant 0 : index
    %c0_130 = arith.constant 0 : index
    %308 = vector.load %arg3[%c11_128, %c0_129, %c0_130] : memref<32x150x64xf32, #tpu.memory_space<vmem>>, vector<1x150x64xf32>
    %309 = vector.shape_cast %308 : vector<1x150x64xf32> to vector<150x64xf32>
    %310 = vector.broadcast %307 : vector<150x1xf32> to vector<150x64xf32>
    %311 = arith.mulf %310, %309 : vector<150x64xf32>
    %312 = arith.addf %306, %311 : vector<150x64xf32>
    %313 = vector.extract_strided_slice %239 {offsets = [0, 12], sizes = [150, 1], strides = [1, 1]} : vector<150x32xf32> to vector<150x1xf32>
    %c12_131 = arith.constant 12 : index
    %c0_132 = arith.constant 0 : index
    %c0_133 = arith.constant 0 : index
    %314 = vector.load %arg3[%c12_131, %c0_132, %c0_133] : memref<32x150x64xf32, #tpu.memory_space<vmem>>, vector<1x150x64xf32>
    %315 = vector.shape_cast %314 : vector<1x150x64xf32> to vector<150x64xf32>
    %316 = vector.broadcast %313 : vector<150x1xf32> to vector<150x64xf32>
    %317 = arith.mulf %316, %315 : vector<150x64xf32>
    %318 = arith.addf %312, %317 : vector<150x64xf32>
    %319 = vector.extract_strided_slice %239 {offsets = [0, 13], sizes = [150, 1], strides = [1, 1]} : vector<150x32xf32> to vector<150x1xf32>
    %c13_134 = arith.constant 13 : index
    %c0_135 = arith.constant 0 : index
    %c0_136 = arith.constant 0 : index
    %320 = vector.load %arg3[%c13_134, %c0_135, %c0_136] : memref<32x150x64xf32, #tpu.memory_space<vmem>>, vector<1x150x64xf32>
    %321 = vector.shape_cast %320 : vector<1x150x64xf32> to vector<150x64xf32>
    %322 = vector.broadcast %319 : vector<150x1xf32> to vector<150x64xf32>
    %323 = arith.mulf %322, %321 : vector<150x64xf32>
    %324 = arith.addf %318, %323 : vector<150x64xf32>
    %325 = vector.extract_strided_slice %239 {offsets = [0, 14], sizes = [150, 1], strides = [1, 1]} : vector<150x32xf32> to vector<150x1xf32>
    %c14_137 = arith.constant 14 : index
    %c0_138 = arith.constant 0 : index
    %c0_139 = arith.constant 0 : index
    %326 = vector.load %arg3[%c14_137, %c0_138, %c0_139] : memref<32x150x64xf32, #tpu.memory_space<vmem>>, vector<1x150x64xf32>
    %327 = vector.shape_cast %326 : vector<1x150x64xf32> to vector<150x64xf32>
    %328 = vector.broadcast %325 : vector<150x1xf32> to vector<150x64xf32>
    %329 = arith.mulf %328, %327 : vector<150x64xf32>
    %330 = arith.addf %324, %329 : vector<150x64xf32>
    %331 = vector.extract_strided_slice %239 {offsets = [0, 15], sizes = [150, 1], strides = [1, 1]} : vector<150x32xf32> to vector<150x1xf32>
    %c15_140 = arith.constant 15 : index
    %c0_141 = arith.constant 0 : index
    %c0_142 = arith.constant 0 : index
    %332 = vector.load %arg3[%c15_140, %c0_141, %c0_142] : memref<32x150x64xf32, #tpu.memory_space<vmem>>, vector<1x150x64xf32>
    %333 = vector.shape_cast %332 : vector<1x150x64xf32> to vector<150x64xf32>
    %334 = vector.broadcast %331 : vector<150x1xf32> to vector<150x64xf32>
    %335 = arith.mulf %334, %333 : vector<150x64xf32>
    %336 = arith.addf %330, %335 : vector<150x64xf32>
    %337 = vector.extract_strided_slice %239 {offsets = [0, 16], sizes = [150, 1], strides = [1, 1]} : vector<150x32xf32> to vector<150x1xf32>
    %c16_143 = arith.constant 16 : index
    %c0_144 = arith.constant 0 : index
    %c0_145 = arith.constant 0 : index
    %338 = vector.load %arg3[%c16_143, %c0_144, %c0_145] : memref<32x150x64xf32, #tpu.memory_space<vmem>>, vector<1x150x64xf32>
    %339 = vector.shape_cast %338 : vector<1x150x64xf32> to vector<150x64xf32>
    %340 = vector.broadcast %337 : vector<150x1xf32> to vector<150x64xf32>
    %341 = arith.mulf %340, %339 : vector<150x64xf32>
    %342 = arith.addf %336, %341 : vector<150x64xf32>
    %343 = vector.extract_strided_slice %239 {offsets = [0, 17], sizes = [150, 1], strides = [1, 1]} : vector<150x32xf32> to vector<150x1xf32>
    %c17_146 = arith.constant 17 : index
    %c0_147 = arith.constant 0 : index
    %c0_148 = arith.constant 0 : index
    %344 = vector.load %arg3[%c17_146, %c0_147, %c0_148] : memref<32x150x64xf32, #tpu.memory_space<vmem>>, vector<1x150x64xf32>
    %345 = vector.shape_cast %344 : vector<1x150x64xf32> to vector<150x64xf32>
    %346 = vector.broadcast %343 : vector<150x1xf32> to vector<150x64xf32>
    %347 = arith.mulf %346, %345 : vector<150x64xf32>
    %348 = arith.addf %342, %347 : vector<150x64xf32>
    %349 = vector.extract_strided_slice %239 {offsets = [0, 18], sizes = [150, 1], strides = [1, 1]} : vector<150x32xf32> to vector<150x1xf32>
    %c18_149 = arith.constant 18 : index
    %c0_150 = arith.constant 0 : index
    %c0_151 = arith.constant 0 : index
    %350 = vector.load %arg3[%c18_149, %c0_150, %c0_151] : memref<32x150x64xf32, #tpu.memory_space<vmem>>, vector<1x150x64xf32>
    %351 = vector.shape_cast %350 : vector<1x150x64xf32> to vector<150x64xf32>
    %352 = vector.broadcast %349 : vector<150x1xf32> to vector<150x64xf32>
    %353 = arith.mulf %352, %351 : vector<150x64xf32>
    %354 = arith.addf %348, %353 : vector<150x64xf32>
    %355 = vector.extract_strided_slice %239 {offsets = [0, 19], sizes = [150, 1], strides = [1, 1]} : vector<150x32xf32> to vector<150x1xf32>
    %c19_152 = arith.constant 19 : index
    %c0_153 = arith.constant 0 : index
    %c0_154 = arith.constant 0 : index
    %356 = vector.load %arg3[%c19_152, %c0_153, %c0_154] : memref<32x150x64xf32, #tpu.memory_space<vmem>>, vector<1x150x64xf32>
    %357 = vector.shape_cast %356 : vector<1x150x64xf32> to vector<150x64xf32>
    %358 = vector.broadcast %355 : vector<150x1xf32> to vector<150x64xf32>
    %359 = arith.mulf %358, %357 : vector<150x64xf32>
    %360 = arith.addf %354, %359 : vector<150x64xf32>
    %361 = vector.extract_strided_slice %239 {offsets = [0, 20], sizes = [150, 1], strides = [1, 1]} : vector<150x32xf32> to vector<150x1xf32>
    %c20_155 = arith.constant 20 : index
    %c0_156 = arith.constant 0 : index
    %c0_157 = arith.constant 0 : index
    %362 = vector.load %arg3[%c20_155, %c0_156, %c0_157] : memref<32x150x64xf32, #tpu.memory_space<vmem>>, vector<1x150x64xf32>
    %363 = vector.shape_cast %362 : vector<1x150x64xf32> to vector<150x64xf32>
    %364 = vector.broadcast %361 : vector<150x1xf32> to vector<150x64xf32>
    %365 = arith.mulf %364, %363 : vector<150x64xf32>
    %366 = arith.addf %360, %365 : vector<150x64xf32>
    %367 = vector.extract_strided_slice %239 {offsets = [0, 21], sizes = [150, 1], strides = [1, 1]} : vector<150x32xf32> to vector<150x1xf32>
    %c21_158 = arith.constant 21 : index
    %c0_159 = arith.constant 0 : index
    %c0_160 = arith.constant 0 : index
    %368 = vector.load %arg3[%c21_158, %c0_159, %c0_160] : memref<32x150x64xf32, #tpu.memory_space<vmem>>, vector<1x150x64xf32>
    %369 = vector.shape_cast %368 : vector<1x150x64xf32> to vector<150x64xf32>
    %370 = vector.broadcast %367 : vector<150x1xf32> to vector<150x64xf32>
    %371 = arith.mulf %370, %369 : vector<150x64xf32>
    %372 = arith.addf %366, %371 : vector<150x64xf32>
    %373 = vector.extract_strided_slice %239 {offsets = [0, 22], sizes = [150, 1], strides = [1, 1]} : vector<150x32xf32> to vector<150x1xf32>
    %c22_161 = arith.constant 22 : index
    %c0_162 = arith.constant 0 : index
    %c0_163 = arith.constant 0 : index
    %374 = vector.load %arg3[%c22_161, %c0_162, %c0_163] : memref<32x150x64xf32, #tpu.memory_space<vmem>>, vector<1x150x64xf32>
    %375 = vector.shape_cast %374 : vector<1x150x64xf32> to vector<150x64xf32>
    %376 = vector.broadcast %373 : vector<150x1xf32> to vector<150x64xf32>
    %377 = arith.mulf %376, %375 : vector<150x64xf32>
    %378 = arith.addf %372, %377 : vector<150x64xf32>
    %379 = vector.extract_strided_slice %239 {offsets = [0, 23], sizes = [150, 1], strides = [1, 1]} : vector<150x32xf32> to vector<150x1xf32>
    %c23_164 = arith.constant 23 : index
    %c0_165 = arith.constant 0 : index
    %c0_166 = arith.constant 0 : index
    %380 = vector.load %arg3[%c23_164, %c0_165, %c0_166] : memref<32x150x64xf32, #tpu.memory_space<vmem>>, vector<1x150x64xf32>
    %381 = vector.shape_cast %380 : vector<1x150x64xf32> to vector<150x64xf32>
    %382 = vector.broadcast %379 : vector<150x1xf32> to vector<150x64xf32>
    %383 = arith.mulf %382, %381 : vector<150x64xf32>
    %384 = arith.addf %378, %383 : vector<150x64xf32>
    %385 = vector.extract_strided_slice %239 {offsets = [0, 24], sizes = [150, 1], strides = [1, 1]} : vector<150x32xf32> to vector<150x1xf32>
    %c24_167 = arith.constant 24 : index
    %c0_168 = arith.constant 0 : index
    %c0_169 = arith.constant 0 : index
    %386 = vector.load %arg3[%c24_167, %c0_168, %c0_169] : memref<32x150x64xf32, #tpu.memory_space<vmem>>, vector<1x150x64xf32>
    %387 = vector.shape_cast %386 : vector<1x150x64xf32> to vector<150x64xf32>
    %388 = vector.broadcast %385 : vector<150x1xf32> to vector<150x64xf32>
    %389 = arith.mulf %388, %387 : vector<150x64xf32>
    %390 = arith.addf %384, %389 : vector<150x64xf32>
    %391 = vector.extract_strided_slice %239 {offsets = [0, 25], sizes = [150, 1], strides = [1, 1]} : vector<150x32xf32> to vector<150x1xf32>
    %c25_170 = arith.constant 25 : index
    %c0_171 = arith.constant 0 : index
    %c0_172 = arith.constant 0 : index
    %392 = vector.load %arg3[%c25_170, %c0_171, %c0_172] : memref<32x150x64xf32, #tpu.memory_space<vmem>>, vector<1x150x64xf32>
    %393 = vector.shape_cast %392 : vector<1x150x64xf32> to vector<150x64xf32>
    %394 = vector.broadcast %391 : vector<150x1xf32> to vector<150x64xf32>
    %395 = arith.mulf %394, %393 : vector<150x64xf32>
    %396 = arith.addf %390, %395 : vector<150x64xf32>
    %397 = vector.extract_strided_slice %239 {offsets = [0, 26], sizes = [150, 1], strides = [1, 1]} : vector<150x32xf32> to vector<150x1xf32>
    %c26_173 = arith.constant 26 : index
    %c0_174 = arith.constant 0 : index
    %c0_175 = arith.constant 0 : index
    %398 = vector.load %arg3[%c26_173, %c0_174, %c0_175] : memref<32x150x64xf32, #tpu.memory_space<vmem>>, vector<1x150x64xf32>
    %399 = vector.shape_cast %398 : vector<1x150x64xf32> to vector<150x64xf32>
    %400 = vector.broadcast %397 : vector<150x1xf32> to vector<150x64xf32>
    %401 = arith.mulf %400, %399 : vector<150x64xf32>
    %402 = arith.addf %396, %401 : vector<150x64xf32>
    %403 = vector.extract_strided_slice %239 {offsets = [0, 27], sizes = [150, 1], strides = [1, 1]} : vector<150x32xf32> to vector<150x1xf32>
    %c27_176 = arith.constant 27 : index
    %c0_177 = arith.constant 0 : index
    %c0_178 = arith.constant 0 : index
    %404 = vector.load %arg3[%c27_176, %c0_177, %c0_178] : memref<32x150x64xf32, #tpu.memory_space<vmem>>, vector<1x150x64xf32>
    %405 = vector.shape_cast %404 : vector<1x150x64xf32> to vector<150x64xf32>
    %406 = vector.broadcast %403 : vector<150x1xf32> to vector<150x64xf32>
    %407 = arith.mulf %406, %405 : vector<150x64xf32>
    %408 = arith.addf %402, %407 : vector<150x64xf32>
    %409 = vector.extract_strided_slice %239 {offsets = [0, 28], sizes = [150, 1], strides = [1, 1]} : vector<150x32xf32> to vector<150x1xf32>
    %c28_179 = arith.constant 28 : index
    %c0_180 = arith.constant 0 : index
    %c0_181 = arith.constant 0 : index
    %410 = vector.load %arg3[%c28_179, %c0_180, %c0_181] : memref<32x150x64xf32, #tpu.memory_space<vmem>>, vector<1x150x64xf32>
    %411 = vector.shape_cast %410 : vector<1x150x64xf32> to vector<150x64xf32>
    %412 = vector.broadcast %409 : vector<150x1xf32> to vector<150x64xf32>
    %413 = arith.mulf %412, %411 : vector<150x64xf32>
    %414 = arith.addf %408, %413 : vector<150x64xf32>
    %415 = vector.extract_strided_slice %239 {offsets = [0, 29], sizes = [150, 1], strides = [1, 1]} : vector<150x32xf32> to vector<150x1xf32>
    %c29_182 = arith.constant 29 : index
    %c0_183 = arith.constant 0 : index
    %c0_184 = arith.constant 0 : index
    %416 = vector.load %arg3[%c29_182, %c0_183, %c0_184] : memref<32x150x64xf32, #tpu.memory_space<vmem>>, vector<1x150x64xf32>
    %417 = vector.shape_cast %416 : vector<1x150x64xf32> to vector<150x64xf32>
    %418 = vector.broadcast %415 : vector<150x1xf32> to vector<150x64xf32>
    %419 = arith.mulf %418, %417 : vector<150x64xf32>
    %420 = arith.addf %414, %419 : vector<150x64xf32>
    %421 = vector.extract_strided_slice %239 {offsets = [0, 30], sizes = [150, 1], strides = [1, 1]} : vector<150x32xf32> to vector<150x1xf32>
    %c30_185 = arith.constant 30 : index
    %c0_186 = arith.constant 0 : index
    %c0_187 = arith.constant 0 : index
    %422 = vector.load %arg3[%c30_185, %c0_186, %c0_187] : memref<32x150x64xf32, #tpu.memory_space<vmem>>, vector<1x150x64xf32>
    %423 = vector.shape_cast %422 : vector<1x150x64xf32> to vector<150x64xf32>
    %424 = vector.broadcast %421 : vector<150x1xf32> to vector<150x64xf32>
    %425 = arith.mulf %424, %423 : vector<150x64xf32>
    %426 = arith.addf %420, %425 : vector<150x64xf32>
    %427 = vector.extract_strided_slice %239 {offsets = [0, 31], sizes = [150, 1], strides = [1, 1]} : vector<150x32xf32> to vector<150x1xf32>
    %c31_188 = arith.constant 31 : index
    %c0_189 = arith.constant 0 : index
    %c0_190 = arith.constant 0 : index
    %428 = vector.load %arg3[%c31_188, %c0_189, %c0_190] : memref<32x150x64xf32, #tpu.memory_space<vmem>>, vector<1x150x64xf32>
    %429 = vector.shape_cast %428 : vector<1x150x64xf32> to vector<150x64xf32>
    %430 = vector.broadcast %427 : vector<150x1xf32> to vector<150x64xf32>
    %431 = arith.mulf %430, %429 : vector<150x64xf32>
    %432 = arith.addf %426, %431 : vector<150x64xf32>
    %cst_191 = arith.constant dense<0.000000e+00> : vector<64xf32>
    %433 = vector.multi_reduction <add>, %432, %cst_191 [0] : vector<150x64xf32> to vector<64xf32>
    %434 = vector.shape_cast %433 : vector<64xf32> to vector<1x64xf32>
    %c0_192 = arith.constant 0 : index
    %c0_193 = arith.constant 0 : index
    %435 = vector.load %arg4[%c0_192, %c0_193] : memref<1x64xf32, #tpu.memory_space<vmem>>, vector<1x64xf32>
    %436 = arith.addf %434, %435 : vector<1x64xf32>
    %cst_194 = arith.constant 0.000000e+00 : f32
    %437 = vector.broadcast %cst_194 : f32 to vector<1x64xf32>
    %438 = arith.maximumf %436, %437 : vector<1x64xf32>
    %c0_195 = arith.constant 0 : index
    %c0_196 = arith.constant 0 : index
    %439 = vector.load %arg5[%c0_195, %c0_196] : memref<1x64xf32, #tpu.memory_space<vmem>>, vector<1x64xf32>
    %440 = arith.mulf %438, %439 : vector<1x64xf32>
    %cst_197 = arith.constant dense<0.000000e+00> : vector<1xf32>
    %441 = vector.multi_reduction <add>, %440, %cst_197 [1] : vector<1x64xf32> to vector<1xf32>
    %442 = vector.shape_cast %441 : vector<1xf32> to vector<1x1xf32>
    %c0_198 = arith.constant 0 : index
    %c0_199 = arith.constant 0 : index
    %443 = vector.load %arg6[%c0_198, %c0_199] : memref<1x1xf32, #tpu.memory_space<vmem>>, vector<1x1xf32>
    %444 = arith.addf %442, %443 : vector<1x1xf32>
    %445 = arith.negf %444 : vector<1x1xf32>
    %446 = math.exp %445 : vector<1x1xf32>
    %cst_200 = arith.constant 1.000000e+00 : f32
    %447 = vector.broadcast %cst_200 : f32 to vector<1x1xf32>
    %448 = arith.addf %447, %446 : vector<1x1xf32>
    %449 = arith.divf %447, %448 : vector<1x1xf32>
    %450 = tpu.concatenate %224, %449 in 0 : vector<1x1xf32>, vector<1x1xf32> -> vector<2x1xf32>
    %c0_201 = arith.constant 0 : index
    %c0_202 = arith.constant 0 : index
    %451 = vector.load %arg7[%c0_201, %c0_202] : memref<2x1xf32, #tpu.memory_space<vmem>>, vector<2x1xf32>
    tpu.vector_store %arg7[%c0_201, %c0_202], %450 {strides = array<i32>} : memref<2x1xf32, #tpu.memory_space<vmem>>, vector<2x1xf32>,
    return
  }
}

</mosaic_0001>

<llo_original>
// kernel: discriminator_forward.1
$region0: #{discriminator_forward.1}
  #allocation0 [shape = 'u32[]', space=smem, size = 0x4, offset = 0x4, fixed_abs, tag = 'smem constant byte address 0x4 - core index']
  #allocation1 [shape = 'u32[144,128]{1,0:T(1,128)}', space=vmem, size = 0x12000, scoped, tag = 'internal scratch']
  #allocation2 [shape = 'f32[1,1]{1,0:T(1,128)S(1)}', space=vmem, size = 0x200, scoped, tag = 'scoped memory for discriminator_forward.1']
  %s0 = inlined_call_operand.vmem [shape: f32[2,150,4], index: 0, kind: input, shape index: {}]
  %s1 = inlined_call_operand.vmem [shape: f32[12,32], index: 1, kind: input, shape index: {}]
  %s2 = inlined_call_operand.vmem [shape: f32[1,32], index: 2, kind: input, shape index: {}]
  %s3 = inlined_call_operand.vmem [shape: f32[32,150,64], index: 3, kind: input, shape index: {}]
  %s4 = inlined_call_operand.vmem [shape: f32[1,64], index: 4, kind: input, shape index: {}]
  %s5 = inlined_call_operand.vmem [shape: f32[1,64], index: 5, kind: input, shape index: {}]
  %s6 = inlined_call_operand.<no memory space> [shape: f32[1,1], index: 6, kind: input, shape index: {}]
  %s7 = inlined_call_operand.vmem [shape: f32[2,1], index: 7, kind: output, shape index: {}]
  %s8 = sld [smem:[#allocation0]]
  $region38: #{discriminator_forward.1} parent=0
    _
  %s10 = ssub.s32 1, %s8
  %s11 = scalar_select 0, %s10, %s8
  %v12 = vstv %s6
  %13 = vst [vmem:[#allocation2] sm:$0x1] %v12
  // Predicated region
  $region2: #{discriminator_forward.1} parent=0 // pred_check
    _
  $region3: #{discriminator_forward.1} parent=0 // pred_check_branch
    %15 = sbr.rel (0) target = $region5
  $region4: #{discriminator_forward.1} parent=0 // pred_region
    _
  $region5: #{discriminator_forward.1} parent=0 // pred_fallthru
    _
  // Predicated region
  $region6: #{discriminator_forward.1} parent=0 // pred_check
    _
  $region7: #{discriminator_forward.1} parent=0 // pred_check_branch
    %17 = sbr.rel (0) target = $region9
  $region8: #{discriminator_forward.1} parent=0 // pred_region
    _
  $region9: #{discriminator_forward.1} parent=0 // pred_fallthru
    _
  // Predicated region
  $region10: #{discriminator_forward.1} parent=0 // pred_check
    _
  $region11: #{discriminator_forward.1} parent=0 // pred_check_branch
    %19 = sbr.rel (0) target = $region13
  $region12: #{discriminator_forward.1} parent=0 // pred_region
    _
  $region13: #{discriminator_forward.1} parent=0 // pred_fallthru
    _
  // Predicated region
  $region14: #{discriminator_forward.1} parent=0 // pred_check
    _
  $region15: #{discriminator_forward.1} parent=0 // pred_check_branch
    %21 = sbr.rel (0) target = $region17
  $region16: #{discriminator_forward.1} parent=0 // pred_region
    _
  $region17: #{discriminator_forward.1} parent=0 // pred_fallthru
    _
  // Predicated region
  $region18: #{discriminator_forward.1} parent=0 // pred_check
    _
  $region19: #{discriminator_forward.1} parent=0 // pred_check_branch
    %23 = sbr.rel (0) target = $region21
  $region20: #{discriminator_forward.1} parent=0 // pred_region
    _
  $region21: #{discriminator_forward.1} parent=0 // pred_fallthru
    _
  // Predicated region
  $region22: #{discriminator_forward.1} parent=0 // pred_check
    _
  $region23: #{discriminator_forward.1} parent=0 // pred_check_branch
    %25 = sbr.rel (0) target = $region25
  $region24: #{discriminator_forward.1} parent=0 // pred_region
    _
  $region25: #{discriminator_forward.1} parent=0 // pred_fallthru
    _
  // Predicated region
  $region26: #{discriminator_forward.1} parent=0 // pred_check
    _
  $region27: #{discriminator_forward.1} parent=0 // pred_check_branch
    %27 = sbr.rel (0) target = $region29
  $region28: #{discriminator_forward.1} parent=0 // pred_region
    _
  $region29: #{discriminator_forward.1} parent=0 // pred_fallthru
    _
  %v28 = vld [vmem:[%s0] sm:$0xff]
  %v29 = vld [vmem:[%s0 + $0x8] sm:$0xff]
  %v30 = vld [vmem:[%s0 + $0x10] sm:$0xff]
  %v31 = vld [vmem:[%s0 + $0x18] sm:$0xff]
  %v32 = vld [vmem:[%s0 + $0x20] sm:$0xff]
  %v33 = vld [vmem:[%s0 + $0x28] sm:$0xff]
  %v34 = vld [vmem:[%s0 + $0x30] sm:$0xff]
  %v35 = vld [vmem:[%s0 + $0x38] sm:$0xff]
  %v36 = vld [vmem:[%s0 + $0x40] sm:$0xff]
  %v37 = vld [vmem:[%s0 + $0x48] sm:$0xff]
  %v38 = vld [vmem:[%s0 + $0x50] sm:$0xff]
  %v39 = vld [vmem:[%s0 + $0x58] sm:$0xff]
  %v40 = vld [vmem:[%s0 + $0x60] sm:$0xff]
  %v41 = vld [vmem:[%s0 + $0x68] sm:$0xff]
  %v42 = vld [vmem:[%s0 + $0x70] sm:$0xff]
  %v43 = vld [vmem:[%s0 + $0x78] sm:$0xff]
  %v44 = vld [vmem:[%s0 + $0x80] sm:$0xff]
  %v45 = vld [vmem:[%s0 + $0x88] sm:$0xff]
  %v46 = vld [vmem:[%s0 + $0x90] sm:$0x3f]
  %vm66 = vcmask 1040384
  %v67 = vrot.slane %v28, 7
  %v68 = vrot.slane %v29, 7
  %v69 = vsel %vm66, %v67, %v68
  %v70 = vrot.slane %v30, 7
  %v71 = vsel %vm66, %v68, %v70
  %v72 = vrot.slane %v31, 7
  %v73 = vsel %vm66, %v70, %v72
  %v74 = vrot.slane %v32, 7
  %v75 = vsel %vm66, %v72, %v74
  %v76 = vrot.slane %v33, 7
  %v77 = vsel %vm66, %v74, %v76
  %v78 = vrot.slane %v34, 7
  %v79 = vsel %vm66, %v76, %v78
  %v80 = vrot.slane %v35, 7
  %v81 = vsel %vm66, %v78, %v80
  %v82 = vrot.slane %v36, 7
  %v83 = vsel %vm66, %v80, %v82
  %v84 = vrot.slane %v37, 7
  %v85 = vsel %vm66, %v82, %v84
  %v86 = vrot.slane %v38, 7
  %v87 = vsel %vm66, %v84, %v86
  %v88 = vrot.slane %v39, 7
  %v89 = vsel %vm66, %v86, %v88
  %v90 = vrot.slane %v40, 7
  %v91 = vsel %vm66, %v88, %v90
  %v92 = vrot.slane %v41, 7
  %v93 = vsel %vm66, %v90, %v92
  %v94 = vrot.slane %v42, 7
  %v95 = vsel %vm66, %v92, %v94
  %v96 = vrot.slane %v43, 7
  %v97 = vsel %vm66, %v94, %v96
  %v98 = vrot.slane %v44, 7
  %v99 = vsel %vm66, %v96, %v98
  %v100 = vrot.slane %v45, 7
  %v101 = vsel %vm66, %v98, %v100
  %v102 = vrot.slane %v46, 7
  %v103 = vsel %vm66, %v100, %v102
  %v123 = vsel %vm66, 0.0, %v67
  %vm124 = vcmask 1046528
  %v125 = vsel %vm124, %v103, 0.0
  %v128 = vrot.slane %v123, 1
  %v129 = vrot.slane %v69, 1
  %v130 = vsel %vm124, %v128, %v129
  %v131 = vrot.slane %v71, 1
  %v132 = vsel %vm124, %v129, %v131
  %v133 = vrot.slane %v73, 1
  %v134 = vsel %vm124, %v131, %v133
  %v135 = vrot.slane %v75, 1
  %v136 = vsel %vm124, %v133, %v135
  %v137 = vrot.slane %v77, 1
  %v138 = vsel %vm124, %v135, %v137
  %v139 = vrot.slane %v79, 1
  %v140 = vsel %vm124, %v137, %v139
  %v141 = vrot.slane %v81, 1
  %v142 = vsel %vm124, %v139, %v141
  %v143 = vrot.slane %v83, 1
  %v144 = vsel %vm124, %v141, %v143
  %v145 = vrot.slane %v85, 1
  %v146 = vsel %vm124, %v143, %v145
  %v147 = vrot.slane %v87, 1
  %v148 = vsel %vm124, %v145, %v147
  %v149 = vrot.slane %v89, 1
  %v150 = vsel %vm124, %v147, %v149
  %v151 = vrot.slane %v91, 1
  %v152 = vsel %vm124, %v149, %v151
  %v153 = vrot.slane %v93, 1
  %v154 = vsel %vm124, %v151, %v153
  %v155 = vrot.slane %v95, 1
  %v156 = vsel %vm124, %v153, %v155
  %v157 = vrot.slane %v97, 1
  %v158 = vsel %vm124, %v155, %v157
  %v159 = vrot.slane %v99, 1
  %v160 = vsel %vm124, %v157, %v159
  %v161 = vrot.slane %v101, 1
  %v162 = vsel %vm124, %v159, %v161
  %v163 = vrot.slane %v125, 1
  %v164 = vsel %vm124, %v161, %v163
  %165 = vrot.lane.b32.xlu0 %v130, 4
  %v166 = vpop.permute.xlu0 %165
  %167 = vrot.lane.b32.xlu0 %v132, 4
  %v168 = vpop.permute.xlu0 %167
  %169 = vrot.lane.b32.xlu0 %v134, 4
  %v170 = vpop.permute.xlu0 %169
  %171 = vrot.lane.b32.xlu0 %v136, 4
  %v172 = vpop.permute.xlu0 %171
  %173 = vrot.lane.b32.xlu0 %v138, 4
  %v174 = vpop.permute.xlu0 %173
  %175 = vrot.lane.b32.xlu0 %v140, 4
  %v176 = vpop.permute.xlu0 %175
  %177 = vrot.lane.b32.xlu0 %v142, 4
  %v178 = vpop.permute.xlu0 %177
  %179 = vrot.lane.b32.xlu0 %v144, 4
  %v180 = vpop.permute.xlu0 %179
  %181 = vrot.lane.b32.xlu0 %v146, 4
  %v182 = vpop.permute.xlu0 %181
  %183 = vrot.lane.b32.xlu0 %v148, 4
  %v184 = vpop.permute.xlu0 %183
  %185 = vrot.lane.b32.xlu0 %v150, 4
  %v186 = vpop.permute.xlu0 %185
  %187 = vrot.lane.b32.xlu0 %v152, 4
  %v188 = vpop.permute.xlu0 %187
  %189 = vrot.lane.b32.xlu0 %v154, 4
  %v190 = vpop.permute.xlu0 %189
  %191 = vrot.lane.b32.xlu0 %v156, 4
  %v192 = vpop.permute.xlu0 %191
  %193 = vrot.lane.b32.xlu0 %v158, 4
  %v194 = vpop.permute.xlu0 %193
  %195 = vrot.lane.b32.xlu0 %v160, 4
  %v196 = vpop.permute.xlu0 %195
  %197 = vrot.lane.b32.xlu0 %v162, 4
  %v198 = vpop.permute.xlu0 %197
  %199 = vrot.lane.b32.xlu0 %v164, 4
  %v200 = vpop.permute.xlu0 %199
  %201 = vrot.lane.b32.xlu0 %v163, 4
  %v202 = vpop.permute.xlu0 %201
  %vm222 = vcmask 1045504
  %v223 = vrot.slane %v123, 2
  %v224 = vrot.slane %v69, 2
  %v225 = vsel %vm222, %v223, %v224
  %v226 = vrot.slane %v71, 2
  %v227 = vsel %vm222, %v224, %v226
  %v228 = vrot.slane %v73, 2
  %v229 = vsel %vm222, %v226, %v228
  %v230 = vrot.slane %v75, 2
  %v231 = vsel %vm222, %v228, %v230
  %v232 = vrot.slane %v77, 2
  %v233 = vsel %vm222, %v230, %v232
  %v234 = vrot.slane %v79, 2
  %v235 = vsel %vm222, %v232, %v234
  %v236 = vrot.slane %v81, 2
  %v237 = vsel %vm222, %v234, %v236
  %v238 = vrot.slane %v83, 2
  %v239 = vsel %vm222, %v236, %v238
  %v240 = vrot.slane %v85, 2
  %v241 = vsel %vm222, %v238, %v240
  %v242 = vrot.slane %v87, 2
  %v243 = vsel %vm222, %v240, %v242
  %v244 = vrot.slane %v89, 2
  %v245 = vsel %vm222, %v242, %v244
  %v246 = vrot.slane %v91, 2
  %v247 = vsel %vm222, %v244, %v246
  %v248 = vrot.slane %v93, 2
  %v249 = vsel %vm222, %v246, %v248
  %v250 = vrot.slane %v95, 2
  %v251 = vsel %vm222, %v248, %v250
  %v252 = vrot.slane %v97, 2
  %v253 = vsel %vm222, %v250, %v252
  %v254 = vrot.slane %v99, 2
  %v255 = vsel %vm222, %v252, %v254
  %v256 = vrot.slane %v101, 2
  %v257 = vsel %vm222, %v254, %v256
  %v258 = vrot.slane %v125, 2
  %v259 = vsel %vm222, %v256, %v258
  %260 = vrot.lane.b32.xlu0 %v225, 8
  %v261 = vpop.permute.xlu0 %260
  %262 = vrot.lane.b32.xlu0 %v227, 8
  %v263 = vpop.permute.xlu0 %262
  %264 = vrot.lane.b32.xlu0 %v229, 8
  %v265 = vpop.permute.xlu0 %264
  %266 = vrot.lane.b32.xlu0 %v231, 8
  %v267 = vpop.permute.xlu0 %266
  %268 = vrot.lane.b32.xlu0 %v233, 8
  %v269 = vpop.permute.xlu0 %268
  %270 = vrot.lane.b32.xlu0 %v235, 8
  %v271 = vpop.permute.xlu0 %270
  %272 = vrot.lane.b32.xlu0 %v237, 8
  %v273 = vpop.permute.xlu0 %272
  %274 = vrot.lane.b32.xlu0 %v239, 8
  %v275 = vpop.permute.xlu0 %274
  %276 = vrot.lane.b32.xlu0 %v241, 8
  %v277 = vpop.permute.xlu0 %276
  %278 = vrot.lane.b32.xlu0 %v243, 8
  %v279 = vpop.permute.xlu0 %278
  %280 = vrot.lane.b32.xlu0 %v245, 8
  %v281 = vpop.permute.xlu0 %280
  %282 = vrot.lane.b32.xlu0 %v247, 8
  %v283 = vpop.permute.xlu0 %282
  %284 = vrot.lane.b32.xlu0 %v249, 8
  %v285 = vpop.permute.xlu0 %284
  %286 = vrot.lane.b32.xlu0 %v251, 8
  %v287 = vpop.permute.xlu0 %286
  %288 = vrot.lane.b32.xlu0 %v253, 8
  %v289 = vpop.permute.xlu0 %288
  %290 = vrot.lane.b32.xlu0 %v255, 8
  %v291 = vpop.permute.xlu0 %290
  %292 = vrot.lane.b32.xlu0 %v257, 8
  %v293 = vpop.permute.xlu0 %292
  %294 = vrot.lane.b32.xlu0 %v259, 8
  %v295 = vpop.permute.xlu0 %294
  %296 = vrot.lane.b32.xlu0 %v258, 8
  %v297 = vpop.permute.xlu0 %296
  %vm317 = vcmask 31744
  %v318 = vsel %vm317, %v123, %v166
  %v319 = vsel %vm317, %v69, %v168
  %v320 = vsel %vm317, %v71, %v170
  %v321 = vsel %vm317, %v73, %v172
  %v322 = vsel %vm317, %v75, %v174
  %v323 = vsel %vm317, %v77, %v176
  %v324 = vsel %vm317, %v79, %v178
  %v325 = vsel %vm317, %v81, %v180
  %v326 = vsel %vm317, %v83, %v182
  %v327 = vsel %vm317, %v85, %v184
  %v328 = vsel %vm317, %v87, %v186
  %v329 = vsel %vm317, %v89, %v188
  %v330 = vsel %vm317, %v91, %v190
  %v331 = vsel %vm317, %v93, %v192
  %v332 = vsel %vm317, %v95, %v194
  %v333 = vsel %vm317, %v97, %v196
  %v334 = vsel %vm317, %v99, %v198
  %v335 = vsel %vm317, %v101, %v200
  %v336 = vsel %vm317, %v125, %v202
  %vm337 = vcmask 64512
  %v338 = vsel %vm337, %v318, %v261
  %v339 = vsel %vm337, %v319, %v263
  %v340 = vsel %vm337, %v320, %v265
  %v341 = vsel %vm337, %v321, %v267
  %v342 = vsel %vm337, %v322, %v269
  %v343 = vsel %vm337, %v323, %v271
  %v344 = vsel %vm337, %v324, %v273
  %v345 = vsel %vm337, %v325, %v275
  %v346 = vsel %vm337, %v326, %v277
  %v347 = vsel %vm337, %v327, %v279
  %v348 = vsel %vm337, %v328, %v281
  %v349 = vsel %vm337, %v329, %v283
  %v350 = vsel %vm337, %v330, %v285
  %v351 = vsel %vm337, %v331, %v287
  %v352 = vsel %vm337, %v332, %v289
  %v353 = vsel %vm337, %v333, %v291
  %v354 = vsel %vm337, %v334, %v293
  %v355 = vsel %vm337, %v335, %v295
  %v356 = vsel %vm337, %v336, %v297
  %v357 = vld [vmem:[%s1] sm:$0xff]
  %v358 = vld [vmem:[%s1 + $0x8] sm:$0xf]
  %v359 = vld [vmem:[%s2] sm:$0x1]
  %v361 = vlaneseq
  %v362 = vshrl.u32 %v361, 7
  %v363 = vsub.s32 0, %v362
  %v364 = vrot.slane %v359, %v363
  %vm366 = vcmask 97280
  %v368 = vsel %vm366, %v338, 0
  %v371 = vsel %vm366, %v339, 0
  %v374 = vsel %vm366, %v340, 0
  %v377 = vsel %vm366, %v341, 0
  %v380 = vsel %vm366, %v342, 0
  %v383 = vsel %vm366, %v343, 0
  %v386 = vsel %vm366, %v344, 0
  %v389 = vsel %vm366, %v345, 0
  %v392 = vsel %vm366, %v346, 0
  %v395 = vsel %vm366, %v347, 0
  %v398 = vsel %vm366, %v348, 0
  %v401 = vsel %vm366, %v349, 0
  %v404 = vsel %vm366, %v350, 0
  %v407 = vsel %vm366, %v351, 0
  %v410 = vsel %vm366, %v352, 0
  %v413 = vsel %vm366, %v353, 0
  %v416 = vsel %vm366, %v354, 0
  %v419 = vsel %vm366, %v355, 0
  %v422 = vsel %vm366, %v356, 0
  %vm424 = vcmask 1043456
  %v426 = vsel %vm424, %v358, 0
  %428 = vmatprep.subr.mxu0 0.0
  %429 = vmatpush1.msra.mxu0 %v357
  %430 = vmatprep.subr.mxu0 0.0
  %431 = vmatpush1.msra.mxu0 %v426
  %432 = vmatprep.subr.mxu0 0.0
  %433 = vmatpush1.msra.mxu0 0.0
  %434 = vmatprep.subr.mxu0 0.0
  %435 = vmatpush1.msra.mxu0 0.0
  %436 = vmatprep.subr.mxu0 0.0
  %437 = vmatpush1.msra.mxu0 0.0
  %438 = vmatprep.subr.mxu0 0.0
  %439 = vmatpush1.msra.mxu0 0.0
  %440 = vmatprep.subr.mxu0 0.0
  %441 = vmatpush1.msra.mxu0 0.0
  %442 = vmatprep.subr.mxu0 0.0
  %443 = vmatpush1.msra.mxu0 0.0
  %444 = vmatprep.subr.mxu0 0.0
  %445 = vmatpush1.msra.mxu0 0.0
  %446 = vmatprep.subr.mxu0 0.0
  %447 = vmatpush1.msra.mxu0 0.0
  %448 = vmatprep.subr.mxu0 0.0
  %449 = vmatpush1.msra.mxu0 0.0
  %450 = vmatprep.subr.mxu0 0.0
  %451 = vmatpush1.msra.mxu0 0.0
  %452 = vmatprep.subr.mxu0 0.0
  %453 = vmatpush1.msra.mxu0 0.0
  %454 = vmatprep.subr.mxu0 0.0
  %455 = vmatpush1.msra.mxu0 0.0
  %456 = vmatprep.subr.mxu0 0.0
  %457 = vmatpush1.msra.mxu0 0.0
  %458 = vmatprep.subr.mxu0 0.0
  %459 = vmatpush1.msra.mxu0 0.0
  %460 = vmatprep.subr.mxu0 0.0
  %461 = vmatpush1.msra.mxu0 0.0
  %462 = vmatprep.subr.mxu0 0.0
  %463 = vmatpush1.msra.mxu0 0.0
  %464 = vmatprep.subr.mxu0 0.0
  %465 = vmatpush1.msra.mxu0 0.0
  %466 = vmatprep.subr.mxu0 0.0
  %467 = vmatpush1.msra.mxu0 0.0
  %468 = vmatprep.subr.mxu0 0.0
  %469 = vmatpush1.msra.mxu0 0.0
  %470 = vmatprep.subr.mxu0 0.0
  %471 = vmatpush1.msra.mxu0 0.0
  %472 = vmatprep.subr.mxu0 0.0
  %473 = vmatpush1.msra.mxu0 0.0
  %474 = vmatprep.subr.mxu0 0.0
  %475 = vmatpush1.msra.mxu0 0.0
  %476 = vmatprep.subr.mxu0 0.0
  %477 = vmatpush1.msra.mxu0 0.0
  %478 = vmatprep.subr.mxu0 0.0
  %479 = vmatpush1.msra.mxu0 0.0
  %480 = vmatprep.subr.mxu0 0.0
  %481 = vmatpush1.msra.mxu0 0.0
  %482 = vmatprep.subr.mxu0 0.0
  %483 = vmatpush1.msra.mxu0 0.0
  %484 = vmatprep.subr.mxu0 0.0
  %485 = vmatpush1.msra.mxu0 0.0
  %486 = vmatprep.subr.mxu0 0.0
  %487 = vmatpush1.msra.mxu0 0.0
  %488 = vmatprep.subr.mxu0 0.0
  %489 = vmatpush1.msra.mxu0 0.0
  %490 = vmatprep.subr.mxu0 0.0
  %491 = vmatpush1.msra.mxu0 0.0
  %492 = vmatprep.mubr.f32.mxu0 0.0
  %493 = vmatmul.mubr.f32.gmra.mrb[0].mxu0 %v368
  %v494 = vpop.f32.mrb[0].mxu0
  %v495 = vadd.f32 %v364, %v494
  %v496 = vpop.f32.mrb[0].mxu0
  %497 = vmatprep.mubr.f32.mxu0 0.0
  %498 = vmatmul.mubr.f32.gmra.mrb[0].mxu0 %v371
  %v499 = vpop.f32.mrb[0].mxu0
  %v500 = vadd.f32 %v364, %v499
  %v501 = vpop.f32.mrb[0].mxu0
  %502 = vmatprep.mubr.f32.mxu0 0.0
  %503 = vmatmul.mubr.f32.gmra.mrb[0].mxu0 %v374
  %v504 = vpop.f32.mrb[0].mxu0
  %v505 = vadd.f32 %v364, %v504
  %v506 = vpop.f32.mrb[0].mxu0
  %507 = vmatprep.mubr.f32.mxu0 0.0
  %508 = vmatmul.mubr.f32.gmra.mrb[0].mxu0 %v377
  %v509 = vpop.f32.mrb[0].mxu0
  %v510 = vadd.f32 %v364, %v509
  %v511 = vpop.f32.mrb[0].mxu0
  %512 = vmatprep.mubr.f32.mxu0 0.0
  %513 = vmatmul.mubr.f32.gmra.mrb[0].mxu0 %v380
  %v514 = vpop.f32.mrb[0].mxu0
  %v515 = vadd.f32 %v364, %v514
  %v516 = vpop.f32.mrb[0].mxu0
  %517 = vmatprep.mubr.f32.mxu0 0.0
  %518 = vmatmul.mubr.f32.gmra.mrb[0].mxu0 %v383
  %v519 = vpop.f32.mrb[0].mxu0
  %v520 = vadd.f32 %v364, %v519
  %v521 = vpop.f32.mrb[0].mxu0
  %522 = vmatprep.mubr.f32.mxu0 0.0
  %523 = vmatmul.mubr.f32.gmra.mrb[0].mxu0 %v386
  %v524 = vpop.f32.mrb[0].mxu0
  %v525 = vadd.f32 %v364, %v524
  %v526 = vpop.f32.mrb[0].mxu0
  %527 = vmatprep.mubr.f32.mxu0 0.0
  %528 = vmatmul.mubr.f32.gmra.mrb[0].mxu0 %v389
  %v529 = vpop.f32.mrb[0].mxu0
  %v530 = vadd.f32 %v364, %v529
  %v531 = vpop.f32.mrb[0].mxu0
  %532 = vmatprep.mubr.f32.mxu0 0.0
  %533 = vmatmul.mubr.f32.gmra.mrb[0].mxu0 %v392
  %v534 = vpop.f32.mrb[0].mxu0
  %v535 = vadd.f32 %v364, %v534
  %v536 = vpop.f32.mrb[0].mxu0
  %537 = vmatprep.mubr.f32.mxu0 0.0
  %538 = vmatmul.mubr.f32.gmra.mrb[0].mxu0 %v395
  %v539 = vpop.f32.mrb[0].mxu0
  %v540 = vadd.f32 %v364, %v539
  %v541 = vpop.f32.mrb[0].mxu0
  %542 = vmatprep.mubr.f32.mxu0 0.0
  %543 = vmatmul.mubr.f32.gmra.mrb[0].mxu0 %v398
  %v544 = vpop.f32.mrb[0].mxu0
  %v545 = vadd.f32 %v364, %v544
  %v546 = vpop.f32.mrb[0].mxu0
  %547 = vmatprep.mubr.f32.mxu0 0.0
  %548 = vmatmul.mubr.f32.gmra.mrb[0].mxu0 %v401
  %v549 = vpop.f32.mrb[0].mxu0
  %v550 = vadd.f32 %v364, %v549
  %v551 = vpop.f32.mrb[0].mxu0
  %552 = vmatprep.mubr.f32.mxu0 0.0
  %553 = vmatmul.mubr.f32.gmra.mrb[0].mxu0 %v404
  %v554 = vpop.f32.mrb[0].mxu0
  %v555 = vadd.f32 %v364, %v554
  %v556 = vpop.f32.mrb[0].mxu0
  %557 = vmatprep.mubr.f32.mxu0 0.0
  %558 = vmatmul.mubr.f32.gmra.mrb[0].mxu0 %v407
  %v559 = vpop.f32.mrb[0].mxu0
  %v560 = vadd.f32 %v364, %v559
  %v561 = vpop.f32.mrb[0].mxu0
  %562 = vmatprep.mubr.f32.mxu0 0.0
  %563 = vmatmul.mubr.f32.gmra.mrb[0].mxu0 %v410
  %v564 = vpop.f32.mrb[0].mxu0
  %v565 = vadd.f32 %v364, %v564
  %v566 = vpop.f32.mrb[0].mxu0
  %567 = vmatprep.mubr.f32.mxu0 0.0
  %568 = vmatmul.mubr.f32.gmra.mrb[0].mxu0 %v413
  %v569 = vpop.f32.mrb[0].mxu0
  %v570 = vadd.f32 %v364, %v569
  %v571 = vpop.f32.mrb[0].mxu0
  %572 = vmatprep.mubr.f32.mxu0 0.0
  %573 = vmatmul.mubr.f32.gmra.mrb[0].mxu0 %v416
  %v574 = vpop.f32.mrb[0].mxu0
  %v575 = vadd.f32 %v364, %v574
  %v576 = vpop.f32.mrb[0].mxu0
  %577 = vmatprep.mubr.f32.mxu0 0.0
  %578 = vmatmul.mubr.f32.gmra.mrb[0].mxu0 %v419
  %v579 = vpop.f32.mrb[0].mxu0
  %v580 = vadd.f32 %v364, %v579
  %v581 = vpop.f32.mrb[0].mxu0
  %582 = vmatprep.mubr.f32.mxu0 0.0
  %583 = vmatmul.mubr.f32.gmra.mrb[0].mxu0 %v422
  %v584 = vpop.f32.mrb[0].mxu0
  %v585 = vadd.f32 %v364, %v584
  %v586 = vpop.f32.mrb[0].mxu0
  %587 = vdwg.mxu0
  %v588 = vmax.f32 %v495, 0.0
  %v589 = vmax.f32 %v500, 0.0
  %v590 = vmax.f32 %v505, 0.0
  %v591 = vmax.f32 %v510, 0.0
  %v592 = vmax.f32 %v515, 0.0
  %v593 = vmax.f32 %v520, 0.0
  %v594 = vmax.f32 %v525, 0.0
  %v595 = vmax.f32 %v530, 0.0
  %v596 = vmax.f32 %v535, 0.0
  %v597 = vmax.f32 %v540, 0.0
  %v598 = vmax.f32 %v545, 0.0
  %v599 = vmax.f32 %v550, 0.0
  %v600 = vmax.f32 %v555, 0.0
  %v601 = vmax.f32 %v560, 0.0
  %v602 = vmax.f32 %v565, 0.0
  %v603 = vmax.f32 %v570, 0.0
  %v604 = vmax.f32 %v575, 0.0
  %v605 = vmax.f32 %v580, 0.0
  %v606 = vmax.f32 %v585, 0.0
  %v607 = vld [vmem:[%s3] sm:$0xff]
  %v608 = vld [vmem:[%s3 + $0x8] sm:$0xff]
  %v609 = vld [vmem:[%s3 + $0x10] sm:$0xff]
  %v610 = vld [vmem:[%s3 + $0x18] sm:$0xff]
  %v611 = vld [vmem:[%s3 + $0x20] sm:$0xff]
  %v612 = vld [vmem:[%s3 + $0x28] sm:$0xff]
  %v613 = vld [vmem:[%s3 + $0x30] sm:$0xff]
  %v614 = vld [vmem:[%s3 + $0x38] sm:$0xff]
  %v615 = vld [vmem:[%s3 + $0x40] sm:$0xff]
  %v616 = vld [vmem:[%s3 + $0x48] sm:$0xff]
  %v617 = vld [vmem:[%s3 + $0x50] sm:$0xff]
  %v618 = vld [vmem:[%s3 + $0x58] sm:$0xff]
  %v619 = vld [vmem:[%s3 + $0x60] sm:$0xff]
  %v620 = vld [vmem:[%s3 + $0x68] sm:$0xff]
  %v621 = vld [vmem:[%s3 + $0x70] sm:$0xff]
  %v622 = vld [vmem:[%s3 + $0x78] sm:$0xff]
  %v623 = vld [vmem:[%s3 + $0x80] sm:$0xff]
  %v624 = vld [vmem:[%s3 + $0x88] sm:$0xff]
  %v625 = vld [vmem:[%s3 + $0x90] sm:$0x3f]
  %627 = vset.pattern.permute.xlu0 0
  %628 = vperm.xlu0 %627, %v588
  %v629 = vpop.permute.xlu0 %628
  %632 = vset.pattern.permute.xlu0 0
  %633 = vperm.xlu0 %632, %v589
  %v634 = vpop.permute.xlu0 %633
  %637 = vset.pattern.permute.xlu0 0
  %638 = vperm.xlu0 %637, %v590
  %v639 = vpop.permute.xlu0 %638
  %642 = vset.pattern.permute.xlu0 0
  %643 = vperm.xlu0 %642, %v591
  %v644 = vpop.permute.xlu0 %643
  %647 = vset.pattern.permute.xlu0 0
  %648 = vperm.xlu0 %647, %v592
  %v649 = vpop.permute.xlu0 %648
  %652 = vset.pattern.permute.xlu0 0
  %653 = vperm.xlu0 %652, %v593
  %v654 = vpop.permute.xlu0 %653
  %657 = vset.pattern.permute.xlu0 0
  %658 = vperm.xlu0 %657, %v594
  %v659 = vpop.permute.xlu0 %658
  %662 = vset.pattern.permute.xlu0 0
  %663 = vperm.xlu0 %662, %v595
  %v664 = vpop.permute.xlu0 %663
  %667 = vset.pattern.permute.xlu0 0
  %668 = vperm.xlu0 %667, %v596
  %v669 = vpop.permute.xlu0 %668
  %672 = vset.pattern.permute.xlu0 0
  %673 = vperm.xlu0 %672, %v597
  %v674 = vpop.permute.xlu0 %673
  %677 = vset.pattern.permute.xlu0 0
  %678 = vperm.xlu0 %677, %v598
  %v679 = vpop.permute.xlu0 %678
  %682 = vset.pattern.permute.xlu0 0
  %683 = vperm.xlu0 %682, %v599
  %v684 = vpop.permute.xlu0 %683
  %687 = vset.pattern.permute.xlu0 0
  %688 = vperm.xlu0 %687, %v600
  %v689 = vpop.permute.xlu0 %688
  %692 = vset.pattern.permute.xlu0 0
  %693 = vperm.xlu0 %692, %v601
  %v694 = vpop.permute.xlu0 %693
  %697 = vset.pattern.permute.xlu0 0
  %698 = vperm.xlu0 %697, %v602
  %v699 = vpop.permute.xlu0 %698
  %702 = vset.pattern.permute.xlu0 0
  %703 = vperm.xlu0 %702, %v603
  %v704 = vpop.permute.xlu0 %703
  %707 = vset.pattern.permute.xlu0 0
  %708 = vperm.xlu0 %707, %v604
  %v709 = vpop.permute.xlu0 %708
  %712 = vset.pattern.permute.xlu0 0
  %713 = vperm.xlu0 %712, %v605
  %v714 = vpop.permute.xlu0 %713
  %717 = vset.pattern.permute.xlu0 0
  %718 = vperm.xlu0 %717, %v606
  %v719 = vpop.permute.xlu0 %718
  %v721 = vmul.f32 %v629, %v607
  %v722 = vmul.f32 %v634, %v608
  %v723 = vmul.f32 %v639, %v609
  %v724 = vmul.f32 %v644, %v610
  %v725 = vmul.f32 %v649, %v611
  %v726 = vmul.f32 %v654, %v612
  %v727 = vmul.f32 %v659, %v613
  %v728 = vmul.f32 %v664, %v614
  %v729 = vmul.f32 %v669, %v615
  %v730 = vmul.f32 %v674, %v616
  %v731 = vmul.f32 %v679, %v617
  %v732 = vmul.f32 %v684, %v618
  %v733 = vmul.f32 %v689, %v619
  %v734 = vmul.f32 %v694, %v620
  %v735 = vmul.f32 %v699, %v621
  %v736 = vmul.f32 %v704, %v622
  %v737 = vmul.f32 %v709, %v623
  %v738 = vmul.f32 %v714, %v624
  %v739 = vmul.f32 %v719, %v625
  %v740 = vadd.f32 %v721, 0.0
  %v741 = vadd.f32 %v722, 0.0
  %v742 = vadd.f32 %v723, 0.0
  %v743 = vadd.f32 %v724, 0.0
  %v744 = vadd.f32 %v725, 0.0
  %v745 = vadd.f32 %v726, 0.0
  %v746 = vadd.f32 %v727, 0.0
  %v747 = vadd.f32 %v728, 0.0
  %v748 = vadd.f32 %v729, 0.0
  %v749 = vadd.f32 %v730, 0.0
  %v750 = vadd.f32 %v731, 0.0
  %v751 = vadd.f32 %v732, 0.0
  %v752 = vadd.f32 %v733, 0.0
  %v753 = vadd.f32 %v734, 0.0
  %v754 = vadd.f32 %v735, 0.0
  %v755 = vadd.f32 %v736, 0.0
  %v756 = vadd.f32 %v737, 0.0
  %v757 = vadd.f32 %v738, 0.0
  %v758 = vadd.f32 %v739, 0.0
  %s759 = scalar_lea.vmem %s3, 152
  %v760 = vld [vmem:[%s759] sm:$0xff]
  %v761 = vld [vmem:[%s759 + $0x8] sm:$0xff]
  %v762 = vld [vmem:[%s759 + $0x10] sm:$0xff]
  %v763 = vld [vmem:[%s759 + $0x18] sm:$0xff]
  %v764 = vld [vmem:[%s759 + $0x20] sm:$0xff]
  %v765 = vld [vmem:[%s759 + $0x28] sm:$0xff]
  %v766 = vld [vmem:[%s759 + $0x30] sm:$0xff]
  %v767 = vld [vmem:[%s759 + $0x38] sm:$0xff]
  %v768 = vld [vmem:[%s759 + $0x40] sm:$0xff]
  %v769 = vld [vmem:[%s759 + $0x48] sm:$0xff]
  %v770 = vld [vmem:[%s759 + $0x50] sm:$0xff]
  %v771 = vld [vmem:[%s759 + $0x58] sm:$0xff]
  %v772 = vld [vmem:[%s759 + $0x60] sm:$0xff]
  %v773 = vld [vmem:[%s759 + $0x68] sm:$0xff]
  %v774 = vld [vmem:[%s759 + $0x70] sm:$0xff]
  %v775 = vld [vmem:[%s759 + $0x78] sm:$0xff]
  %v776 = vld [vmem:[%s759 + $0x80] sm:$0xff]
  %v777 = vld [vmem:[%s759 + $0x88] sm:$0xff]
  %v778 = vld [vmem:[%s759 + $0x90] sm:$0x3f]
  %779 = vset.pattern.permute.xlu0 1
  %780 = vperm.xlu0 %779, %v588
  %v781 = vpop.permute.xlu0 %780
  %783 = vset.pattern.permute.xlu0 1
  %784 = vperm.xlu0 %783, %v589
  %v785 = vpop.permute.xlu0 %784
  %787 = vset.pattern.permute.xlu0 1
  %788 = vperm.xlu0 %787, %v590
  %v789 = vpop.permute.xlu0 %788
  %791 = vset.pattern.permute.xlu0 1
  %792 = vperm.xlu0 %791, %v591
  %v793 = vpop.permute.xlu0 %792
  %795 = vset.pattern.permute.xlu0 1
  %796 = vperm.xlu0 %795, %v592
  %v797 = vpop.permute.xlu0 %796
  %799 = vset.pattern.permute.xlu0 1
  %800 = vperm.xlu0 %799, %v593
  %v801 = vpop.permute.xlu0 %800
  %803 = vset.pattern.permute.xlu0 1
  %804 = vperm.xlu0 %803, %v594
  %v805 = vpop.permute.xlu0 %804
  %807 = vset.pattern.permute.xlu0 1
  %808 = vperm.xlu0 %807, %v595
  %v809 = vpop.permute.xlu0 %808
  %811 = vset.pattern.permute.xlu0 1
  %812 = vperm.xlu0 %811, %v596
  %v813 = vpop.permute.xlu0 %812
  %815 = vset.pattern.permute.xlu0 1
  %816 = vperm.xlu0 %815, %v597
  %v817 = vpop.permute.xlu0 %816
  %819 = vset.pattern.permute.xlu0 1
  %820 = vperm.xlu0 %819, %v598
  %v821 = vpop.permute.xlu0 %820
  %823 = vset.pattern.permute.xlu0 1
  %824 = vperm.xlu0 %823, %v599
  %v825 = vpop.permute.xlu0 %824
  %827 = vset.pattern.permute.xlu0 1
  %828 = vperm.xlu0 %827, %v600
  %v829 = vpop.permute.xlu0 %828
  %831 = vset.pattern.permute.xlu0 1
  %832 = vperm.xlu0 %831, %v601
  %v833 = vpop.permute.xlu0 %832
  %835 = vset.pattern.permute.xlu0 1
  %836 = vperm.xlu0 %835, %v602
  %v837 = vpop.permute.xlu0 %836
  %839 = vset.pattern.permute.xlu0 1
  %840 = vperm.xlu0 %839, %v603
  %v841 = vpop.permute.xlu0 %840
  %843 = vset.pattern.permute.xlu0 1
  %844 = vperm.xlu0 %843, %v604
  %v845 = vpop.permute.xlu0 %844
  %847 = vset.pattern.permute.xlu0 1
  %848 = vperm.xlu0 %847, %v605
  %v849 = vpop.permute.xlu0 %848
  %851 = vset.pattern.permute.xlu0 1
  %852 = vperm.xlu0 %851, %v606
  %v853 = vpop.permute.xlu0 %852
  %v855 = vmul.f32 %v781, %v760
  %v856 = vmul.f32 %v785, %v761
  %v857 = vmul.f32 %v789, %v762
  %v858 = vmul.f32 %v793, %v763
  %v859 = vmul.f32 %v797, %v764
  %v860 = vmul.f32 %v801, %v765
  %v861 = vmul.f32 %v805, %v766
  %v862 = vmul.f32 %v809, %v767
  %v863 = vmul.f32 %v813, %v768
  %v864 = vmul.f32 %v817, %v769
  %v865 = vmul.f32 %v821, %v770
  %v866 = vmul.f32 %v825, %v771
  %v867 = vmul.f32 %v829, %v772
  %v868 = vmul.f32 %v833, %v773
  %v869 = vmul.f32 %v837, %v774
  %v870 = vmul.f32 %v841, %v775
  %v871 = vmul.f32 %v845, %v776
  %v872 = vmul.f32 %v849, %v777
  %v873 = vmul.f32 %v853, %v778
  %v874 = vadd.f32 %v740, %v855
  %v875 = vadd.f32 %v741, %v856
  %v876 = vadd.f32 %v742, %v857
  %v877 = vadd.f32 %v743, %v858
  %v878 = vadd.f32 %v744, %v859
  %v879 = vadd.f32 %v745, %v860
  %v880 = vadd.f32 %v746, %v861
  %v881 = vadd.f32 %v747, %v862
  %v882 = vadd.f32 %v748, %v863
  %v883 = vadd.f32 %v749, %v864
  %v884 = vadd.f32 %v750, %v865
  %v885 = vadd.f32 %v751, %v866
  %v886 = vadd.f32 %v752, %v867
  %v887 = vadd.f32 %v753, %v868
  %v888 = vadd.f32 %v754, %v869
  %v889 = vadd.f32 %v755, %v870
  %v890 = vadd.f32 %v756, %v871
  %v891 = vadd.f32 %v757, %v872
  %v892 = vadd.f32 %v758, %v873
  %s893 = scalar_lea.vmem %s3, 304
  %v894 = vld [vmem:[%s893] sm:$0xff]
  %v895 = vld [vmem:[%s893 + $0x8] sm:$0xff]
  %v896 = vld [vmem:[%s893 + $0x10] sm:$0xff]
  %v897 = vld [vmem:[%s893 + $0x18] sm:$0xff]
  %v898 = vld [vmem:[%s893 + $0x20] sm:$0xff]
  %v899 = vld [vmem:[%s893 + $0x28] sm:$0xff]
  %v900 = vld [vmem:[%s893 + $0x30] sm:$0xff]
  %v901 = vld [vmem:[%s893 + $0x38] sm:$0xff]
  %v902 = vld [vmem:[%s893 + $0x40] sm:$0xff]
  %v903 = vld [vmem:[%s893 + $0x48] sm:$0xff]
  %v904 = vld [vmem:[%s893 + $0x50] sm:$0xff]
  %v905 = vld [vmem:[%s893 + $0x58] sm:$0xff]
  %v906 = vld [vmem:[%s893 + $0x60] sm:$0xff]
  %v907 = vld [vmem:[%s893 + $0x68] sm:$0xff]
  %v908 = vld [vmem:[%s893 + $0x70] sm:$0xff]
  %v909 = vld [vmem:[%s893 + $0x78] sm:$0xff]
  %v910 = vld [vmem:[%s893 + $0x80] sm:$0xff]
  %v911 = vld [vmem:[%s893 + $0x88] sm:$0xff]
  %v912 = vld [vmem:[%s893 + $0x90] sm:$0x3f]
  %913 = vset.pattern.permute.xlu0 2
  %914 = vperm.xlu0 %913, %v588
  %v915 = vpop.permute.xlu0 %914
  %917 = vset.pattern.permute.xlu0 2
  %918 = vperm.xlu0 %917, %v589
  %v919 = vpop.permute.xlu0 %918
  %921 = vset.pattern.permute.xlu0 2
  %922 = vperm.xlu0 %921, %v590
  %v923 = vpop.permute.xlu0 %922
  %925 = vset.pattern.permute.xlu0 2
  %926 = vperm.xlu0 %925, %v591
  %v927 = vpop.permute.xlu0 %926
  %929 = vset.pattern.permute.xlu0 2
  %930 = vperm.xlu0 %929, %v592
  %v931 = vpop.permute.xlu0 %930
  %933 = vset.pattern.permute.xlu0 2
  %934 = vperm.xlu0 %933, %v593
  %v935 = vpop.permute.xlu0 %934
  %937 = vset.pattern.permute.xlu0 2
  %938 = vperm.xlu0 %937, %v594
  %v939 = vpop.permute.xlu0 %938
  %941 = vset.pattern.permute.xlu0 2
  %942 = vperm.xlu0 %941, %v595
  %v943 = vpop.permute.xlu0 %942
  %945 = vset.pattern.permute.xlu0 2
  %946 = vperm.xlu0 %945, %v596
  %v947 = vpop.permute.xlu0 %946
  %949 = vset.pattern.permute.xlu0 2
  %950 = vperm.xlu0 %949, %v597
  %v951 = vpop.permute.xlu0 %950
  %953 = vset.pattern.permute.xlu0 2
  %954 = vperm.xlu0 %953, %v598
  %v955 = vpop.permute.xlu0 %954
  %957 = vset.pattern.permute.xlu0 2
  %958 = vperm.xlu0 %957, %v599
  %v959 = vpop.permute.xlu0 %958
  %961 = vset.pattern.permute.xlu0 2
  %962 = vperm.xlu0 %961, %v600
  %v963 = vpop.permute.xlu0 %962
  %965 = vset.pattern.permute.xlu0 2
  %966 = vperm.xlu0 %965, %v601
  %v967 = vpop.permute.xlu0 %966
  %969 = vset.pattern.permute.xlu0 2
  %970 = vperm.xlu0 %969, %v602
  %v971 = vpop.permute.xlu0 %970
  %973 = vset.pattern.permute.xlu0 2
  %974 = vperm.xlu0 %973, %v603
  %v975 = vpop.permute.xlu0 %974
  %977 = vset.pattern.permute.xlu0 2
  %978 = vperm.xlu0 %977, %v604
  %v979 = vpop.permute.xlu0 %978
  %981 = vset.pattern.permute.xlu0 2
  %982 = vperm.xlu0 %981, %v605
  %v983 = vpop.permute.xlu0 %982
  %985 = vset.pattern.permute.xlu0 2
  %986 = vperm.xlu0 %985, %v606
  %v987 = vpop.permute.xlu0 %986
  %v989 = vmul.f32 %v915, %v894
  %v990 = vmul.f32 %v919, %v895
  %v991 = vmul.f32 %v923, %v896
  %v992 = vmul.f32 %v927, %v897
  %v993 = vmul.f32 %v931, %v898
  %v994 = vmul.f32 %v935, %v899
  %v995 = vmul.f32 %v939, %v900
  %v996 = vmul.f32 %v943, %v901
  %v997 = vmul.f32 %v947, %v902
  %v998 = vmul.f32 %v951, %v903
  %v999 = vmul.f32 %v955, %v904
  %v1000 = vmul.f32 %v959, %v905
  %v1001 = vmul.f32 %v963, %v906
  %v1002 = vmul.f32 %v967, %v907
  %v1003 = vmul.f32 %v971, %v908
  %v1004 = vmul.f32 %v975, %v909
  %v1005 = vmul.f32 %v979, %v910
  %v1006 = vmul.f32 %v983, %v911
  %v1007 = vmul.f32 %v987, %v912
  %v1008 = vadd.f32 %v874, %v989
  %v1009 = vadd.f32 %v875, %v990
  %v1010 = vadd.f32 %v876, %v991
  %v1011 = vadd.f32 %v877, %v992
  %v1012 = vadd.f32 %v878, %v993
  %v1013 = vadd.f32 %v879, %v994
  %v1014 = vadd.f32 %v880, %v995
  %v1015 = vadd.f32 %v881, %v996
  %v1016 = vadd.f32 %v882, %v997
  %v1017 = vadd.f32 %v883, %v998
  %v1018 = vadd.f32 %v884, %v999
  %v1019 = vadd.f32 %v885, %v1000
  %v1020 = vadd.f32 %v886, %v1001
  %v1021 = vadd.f32 %v887, %v1002
  %v1022 = vadd.f32 %v888, %v1003
  %v1023 = vadd.f32 %v889, %v1004
  %v1024 = vadd.f32 %v890, %v1005
  %v1025 = vadd.f32 %v891, %v1006
  %v1026 = vadd.f32 %v892, %v1007
  %s1027 = scalar_lea.vmem %s3, 456
  %v1028 = vld [vmem:[%s1027] sm:$0xff]
  %v1029 = vld [vmem:[%s1027 + $0x8] sm:$0xff]
  %v1030 = vld [vmem:[%s1027 + $0x10] sm:$0xff]
  %v1031 = vld [vmem:[%s1027 + $0x18] sm:$0xff]
  %v1032 = vld [vmem:[%s1027 + $0x20] sm:$0xff]
  %v1033 = vld [vmem:[%s1027 + $0x28] sm:$0xff]
  %v1034 = vld [vmem:[%s1027 + $0x30] sm:$0xff]
  %v1035 = vld [vmem:[%s1027 + $0x38] sm:$0xff]
  %v1036 = vld [vmem:[%s1027 + $0x40] sm:$0xff]
  %v1037 = vld [vmem:[%s1027 + $0x48] sm:$0xff]
  %v1038 = vld [vmem:[%s1027 + $0x50] sm:$0xff]
  %v1039 = vld [vmem:[%s1027 + $0x58] sm:$0xff]
  %v1040 = vld [vmem:[%s1027 + $0x60] sm:$0xff]
  %v1041 = vld [vmem:[%s1027 + $0x68] sm:$0xff]
  %v1042 = vld [vmem:[%s1027 + $0x70] sm:$0xff]
  %v1043 = vld [vmem:[%s1027 + $0x78] sm:$0xff]
  %v1044 = vld [vmem:[%s1027 + $0x80] sm:$0xff]
  %v1045 = vld [vmem:[%s1027 + $0x88] sm:$0xff]
  %v1046 = vld [vmem:[%s1027 + $0x90] sm:$0x3f]
  %1047 = vset.pattern.permute.xlu0 3
  %1048 = vperm.xlu0 %1047, %v588
  %v1049 = vpop.permute.xlu0 %1048
  %1051 = vset.pattern.permute.xlu0 3
  %1052 = vperm.xlu0 %1051, %v589
  %v1053 = vpop.permute.xlu0 %1052
  %1055 = vset.pattern.permute.xlu0 3
  %1056 = vperm.xlu0 %1055, %v590
  %v1057 = vpop.permute.xlu0 %1056
  %1059 = vset.pattern.permute.xlu0 3
  %1060 = vperm.xlu0 %1059, %v591
  %v1061 = vpop.permute.xlu0 %1060
  %1063 = vset.pattern.permute.xlu0 3
  %1064 = vperm.xlu0 %1063, %v592
  %v1065 = vpop.permute.xlu0 %1064
  %1067 = vset.pattern.permute.xlu0 3
  %1068 = vperm.xlu0 %1067, %v593
  %v1069 = vpop.permute.xlu0 %1068
  %1071 = vset.pattern.permute.xlu0 3
  %1072 = vperm.xlu0 %1071, %v594
  %v1073 = vpop.permute.xlu0 %1072
  %1075 = vset.pattern.permute.xlu0 3
  %1076 = vperm.xlu0 %1075, %v595
  %v1077 = vpop.permute.xlu0 %1076
  %1079 = vset.pattern.permute.xlu0 3
  %1080 = vperm.xlu0 %1079, %v596
  %v1081 = vpop.permute.xlu0 %1080
  %1083 = vset.pattern.permute.xlu0 3
  %1084 = vperm.xlu0 %1083, %v597
  %v1085 = vpop.permute.xlu0 %1084
  %1087 = vset.pattern.permute.xlu0 3
  %1088 = vperm.xlu0 %1087, %v598
  %v1089 = vpop.permute.xlu0 %1088
  %1091 = vset.pattern.permute.xlu0 3
  %1092 = vperm.xlu0 %1091, %v599
  %v1093 = vpop.permute.xlu0 %1092
  %1095 = vset.pattern.permute.xlu0 3
  %1096 = vperm.xlu0 %1095, %v600
  %v1097 = vpop.permute.xlu0 %1096
  %1099 = vset.pattern.permute.xlu0 3
  %1100 = vperm.xlu0 %1099, %v601
  %v1101 = vpop.permute.xlu0 %1100
  %1103 = vset.pattern.permute.xlu0 3
  %1104 = vperm.xlu0 %1103, %v602
  %v1105 = vpop.permute.xlu0 %1104
  %1107 = vset.pattern.permute.xlu0 3
  %1108 = vperm.xlu0 %1107, %v603
  %v1109 = vpop.permute.xlu0 %1108
  %1111 = vset.pattern.permute.xlu0 3
  %1112 = vperm.xlu0 %1111, %v604
  %v1113 = vpop.permute.xlu0 %1112
  %1115 = vset.pattern.permute.xlu0 3
  %1116 = vperm.xlu0 %1115, %v605
  %v1117 = vpop.permute.xlu0 %1116
  %1119 = vset.pattern.permute.xlu0 3
  %1120 = vperm.xlu0 %1119, %v606
  %v1121 = vpop.permute.xlu0 %1120
  %v1123 = vmul.f32 %v1049, %v1028
  %v1124 = vmul.f32 %v1053, %v1029
  %v1125 = vmul.f32 %v1057, %v1030
  %v1126 = vmul.f32 %v1061, %v1031
  %v1127 = vmul.f32 %v1065, %v1032
  %v1128 = vmul.f32 %v1069, %v1033
  %v1129 = vmul.f32 %v1073, %v1034
  %v1130 = vmul.f32 %v1077, %v1035
  %v1131 = vmul.f32 %v1081, %v1036
  %v1132 = vmul.f32 %v1085, %v1037
  %v1133 = vmul.f32 %v1089, %v1038
  %v1134 = vmul.f32 %v1093, %v1039
  %v1135 = vmul.f32 %v1097, %v1040
  %v1136 = vmul.f32 %v1101, %v1041
  %v1137 = vmul.f32 %v1105, %v1042
  %v1138 = vmul.f32 %v1109, %v1043
  %v1139 = vmul.f32 %v1113, %v1044
  %v1140 = vmul.f32 %v1117, %v1045
  %v1141 = vmul.f32 %v1121, %v1046
  %v1142 = vadd.f32 %v1008, %v1123
  %v1143 = vadd.f32 %v1009, %v1124
  %v1144 = vadd.f32 %v1010, %v1125
  %v1145 = vadd.f32 %v1011, %v1126
  %v1146 = vadd.f32 %v1012, %v1127
  %v1147 = vadd.f32 %v1013, %v1128
  %v1148 = vadd.f32 %v1014, %v1129
  %v1149 = vadd.f32 %v1015, %v1130
  %v1150 = vadd.f32 %v1016, %v1131
  %v1151 = vadd.f32 %v1017, %v1132
  %v1152 = vadd.f32 %v1018, %v1133
  %v1153 = vadd.f32 %v1019, %v1134
  %v1154 = vadd.f32 %v1020, %v1135
  %v1155 = vadd.f32 %v1021, %v1136
  %v1156 = vadd.f32 %v1022, %v1137
  %v1157 = vadd.f32 %v1023, %v1138
  %v1158 = vadd.f32 %v1024, %v1139
  %v1159 = vadd.f32 %v1025, %v1140
  %v1160 = vadd.f32 %v1026, %v1141
  %s1161 = scalar_lea.vmem %s3, 608
  %v1162 = vld [vmem:[%s1161] sm:$0xff]
  %v1163 = vld [vmem:[%s1161 + $0x8] sm:$0xff]
  %v1164 = vld [vmem:[%s1161 + $0x10] sm:$0xff]
  %v1165 = vld [vmem:[%s1161 + $0x18] sm:$0xff]
  %v1166 = vld [vmem:[%s1161 + $0x20] sm:$0xff]
  %v1167 = vld [vmem:[%s1161 + $0x28] sm:$0xff]
  %v1168 = vld [vmem:[%s1161 + $0x30] sm:$0xff]
  %v1169 = vld [vmem:[%s1161 + $0x38] sm:$0xff]
  %v1170 = vld [vmem:[%s1161 + $0x40] sm:$0xff]
  %v1171 = vld [vmem:[%s1161 + $0x48] sm:$0xff]
  %v1172 = vld [vmem:[%s1161 + $0x50] sm:$0xff]
  %v1173 = vld [vmem:[%s1161 + $0x58] sm:$0xff]
  %v1174 = vld [vmem:[%s1161 + $0x60] sm:$0xff]
  %v1175 = vld [vmem:[%s1161 + $0x68] sm:$0xff]
  %v1176 = vld [vmem:[%s1161 + $0x70] sm:$0xff]
  %v1177 = vld [vmem:[%s1161 + $0x78] sm:$0xff]
  %v1178 = vld [vmem:[%s1161 + $0x80] sm:$0xff]
  %v1179 = vld [vmem:[%s1161 + $0x88] sm:$0xff]
  %v1180 = vld [vmem:[%s1161 + $0x90] sm:$0x3f]
  %1181 = vset.pattern.permute.xlu0 4
  %1182 = vperm.xlu0 %1181, %v588
  %v1183 = vpop.permute.xlu0 %1182
  %1185 = vset.pattern.permute.xlu0 4
  %1186 = vperm.xlu0 %1185, %v589
  %v1187 = vpop.permute.xlu0 %1186
  %1189 = vset.pattern.permute.xlu0 4
  %1190 = vperm.xlu0 %1189, %v590
  %v1191 = vpop.permute.xlu0 %1190
  %1193 = vset.pattern.permute.xlu0 4
  %1194 = vperm.xlu0 %1193, %v591
  %v1195 = vpop.permute.xlu0 %1194
  %1197 = vset.pattern.permute.xlu0 4
  %1198 = vperm.xlu0 %1197, %v592
  %v1199 = vpop.permute.xlu0 %1198
  %1201 = vset.pattern.permute.xlu0 4
  %1202 = vperm.xlu0 %1201, %v593
  %v1203 = vpop.permute.xlu0 %1202
  %1205 = vset.pattern.permute.xlu0 4
  %1206 = vperm.xlu0 %1205, %v594
  %v1207 = vpop.permute.xlu0 %1206
  %1209 = vset.pattern.permute.xlu0 4
  %1210 = vperm.xlu0 %1209, %v595
  %v1211 = vpop.permute.xlu0 %1210
  %1213 = vset.pattern.permute.xlu0 4
  %1214 = vperm.xlu0 %1213, %v596
  %v1215 = vpop.permute.xlu0 %1214
  %1217 = vset.pattern.permute.xlu0 4
  %1218 = vperm.xlu0 %1217, %v597
  %v1219 = vpop.permute.xlu0 %1218
  %1221 = vset.pattern.permute.xlu0 4
  %1222 = vperm.xlu0 %1221, %v598
  %v1223 = vpop.permute.xlu0 %1222
  %1225 = vset.pattern.permute.xlu0 4
  %1226 = vperm.xlu0 %1225, %v599
  %v1227 = vpop.permute.xlu0 %1226
  %1229 = vset.pattern.permute.xlu0 4
  %1230 = vperm.xlu0 %1229, %v600
  %v1231 = vpop.permute.xlu0 %1230
  %1233 = vset.pattern.permute.xlu0 4
  %1234 = vperm.xlu0 %1233, %v601
  %v1235 = vpop.permute.xlu0 %1234
  %1237 = vset.pattern.permute.xlu0 4
  %1238 = vperm.xlu0 %1237, %v602
  %v1239 = vpop.permute.xlu0 %1238
  %1241 = vset.pattern.permute.xlu0 4
  %1242 = vperm.xlu0 %1241, %v603
  %v1243 = vpop.permute.xlu0 %1242
  %1245 = vset.pattern.permute.xlu0 4
  %1246 = vperm.xlu0 %1245, %v604
  %v1247 = vpop.permute.xlu0 %1246
  %1249 = vset.pattern.permute.xlu0 4
  %1250 = vperm.xlu0 %1249, %v605
  %v1251 = vpop.permute.xlu0 %1250
  %1253 = vset.pattern.permute.xlu0 4
  %1254 = vperm.xlu0 %1253, %v606
  %v1255 = vpop.permute.xlu0 %1254
  %v1257 = vmul.f32 %v1183, %v1162
  %v1258 = vmul.f32 %v1187, %v1163
  %v1259 = vmul.f32 %v1191, %v1164
  %v1260 = vmul.f32 %v1195, %v1165
  %v1261 = vmul.f32 %v1199, %v1166
  %v1262 = vmul.f32 %v1203, %v1167
  %v1263 = vmul.f32 %v1207, %v1168
  %v1264 = vmul.f32 %v1211, %v1169
  %v1265 = vmul.f32 %v1215, %v1170
  %v1266 = vmul.f32 %v1219, %v1171
  %v1267 = vmul.f32 %v1223, %v1172
  %v1268 = vmul.f32 %v1227, %v1173
  %v1269 = vmul.f32 %v1231, %v1174
  %v1270 = vmul.f32 %v1235, %v1175
  %v1271 = vmul.f32 %v1239, %v1176
  %v1272 = vmul.f32 %v1243, %v1177
  %v1273 = vmul.f32 %v1247, %v1178
  %v1274 = vmul.f32 %v1251, %v1179
  %v1275 = vmul.f32 %v1255, %v1180
  %v1276 = vadd.f32 %v1142, %v1257
  %v1277 = vadd.f32 %v1143, %v1258
  %v1278 = vadd.f32 %v1144, %v1259
  %v1279 = vadd.f32 %v1145, %v1260
  %v1280 = vadd.f32 %v1146, %v1261
  %v1281 = vadd.f32 %v1147, %v1262
  %v1282 = vadd.f32 %v1148, %v1263
  %v1283 = vadd.f32 %v1149, %v1264
  %v1284 = vadd.f32 %v1150, %v1265
  %v1285 = vadd.f32 %v1151, %v1266
  %v1286 = vadd.f32 %v1152, %v1267
  %v1287 = vadd.f32 %v1153, %v1268
  %v1288 = vadd.f32 %v1154, %v1269
  %v1289 = vadd.f32 %v1155, %v1270
  %v1290 = vadd.f32 %v1156, %v1271
  %v1291 = vadd.f32 %v1157, %v1272
  %v1292 = vadd.f32 %v1158, %v1273
  %v1293 = vadd.f32 %v1159, %v1274
  %v1294 = vadd.f32 %v1160, %v1275
  %s1295 = scalar_lea.vmem %s3, 760
  %v1296 = vld [vmem:[%s1295] sm:$0xff]
  %v1297 = vld [vmem:[%s1295 + $0x8] sm:$0xff]
  %v1298 = vld [vmem:[%s1295 + $0x10] sm:$0xff]
  %v1299 = vld [vmem:[%s1295 + $0x18] sm:$0xff]
  %v1300 = vld [vmem:[%s1295 + $0x20] sm:$0xff]
  %v1301 = vld [vmem:[%s1295 + $0x28] sm:$0xff]
  %v1302 = vld [vmem:[%s1295 + $0x30] sm:$0xff]
  %v1303 = vld [vmem:[%s1295 + $0x38] sm:$0xff]
  %v1304 = vld [vmem:[%s1295 + $0x40] sm:$0xff]
  %v1305 = vld [vmem:[%s1295 + $0x48] sm:$0xff]
  %v1306 = vld [vmem:[%s1295 + $0x50] sm:$0xff]
  %v1307 = vld [vmem:[%s1295 + $0x58] sm:$0xff]
  %v1308 = vld [vmem:[%s1295 + $0x60] sm:$0xff]
  %v1309 = vld [vmem:[%s1295 + $0x68] sm:$0xff]
  %v1310 = vld [vmem:[%s1295 + $0x70] sm:$0xff]
  %v1311 = vld [vmem:[%s1295 + $0x78] sm:$0xff]
  %v1312 = vld [vmem:[%s1295 + $0x80] sm:$0xff]
  %v1313 = vld [vmem:[%s1295 + $0x88] sm:$0xff]
  %v1314 = vld [vmem:[%s1295 + $0x90] sm:$0x3f]
  %1315 = vset.pattern.permute.xlu0 5
  %1316 = vperm.xlu0 %1315, %v588
  %v1317 = vpop.permute.xlu0 %1316
  %1319 = vset.pattern.permute.xlu0 5
  %1320 = vperm.xlu0 %1319, %v589
  %v1321 = vpop.permute.xlu0 %1320
  %1323 = vset.pattern.permute.xlu0 5
  %1324 = vperm.xlu0 %1323, %v590
  %v1325 = vpop.permute.xlu0 %1324
  %1327 = vset.pattern.permute.xlu0 5
  %1328 = vperm.xlu0 %1327, %v591
  %v1329 = vpop.permute.xlu0 %1328
  %1331 = vset.pattern.permute.xlu0 5
  %1332 = vperm.xlu0 %1331, %v592
  %v1333 = vpop.permute.xlu0 %1332
  %1335 = vset.pattern.permute.xlu0 5
  %1336 = vperm.xlu0 %1335, %v593
  %v1337 = vpop.permute.xlu0 %1336
  %1339 = vset.pattern.permute.xlu0 5
  %1340 = vperm.xlu0 %1339, %v594
  %v1341 = vpop.permute.xlu0 %1340
  %1343 = vset.pattern.permute.xlu0 5
  %1344 = vperm.xlu0 %1343, %v595
  %v1345 = vpop.permute.xlu0 %1344
  %1347 = vset.pattern.permute.xlu0 5
  %1348 = vperm.xlu0 %1347, %v596
  %v1349 = vpop.permute.xlu0 %1348
  %1351 = vset.pattern.permute.xlu0 5
  %1352 = vperm.xlu0 %1351, %v597
  %v1353 = vpop.permute.xlu0 %1352
  %1355 = vset.pattern.permute.xlu0 5
  %1356 = vperm.xlu0 %1355, %v598
  %v1357 = vpop.permute.xlu0 %1356
  %1359 = vset.pattern.permute.xlu0 5
  %1360 = vperm.xlu0 %1359, %v599
  %v1361 = vpop.permute.xlu0 %1360
  %1363 = vset.pattern.permute.xlu0 5
  %1364 = vperm.xlu0 %1363, %v600
  %v1365 = vpop.permute.xlu0 %1364
  %1367 = vset.pattern.permute.xlu0 5
  %1368 = vperm.xlu0 %1367, %v601
  %v1369 = vpop.permute.xlu0 %1368
  %1371 = vset.pattern.permute.xlu0 5
  %1372 = vperm.xlu0 %1371, %v602
  %v1373 = vpop.permute.xlu0 %1372
  %1375 = vset.pattern.permute.xlu0 5
  %1376 = vperm.xlu0 %1375, %v603
  %v1377 = vpop.permute.xlu0 %1376
  %1379 = vset.pattern.permute.xlu0 5
  %1380 = vperm.xlu0 %1379, %v604
  %v1381 = vpop.permute.xlu0 %1380
  %1383 = vset.pattern.permute.xlu0 5
  %1384 = vperm.xlu0 %1383, %v605
  %v1385 = vpop.permute.xlu0 %1384
  %1387 = vset.pattern.permute.xlu0 5
  %1388 = vperm.xlu0 %1387, %v606
  %v1389 = vpop.permute.xlu0 %1388
  %v1391 = vmul.f32 %v1317, %v1296
  %v1392 = vmul.f32 %v1321, %v1297
  %v1393 = vmul.f32 %v1325, %v1298
  %v1394 = vmul.f32 %v1329, %v1299
  %v1395 = vmul.f32 %v1333, %v1300
  %v1396 = vmul.f32 %v1337, %v1301
  %v1397 = vmul.f32 %v1341, %v1302
  %v1398 = vmul.f32 %v1345, %v1303
  %v1399 = vmul.f32 %v1349, %v1304
  %v1400 = vmul.f32 %v1353, %v1305
  %v1401 = vmul.f32 %v1357, %v1306
  %v1402 = vmul.f32 %v1361, %v1307
  %v1403 = vmul.f32 %v1365, %v1308
  %v1404 = vmul.f32 %v1369, %v1309
  %v1405 = vmul.f32 %v1373, %v1310
  %v1406 = vmul.f32 %v1377, %v1311
  %v1407 = vmul.f32 %v1381, %v1312
  %v1408 = vmul.f32 %v1385, %v1313
  %v1409 = vmul.f32 %v1389, %v1314
  %v1410 = vadd.f32 %v1276, %v1391
  %v1411 = vadd.f32 %v1277, %v1392
  %v1412 = vadd.f32 %v1278, %v1393
  %v1413 = vadd.f32 %v1279, %v1394
  %v1414 = vadd.f32 %v1280, %v1395
  %v1415 = vadd.f32 %v1281, %v1396
  %v1416 = vadd.f32 %v1282, %v1397
  %v1417 = vadd.f32 %v1283, %v1398
  %v1418 = vadd.f32 %v1284, %v1399
  %v1419 = vadd.f32 %v1285, %v1400
  %v1420 = vadd.f32 %v1286, %v1401
  %v1421 = vadd.f32 %v1287, %v1402
  %v1422 = vadd.f32 %v1288, %v1403
  %v1423 = vadd.f32 %v1289, %v1404
  %v1424 = vadd.f32 %v1290, %v1405
  %v1425 = vadd.f32 %v1291, %v1406
  %v1426 = vadd.f32 %v1292, %v1407
  %v1427 = vadd.f32 %v1293, %v1408
  %v1428 = vadd.f32 %v1294, %v1409
  %s1429 = scalar_lea.vmem %s3, 912
  %v1430 = vld [vmem:[%s1429] sm:$0xff]
  %v1431 = vld [vmem:[%s1429 + $0x8] sm:$0xff]
  %v1432 = vld [vmem:[%s1429 + $0x10] sm:$0xff]
  %v1433 = vld [vmem:[%s1429 + $0x18] sm:$0xff]
  %v1434 = vld [vmem:[%s1429 + $0x20] sm:$0xff]
  %v1435 = vld [vmem:[%s1429 + $0x28] sm:$0xff]
  %v1436 = vld [vmem:[%s1429 + $0x30] sm:$0xff]
  %v1437 = vld [vmem:[%s1429 + $0x38] sm:$0xff]
  %v1438 = vld [vmem:[%s1429 + $0x40] sm:$0xff]
  %v1439 = vld [vmem:[%s1429 + $0x48] sm:$0xff]
  %v1440 = vld [vmem:[%s1429 + $0x50] sm:$0xff]
  %v1441 = vld [vmem:[%s1429 + $0x58] sm:$0xff]
  %v1442 = vld [vmem:[%s1429 + $0x60] sm:$0xff]
  %v1443 = vld [vmem:[%s1429 + $0x68] sm:$0xff]
  %v1444 = vld [vmem:[%s1429 + $0x70] sm:$0xff]
  %v1445 = vld [vmem:[%s1429 + $0x78] sm:$0xff]
  %v1446 = vld [vmem:[%s1429 + $0x80] sm:$0xff]
  %v1447 = vld [vmem:[%s1429 + $0x88] sm:$0xff]
  %v1448 = vld [vmem:[%s1429 + $0x90] sm:$0x3f]
  %1449 = vset.pattern.permute.xlu0 6
  %1450 = vperm.xlu0 %1449, %v588
  %v1451 = vpop.permute.xlu0 %1450
  %1453 = vset.pattern.permute.xlu0 6
  %1454 = vperm.xlu0 %1453, %v589
  %v1455 = vpop.permute.xlu0 %1454
  %1457 = vset.pattern.permute.xlu0 6
  %1458 = vperm.xlu0 %1457, %v590
  %v1459 = vpop.permute.xlu0 %1458
  %1461 = vset.pattern.permute.xlu0 6
  %1462 = vperm.xlu0 %1461, %v591
  %v1463 = vpop.permute.xlu0 %1462
  %1465 = vset.pattern.permute.xlu0 6
  %1466 = vperm.xlu0 %1465, %v592
  %v1467 = vpop.permute.xlu0 %1466
  %1469 = vset.pattern.permute.xlu0 6
  %1470 = vperm.xlu0 %1469, %v593
  %v1471 = vpop.permute.xlu0 %1470
  %1473 = vset.pattern.permute.xlu0 6
  %1474 = vperm.xlu0 %1473, %v594
  %v1475 = vpop.permute.xlu0 %1474
  %1477 = vset.pattern.permute.xlu0 6
  %1478 = vperm.xlu0 %1477, %v595
  %v1479 = vpop.permute.xlu0 %1478
  %1481 = vset.pattern.permute.xlu0 6
  %1482 = vperm.xlu0 %1481, %v596
  %v1483 = vpop.permute.xlu0 %1482
  %1485 = vset.pattern.permute.xlu0 6
  %1486 = vperm.xlu0 %1485, %v597
  %v1487 = vpop.permute.xlu0 %1486
  %1489 = vset.pattern.permute.xlu0 6
  %1490 = vperm.xlu0 %1489, %v598
  %v1491 = vpop.permute.xlu0 %1490
  %1493 = vset.pattern.permute.xlu0 6
  %1494 = vperm.xlu0 %1493, %v599
  %v1495 = vpop.permute.xlu0 %1494
  %1497 = vset.pattern.permute.xlu0 6
  %1498 = vperm.xlu0 %1497, %v600
  %v1499 = vpop.permute.xlu0 %1498
  %1501 = vset.pattern.permute.xlu0 6
  %1502 = vperm.xlu0 %1501, %v601
  %v1503 = vpop.permute.xlu0 %1502
  %1505 = vset.pattern.permute.xlu0 6
  %1506 = vperm.xlu0 %1505, %v602
  %v1507 = vpop.permute.xlu0 %1506
  %1509 = vset.pattern.permute.xlu0 6
  %1510 = vperm.xlu0 %1509, %v603
  %v1511 = vpop.permute.xlu0 %1510
  %1513 = vset.pattern.permute.xlu0 6
  %1514 = vperm.xlu0 %1513, %v604
  %v1515 = vpop.permute.xlu0 %1514
  %1517 = vset.pattern.permute.xlu0 6
  %1518 = vperm.xlu0 %1517, %v605
  %v1519 = vpop.permute.xlu0 %1518
  %1521 = vset.pattern.permute.xlu0 6
  %1522 = vperm.xlu0 %1521, %v606
  %v1523 = vpop.permute.xlu0 %1522
  %v1525 = vmul.f32 %v1451, %v1430
  %v1526 = vmul.f32 %v1455, %v1431
  %v1527 = vmul.f32 %v1459, %v1432
  %v1528 = vmul.f32 %v1463, %v1433
  %v1529 = vmul.f32 %v1467, %v1434
  %v1530 = vmul.f32 %v1471, %v1435
  %v1531 = vmul.f32 %v1475, %v1436
  %v1532 = vmul.f32 %v1479, %v1437
  %v1533 = vmul.f32 %v1483, %v1438
  %v1534 = vmul.f32 %v1487, %v1439
  %v1535 = vmul.f32 %v1491, %v1440
  %v1536 = vmul.f32 %v1495, %v1441
  %v1537 = vmul.f32 %v1499, %v1442
  %v1538 = vmul.f32 %v1503, %v1443
  %v1539 = vmul.f32 %v1507, %v1444
  %v1540 = vmul.f32 %v1511, %v1445
  %v1541 = vmul.f32 %v1515, %v1446
  %v1542 = vmul.f32 %v1519, %v1447
  %v1543 = vmul.f32 %v1523, %v1448
  %v1544 = vadd.f32 %v1410, %v1525
  %v1545 = vadd.f32 %v1411, %v1526
  %v1546 = vadd.f32 %v1412, %v1527
  %v1547 = vadd.f32 %v1413, %v1528
  %v1548 = vadd.f32 %v1414, %v1529
  %v1549 = vadd.f32 %v1415, %v1530
  %v1550 = vadd.f32 %v1416, %v1531
  %v1551 = vadd.f32 %v1417, %v1532
  %v1552 = vadd.f32 %v1418, %v1533
  %v1553 = vadd.f32 %v1419, %v1534
  %v1554 = vadd.f32 %v1420, %v1535
  %v1555 = vadd.f32 %v1421, %v1536
  %v1556 = vadd.f32 %v1422, %v1537
  %v1557 = vadd.f32 %v1423, %v1538
  %v1558 = vadd.f32 %v1424, %v1539
  %v1559 = vadd.f32 %v1425, %v1540
  %v1560 = vadd.f32 %v1426, %v1541
  %v1561 = vadd.f32 %v1427, %v1542
  %v1562 = vadd.f32 %v1428, %v1543
  %s1563 = scalar_lea.vmem %s3, 1064
  %v1564 = vld [vmem:[%s1563] sm:$0xff]
  %v1565 = vld [vmem:[%s1563 + $0x8] sm:$0xff]
  %v1566 = vld [vmem:[%s1563 + $0x10] sm:$0xff]
  %v1567 = vld [vmem:[%s1563 + $0x18] sm:$0xff]
  %v1568 = vld [vmem:[%s1563 + $0x20] sm:$0xff]
  %v1569 = vld [vmem:[%s1563 + $0x28] sm:$0xff]
  %v1570 = vld [vmem:[%s1563 + $0x30] sm:$0xff]
  %v1571 = vld [vmem:[%s1563 + $0x38] sm:$0xff]
  %v1572 = vld [vmem:[%s1563 + $0x40] sm:$0xff]
  %v1573 = vld [vmem:[%s1563 + $0x48] sm:$0xff]
  %v1574 = vld [vmem:[%s1563 + $0x50] sm:$0xff]
  %v1575 = vld [vmem:[%s1563 + $0x58] sm:$0xff]
  %v1576 = vld [vmem:[%s1563 + $0x60] sm:$0xff]
  %v1577 = vld [vmem:[%s1563 + $0x68] sm:$0xff]
  %v1578 = vld [vmem:[%s1563 + $0x70] sm:$0xff]
  %v1579 = vld [vmem:[%s1563 + $0x78] sm:$0xff]
  %v1580 = vld [vmem:[%s1563 + $0x80] sm:$0xff]
  %v1581 = vld [vmem:[%s1563 + $0x88] sm:$0xff]
  %v1582 = vld [vmem:[%s1563 + $0x90] sm:$0x3f]
  %1583 = vset.pattern.permute.xlu0 7
  %1584 = vperm.xlu0 %1583, %v588
  %v1585 = vpop.permute.xlu0 %1584
  %1587 = vset.pattern.permute.xlu0 7
  %1588 = vperm.xlu0 %1587, %v589
  %v1589 = vpop.permute.xlu0 %1588
  %1591 = vset.pattern.permute.xlu0 7
  %1592 = vperm.xlu0 %1591, %v590
  %v1593 = vpop.permute.xlu0 %1592
  %1595 = vset.pattern.permute.xlu0 7
  %1596 = vperm.xlu0 %1595, %v591
  %v1597 = vpop.permute.xlu0 %1596
  %1599 = vset.pattern.permute.xlu0 7
  %1600 = vperm.xlu0 %1599, %v592
  %v1601 = vpop.permute.xlu0 %1600
  %1603 = vset.pattern.permute.xlu0 7
  %1604 = vperm.xlu0 %1603, %v593
  %v1605 = vpop.permute.xlu0 %1604
  %1607 = vset.pattern.permute.xlu0 7
  %1608 = vperm.xlu0 %1607, %v594
  %v1609 = vpop.permute.xlu0 %1608
  %1611 = vset.pattern.permute.xlu0 7
  %1612 = vperm.xlu0 %1611, %v595
  %v1613 = vpop.permute.xlu0 %1612
  %1615 = vset.pattern.permute.xlu0 7
  %1616 = vperm.xlu0 %1615, %v596
  %v1617 = vpop.permute.xlu0 %1616
  %1619 = vset.pattern.permute.xlu0 7
  %1620 = vperm.xlu0 %1619, %v597
  %v1621 = vpop.permute.xlu0 %1620
  %1623 = vset.pattern.permute.xlu0 7
  %1624 = vperm.xlu0 %1623, %v598
  %v1625 = vpop.permute.xlu0 %1624
  %1627 = vset.pattern.permute.xlu0 7
  %1628 = vperm.xlu0 %1627, %v599
  %v1629 = vpop.permute.xlu0 %1628
  %1631 = vset.pattern.permute.xlu0 7
  %1632 = vperm.xlu0 %1631, %v600
  %v1633 = vpop.permute.xlu0 %1632
  %1635 = vset.pattern.permute.xlu0 7
  %1636 = vperm.xlu0 %1635, %v601
  %v1637 = vpop.permute.xlu0 %1636
  %1639 = vset.pattern.permute.xlu0 7
  %1640 = vperm.xlu0 %1639, %v602
  %v1641 = vpop.permute.xlu0 %1640
  %1643 = vset.pattern.permute.xlu0 7
  %1644 = vperm.xlu0 %1643, %v603
  %v1645 = vpop.permute.xlu0 %1644
  %1647 = vset.pattern.permute.xlu0 7
  %1648 = vperm.xlu0 %1647, %v604
  %v1649 = vpop.permute.xlu0 %1648
  %1651 = vset.pattern.permute.xlu0 7
  %1652 = vperm.xlu0 %1651, %v605
  %v1653 = vpop.permute.xlu0 %1652
  %1655 = vset.pattern.permute.xlu0 7
  %1656 = vperm.xlu0 %1655, %v606
  %v1657 = vpop.permute.xlu0 %1656
  %v1659 = vmul.f32 %v1585, %v1564
  %v1660 = vmul.f32 %v1589, %v1565
  %v1661 = vmul.f32 %v1593, %v1566
  %v1662 = vmul.f32 %v1597, %v1567
  %v1663 = vmul.f32 %v1601, %v1568
  %v1664 = vmul.f32 %v1605, %v1569
  %v1665 = vmul.f32 %v1609, %v1570
  %v1666 = vmul.f32 %v1613, %v1571
  %v1667 = vmul.f32 %v1617, %v1572
  %v1668 = vmul.f32 %v1621, %v1573
  %v1669 = vmul.f32 %v1625, %v1574
  %v1670 = vmul.f32 %v1629, %v1575
  %v1671 = vmul.f32 %v1633, %v1576
  %v1672 = vmul.f32 %v1637, %v1577
  %v1673 = vmul.f32 %v1641, %v1578
  %v1674 = vmul.f32 %v1645, %v1579
  %v1675 = vmul.f32 %v1649, %v1580
  %v1676 = vmul.f32 %v1653, %v1581
  %v1677 = vmul.f32 %v1657, %v1582
  %v1678 = vadd.f32 %v1544, %v1659
  %v1679 = vadd.f32 %v1545, %v1660
  %v1680 = vadd.f32 %v1546, %v1661
  %v1681 = vadd.f32 %v1547, %v1662
  %v1682 = vadd.f32 %v1548, %v1663
  %v1683 = vadd.f32 %v1549, %v1664
  %v1684 = vadd.f32 %v1550, %v1665
  %v1685 = vadd.f32 %v1551, %v1666
  %v1686 = vadd.f32 %v1552, %v1667
  %v1687 = vadd.f32 %v1553, %v1668
  %v1688 = vadd.f32 %v1554, %v1669
  %v1689 = vadd.f32 %v1555, %v1670
  %v1690 = vadd.f32 %v1556, %v1671
  %v1691 = vadd.f32 %v1557, %v1672
  %v1692 = vadd.f32 %v1558, %v1673
  %v1693 = vadd.f32 %v1559, %v1674
  %v1694 = vadd.f32 %v1560, %v1675
  %v1695 = vadd.f32 %v1561, %v1676
  %v1696 = vadd.f32 %v1562, %v1677
  %s1697 = scalar_lea.vmem %s3, 1216
  %v1698 = vld [vmem:[%s1697] sm:$0xff]
  %v1699 = vld [vmem:[%s1697 + $0x8] sm:$0xff]
  %v1700 = vld [vmem:[%s1697 + $0x10] sm:$0xff]
  %v1701 = vld [vmem:[%s1697 + $0x18] sm:$0xff]
  %v1702 = vld [vmem:[%s1697 + $0x20] sm:$0xff]
  %v1703 = vld [vmem:[%s1697 + $0x28] sm:$0xff]
  %v1704 = vld [vmem:[%s1697 + $0x30] sm:$0xff]
  %v1705 = vld [vmem:[%s1697 + $0x38] sm:$0xff]
  %v1706 = vld [vmem:[%s1697 + $0x40] sm:$0xff]
  %v1707 = vld [vmem:[%s1697 + $0x48] sm:$0xff]
  %v1708 = vld [vmem:[%s1697 + $0x50] sm:$0xff]
  %v1709 = vld [vmem:[%s1697 + $0x58] sm:$0xff]
  %v1710 = vld [vmem:[%s1697 + $0x60] sm:$0xff]
  %v1711 = vld [vmem:[%s1697 + $0x68] sm:$0xff]
  %v1712 = vld [vmem:[%s1697 + $0x70] sm:$0xff]
  %v1713 = vld [vmem:[%s1697 + $0x78] sm:$0xff]
  %v1714 = vld [vmem:[%s1697 + $0x80] sm:$0xff]
  %v1715 = vld [vmem:[%s1697 + $0x88] sm:$0xff]
  %v1716 = vld [vmem:[%s1697 + $0x90] sm:$0x3f]
  %1717 = vset.pattern.permute.xlu0 8
  %1718 = vperm.xlu0 %1717, %v588
  %v1719 = vpop.permute.xlu0 %1718
  %1721 = vset.pattern.permute.xlu0 8
  %1722 = vperm.xlu0 %1721, %v589
  %v1723 = vpop.permute.xlu0 %1722
  %1725 = vset.pattern.permute.xlu0 8
  %1726 = vperm.xlu0 %1725, %v590
  %v1727 = vpop.permute.xlu0 %1726
  %1729 = vset.pattern.permute.xlu0 8
  %1730 = vperm.xlu0 %1729, %v591
  %v1731 = vpop.permute.xlu0 %1730
  %1733 = vset.pattern.permute.xlu0 8
  %1734 = vperm.xlu0 %1733, %v592
  %v1735 = vpop.permute.xlu0 %1734
  %1737 = vset.pattern.permute.xlu0 8
  %1738 = vperm.xlu0 %1737, %v593
  %v1739 = vpop.permute.xlu0 %1738
  %1741 = vset.pattern.permute.xlu0 8
  %1742 = vperm.xlu0 %1741, %v594
  %v1743 = vpop.permute.xlu0 %1742
  %1745 = vset.pattern.permute.xlu0 8
  %1746 = vperm.xlu0 %1745, %v595
  %v1747 = vpop.permute.xlu0 %1746
  %1749 = vset.pattern.permute.xlu0 8
  %1750 = vperm.xlu0 %1749, %v596
  %v1751 = vpop.permute.xlu0 %1750
  %1753 = vset.pattern.permute.xlu0 8
  %1754 = vperm.xlu0 %1753, %v597
  %v1755 = vpop.permute.xlu0 %1754
  %1757 = vset.pattern.permute.xlu0 8
  %1758 = vperm.xlu0 %1757, %v598
  %v1759 = vpop.permute.xlu0 %1758
  %1761 = vset.pattern.permute.xlu0 8
  %1762 = vperm.xlu0 %1761, %v599
  %v1763 = vpop.permute.xlu0 %1762
  %1765 = vset.pattern.permute.xlu0 8
  %1766 = vperm.xlu0 %1765, %v600
  %v1767 = vpop.permute.xlu0 %1766
  %1769 = vset.pattern.permute.xlu0 8
  %1770 = vperm.xlu0 %1769, %v601
  %v1771 = vpop.permute.xlu0 %1770
  %1773 = vset.pattern.permute.xlu0 8
  %1774 = vperm.xlu0 %1773, %v602
  %v1775 = vpop.permute.xlu0 %1774
  %1777 = vset.pattern.permute.xlu0 8
  %1778 = vperm.xlu0 %1777, %v603
  %v1779 = vpop.permute.xlu0 %1778
  %1781 = vset.pattern.permute.xlu0 8
  %1782 = vperm.xlu0 %1781, %v604
  %v1783 = vpop.permute.xlu0 %1782
  %1785 = vset.pattern.permute.xlu0 8
  %1786 = vperm.xlu0 %1785, %v605
  %v1787 = vpop.permute.xlu0 %1786
  %1789 = vset.pattern.permute.xlu0 8
  %1790 = vperm.xlu0 %1789, %v606
  %v1791 = vpop.permute.xlu0 %1790
  %v1793 = vmul.f32 %v1719, %v1698
  %v1794 = vmul.f32 %v1723, %v1699
  %v1795 = vmul.f32 %v1727, %v1700
  %v1796 = vmul.f32 %v1731, %v1701
  %v1797 = vmul.f32 %v1735, %v1702
  %v1798 = vmul.f32 %v1739, %v1703
  %v1799 = vmul.f32 %v1743, %v1704
  %v1800 = vmul.f32 %v1747, %v1705
  %v1801 = vmul.f32 %v1751, %v1706
  %v1802 = vmul.f32 %v1755, %v1707
  %v1803 = vmul.f32 %v1759, %v1708
  %v1804 = vmul.f32 %v1763, %v1709
  %v1805 = vmul.f32 %v1767, %v1710
  %v1806 = vmul.f32 %v1771, %v1711
  %v1807 = vmul.f32 %v1775, %v1712
  %v1808 = vmul.f32 %v1779, %v1713
  %v1809 = vmul.f32 %v1783, %v1714
  %v1810 = vmul.f32 %v1787, %v1715
  %v1811 = vmul.f32 %v1791, %v1716
  %v1812 = vadd.f32 %v1678, %v1793
  %v1813 = vadd.f32 %v1679, %v1794
  %v1814 = vadd.f32 %v1680, %v1795
  %v1815 = vadd.f32 %v1681, %v1796
  %v1816 = vadd.f32 %v1682, %v1797
  %v1817 = vadd.f32 %v1683, %v1798
  %v1818 = vadd.f32 %v1684, %v1799
  %v1819 = vadd.f32 %v1685, %v1800
  %v1820 = vadd.f32 %v1686, %v1801
  %v1821 = vadd.f32 %v1687, %v1802
  %v1822 = vadd.f32 %v1688, %v1803
  %v1823 = vadd.f32 %v1689, %v1804
  %v1824 = vadd.f32 %v1690, %v1805
  %v1825 = vadd.f32 %v1691, %v1806
  %v1826 = vadd.f32 %v1692, %v1807
  %v1827 = vadd.f32 %v1693, %v1808
  %v1828 = vadd.f32 %v1694, %v1809
  %v1829 = vadd.f32 %v1695, %v1810
  %v1830 = vadd.f32 %v1696, %v1811
  %s1831 = scalar_lea.vmem %s3, 1368
  %v1832 = vld [vmem:[%s1831] sm:$0xff]
  %v1833 = vld [vmem:[%s1831 + $0x8] sm:$0xff]
  %v1834 = vld [vmem:[%s1831 + $0x10] sm:$0xff]
  %v1835 = vld [vmem:[%s1831 + $0x18] sm:$0xff]
  %v1836 = vld [vmem:[%s1831 + $0x20] sm:$0xff]
  %v1837 = vld [vmem:[%s1831 + $0x28] sm:$0xff]
  %v1838 = vld [vmem:[%s1831 + $0x30] sm:$0xff]
  %v1839 = vld [vmem:[%s1831 + $0x38] sm:$0xff]
  %v1840 = vld [vmem:[%s1831 + $0x40] sm:$0xff]
  %v1841 = vld [vmem:[%s1831 + $0x48] sm:$0xff]
  %v1842 = vld [vmem:[%s1831 + $0x50] sm:$0xff]
  %v1843 = vld [vmem:[%s1831 + $0x58] sm:$0xff]
  %v1844 = vld [vmem:[%s1831 + $0x60] sm:$0xff]
  %v1845 = vld [vmem:[%s1831 + $0x68] sm:$0xff]
  %v1846 = vld [vmem:[%s1831 + $0x70] sm:$0xff]
  %v1847 = vld [vmem:[%s1831 + $0x78] sm:$0xff]
  %v1848 = vld [vmem:[%s1831 + $0x80] sm:$0xff]
  %v1849 = vld [vmem:[%s1831 + $0x88] sm:$0xff]
  %v1850 = vld [vmem:[%s1831 + $0x90] sm:$0x3f]
  %1851 = vset.pattern.permute.xlu0 9
  %1852 = vperm.xlu0 %1851, %v588
  %v1853 = vpop.permute.xlu0 %1852
  %1855 = vset.pattern.permute.xlu0 9
  %1856 = vperm.xlu0 %1855, %v589
  %v1857 = vpop.permute.xlu0 %1856
  %1859 = vset.pattern.permute.xlu0 9
  %1860 = vperm.xlu0 %1859, %v590
  %v1861 = vpop.permute.xlu0 %1860
  %1863 = vset.pattern.permute.xlu0 9
  %1864 = vperm.xlu0 %1863, %v591
  %v1865 = vpop.permute.xlu0 %1864
  %1867 = vset.pattern.permute.xlu0 9
  %1868 = vperm.xlu0 %1867, %v592
  %v1869 = vpop.permute.xlu0 %1868
  %1871 = vset.pattern.permute.xlu0 9
  %1872 = vperm.xlu0 %1871, %v593
  %v1873 = vpop.permute.xlu0 %1872
  %1875 = vset.pattern.permute.xlu0 9
  %1876 = vperm.xlu0 %1875, %v594
  %v1877 = vpop.permute.xlu0 %1876
  %1879 = vset.pattern.permute.xlu0 9
  %1880 = vperm.xlu0 %1879, %v595
  %v1881 = vpop.permute.xlu0 %1880
  %1883 = vset.pattern.permute.xlu0 9
  %1884 = vperm.xlu0 %1883, %v596
  %v1885 = vpop.permute.xlu0 %1884
  %1887 = vset.pattern.permute.xlu0 9
  %1888 = vperm.xlu0 %1887, %v597
  %v1889 = vpop.permute.xlu0 %1888
  %1891 = vset.pattern.permute.xlu0 9
  %1892 = vperm.xlu0 %1891, %v598
  %v1893 = vpop.permute.xlu0 %1892
  %1895 = vset.pattern.permute.xlu0 9
  %1896 = vperm.xlu0 %1895, %v599
  %v1897 = vpop.permute.xlu0 %1896
  %1899 = vset.pattern.permute.xlu0 9
  %1900 = vperm.xlu0 %1899, %v600
  %v1901 = vpop.permute.xlu0 %1900
  %1903 = vset.pattern.permute.xlu0 9
  %1904 = vperm.xlu0 %1903, %v601
  %v1905 = vpop.permute.xlu0 %1904
  %1907 = vset.pattern.permute.xlu0 9
  %1908 = vperm.xlu0 %1907, %v602
  %v1909 = vpop.permute.xlu0 %1908
  %1911 = vset.pattern.permute.xlu0 9
  %1912 = vperm.xlu0 %1911, %v603
  %v1913 = vpop.permute.xlu0 %1912
  %1915 = vset.pattern.permute.xlu0 9
  %1916 = vperm.xlu0 %1915, %v604
  %v1917 = vpop.permute.xlu0 %1916
  %1919 = vset.pattern.permute.xlu0 9
  %1920 = vperm.xlu0 %1919, %v605
  %v1921 = vpop.permute.xlu0 %1920
  %1923 = vset.pattern.permute.xlu0 9
  %1924 = vperm.xlu0 %1923, %v606
  %v1925 = vpop.permute.xlu0 %1924
  %v1927 = vmul.f32 %v1853, %v1832
  %v1928 = vmul.f32 %v1857, %v1833
  %v1929 = vmul.f32 %v1861, %v1834
  %v1930 = vmul.f32 %v1865, %v1835
  %v1931 = vmul.f32 %v1869, %v1836
  %v1932 = vmul.f32 %v1873, %v1837
  %v1933 = vmul.f32 %v1877, %v1838
  %v1934 = vmul.f32 %v1881, %v1839
  %v1935 = vmul.f32 %v1885, %v1840
  %v1936 = vmul.f32 %v1889, %v1841
  %v1937 = vmul.f32 %v1893, %v1842
  %v1938 = vmul.f32 %v1897, %v1843
  %v1939 = vmul.f32 %v1901, %v1844
  %v1940 = vmul.f32 %v1905, %v1845
  %v1941 = vmul.f32 %v1909, %v1846
  %v1942 = vmul.f32 %v1913, %v1847
  %v1943 = vmul.f32 %v1917, %v1848
  %v1944 = vmul.f32 %v1921, %v1849
  %v1945 = vmul.f32 %v1925, %v1850
  %v1946 = vadd.f32 %v1812, %v1927
  %v1947 = vadd.f32 %v1813, %v1928
  %v1948 = vadd.f32 %v1814, %v1929
  %v1949 = vadd.f32 %v1815, %v1930
  %v1950 = vadd.f32 %v1816, %v1931
  %v1951 = vadd.f32 %v1817, %v1932
  %v1952 = vadd.f32 %v1818, %v1933
  %v1953 = vadd.f32 %v1819, %v1934
  %v1954 = vadd.f32 %v1820, %v1935
  %v1955 = vadd.f32 %v1821, %v1936
  %v1956 = vadd.f32 %v1822, %v1937
  %v1957 = vadd.f32 %v1823, %v1938
  %v1958 = vadd.f32 %v1824, %v1939
  %v1959 = vadd.f32 %v1825, %v1940
  %v1960 = vadd.f32 %v1826, %v1941
  %v1961 = vadd.f32 %v1827, %v1942
  %v1962 = vadd.f32 %v1828, %v1943
  %v1963 = vadd.f32 %v1829, %v1944
  %v1964 = vadd.f32 %v1830, %v1945
  %s1965 = scalar_lea.vmem %s3, 1520
  %v1966 = vld [vmem:[%s1965] sm:$0xff]
  %v1967 = vld [vmem:[%s1965 + $0x8] sm:$0xff]
  %v1968 = vld [vmem:[%s1965 + $0x10] sm:$0xff]
  %v1969 = vld [vmem:[%s1965 + $0x18] sm:$0xff]
  %v1970 = vld [vmem:[%s1965 + $0x20] sm:$0xff]
  %v1971 = vld [vmem:[%s1965 + $0x28] sm:$0xff]
  %v1972 = vld [vmem:[%s1965 + $0x30] sm:$0xff]
  %v1973 = vld [vmem:[%s1965 + $0x38] sm:$0xff]
  %v1974 = vld [vmem:[%s1965 + $0x40] sm:$0xff]
  %v1975 = vld [vmem:[%s1965 + $0x48] sm:$0xff]
  %v1976 = vld [vmem:[%s1965 + $0x50] sm:$0xff]
  %v1977 = vld [vmem:[%s1965 + $0x58] sm:$0xff]
  %v1978 = vld [vmem:[%s1965 + $0x60] sm:$0xff]
  %v1979 = vld [vmem:[%s1965 + $0x68] sm:$0xff]
  %v1980 = vld [vmem:[%s1965 + $0x70] sm:$0xff]
  %v1981 = vld [vmem:[%s1965 + $0x78] sm:$0xff]
  %v1982 = vld [vmem:[%s1965 + $0x80] sm:$0xff]
  %v1983 = vld [vmem:[%s1965 + $0x88] sm:$0xff]
  %v1984 = vld [vmem:[%s1965 + $0x90] sm:$0x3f]
  %1985 = vset.pattern.permute.xlu0 10
  %1986 = vperm.xlu0 %1985, %v588
  %v1987 = vpop.permute.xlu0 %1986
  %1989 = vset.pattern.permute.xlu0 10
  %1990 = vperm.xlu0 %1989, %v589
  %v1991 = vpop.permute.xlu0 %1990
  %1993 = vset.pattern.permute.xlu0 10
  %1994 = vperm.xlu0 %1993, %v590
  %v1995 = vpop.permute.xlu0 %1994
  %1997 = vset.pattern.permute.xlu0 10
  %1998 = vperm.xlu0 %1997, %v591
  %v1999 = vpop.permute.xlu0 %1998
  %2001 = vset.pattern.permute.xlu0 10
  %2002 = vperm.xlu0 %2001, %v592
  %v2003 = vpop.permute.xlu0 %2002
  %2005 = vset.pattern.permute.xlu0 10
  %2006 = vperm.xlu0 %2005, %v593
  %v2007 = vpop.permute.xlu0 %2006
  %2009 = vset.pattern.permute.xlu0 10
  %2010 = vperm.xlu0 %2009, %v594
  %v2011 = vpop.permute.xlu0 %2010
  %2013 = vset.pattern.permute.xlu0 10
  %2014 = vperm.xlu0 %2013, %v595
  %v2015 = vpop.permute.xlu0 %2014
  %2017 = vset.pattern.permute.xlu0 10
  %2018 = vperm.xlu0 %2017, %v596
  %v2019 = vpop.permute.xlu0 %2018
  %2021 = vset.pattern.permute.xlu0 10
  %2022 = vperm.xlu0 %2021, %v597
  %v2023 = vpop.permute.xlu0 %2022
  %2025 = vset.pattern.permute.xlu0 10
  %2026 = vperm.xlu0 %2025, %v598
  %v2027 = vpop.permute.xlu0 %2026
  %2029 = vset.pattern.permute.xlu0 10
  %2030 = vperm.xlu0 %2029, %v599
  %v2031 = vpop.permute.xlu0 %2030
  %2033 = vset.pattern.permute.xlu0 10
  %2034 = vperm.xlu0 %2033, %v600
  %v2035 = vpop.permute.xlu0 %2034
  %2037 = vset.pattern.permute.xlu0 10
  %2038 = vperm.xlu0 %2037, %v601
  %v2039 = vpop.permute.xlu0 %2038
  %2041 = vset.pattern.permute.xlu0 10
  %2042 = vperm.xlu0 %2041, %v602
  %v2043 = vpop.permute.xlu0 %2042
  %2045 = vset.pattern.permute.xlu0 10
  %2046 = vperm.xlu0 %2045, %v603
  %v2047 = vpop.permute.xlu0 %2046
  %2049 = vset.pattern.permute.xlu0 10
  %2050 = vperm.xlu0 %2049, %v604
  %v2051 = vpop.permute.xlu0 %2050
  %2053 = vset.pattern.permute.xlu0 10
  %2054 = vperm.xlu0 %2053, %v605
  %v2055 = vpop.permute.xlu0 %2054
  %2057 = vset.pattern.permute.xlu0 10
  %2058 = vperm.xlu0 %2057, %v606
  %v2059 = vpop.permute.xlu0 %2058
  %v2061 = vmul.f32 %v1987, %v1966
  %v2062 = vmul.f32 %v1991, %v1967
  %v2063 = vmul.f32 %v1995, %v1968
  %v2064 = vmul.f32 %v1999, %v1969
  %v2065 = vmul.f32 %v2003, %v1970
  %v2066 = vmul.f32 %v2007, %v1971
  %v2067 = vmul.f32 %v2011, %v1972
  %v2068 = vmul.f32 %v2015, %v1973
  %v2069 = vmul.f32 %v2019, %v1974
  %v2070 = vmul.f32 %v2023, %v1975
  %v2071 = vmul.f32 %v2027, %v1976
  %v2072 = vmul.f32 %v2031, %v1977
  %v2073 = vmul.f32 %v2035, %v1978
  %v2074 = vmul.f32 %v2039, %v1979
  %v2075 = vmul.f32 %v2043, %v1980
  %v2076 = vmul.f32 %v2047, %v1981
  %v2077 = vmul.f32 %v2051, %v1982
  %v2078 = vmul.f32 %v2055, %v1983
  %v2079 = vmul.f32 %v2059, %v1984
  %v2080 = vadd.f32 %v1946, %v2061
  %v2081 = vadd.f32 %v1947, %v2062
  %v2082 = vadd.f32 %v1948, %v2063
  %v2083 = vadd.f32 %v1949, %v2064
  %v2084 = vadd.f32 %v1950, %v2065
  %v2085 = vadd.f32 %v1951, %v2066
  %v2086 = vadd.f32 %v1952, %v2067
  %v2087 = vadd.f32 %v1953, %v2068
  %v2088 = vadd.f32 %v1954, %v2069
  %v2089 = vadd.f32 %v1955, %v2070
  %v2090 = vadd.f32 %v1956, %v2071
  %v2091 = vadd.f32 %v1957, %v2072
  %v2092 = vadd.f32 %v1958, %v2073
  %v2093 = vadd.f32 %v1959, %v2074
  %v2094 = vadd.f32 %v1960, %v2075
  %v2095 = vadd.f32 %v1961, %v2076
  %v2096 = vadd.f32 %v1962, %v2077
  %v2097 = vadd.f32 %v1963, %v2078
  %v2098 = vadd.f32 %v1964, %v2079
  %s2099 = scalar_lea.vmem %s3, 1672
  %v2100 = vld [vmem:[%s2099] sm:$0xff]
  %v2101 = vld [vmem:[%s2099 + $0x8] sm:$0xff]
  %v2102 = vld [vmem:[%s2099 + $0x10] sm:$0xff]
  %v2103 = vld [vmem:[%s2099 + $0x18] sm:$0xff]
  %v2104 = vld [vmem:[%s2099 + $0x20] sm:$0xff]
  %v2105 = vld [vmem:[%s2099 + $0x28] sm:$0xff]
  %v2106 = vld [vmem:[%s2099 + $0x30] sm:$0xff]
  %v2107 = vld [vmem:[%s2099 + $0x38] sm:$0xff]
  %v2108 = vld [vmem:[%s2099 + $0x40] sm:$0xff]
  %v2109 = vld [vmem:[%s2099 + $0x48] sm:$0xff]
  %v2110 = vld [vmem:[%s2099 + $0x50] sm:$0xff]
  %v2111 = vld [vmem:[%s2099 + $0x58] sm:$0xff]
  %v2112 = vld [vmem:[%s2099 + $0x60] sm:$0xff]
  %v2113 = vld [vmem:[%s2099 + $0x68] sm:$0xff]
  %v2114 = vld [vmem:[%s2099 + $0x70] sm:$0xff]
  %v2115 = vld [vmem:[%s2099 + $0x78] sm:$0xff]
  %v2116 = vld [vmem:[%s2099 + $0x80] sm:$0xff]
  %v2117 = vld [vmem:[%s2099 + $0x88] sm:$0xff]
  %v2118 = vld [vmem:[%s2099 + $0x90] sm:$0x3f]
  %2119 = vset.pattern.permute.xlu0 11
  %2120 = vperm.xlu0 %2119, %v588
  %v2121 = vpop.permute.xlu0 %2120
  %2123 = vset.pattern.permute.xlu0 11
  %2124 = vperm.xlu0 %2123, %v589
  %v2125 = vpop.permute.xlu0 %2124
  %2127 = vset.pattern.permute.xlu0 11
  %2128 = vperm.xlu0 %2127, %v590
  %v2129 = vpop.permute.xlu0 %2128
  %2131 = vset.pattern.permute.xlu0 11
  %2132 = vperm.xlu0 %2131, %v591
  %v2133 = vpop.permute.xlu0 %2132
  %2135 = vset.pattern.permute.xlu0 11
  %2136 = vperm.xlu0 %2135, %v592
  %v2137 = vpop.permute.xlu0 %2136
  %2139 = vset.pattern.permute.xlu0 11
  %2140 = vperm.xlu0 %2139, %v593
  %v2141 = vpop.permute.xlu0 %2140
  %2143 = vset.pattern.permute.xlu0 11
  %2144 = vperm.xlu0 %2143, %v594
  %v2145 = vpop.permute.xlu0 %2144
  %2147 = vset.pattern.permute.xlu0 11
  %2148 = vperm.xlu0 %2147, %v595
  %v2149 = vpop.permute.xlu0 %2148
  %2151 = vset.pattern.permute.xlu0 11
  %2152 = vperm.xlu0 %2151, %v596
  %v2153 = vpop.permute.xlu0 %2152
  %2155 = vset.pattern.permute.xlu0 11
  %2156 = vperm.xlu0 %2155, %v597
  %v2157 = vpop.permute.xlu0 %2156
  %2159 = vset.pattern.permute.xlu0 11
  %2160 = vperm.xlu0 %2159, %v598
  %v2161 = vpop.permute.xlu0 %2160
  %2163 = vset.pattern.permute.xlu0 11
  %2164 = vperm.xlu0 %2163, %v599
  %v2165 = vpop.permute.xlu0 %2164
  %2167 = vset.pattern.permute.xlu0 11
  %2168 = vperm.xlu0 %2167, %v600
  %v2169 = vpop.permute.xlu0 %2168
  %2171 = vset.pattern.permute.xlu0 11
  %2172 = vperm.xlu0 %2171, %v601
  %v2173 = vpop.permute.xlu0 %2172
  %2175 = vset.pattern.permute.xlu0 11
  %2176 = vperm.xlu0 %2175, %v602
  %v2177 = vpop.permute.xlu0 %2176
  %2179 = vset.pattern.permute.xlu0 11
  %2180 = vperm.xlu0 %2179, %v603
  %v2181 = vpop.permute.xlu0 %2180
  %2183 = vset.pattern.permute.xlu0 11
  %2184 = vperm.xlu0 %2183, %v604
  %v2185 = vpop.permute.xlu0 %2184
  %2187 = vset.pattern.permute.xlu0 11
  %2188 = vperm.xlu0 %2187, %v605
  %v2189 = vpop.permute.xlu0 %2188
  %2191 = vset.pattern.permute.xlu0 11
  %2192 = vperm.xlu0 %2191, %v606
  %v2193 = vpop.permute.xlu0 %2192
  %v2195 = vmul.f32 %v2121, %v2100
  %v2196 = vmul.f32 %v2125, %v2101
  %v2197 = vmul.f32 %v2129, %v2102
  %v2198 = vmul.f32 %v2133, %v2103
  %v2199 = vmul.f32 %v2137, %v2104
  %v2200 = vmul.f32 %v2141, %v2105
  %v2201 = vmul.f32 %v2145, %v2106
  %v2202 = vmul.f32 %v2149, %v2107
  %v2203 = vmul.f32 %v2153, %v2108
  %v2204 = vmul.f32 %v2157, %v2109
  %v2205 = vmul.f32 %v2161, %v2110
  %v2206 = vmul.f32 %v2165, %v2111
  %v2207 = vmul.f32 %v2169, %v2112
  %v2208 = vmul.f32 %v2173, %v2113
  %v2209 = vmul.f32 %v2177, %v2114
  %v2210 = vmul.f32 %v2181, %v2115
  %v2211 = vmul.f32 %v2185, %v2116
  %v2212 = vmul.f32 %v2189, %v2117
  %v2213 = vmul.f32 %v2193, %v2118
  %v2214 = vadd.f32 %v2080, %v2195
  %v2215 = vadd.f32 %v2081, %v2196
  %v2216 = vadd.f32 %v2082, %v2197
  %v2217 = vadd.f32 %v2083, %v2198
  %v2218 = vadd.f32 %v2084, %v2199
  %v2219 = vadd.f32 %v2085, %v2200
  %v2220 = vadd.f32 %v2086, %v2201
  %v2221 = vadd.f32 %v2087, %v2202
  %v2222 = vadd.f32 %v2088, %v2203
  %v2223 = vadd.f32 %v2089, %v2204
  %v2224 = vadd.f32 %v2090, %v2205
  %v2225 = vadd.f32 %v2091, %v2206
  %v2226 = vadd.f32 %v2092, %v2207
  %v2227 = vadd.f32 %v2093, %v2208
  %v2228 = vadd.f32 %v2094, %v2209
  %v2229 = vadd.f32 %v2095, %v2210
  %v2230 = vadd.f32 %v2096, %v2211
  %v2231 = vadd.f32 %v2097, %v2212
  %v2232 = vadd.f32 %v2098, %v2213
  %s2233 = scalar_lea.vmem %s3, 1824
  %v2234 = vld [vmem:[%s2233] sm:$0xff]
  %v2235 = vld [vmem:[%s2233 + $0x8] sm:$0xff]
  %v2236 = vld [vmem:[%s2233 + $0x10] sm:$0xff]
  %v2237 = vld [vmem:[%s2233 + $0x18] sm:$0xff]
  %v2238 = vld [vmem:[%s2233 + $0x20] sm:$0xff]
  %v2239 = vld [vmem:[%s2233 + $0x28] sm:$0xff]
  %v2240 = vld [vmem:[%s2233 + $0x30] sm:$0xff]
  %v2241 = vld [vmem:[%s2233 + $0x38] sm:$0xff]
  %v2242 = vld [vmem:[%s2233 + $0x40] sm:$0xff]
  %v2243 = vld [vmem:[%s2233 + $0x48] sm:$0xff]
  %v2244 = vld [vmem:[%s2233 + $0x50] sm:$0xff]
  %v2245 = vld [vmem:[%s2233 + $0x58] sm:$0xff]
  %v2246 = vld [vmem:[%s2233 + $0x60] sm:$0xff]
  %v2247 = vld [vmem:[%s2233 + $0x68] sm:$0xff]
  %v2248 = vld [vmem:[%s2233 + $0x70] sm:$0xff]
  %v2249 = vld [vmem:[%s2233 + $0x78] sm:$0xff]
  %v2250 = vld [vmem:[%s2233 + $0x80] sm:$0xff]
  %v2251 = vld [vmem:[%s2233 + $0x88] sm:$0xff]
  %v2252 = vld [vmem:[%s2233 + $0x90] sm:$0x3f]
  %2253 = vset.pattern.permute.xlu0 12
  %2254 = vperm.xlu0 %2253, %v588
  %v2255 = vpop.permute.xlu0 %2254
  %2257 = vset.pattern.permute.xlu0 12
  %2258 = vperm.xlu0 %2257, %v589
  %v2259 = vpop.permute.xlu0 %2258
  %2261 = vset.pattern.permute.xlu0 12
  %2262 = vperm.xlu0 %2261, %v590
  %v2263 = vpop.permute.xlu0 %2262
  %2265 = vset.pattern.permute.xlu0 12
  %2266 = vperm.xlu0 %2265, %v591
  %v2267 = vpop.permute.xlu0 %2266
  %2269 = vset.pattern.permute.xlu0 12
  %2270 = vperm.xlu0 %2269, %v592
  %v2271 = vpop.permute.xlu0 %2270
  %2273 = vset.pattern.permute.xlu0 12
  %2274 = vperm.xlu0 %2273, %v593
  %v2275 = vpop.permute.xlu0 %2274
  %2277 = vset.pattern.permute.xlu0 12
  %2278 = vperm.xlu0 %2277, %v594
  %v2279 = vpop.permute.xlu0 %2278
  %2281 = vset.pattern.permute.xlu0 12
  %2282 = vperm.xlu0 %2281, %v595
  %v2283 = vpop.permute.xlu0 %2282
  %2285 = vset.pattern.permute.xlu0 12
  %2286 = vperm.xlu0 %2285, %v596
  %v2287 = vpop.permute.xlu0 %2286
  %2289 = vset.pattern.permute.xlu0 12
  %2290 = vperm.xlu0 %2289, %v597
  %v2291 = vpop.permute.xlu0 %2290
  %2293 = vset.pattern.permute.xlu0 12
  %2294 = vperm.xlu0 %2293, %v598
  %v2295 = vpop.permute.xlu0 %2294
  %2297 = vset.pattern.permute.xlu0 12
  %2298 = vperm.xlu0 %2297, %v599
  %v2299 = vpop.permute.xlu0 %2298
  %2301 = vset.pattern.permute.xlu0 12
  %2302 = vperm.xlu0 %2301, %v600
  %v2303 = vpop.permute.xlu0 %2302
  %2305 = vset.pattern.permute.xlu0 12
  %2306 = vperm.xlu0 %2305, %v601
  %v2307 = vpop.permute.xlu0 %2306
  %2309 = vset.pattern.permute.xlu0 12
  %2310 = vperm.xlu0 %2309, %v602
  %v2311 = vpop.permute.xlu0 %2310
  %2313 = vset.pattern.permute.xlu0 12
  %2314 = vperm.xlu0 %2313, %v603
  %v2315 = vpop.permute.xlu0 %2314
  %2317 = vset.pattern.permute.xlu0 12
  %2318 = vperm.xlu0 %2317, %v604
  %v2319 = vpop.permute.xlu0 %2318
  %2321 = vset.pattern.permute.xlu0 12
  %2322 = vperm.xlu0 %2321, %v605
  %v2323 = vpop.permute.xlu0 %2322
  %2325 = vset.pattern.permute.xlu0 12
  %2326 = vperm.xlu0 %2325, %v606
  %v2327 = vpop.permute.xlu0 %2326
  %v2329 = vmul.f32 %v2255, %v2234
  %v2330 = vmul.f32 %v2259, %v2235
  %v2331 = vmul.f32 %v2263, %v2236
  %v2332 = vmul.f32 %v2267, %v2237
  %v2333 = vmul.f32 %v2271, %v2238
  %v2334 = vmul.f32 %v2275, %v2239
  %v2335 = vmul.f32 %v2279, %v2240
  %v2336 = vmul.f32 %v2283, %v2241
  %v2337 = vmul.f32 %v2287, %v2242
  %v2338 = vmul.f32 %v2291, %v2243
  %v2339 = vmul.f32 %v2295, %v2244
  %v2340 = vmul.f32 %v2299, %v2245
  %v2341 = vmul.f32 %v2303, %v2246
  %v2342 = vmul.f32 %v2307, %v2247
  %v2343 = vmul.f32 %v2311, %v2248
  %v2344 = vmul.f32 %v2315, %v2249
  %v2345 = vmul.f32 %v2319, %v2250
  %v2346 = vmul.f32 %v2323, %v2251
  %v2347 = vmul.f32 %v2327, %v2252
  %v2348 = vadd.f32 %v2214, %v2329
  %v2349 = vadd.f32 %v2215, %v2330
  %v2350 = vadd.f32 %v2216, %v2331
  %v2351 = vadd.f32 %v2217, %v2332
  %v2352 = vadd.f32 %v2218, %v2333
  %v2353 = vadd.f32 %v2219, %v2334
  %v2354 = vadd.f32 %v2220, %v2335
  %v2355 = vadd.f32 %v2221, %v2336
  %v2356 = vadd.f32 %v2222, %v2337
  %v2357 = vadd.f32 %v2223, %v2338
  %v2358 = vadd.f32 %v2224, %v2339
  %v2359 = vadd.f32 %v2225, %v2340
  %v2360 = vadd.f32 %v2226, %v2341
  %v2361 = vadd.f32 %v2227, %v2342
  %v2362 = vadd.f32 %v2228, %v2343
  %v2363 = vadd.f32 %v2229, %v2344
  %v2364 = vadd.f32 %v2230, %v2345
  %v2365 = vadd.f32 %v2231, %v2346
  %v2366 = vadd.f32 %v2232, %v2347
  %s2367 = scalar_lea.vmem %s3, 1976
  %v2368 = vld [vmem:[%s2367] sm:$0xff]
  %v2369 = vld [vmem:[%s2367 + $0x8] sm:$0xff]
  %v2370 = vld [vmem:[%s2367 + $0x10] sm:$0xff]
  %v2371 = vld [vmem:[%s2367 + $0x18] sm:$0xff]
  %v2372 = vld [vmem:[%s2367 + $0x20] sm:$0xff]
  %v2373 = vld [vmem:[%s2367 + $0x28] sm:$0xff]
  %v2374 = vld [vmem:[%s2367 + $0x30] sm:$0xff]
  %v2375 = vld [vmem:[%s2367 + $0x38] sm:$0xff]
  %v2376 = vld [vmem:[%s2367 + $0x40] sm:$0xff]
  %v2377 = vld [vmem:[%s2367 + $0x48] sm:$0xff]
  %v2378 = vld [vmem:[%s2367 + $0x50] sm:$0xff]
  %v2379 = vld [vmem:[%s2367 + $0x58] sm:$0xff]
  %v2380 = vld [vmem:[%s2367 + $0x60] sm:$0xff]
  %v2381 = vld [vmem:[%s2367 + $0x68] sm:$0xff]
  %v2382 = vld [vmem:[%s2367 + $0x70] sm:$0xff]
  %v2383 = vld [vmem:[%s2367 + $0x78] sm:$0xff]
  %v2384 = vld [vmem:[%s2367 + $0x80] sm:$0xff]
  %v2385 = vld [vmem:[%s2367 + $0x88] sm:$0xff]
  %v2386 = vld [vmem:[%s2367 + $0x90] sm:$0x3f]
  %2387 = vset.pattern.permute.xlu0 13
  %2388 = vperm.xlu0 %2387, %v588
  %v2389 = vpop.permute.xlu0 %2388
  %2391 = vset.pattern.permute.xlu0 13
  %2392 = vperm.xlu0 %2391, %v589
  %v2393 = vpop.permute.xlu0 %2392
  %2395 = vset.pattern.permute.xlu0 13
  %2396 = vperm.xlu0 %2395, %v590
  %v2397 = vpop.permute.xlu0 %2396
  %2399 = vset.pattern.permute.xlu0 13
  %2400 = vperm.xlu0 %2399, %v591
  %v2401 = vpop.permute.xlu0 %2400
  %2403 = vset.pattern.permute.xlu0 13
  %2404 = vperm.xlu0 %2403, %v592
  %v2405 = vpop.permute.xlu0 %2404
  %2407 = vset.pattern.permute.xlu0 13
  %2408 = vperm.xlu0 %2407, %v593
  %v2409 = vpop.permute.xlu0 %2408
  %2411 = vset.pattern.permute.xlu0 13
  %2412 = vperm.xlu0 %2411, %v594
  %v2413 = vpop.permute.xlu0 %2412
  %2415 = vset.pattern.permute.xlu0 13
  %2416 = vperm.xlu0 %2415, %v595
  %v2417 = vpop.permute.xlu0 %2416
  %2419 = vset.pattern.permute.xlu0 13
  %2420 = vperm.xlu0 %2419, %v596
  %v2421 = vpop.permute.xlu0 %2420
  %2423 = vset.pattern.permute.xlu0 13
  %2424 = vperm.xlu0 %2423, %v597
  %v2425 = vpop.permute.xlu0 %2424
  %2427 = vset.pattern.permute.xlu0 13
  %2428 = vperm.xlu0 %2427, %v598
  %v2429 = vpop.permute.xlu0 %2428
  %2431 = vset.pattern.permute.xlu0 13
  %2432 = vperm.xlu0 %2431, %v599
  %v2433 = vpop.permute.xlu0 %2432
  %2435 = vset.pattern.permute.xlu0 13
  %2436 = vperm.xlu0 %2435, %v600
  %v2437 = vpop.permute.xlu0 %2436
  %2439 = vset.pattern.permute.xlu0 13
  %2440 = vperm.xlu0 %2439, %v601
  %v2441 = vpop.permute.xlu0 %2440
  %2443 = vset.pattern.permute.xlu0 13
  %2444 = vperm.xlu0 %2443, %v602
  %v2445 = vpop.permute.xlu0 %2444
  %2447 = vset.pattern.permute.xlu0 13
  %2448 = vperm.xlu0 %2447, %v603
  %v2449 = vpop.permute.xlu0 %2448
  %2451 = vset.pattern.permute.xlu0 13
  %2452 = vperm.xlu0 %2451, %v604
  %v2453 = vpop.permute.xlu0 %2452
  %2455 = vset.pattern.permute.xlu0 13
  %2456 = vperm.xlu0 %2455, %v605
  %v2457 = vpop.permute.xlu0 %2456
  %2459 = vset.pattern.permute.xlu0 13
  %2460 = vperm.xlu0 %2459, %v606
  %v2461 = vpop.permute.xlu0 %2460
  %v2463 = vmul.f32 %v2389, %v2368
  %v2464 = vmul.f32 %v2393, %v2369
  %v2465 = vmul.f32 %v2397, %v2370
  %v2466 = vmul.f32 %v2401, %v2371
  %v2467 = vmul.f32 %v2405, %v2372
  %v2468 = vmul.f32 %v2409, %v2373
  %v2469 = vmul.f32 %v2413, %v2374
  %v2470 = vmul.f32 %v2417, %v2375
  %v2471 = vmul.f32 %v2421, %v2376
  %v2472 = vmul.f32 %v2425, %v2377
  %v2473 = vmul.f32 %v2429, %v2378
  %v2474 = vmul.f32 %v2433, %v2379
  %v2475 = vmul.f32 %v2437, %v2380
  %v2476 = vmul.f32 %v2441, %v2381
  %v2477 = vmul.f32 %v2445, %v2382
  %v2478 = vmul.f32 %v2449, %v2383
  %v2479 = vmul.f32 %v2453, %v2384
  %v2480 = vmul.f32 %v2457, %v2385
  %v2481 = vmul.f32 %v2461, %v2386
  %v2482 = vadd.f32 %v2348, %v2463
  %v2483 = vadd.f32 %v2349, %v2464
  %v2484 = vadd.f32 %v2350, %v2465
  %v2485 = vadd.f32 %v2351, %v2466
  %v2486 = vadd.f32 %v2352, %v2467
  %v2487 = vadd.f32 %v2353, %v2468
  %v2488 = vadd.f32 %v2354, %v2469
  %v2489 = vadd.f32 %v2355, %v2470
  %v2490 = vadd.f32 %v2356, %v2471
  %v2491 = vadd.f32 %v2357, %v2472
  %v2492 = vadd.f32 %v2358, %v2473
  %v2493 = vadd.f32 %v2359, %v2474
  %v2494 = vadd.f32 %v2360, %v2475
  %v2495 = vadd.f32 %v2361, %v2476
  %v2496 = vadd.f32 %v2362, %v2477
  %v2497 = vadd.f32 %v2363, %v2478
  %v2498 = vadd.f32 %v2364, %v2479
  %v2499 = vadd.f32 %v2365, %v2480
  %v2500 = vadd.f32 %v2366, %v2481
  %s2501 = scalar_lea.vmem %s3, 2128
  %v2502 = vld [vmem:[%s2501] sm:$0xff]
  %v2503 = vld [vmem:[%s2501 + $0x8] sm:$0xff]
  %v2504 = vld [vmem:[%s2501 + $0x10] sm:$0xff]
  %v2505 = vld [vmem:[%s2501 + $0x18] sm:$0xff]
  %v2506 = vld [vmem:[%s2501 + $0x20] sm:$0xff]
  %v2507 = vld [vmem:[%s2501 + $0x28] sm:$0xff]
  %v2508 = vld [vmem:[%s2501 + $0x30] sm:$0xff]
  %v2509 = vld [vmem:[%s2501 + $0x38] sm:$0xff]
  %v2510 = vld [vmem:[%s2501 + $0x40] sm:$0xff]
  %v2511 = vld [vmem:[%s2501 + $0x48] sm:$0xff]
  %v2512 = vld [vmem:[%s2501 + $0x50] sm:$0xff]
  %v2513 = vld [vmem:[%s2501 + $0x58] sm:$0xff]
  %v2514 = vld [vmem:[%s2501 + $0x60] sm:$0xff]
  %v2515 = vld [vmem:[%s2501 + $0x68] sm:$0xff]
  %v2516 = vld [vmem:[%s2501 + $0x70] sm:$0xff]
  %v2517 = vld [vmem:[%s2501 + $0x78] sm:$0xff]
  %v2518 = vld [vmem:[%s2501 + $0x80] sm:$0xff]
  %v2519 = vld [vmem:[%s2501 + $0x88] sm:$0xff]
  %v2520 = vld [vmem:[%s2501 + $0x90] sm:$0x3f]
  %2521 = vset.pattern.permute.xlu0 14
  %2522 = vperm.xlu0 %2521, %v588
  %v2523 = vpop.permute.xlu0 %2522
  %2525 = vset.pattern.permute.xlu0 14
  %2526 = vperm.xlu0 %2525, %v589
  %v2527 = vpop.permute.xlu0 %2526
  %2529 = vset.pattern.permute.xlu0 14
  %2530 = vperm.xlu0 %2529, %v590
  %v2531 = vpop.permute.xlu0 %2530
  %2533 = vset.pattern.permute.xlu0 14
  %2534 = vperm.xlu0 %2533, %v591
  %v2535 = vpop.permute.xlu0 %2534
  %2537 = vset.pattern.permute.xlu0 14
  %2538 = vperm.xlu0 %2537, %v592
  %v2539 = vpop.permute.xlu0 %2538
  %2541 = vset.pattern.permute.xlu0 14
  %2542 = vperm.xlu0 %2541, %v593
  %v2543 = vpop.permute.xlu0 %2542
  %2545 = vset.pattern.permute.xlu0 14
  %2546 = vperm.xlu0 %2545, %v594
  %v2547 = vpop.permute.xlu0 %2546
  %2549 = vset.pattern.permute.xlu0 14
  %2550 = vperm.xlu0 %2549, %v595
  %v2551 = vpop.permute.xlu0 %2550
  %2553 = vset.pattern.permute.xlu0 14
  %2554 = vperm.xlu0 %2553, %v596
  %v2555 = vpop.permute.xlu0 %2554
  %2557 = vset.pattern.permute.xlu0 14
  %2558 = vperm.xlu0 %2557, %v597
  %v2559 = vpop.permute.xlu0 %2558
  %2561 = vset.pattern.permute.xlu0 14
  %2562 = vperm.xlu0 %2561, %v598
  %v2563 = vpop.permute.xlu0 %2562
  %2565 = vset.pattern.permute.xlu0 14
  %2566 = vperm.xlu0 %2565, %v599
  %v2567 = vpop.permute.xlu0 %2566
  %2569 = vset.pattern.permute.xlu0 14
  %2570 = vperm.xlu0 %2569, %v600
  %v2571 = vpop.permute.xlu0 %2570
  %2573 = vset.pattern.permute.xlu0 14
  %2574 = vperm.xlu0 %2573, %v601
  %v2575 = vpop.permute.xlu0 %2574
  %2577 = vset.pattern.permute.xlu0 14
  %2578 = vperm.xlu0 %2577, %v602
  %v2579 = vpop.permute.xlu0 %2578
  %2581 = vset.pattern.permute.xlu0 14
  %2582 = vperm.xlu0 %2581, %v603
  %v2583 = vpop.permute.xlu0 %2582
  %2585 = vset.pattern.permute.xlu0 14
  %2586 = vperm.xlu0 %2585, %v604
  %v2587 = vpop.permute.xlu0 %2586
  %2589 = vset.pattern.permute.xlu0 14
  %2590 = vperm.xlu0 %2589, %v605
  %v2591 = vpop.permute.xlu0 %2590
  %2593 = vset.pattern.permute.xlu0 14
  %2594 = vperm.xlu0 %2593, %v606
  %v2595 = vpop.permute.xlu0 %2594
  %v2597 = vmul.f32 %v2523, %v2502
  %v2598 = vmul.f32 %v2527, %v2503
  %v2599 = vmul.f32 %v2531, %v2504
  %v2600 = vmul.f32 %v2535, %v2505
  %v2601 = vmul.f32 %v2539, %v2506
  %v2602 = vmul.f32 %v2543, %v2507
  %v2603 = vmul.f32 %v2547, %v2508
  %v2604 = vmul.f32 %v2551, %v2509
  %v2605 = vmul.f32 %v2555, %v2510
  %v2606 = vmul.f32 %v2559, %v2511
  %v2607 = vmul.f32 %v2563, %v2512
  %v2608 = vmul.f32 %v2567, %v2513
  %v2609 = vmul.f32 %v2571, %v2514
  %v2610 = vmul.f32 %v2575, %v2515
  %v2611 = vmul.f32 %v2579, %v2516
  %v2612 = vmul.f32 %v2583, %v2517
  %v2613 = vmul.f32 %v2587, %v2518
  %v2614 = vmul.f32 %v2591, %v2519
  %v2615 = vmul.f32 %v2595, %v2520
  %v2616 = vadd.f32 %v2482, %v2597
  %v2617 = vadd.f32 %v2483, %v2598
  %v2618 = vadd.f32 %v2484, %v2599
  %v2619 = vadd.f32 %v2485, %v2600
  %v2620 = vadd.f32 %v2486, %v2601
  %v2621 = vadd.f32 %v2487, %v2602
  %v2622 = vadd.f32 %v2488, %v2603
  %v2623 = vadd.f32 %v2489, %v2604
  %v2624 = vadd.f32 %v2490, %v2605
  %v2625 = vadd.f32 %v2491, %v2606
  %v2626 = vadd.f32 %v2492, %v2607
  %v2627 = vadd.f32 %v2493, %v2608
  %v2628 = vadd.f32 %v2494, %v2609
  %v2629 = vadd.f32 %v2495, %v2610
  %v2630 = vadd.f32 %v2496, %v2611
  %v2631 = vadd.f32 %v2497, %v2612
  %v2632 = vadd.f32 %v2498, %v2613
  %v2633 = vadd.f32 %v2499, %v2614
  %v2634 = vadd.f32 %v2500, %v2615
  %s2635 = scalar_lea.vmem %s3, 2280
  %v2636 = vld [vmem:[%s2635] sm:$0xff]
  %v2637 = vld [vmem:[%s2635 + $0x8] sm:$0xff]
  %v2638 = vld [vmem:[%s2635 + $0x10] sm:$0xff]
  %v2639 = vld [vmem:[%s2635 + $0x18] sm:$0xff]
  %v2640 = vld [vmem:[%s2635 + $0x20] sm:$0xff]
  %v2641 = vld [vmem:[%s2635 + $0x28] sm:$0xff]
  %v2642 = vld [vmem:[%s2635 + $0x30] sm:$0xff]
  %v2643 = vld [vmem:[%s2635 + $0x38] sm:$0xff]
  %v2644 = vld [vmem:[%s2635 + $0x40] sm:$0xff]
  %v2645 = vld [vmem:[%s2635 + $0x48] sm:$0xff]
  %v2646 = vld [vmem:[%s2635 + $0x50] sm:$0xff]
  %v2647 = vld [vmem:[%s2635 + $0x58] sm:$0xff]
  %v2648 = vld [vmem:[%s2635 + $0x60] sm:$0xff]
  %v2649 = vld [vmem:[%s2635 + $0x68] sm:$0xff]
  %v2650 = vld [vmem:[%s2635 + $0x70] sm:$0xff]
  %v2651 = vld [vmem:[%s2635 + $0x78] sm:$0xff]
  %v2652 = vld [vmem:[%s2635 + $0x80] sm:$0xff]
  %v2653 = vld [vmem:[%s2635 + $0x88] sm:$0xff]
  %v2654 = vld [vmem:[%s2635 + $0x90] sm:$0x3f]
  %2655 = vset.pattern.permute.xlu0 15
  %2656 = vperm.xlu0 %2655, %v588
  %v2657 = vpop.permute.xlu0 %2656
  %2659 = vset.pattern.permute.xlu0 15
  %2660 = vperm.xlu0 %2659, %v589
  %v2661 = vpop.permute.xlu0 %2660
  %2663 = vset.pattern.permute.xlu0 15
  %2664 = vperm.xlu0 %2663, %v590
  %v2665 = vpop.permute.xlu0 %2664
  %2667 = vset.pattern.permute.xlu0 15
  %2668 = vperm.xlu0 %2667, %v591
  %v2669 = vpop.permute.xlu0 %2668
  %2671 = vset.pattern.permute.xlu0 15
  %2672 = vperm.xlu0 %2671, %v592
  %v2673 = vpop.permute.xlu0 %2672
  %2675 = vset.pattern.permute.xlu0 15
  %2676 = vperm.xlu0 %2675, %v593
  %v2677 = vpop.permute.xlu0 %2676
  %2679 = vset.pattern.permute.xlu0 15
  %2680 = vperm.xlu0 %2679, %v594
  %v2681 = vpop.permute.xlu0 %2680
  %2683 = vset.pattern.permute.xlu0 15
  %2684 = vperm.xlu0 %2683, %v595
  %v2685 = vpop.permute.xlu0 %2684
  %2687 = vset.pattern.permute.xlu0 15
  %2688 = vperm.xlu0 %2687, %v596
  %v2689 = vpop.permute.xlu0 %2688
  %2691 = vset.pattern.permute.xlu0 15
  %2692 = vperm.xlu0 %2691, %v597
  %v2693 = vpop.permute.xlu0 %2692
  %2695 = vset.pattern.permute.xlu0 15
  %2696 = vperm.xlu0 %2695, %v598
  %v2697 = vpop.permute.xlu0 %2696
  %2699 = vset.pattern.permute.xlu0 15
  %2700 = vperm.xlu0 %2699, %v599
  %v2701 = vpop.permute.xlu0 %2700
  %2703 = vset.pattern.permute.xlu0 15
  %2704 = vperm.xlu0 %2703, %v600
  %v2705 = vpop.permute.xlu0 %2704
  %2707 = vset.pattern.permute.xlu0 15
  %2708 = vperm.xlu0 %2707, %v601
  %v2709 = vpop.permute.xlu0 %2708
  %2711 = vset.pattern.permute.xlu0 15
  %2712 = vperm.xlu0 %2711, %v602
  %v2713 = vpop.permute.xlu0 %2712
  %2715 = vset.pattern.permute.xlu0 15
  %2716 = vperm.xlu0 %2715, %v603
  %v2717 = vpop.permute.xlu0 %2716
  %2719 = vset.pattern.permute.xlu0 15
  %2720 = vperm.xlu0 %2719, %v604
  %v2721 = vpop.permute.xlu0 %2720
  %2723 = vset.pattern.permute.xlu0 15
  %2724 = vperm.xlu0 %2723, %v605
  %v2725 = vpop.permute.xlu0 %2724
  %2727 = vset.pattern.permute.xlu0 15
  %2728 = vperm.xlu0 %2727, %v606
  %v2729 = vpop.permute.xlu0 %2728
  %v2731 = vmul.f32 %v2657, %v2636
  %v2732 = vmul.f32 %v2661, %v2637
  %v2733 = vmul.f32 %v2665, %v2638
  %v2734 = vmul.f32 %v2669, %v2639
  %v2735 = vmul.f32 %v2673, %v2640
  %v2736 = vmul.f32 %v2677, %v2641
  %v2737 = vmul.f32 %v2681, %v2642
  %v2738 = vmul.f32 %v2685, %v2643
  %v2739 = vmul.f32 %v2689, %v2644
  %v2740 = vmul.f32 %v2693, %v2645
  %v2741 = vmul.f32 %v2697, %v2646
  %v2742 = vmul.f32 %v2701, %v2647
  %v2743 = vmul.f32 %v2705, %v2648
  %v2744 = vmul.f32 %v2709, %v2649
  %v2745 = vmul.f32 %v2713, %v2650
  %v2746 = vmul.f32 %v2717, %v2651
  %v2747 = vmul.f32 %v2721, %v2652
  %v2748 = vmul.f32 %v2725, %v2653
  %v2749 = vmul.f32 %v2729, %v2654
  %v2750 = vadd.f32 %v2616, %v2731
  %v2751 = vadd.f32 %v2617, %v2732
  %v2752 = vadd.f32 %v2618, %v2733
  %v2753 = vadd.f32 %v2619, %v2734
  %v2754 = vadd.f32 %v2620, %v2735
  %v2755 = vadd.f32 %v2621, %v2736
  %v2756 = vadd.f32 %v2622, %v2737
  %v2757 = vadd.f32 %v2623, %v2738
  %v2758 = vadd.f32 %v2624, %v2739
  %v2759 = vadd.f32 %v2625, %v2740
  %v2760 = vadd.f32 %v2626, %v2741
  %v2761 = vadd.f32 %v2627, %v2742
  %v2762 = vadd.f32 %v2628, %v2743
  %v2763 = vadd.f32 %v2629, %v2744
  %v2764 = vadd.f32 %v2630, %v2745
  %v2765 = vadd.f32 %v2631, %v2746
  %v2766 = vadd.f32 %v2632, %v2747
  %v2767 = vadd.f32 %v2633, %v2748
  %v2768 = vadd.f32 %v2634, %v2749
  %s2769 = scalar_lea.vmem %s3, 2432
  %v2770 = vld [vmem:[%s2769] sm:$0xff]
  %v2771 = vld [vmem:[%s2769 + $0x8] sm:$0xff]
  %v2772 = vld [vmem:[%s2769 + $0x10] sm:$0xff]
  %v2773 = vld [vmem:[%s2769 + $0x18] sm:$0xff]
  %v2774 = vld [vmem:[%s2769 + $0x20] sm:$0xff]
  %v2775 = vld [vmem:[%s2769 + $0x28] sm:$0xff]
  %v2776 = vld [vmem:[%s2769 + $0x30] sm:$0xff]
  %v2777 = vld [vmem:[%s2769 + $0x38] sm:$0xff]
  %v2778 = vld [vmem:[%s2769 + $0x40] sm:$0xff]
  %v2779 = vld [vmem:[%s2769 + $0x48] sm:$0xff]
  %v2780 = vld [vmem:[%s2769 + $0x50] sm:$0xff]
  %v2781 = vld [vmem:[%s2769 + $0x58] sm:$0xff]
  %v2782 = vld [vmem:[%s2769 + $0x60] sm:$0xff]
  %v2783 = vld [vmem:[%s2769 + $0x68] sm:$0xff]
  %v2784 = vld [vmem:[%s2769 + $0x70] sm:$0xff]
  %v2785 = vld [vmem:[%s2769 + $0x78] sm:$0xff]
  %v2786 = vld [vmem:[%s2769 + $0x80] sm:$0xff]
  %v2787 = vld [vmem:[%s2769 + $0x88] sm:$0xff]
  %v2788 = vld [vmem:[%s2769 + $0x90] sm:$0x3f]
  %2789 = vset.pattern.permute.xlu0 16
  %2790 = vperm.xlu0 %2789, %v588
  %v2791 = vpop.permute.xlu0 %2790
  %2793 = vset.pattern.permute.xlu0 16
  %2794 = vperm.xlu0 %2793, %v589
  %v2795 = vpop.permute.xlu0 %2794
  %2797 = vset.pattern.permute.xlu0 16
  %2798 = vperm.xlu0 %2797, %v590
  %v2799 = vpop.permute.xlu0 %2798
  %2801 = vset.pattern.permute.xlu0 16
  %2802 = vperm.xlu0 %2801, %v591
  %v2803 = vpop.permute.xlu0 %2802
  %2805 = vset.pattern.permute.xlu0 16
  %2806 = vperm.xlu0 %2805, %v592
  %v2807 = vpop.permute.xlu0 %2806
  %2809 = vset.pattern.permute.xlu0 16
  %2810 = vperm.xlu0 %2809, %v593
  %v2811 = vpop.permute.xlu0 %2810
  %2813 = vset.pattern.permute.xlu0 16
  %2814 = vperm.xlu0 %2813, %v594
  %v2815 = vpop.permute.xlu0 %2814
  %2817 = vset.pattern.permute.xlu0 16
  %2818 = vperm.xlu0 %2817, %v595
  %v2819 = vpop.permute.xlu0 %2818
  %2821 = vset.pattern.permute.xlu0 16
  %2822 = vperm.xlu0 %2821, %v596
  %v2823 = vpop.permute.xlu0 %2822
  %2825 = vset.pattern.permute.xlu0 16
  %2826 = vperm.xlu0 %2825, %v597
  %v2827 = vpop.permute.xlu0 %2826
  %2829 = vset.pattern.permute.xlu0 16
  %2830 = vperm.xlu0 %2829, %v598
  %v2831 = vpop.permute.xlu0 %2830
  %2833 = vset.pattern.permute.xlu0 16
  %2834 = vperm.xlu0 %2833, %v599
  %v2835 = vpop.permute.xlu0 %2834
  %2837 = vset.pattern.permute.xlu0 16
  %2838 = vperm.xlu0 %2837, %v600
  %v2839 = vpop.permute.xlu0 %2838
  %2841 = vset.pattern.permute.xlu0 16
  %2842 = vperm.xlu0 %2841, %v601
  %v2843 = vpop.permute.xlu0 %2842
  %2845 = vset.pattern.permute.xlu0 16
  %2846 = vperm.xlu0 %2845, %v602
  %v2847 = vpop.permute.xlu0 %2846
  %2849 = vset.pattern.permute.xlu0 16
  %2850 = vperm.xlu0 %2849, %v603
  %v2851 = vpop.permute.xlu0 %2850
  %2853 = vset.pattern.permute.xlu0 16
  %2854 = vperm.xlu0 %2853, %v604
  %v2855 = vpop.permute.xlu0 %2854
  %2857 = vset.pattern.permute.xlu0 16
  %2858 = vperm.xlu0 %2857, %v605
  %v2859 = vpop.permute.xlu0 %2858
  %2861 = vset.pattern.permute.xlu0 16
  %2862 = vperm.xlu0 %2861, %v606
  %v2863 = vpop.permute.xlu0 %2862
  %v2865 = vmul.f32 %v2791, %v2770
  %v2866 = vmul.f32 %v2795, %v2771
  %v2867 = vmul.f32 %v2799, %v2772
  %v2868 = vmul.f32 %v2803, %v2773
  %v2869 = vmul.f32 %v2807, %v2774
  %v2870 = vmul.f32 %v2811, %v2775
  %v2871 = vmul.f32 %v2815, %v2776
  %v2872 = vmul.f32 %v2819, %v2777
  %v2873 = vmul.f32 %v2823, %v2778
  %v2874 = vmul.f32 %v2827, %v2779
  %v2875 = vmul.f32 %v2831, %v2780
  %v2876 = vmul.f32 %v2835, %v2781
  %v2877 = vmul.f32 %v2839, %v2782
  %v2878 = vmul.f32 %v2843, %v2783
  %v2879 = vmul.f32 %v2847, %v2784
  %v2880 = vmul.f32 %v2851, %v2785
  %v2881 = vmul.f32 %v2855, %v2786
  %v2882 = vmul.f32 %v2859, %v2787
  %v2883 = vmul.f32 %v2863, %v2788
  %v2884 = vadd.f32 %v2750, %v2865
  %v2885 = vadd.f32 %v2751, %v2866
  %v2886 = vadd.f32 %v2752, %v2867
  %v2887 = vadd.f32 %v2753, %v2868
  %v2888 = vadd.f32 %v2754, %v2869
  %v2889 = vadd.f32 %v2755, %v2870
  %v2890 = vadd.f32 %v2756, %v2871
  %v2891 = vadd.f32 %v2757, %v2872
  %v2892 = vadd.f32 %v2758, %v2873
  %v2893 = vadd.f32 %v2759, %v2874
  %v2894 = vadd.f32 %v2760, %v2875
  %v2895 = vadd.f32 %v2761, %v2876
  %v2896 = vadd.f32 %v2762, %v2877
  %v2897 = vadd.f32 %v2763, %v2878
  %v2898 = vadd.f32 %v2764, %v2879
  %v2899 = vadd.f32 %v2765, %v2880
  %v2900 = vadd.f32 %v2766, %v2881
  %v2901 = vadd.f32 %v2767, %v2882
  %v2902 = vadd.f32 %v2768, %v2883
  %s2903 = scalar_lea.vmem %s3, 2584
  %v2904 = vld [vmem:[%s2903] sm:$0xff]
  %v2905 = vld [vmem:[%s2903 + $0x8] sm:$0xff]
  %v2906 = vld [vmem:[%s2903 + $0x10] sm:$0xff]
  %v2907 = vld [vmem:[%s2903 + $0x18] sm:$0xff]
  %v2908 = vld [vmem:[%s2903 + $0x20] sm:$0xff]
  %v2909 = vld [vmem:[%s2903 + $0x28] sm:$0xff]
  %v2910 = vld [vmem:[%s2903 + $0x30] sm:$0xff]
  %v2911 = vld [vmem:[%s2903 + $0x38] sm:$0xff]
  %v2912 = vld [vmem:[%s2903 + $0x40] sm:$0xff]
  %v2913 = vld [vmem:[%s2903 + $0x48] sm:$0xff]
  %v2914 = vld [vmem:[%s2903 + $0x50] sm:$0xff]
  %v2915 = vld [vmem:[%s2903 + $0x58] sm:$0xff]
  %v2916 = vld [vmem:[%s2903 + $0x60] sm:$0xff]
  %v2917 = vld [vmem:[%s2903 + $0x68] sm:$0xff]
  %v2918 = vld [vmem:[%s2903 + $0x70] sm:$0xff]
  %v2919 = vld [vmem:[%s2903 + $0x78] sm:$0xff]
  %v2920 = vld [vmem:[%s2903 + $0x80] sm:$0xff]
  %v2921 = vld [vmem:[%s2903 + $0x88] sm:$0xff]
  %v2922 = vld [vmem:[%s2903 + $0x90] sm:$0x3f]
  %2923 = vset.pattern.permute.xlu0 17
  %2924 = vperm.xlu0 %2923, %v588
  %v2925 = vpop.permute.xlu0 %2924
  %2927 = vset.pattern.permute.xlu0 17
  %2928 = vperm.xlu0 %2927, %v589
  %v2929 = vpop.permute.xlu0 %2928
  %2931 = vset.pattern.permute.xlu0 17
  %2932 = vperm.xlu0 %2931, %v590
  %v2933 = vpop.permute.xlu0 %2932
  %2935 = vset.pattern.permute.xlu0 17
  %2936 = vperm.xlu0 %2935, %v591
  %v2937 = vpop.permute.xlu0 %2936
  %2939 = vset.pattern.permute.xlu0 17
  %2940 = vperm.xlu0 %2939, %v592
  %v2941 = vpop.permute.xlu0 %2940
  %2943 = vset.pattern.permute.xlu0 17
  %2944 = vperm.xlu0 %2943, %v593
  %v2945 = vpop.permute.xlu0 %2944
  %2947 = vset.pattern.permute.xlu0 17
  %2948 = vperm.xlu0 %2947, %v594
  %v2949 = vpop.permute.xlu0 %2948
  %2951 = vset.pattern.permute.xlu0 17
  %2952 = vperm.xlu0 %2951, %v595
  %v2953 = vpop.permute.xlu0 %2952
  %2955 = vset.pattern.permute.xlu0 17
  %2956 = vperm.xlu0 %2955, %v596
  %v2957 = vpop.permute.xlu0 %2956
  %2959 = vset.pattern.permute.xlu0 17
  %2960 = vperm.xlu0 %2959, %v597
  %v2961 = vpop.permute.xlu0 %2960
  %2963 = vset.pattern.permute.xlu0 17
  %2964 = vperm.xlu0 %2963, %v598
  %v2965 = vpop.permute.xlu0 %2964
  %2967 = vset.pattern.permute.xlu0 17
  %2968 = vperm.xlu0 %2967, %v599
  %v2969 = vpop.permute.xlu0 %2968
  %2971 = vset.pattern.permute.xlu0 17
  %2972 = vperm.xlu0 %2971, %v600
  %v2973 = vpop.permute.xlu0 %2972
  %2975 = vset.pattern.permute.xlu0 17
  %2976 = vperm.xlu0 %2975, %v601
  %v2977 = vpop.permute.xlu0 %2976
  %2979 = vset.pattern.permute.xlu0 17
  %2980 = vperm.xlu0 %2979, %v602
  %v2981 = vpop.permute.xlu0 %2980
  %2983 = vset.pattern.permute.xlu0 17
  %2984 = vperm.xlu0 %2983, %v603
  %v2985 = vpop.permute.xlu0 %2984
  %2987 = vset.pattern.permute.xlu0 17
  %2988 = vperm.xlu0 %2987, %v604
  %v2989 = vpop.permute.xlu0 %2988
  %2991 = vset.pattern.permute.xlu0 17
  %2992 = vperm.xlu0 %2991, %v605
  %v2993 = vpop.permute.xlu0 %2992
  %2995 = vset.pattern.permute.xlu0 17
  %2996 = vperm.xlu0 %2995, %v606
  %v2997 = vpop.permute.xlu0 %2996
  %v2999 = vmul.f32 %v2925, %v2904
  %v3000 = vmul.f32 %v2929, %v2905
  %v3001 = vmul.f32 %v2933, %v2906
  %v3002 = vmul.f32 %v2937, %v2907
  %v3003 = vmul.f32 %v2941, %v2908
  %v3004 = vmul.f32 %v2945, %v2909
  %v3005 = vmul.f32 %v2949, %v2910
  %v3006 = vmul.f32 %v2953, %v2911
  %v3007 = vmul.f32 %v2957, %v2912
  %v3008 = vmul.f32 %v2961, %v2913
  %v3009 = vmul.f32 %v2965, %v2914
  %v3010 = vmul.f32 %v2969, %v2915
  %v3011 = vmul.f32 %v2973, %v2916
  %v3012 = vmul.f32 %v2977, %v2917
  %v3013 = vmul.f32 %v2981, %v2918
  %v3014 = vmul.f32 %v2985, %v2919
  %v3015 = vmul.f32 %v2989, %v2920
  %v3016 = vmul.f32 %v2993, %v2921
  %v3017 = vmul.f32 %v2997, %v2922
  %v3018 = vadd.f32 %v2884, %v2999
  %v3019 = vadd.f32 %v2885, %v3000
  %v3020 = vadd.f32 %v2886, %v3001
  %v3021 = vadd.f32 %v2887, %v3002
  %v3022 = vadd.f32 %v2888, %v3003
  %v3023 = vadd.f32 %v2889, %v3004
  %v3024 = vadd.f32 %v2890, %v3005
  %v3025 = vadd.f32 %v2891, %v3006
  %v3026 = vadd.f32 %v2892, %v3007
  %v3027 = vadd.f32 %v2893, %v3008
  %v3028 = vadd.f32 %v2894, %v3009
  %v3029 = vadd.f32 %v2895, %v3010
  %v3030 = vadd.f32 %v2896, %v3011
  %v3031 = vadd.f32 %v2897, %v3012
  %v3032 = vadd.f32 %v2898, %v3013
  %v3033 = vadd.f32 %v2899, %v3014
  %v3034 = vadd.f32 %v2900, %v3015
  %v3035 = vadd.f32 %v2901, %v3016
  %v3036 = vadd.f32 %v2902, %v3017
  %s3037 = scalar_lea.vmem %s3, 2736
  %v3038 = vld [vmem:[%s3037] sm:$0xff]
  %v3039 = vld [vmem:[%s3037 + $0x8] sm:$0xff]
  %v3040 = vld [vmem:[%s3037 + $0x10] sm:$0xff]
  %v3041 = vld [vmem:[%s3037 + $0x18] sm:$0xff]
  %v3042 = vld [vmem:[%s3037 + $0x20] sm:$0xff]
  %v3043 = vld [vmem:[%s3037 + $0x28] sm:$0xff]
  %v3044 = vld [vmem:[%s3037 + $0x30] sm:$0xff]
  %v3045 = vld [vmem:[%s3037 + $0x38] sm:$0xff]
  %v3046 = vld [vmem:[%s3037 + $0x40] sm:$0xff]
  %v3047 = vld [vmem:[%s3037 + $0x48] sm:$0xff]
  %v3048 = vld [vmem:[%s3037 + $0x50] sm:$0xff]
  %v3049 = vld [vmem:[%s3037 + $0x58] sm:$0xff]
  %v3050 = vld [vmem:[%s3037 + $0x60] sm:$0xff]
  %v3051 = vld [vmem:[%s3037 + $0x68] sm:$0xff]
  %v3052 = vld [vmem:[%s3037 + $0x70] sm:$0xff]
  %v3053 = vld [vmem:[%s3037 + $0x78] sm:$0xff]
  %v3054 = vld [vmem:[%s3037 + $0x80] sm:$0xff]
  %v3055 = vld [vmem:[%s3037 + $0x88] sm:$0xff]
  %v3056 = vld [vmem:[%s3037 + $0x90] sm:$0x3f]
  %3057 = vset.pattern.permute.xlu0 18
  %3058 = vperm.xlu0 %3057, %v588
  %v3059 = vpop.permute.xlu0 %3058
  %3061 = vset.pattern.permute.xlu0 18
  %3062 = vperm.xlu0 %3061, %v589
  %v3063 = vpop.permute.xlu0 %3062
  %3065 = vset.pattern.permute.xlu0 18
  %3066 = vperm.xlu0 %3065, %v590
  %v3067 = vpop.permute.xlu0 %3066
  %3069 = vset.pattern.permute.xlu0 18
  %3070 = vperm.xlu0 %3069, %v591
  %v3071 = vpop.permute.xlu0 %3070
  %3073 = vset.pattern.permute.xlu0 18
  %3074 = vperm.xlu0 %3073, %v592
  %v3075 = vpop.permute.xlu0 %3074
  %3077 = vset.pattern.permute.xlu0 18
  %3078 = vperm.xlu0 %3077, %v593
  %v3079 = vpop.permute.xlu0 %3078
  %3081 = vset.pattern.permute.xlu0 18
  %3082 = vperm.xlu0 %3081, %v594
  %v3083 = vpop.permute.xlu0 %3082
  %3085 = vset.pattern.permute.xlu0 18
  %3086 = vperm.xlu0 %3085, %v595
  %v3087 = vpop.permute.xlu0 %3086
  %3089 = vset.pattern.permute.xlu0 18
  %3090 = vperm.xlu0 %3089, %v596
  %v3091 = vpop.permute.xlu0 %3090
  %3093 = vset.pattern.permute.xlu0 18
  %3094 = vperm.xlu0 %3093, %v597
  %v3095 = vpop.permute.xlu0 %3094
  %3097 = vset.pattern.permute.xlu0 18
  %3098 = vperm.xlu0 %3097, %v598
  %v3099 = vpop.permute.xlu0 %3098
  %3101 = vset.pattern.permute.xlu0 18
  %3102 = vperm.xlu0 %3101, %v599
  %v3103 = vpop.permute.xlu0 %3102
  %3105 = vset.pattern.permute.xlu0 18
  %3106 = vperm.xlu0 %3105, %v600
  %v3107 = vpop.permute.xlu0 %3106
  %3109 = vset.pattern.permute.xlu0 18
  %3110 = vperm.xlu0 %3109, %v601
  %v3111 = vpop.permute.xlu0 %3110
  %3113 = vset.pattern.permute.xlu0 18
  %3114 = vperm.xlu0 %3113, %v602
  %v3115 = vpop.permute.xlu0 %3114
  %3117 = vset.pattern.permute.xlu0 18
  %3118 = vperm.xlu0 %3117, %v603
  %v3119 = vpop.permute.xlu0 %3118
  %3121 = vset.pattern.permute.xlu0 18
  %3122 = vperm.xlu0 %3121, %v604
  %v3123 = vpop.permute.xlu0 %3122
  %3125 = vset.pattern.permute.xlu0 18
  %3126 = vperm.xlu0 %3125, %v605
  %v3127 = vpop.permute.xlu0 %3126
  %3129 = vset.pattern.permute.xlu0 18
  %3130 = vperm.xlu0 %3129, %v606
  %v3131 = vpop.permute.xlu0 %3130
  %v3133 = vmul.f32 %v3059, %v3038
  %v3134 = vmul.f32 %v3063, %v3039
  %v3135 = vmul.f32 %v3067, %v3040
  %v3136 = vmul.f32 %v3071, %v3041
  %v3137 = vmul.f32 %v3075, %v3042
  %v3138 = vmul.f32 %v3079, %v3043
  %v3139 = vmul.f32 %v3083, %v3044
  %v3140 = vmul.f32 %v3087, %v3045
  %v3141 = vmul.f32 %v3091, %v3046
  %v3142 = vmul.f32 %v3095, %v3047
  %v3143 = vmul.f32 %v3099, %v3048
  %v3144 = vmul.f32 %v3103, %v3049
  %v3145 = vmul.f32 %v3107, %v3050
  %v3146 = vmul.f32 %v3111, %v3051
  %v3147 = vmul.f32 %v3115, %v3052
  %v3148 = vmul.f32 %v3119, %v3053
  %v3149 = vmul.f32 %v3123, %v3054
  %v3150 = vmul.f32 %v3127, %v3055
  %v3151 = vmul.f32 %v3131, %v3056
  %v3152 = vadd.f32 %v3018, %v3133
  %v3153 = vadd.f32 %v3019, %v3134
  %v3154 = vadd.f32 %v3020, %v3135
  %v3155 = vadd.f32 %v3021, %v3136
  %v3156 = vadd.f32 %v3022, %v3137
  %v3157 = vadd.f32 %v3023, %v3138
  %v3158 = vadd.f32 %v3024, %v3139
  %v3159 = vadd.f32 %v3025, %v3140
  %v3160 = vadd.f32 %v3026, %v3141
  %v3161 = vadd.f32 %v3027, %v3142
  %v3162 = vadd.f32 %v3028, %v3143
  %v3163 = vadd.f32 %v3029, %v3144
  %v3164 = vadd.f32 %v3030, %v3145
  %v3165 = vadd.f32 %v3031, %v3146
  %v3166 = vadd.f32 %v3032, %v3147
  %v3167 = vadd.f32 %v3033, %v3148
  %v3168 = vadd.f32 %v3034, %v3149
  %v3169 = vadd.f32 %v3035, %v3150
  %v3170 = vadd.f32 %v3036, %v3151
  %s3171 = scalar_lea.vmem %s3, 2888
  %v3172 = vld [vmem:[%s3171] sm:$0xff]
  %v3173 = vld [vmem:[%s3171 + $0x8] sm:$0xff]
  %v3174 = vld [vmem:[%s3171 + $0x10] sm:$0xff]
  %v3175 = vld [vmem:[%s3171 + $0x18] sm:$0xff]
  %v3176 = vld [vmem:[%s3171 + $0x20] sm:$0xff]
  %v3177 = vld [vmem:[%s3171 + $0x28] sm:$0xff]
  %v3178 = vld [vmem:[%s3171 + $0x30] sm:$0xff]
  %v3179 = vld [vmem:[%s3171 + $0x38] sm:$0xff]
  %v3180 = vld [vmem:[%s3171 + $0x40] sm:$0xff]
  %v3181 = vld [vmem:[%s3171 + $0x48] sm:$0xff]
  %v3182 = vld [vmem:[%s3171 + $0x50] sm:$0xff]
  %v3183 = vld [vmem:[%s3171 + $0x58] sm:$0xff]
  %v3184 = vld [vmem:[%s3171 + $0x60] sm:$0xff]
  %v3185 = vld [vmem:[%s3171 + $0x68] sm:$0xff]
  %v3186 = vld [vmem:[%s3171 + $0x70] sm:$0xff]
  %v3187 = vld [vmem:[%s3171 + $0x78] sm:$0xff]
  %v3188 = vld [vmem:[%s3171 + $0x80] sm:$0xff]
  %v3189 = vld [vmem:[%s3171 + $0x88] sm:$0xff]
  %v3190 = vld [vmem:[%s3171 + $0x90] sm:$0x3f]
  %3191 = vset.pattern.permute.xlu0 19
  %3192 = vperm.xlu0 %3191, %v588
  %v3193 = vpop.permute.xlu0 %3192
  %3195 = vset.pattern.permute.xlu0 19
  %3196 = vperm.xlu0 %3195, %v589
  %v3197 = vpop.permute.xlu0 %3196
  %3199 = vset.pattern.permute.xlu0 19
  %3200 = vperm.xlu0 %3199, %v590
  %v3201 = vpop.permute.xlu0 %3200
  %3203 = vset.pattern.permute.xlu0 19
  %3204 = vperm.xlu0 %3203, %v591
  %v3205 = vpop.permute.xlu0 %3204
  %3207 = vset.pattern.permute.xlu0 19
  %3208 = vperm.xlu0 %3207, %v592
  %v3209 = vpop.permute.xlu0 %3208
  %3211 = vset.pattern.permute.xlu0 19
  %3212 = vperm.xlu0 %3211, %v593
  %v3213 = vpop.permute.xlu0 %3212
  %3215 = vset.pattern.permute.xlu0 19
  %3216 = vperm.xlu0 %3215, %v594
  %v3217 = vpop.permute.xlu0 %3216
  %3219 = vset.pattern.permute.xlu0 19
  %3220 = vperm.xlu0 %3219, %v595
  %v3221 = vpop.permute.xlu0 %3220
  %3223 = vset.pattern.permute.xlu0 19
  %3224 = vperm.xlu0 %3223, %v596
  %v3225 = vpop.permute.xlu0 %3224
  %3227 = vset.pattern.permute.xlu0 19
  %3228 = vperm.xlu0 %3227, %v597
  %v3229 = vpop.permute.xlu0 %3228
  %3231 = vset.pattern.permute.xlu0 19
  %3232 = vperm.xlu0 %3231, %v598
  %v3233 = vpop.permute.xlu0 %3232
  %3235 = vset.pattern.permute.xlu0 19
  %3236 = vperm.xlu0 %3235, %v599
  %v3237 = vpop.permute.xlu0 %3236
  %3239 = vset.pattern.permute.xlu0 19
  %3240 = vperm.xlu0 %3239, %v600
  %v3241 = vpop.permute.xlu0 %3240
  %3243 = vset.pattern.permute.xlu0 19
  %3244 = vperm.xlu0 %3243, %v601
  %v3245 = vpop.permute.xlu0 %3244
  %3247 = vset.pattern.permute.xlu0 19
  %3248 = vperm.xlu0 %3247, %v602
  %v3249 = vpop.permute.xlu0 %3248
  %3251 = vset.pattern.permute.xlu0 19
  %3252 = vperm.xlu0 %3251, %v603
  %v3253 = vpop.permute.xlu0 %3252
  %3255 = vset.pattern.permute.xlu0 19
  %3256 = vperm.xlu0 %3255, %v604
  %v3257 = vpop.permute.xlu0 %3256
  %3259 = vset.pattern.permute.xlu0 19
  %3260 = vperm.xlu0 %3259, %v605
  %v3261 = vpop.permute.xlu0 %3260
  %3263 = vset.pattern.permute.xlu0 19
  %3264 = vperm.xlu0 %3263, %v606
  %v3265 = vpop.permute.xlu0 %3264
  %v3267 = vmul.f32 %v3193, %v3172
  %v3268 = vmul.f32 %v3197, %v3173
  %v3269 = vmul.f32 %v3201, %v3174
  %v3270 = vmul.f32 %v3205, %v3175
  %v3271 = vmul.f32 %v3209, %v3176
  %v3272 = vmul.f32 %v3213, %v3177
  %v3273 = vmul.f32 %v3217, %v3178
  %v3274 = vmul.f32 %v3221, %v3179
  %v3275 = vmul.f32 %v3225, %v3180
  %v3276 = vmul.f32 %v3229, %v3181
  %v3277 = vmul.f32 %v3233, %v3182
  %v3278 = vmul.f32 %v3237, %v3183
  %v3279 = vmul.f32 %v3241, %v3184
  %v3280 = vmul.f32 %v3245, %v3185
  %v3281 = vmul.f32 %v3249, %v3186
  %v3282 = vmul.f32 %v3253, %v3187
  %v3283 = vmul.f32 %v3257, %v3188
  %v3284 = vmul.f32 %v3261, %v3189
  %v3285 = vmul.f32 %v3265, %v3190
  %v3286 = vadd.f32 %v3152, %v3267
  %v3287 = vadd.f32 %v3153, %v3268
  %v3288 = vadd.f32 %v3154, %v3269
  %v3289 = vadd.f32 %v3155, %v3270
  %v3290 = vadd.f32 %v3156, %v3271
  %v3291 = vadd.f32 %v3157, %v3272
  %v3292 = vadd.f32 %v3158, %v3273
  %v3293 = vadd.f32 %v3159, %v3274
  %v3294 = vadd.f32 %v3160, %v3275
  %v3295 = vadd.f32 %v3161, %v3276
  %v3296 = vadd.f32 %v3162, %v3277
  %v3297 = vadd.f32 %v3163, %v3278
  %v3298 = vadd.f32 %v3164, %v3279
  %v3299 = vadd.f32 %v3165, %v3280
  %v3300 = vadd.f32 %v3166, %v3281
  %v3301 = vadd.f32 %v3167, %v3282
  %v3302 = vadd.f32 %v3168, %v3283
  %v3303 = vadd.f32 %v3169, %v3284
  %v3304 = vadd.f32 %v3170, %v3285
  %s3305 = scalar_lea.vmem %s3, 3040
  %v3306 = vld [vmem:[%s3305] sm:$0xff]
  %v3307 = vld [vmem:[%s3305 + $0x8] sm:$0xff]
  %v3308 = vld [vmem:[%s3305 + $0x10] sm:$0xff]
  %v3309 = vld [vmem:[%s3305 + $0x18] sm:$0xff]
  %v3310 = vld [vmem:[%s3305 + $0x20] sm:$0xff]
  %v3311 = vld [vmem:[%s3305 + $0x28] sm:$0xff]
  %v3312 = vld [vmem:[%s3305 + $0x30] sm:$0xff]
  %v3313 = vld [vmem:[%s3305 + $0x38] sm:$0xff]
  %v3314 = vld [vmem:[%s3305 + $0x40] sm:$0xff]
  %v3315 = vld [vmem:[%s3305 + $0x48] sm:$0xff]
  %v3316 = vld [vmem:[%s3305 + $0x50] sm:$0xff]
  %v3317 = vld [vmem:[%s3305 + $0x58] sm:$0xff]
  %v3318 = vld [vmem:[%s3305 + $0x60] sm:$0xff]
  %v3319 = vld [vmem:[%s3305 + $0x68] sm:$0xff]
  %v3320 = vld [vmem:[%s3305 + $0x70] sm:$0xff]
  %v3321 = vld [vmem:[%s3305 + $0x78] sm:$0xff]
  %v3322 = vld [vmem:[%s3305 + $0x80] sm:$0xff]
  %v3323 = vld [vmem:[%s3305 + $0x88] sm:$0xff]
  %v3324 = vld [vmem:[%s3305 + $0x90] sm:$0x3f]
  %3325 = vset.pattern.permute.xlu0 20
  %3326 = vperm.xlu0 %3325, %v588
  %v3327 = vpop.permute.xlu0 %3326
  %3329 = vset.pattern.permute.xlu0 20
  %3330 = vperm.xlu0 %3329, %v589
  %v3331 = vpop.permute.xlu0 %3330
  %3333 = vset.pattern.permute.xlu0 20
  %3334 = vperm.xlu0 %3333, %v590
  %v3335 = vpop.permute.xlu0 %3334
  %3337 = vset.pattern.permute.xlu0 20
  %3338 = vperm.xlu0 %3337, %v591
  %v3339 = vpop.permute.xlu0 %3338
  %3341 = vset.pattern.permute.xlu0 20
  %3342 = vperm.xlu0 %3341, %v592
  %v3343 = vpop.permute.xlu0 %3342
  %3345 = vset.pattern.permute.xlu0 20
  %3346 = vperm.xlu0 %3345, %v593
  %v3347 = vpop.permute.xlu0 %3346
  %3349 = vset.pattern.permute.xlu0 20
  %3350 = vperm.xlu0 %3349, %v594
  %v3351 = vpop.permute.xlu0 %3350
  %3353 = vset.pattern.permute.xlu0 20
  %3354 = vperm.xlu0 %3353, %v595
  %v3355 = vpop.permute.xlu0 %3354
  %3357 = vset.pattern.permute.xlu0 20
  %3358 = vperm.xlu0 %3357, %v596
  %v3359 = vpop.permute.xlu0 %3358
  %3361 = vset.pattern.permute.xlu0 20
  %3362 = vperm.xlu0 %3361, %v597
  %v3363 = vpop.permute.xlu0 %3362
  %3365 = vset.pattern.permute.xlu0 20
  %3366 = vperm.xlu0 %3365, %v598
  %v3367 = vpop.permute.xlu0 %3366
  %3369 = vset.pattern.permute.xlu0 20
  %3370 = vperm.xlu0 %3369, %v599
  %v3371 = vpop.permute.xlu0 %3370
  %3373 = vset.pattern.permute.xlu0 20
  %3374 = vperm.xlu0 %3373, %v600
  %v3375 = vpop.permute.xlu0 %3374
  %3377 = vset.pattern.permute.xlu0 20
  %3378 = vperm.xlu0 %3377, %v601
  %v3379 = vpop.permute.xlu0 %3378
  %3381 = vset.pattern.permute.xlu0 20
  %3382 = vperm.xlu0 %3381, %v602
  %v3383 = vpop.permute.xlu0 %3382
  %3385 = vset.pattern.permute.xlu0 20
  %3386 = vperm.xlu0 %3385, %v603
  %v3387 = vpop.permute.xlu0 %3386
  %3389 = vset.pattern.permute.xlu0 20
  %3390 = vperm.xlu0 %3389, %v604
  %v3391 = vpop.permute.xlu0 %3390
  %3393 = vset.pattern.permute.xlu0 20
  %3394 = vperm.xlu0 %3393, %v605
  %v3395 = vpop.permute.xlu0 %3394
  %3397 = vset.pattern.permute.xlu0 20
  %3398 = vperm.xlu0 %3397, %v606
  %v3399 = vpop.permute.xlu0 %3398
  %v3401 = vmul.f32 %v3327, %v3306
  %v3402 = vmul.f32 %v3331, %v3307
  %v3403 = vmul.f32 %v3335, %v3308
  %v3404 = vmul.f32 %v3339, %v3309
  %v3405 = vmul.f32 %v3343, %v3310
  %v3406 = vmul.f32 %v3347, %v3311
  %v3407 = vmul.f32 %v3351, %v3312
  %v3408 = vmul.f32 %v3355, %v3313
  %v3409 = vmul.f32 %v3359, %v3314
  %v3410 = vmul.f32 %v3363, %v3315
  %v3411 = vmul.f32 %v3367, %v3316
  %v3412 = vmul.f32 %v3371, %v3317
  %v3413 = vmul.f32 %v3375, %v3318
  %v3414 = vmul.f32 %v3379, %v3319
  %v3415 = vmul.f32 %v3383, %v3320
  %v3416 = vmul.f32 %v3387, %v3321
  %v3417 = vmul.f32 %v3391, %v3322
  %v3418 = vmul.f32 %v3395, %v3323
  %v3419 = vmul.f32 %v3399, %v3324
  %v3420 = vadd.f32 %v3286, %v3401
  %v3421 = vadd.f32 %v3287, %v3402
  %v3422 = vadd.f32 %v3288, %v3403
  %v3423 = vadd.f32 %v3289, %v3404
  %v3424 = vadd.f32 %v3290, %v3405
  %v3425 = vadd.f32 %v3291, %v3406
  %v3426 = vadd.f32 %v3292, %v3407
  %v3427 = vadd.f32 %v3293, %v3408
  %v3428 = vadd.f32 %v3294, %v3409
  %v3429 = vadd.f32 %v3295, %v3410
  %v3430 = vadd.f32 %v3296, %v3411
  %v3431 = vadd.f32 %v3297, %v3412
  %v3432 = vadd.f32 %v3298, %v3413
  %v3433 = vadd.f32 %v3299, %v3414
  %v3434 = vadd.f32 %v3300, %v3415
  %v3435 = vadd.f32 %v3301, %v3416
  %v3436 = vadd.f32 %v3302, %v3417
  %v3437 = vadd.f32 %v3303, %v3418
  %v3438 = vadd.f32 %v3304, %v3419
  %s3439 = scalar_lea.vmem %s3, 3192
  %v3440 = vld [vmem:[%s3439] sm:$0xff]
  %v3441 = vld [vmem:[%s3439 + $0x8] sm:$0xff]
  %v3442 = vld [vmem:[%s3439 + $0x10] sm:$0xff]
  %v3443 = vld [vmem:[%s3439 + $0x18] sm:$0xff]
  %v3444 = vld [vmem:[%s3439 + $0x20] sm:$0xff]
  %v3445 = vld [vmem:[%s3439 + $0x28] sm:$0xff]
  %v3446 = vld [vmem:[%s3439 + $0x30] sm:$0xff]
  %v3447 = vld [vmem:[%s3439 + $0x38] sm:$0xff]
  %v3448 = vld [vmem:[%s3439 + $0x40] sm:$0xff]
  %v3449 = vld [vmem:[%s3439 + $0x48] sm:$0xff]
  %v3450 = vld [vmem:[%s3439 + $0x50] sm:$0xff]
  %v3451 = vld [vmem:[%s3439 + $0x58] sm:$0xff]
  %v3452 = vld [vmem:[%s3439 + $0x60] sm:$0xff]
  %v3453 = vld [vmem:[%s3439 + $0x68] sm:$0xff]
  %v3454 = vld [vmem:[%s3439 + $0x70] sm:$0xff]
  %v3455 = vld [vmem:[%s3439 + $0x78] sm:$0xff]
  %v3456 = vld [vmem:[%s3439 + $0x80] sm:$0xff]
  %v3457 = vld [vmem:[%s3439 + $0x88] sm:$0xff]
  %v3458 = vld [vmem:[%s3439 + $0x90] sm:$0x3f]
  %3459 = vset.pattern.permute.xlu0 21
  %3460 = vperm.xlu0 %3459, %v588
  %v3461 = vpop.permute.xlu0 %3460
  %3463 = vset.pattern.permute.xlu0 21
  %3464 = vperm.xlu0 %3463, %v589
  %v3465 = vpop.permute.xlu0 %3464
  %3467 = vset.pattern.permute.xlu0 21
  %3468 = vperm.xlu0 %3467, %v590
  %v3469 = vpop.permute.xlu0 %3468
  %3471 = vset.pattern.permute.xlu0 21
  %3472 = vperm.xlu0 %3471, %v591
  %v3473 = vpop.permute.xlu0 %3472
  %3475 = vset.pattern.permute.xlu0 21
  %3476 = vperm.xlu0 %3475, %v592
  %v3477 = vpop.permute.xlu0 %3476
  %3479 = vset.pattern.permute.xlu0 21
  %3480 = vperm.xlu0 %3479, %v593
  %v3481 = vpop.permute.xlu0 %3480
  %3483 = vset.pattern.permute.xlu0 21
  %3484 = vperm.xlu0 %3483, %v594
  %v3485 = vpop.permute.xlu0 %3484
  %3487 = vset.pattern.permute.xlu0 21
  %3488 = vperm.xlu0 %3487, %v595
  %v3489 = vpop.permute.xlu0 %3488
  %3491 = vset.pattern.permute.xlu0 21
  %3492 = vperm.xlu0 %3491, %v596
  %v3493 = vpop.permute.xlu0 %3492
  %3495 = vset.pattern.permute.xlu0 21
  %3496 = vperm.xlu0 %3495, %v597
  %v3497 = vpop.permute.xlu0 %3496
  %3499 = vset.pattern.permute.xlu0 21
  %3500 = vperm.xlu0 %3499, %v598
  %v3501 = vpop.permute.xlu0 %3500
  %3503 = vset.pattern.permute.xlu0 21
  %3504 = vperm.xlu0 %3503, %v599
  %v3505 = vpop.permute.xlu0 %3504
  %3507 = vset.pattern.permute.xlu0 21
  %3508 = vperm.xlu0 %3507, %v600
  %v3509 = vpop.permute.xlu0 %3508
  %3511 = vset.pattern.permute.xlu0 21
  %3512 = vperm.xlu0 %3511, %v601
  %v3513 = vpop.permute.xlu0 %3512
  %3515 = vset.pattern.permute.xlu0 21
  %3516 = vperm.xlu0 %3515, %v602
  %v3517 = vpop.permute.xlu0 %3516
  %3519 = vset.pattern.permute.xlu0 21
  %3520 = vperm.xlu0 %3519, %v603
  %v3521 = vpop.permute.xlu0 %3520
  %3523 = vset.pattern.permute.xlu0 21
  %3524 = vperm.xlu0 %3523, %v604
  %v3525 = vpop.permute.xlu0 %3524
  %3527 = vset.pattern.permute.xlu0 21
  %3528 = vperm.xlu0 %3527, %v605
  %v3529 = vpop.permute.xlu0 %3528
  %3531 = vset.pattern.permute.xlu0 21
  %3532 = vperm.xlu0 %3531, %v606
  %v3533 = vpop.permute.xlu0 %3532
  %v3535 = vmul.f32 %v3461, %v3440
  %v3536 = vmul.f32 %v3465, %v3441
  %v3537 = vmul.f32 %v3469, %v3442
  %v3538 = vmul.f32 %v3473, %v3443
  %v3539 = vmul.f32 %v3477, %v3444
  %v3540 = vmul.f32 %v3481, %v3445
  %v3541 = vmul.f32 %v3485, %v3446
  %v3542 = vmul.f32 %v3489, %v3447
  %v3543 = vmul.f32 %v3493, %v3448
  %v3544 = vmul.f32 %v3497, %v3449
  %v3545 = vmul.f32 %v3501, %v3450
  %v3546 = vmul.f32 %v3505, %v3451
  %v3547 = vmul.f32 %v3509, %v3452
  %v3548 = vmul.f32 %v3513, %v3453
  %v3549 = vmul.f32 %v3517, %v3454
  %v3550 = vmul.f32 %v3521, %v3455
  %v3551 = vmul.f32 %v3525, %v3456
  %v3552 = vmul.f32 %v3529, %v3457
  %v3553 = vmul.f32 %v3533, %v3458
  %v3554 = vadd.f32 %v3420, %v3535
  %v3555 = vadd.f32 %v3421, %v3536
  %v3556 = vadd.f32 %v3422, %v3537
  %v3557 = vadd.f32 %v3423, %v3538
  %v3558 = vadd.f32 %v3424, %v3539
  %v3559 = vadd.f32 %v3425, %v3540
  %v3560 = vadd.f32 %v3426, %v3541
  %v3561 = vadd.f32 %v3427, %v3542
  %v3562 = vadd.f32 %v3428, %v3543
  %v3563 = vadd.f32 %v3429, %v3544
  %v3564 = vadd.f32 %v3430, %v3545
  %v3565 = vadd.f32 %v3431, %v3546
  %v3566 = vadd.f32 %v3432, %v3547
  %v3567 = vadd.f32 %v3433, %v3548
  %v3568 = vadd.f32 %v3434, %v3549
  %v3569 = vadd.f32 %v3435, %v3550
  %v3570 = vadd.f32 %v3436, %v3551
  %v3571 = vadd.f32 %v3437, %v3552
  %v3572 = vadd.f32 %v3438, %v3553
  %s3573 = scalar_lea.vmem %s3, 3344
  %v3574 = vld [vmem:[%s3573] sm:$0xff]
  %v3575 = vld [vmem:[%s3573 + $0x8] sm:$0xff]
  %v3576 = vld [vmem:[%s3573 + $0x10] sm:$0xff]
  %v3577 = vld [vmem:[%s3573 + $0x18] sm:$0xff]
  %v3578 = vld [vmem:[%s3573 + $0x20] sm:$0xff]
  %v3579 = vld [vmem:[%s3573 + $0x28] sm:$0xff]
  %v3580 = vld [vmem:[%s3573 + $0x30] sm:$0xff]
  %v3581 = vld [vmem:[%s3573 + $0x38] sm:$0xff]
  %v3582 = vld [vmem:[%s3573 + $0x40] sm:$0xff]
  %v3583 = vld [vmem:[%s3573 + $0x48] sm:$0xff]
  %v3584 = vld [vmem:[%s3573 + $0x50] sm:$0xff]
  %v3585 = vld [vmem:[%s3573 + $0x58] sm:$0xff]
  %v3586 = vld [vmem:[%s3573 + $0x60] sm:$0xff]
  %v3587 = vld [vmem:[%s3573 + $0x68] sm:$0xff]
  %v3588 = vld [vmem:[%s3573 + $0x70] sm:$0xff]
  %v3589 = vld [vmem:[%s3573 + $0x78] sm:$0xff]
  %v3590 = vld [vmem:[%s3573 + $0x80] sm:$0xff]
  %v3591 = vld [vmem:[%s3573 + $0x88] sm:$0xff]
  %v3592 = vld [vmem:[%s3573 + $0x90] sm:$0x3f]
  %3593 = vset.pattern.permute.xlu0 22
  %3594 = vperm.xlu0 %3593, %v588
  %v3595 = vpop.permute.xlu0 %3594
  %3597 = vset.pattern.permute.xlu0 22
  %3598 = vperm.xlu0 %3597, %v589
  %v3599 = vpop.permute.xlu0 %3598
  %3601 = vset.pattern.permute.xlu0 22
  %3602 = vperm.xlu0 %3601, %v590
  %v3603 = vpop.permute.xlu0 %3602
  %3605 = vset.pattern.permute.xlu0 22
  %3606 = vperm.xlu0 %3605, %v591
  %v3607 = vpop.permute.xlu0 %3606
  %3609 = vset.pattern.permute.xlu0 22
  %3610 = vperm.xlu0 %3609, %v592
  %v3611 = vpop.permute.xlu0 %3610
  %3613 = vset.pattern.permute.xlu0 22
  %3614 = vperm.xlu0 %3613, %v593
  %v3615 = vpop.permute.xlu0 %3614
  %3617 = vset.pattern.permute.xlu0 22
  %3618 = vperm.xlu0 %3617, %v594
  %v3619 = vpop.permute.xlu0 %3618
  %3621 = vset.pattern.permute.xlu0 22
  %3622 = vperm.xlu0 %3621, %v595
  %v3623 = vpop.permute.xlu0 %3622
  %3625 = vset.pattern.permute.xlu0 22
  %3626 = vperm.xlu0 %3625, %v596
  %v3627 = vpop.permute.xlu0 %3626
  %3629 = vset.pattern.permute.xlu0 22
  %3630 = vperm.xlu0 %3629, %v597
  %v3631 = vpop.permute.xlu0 %3630
  %3633 = vset.pattern.permute.xlu0 22
  %3634 = vperm.xlu0 %3633, %v598
  %v3635 = vpop.permute.xlu0 %3634
  %3637 = vset.pattern.permute.xlu0 22
  %3638 = vperm.xlu0 %3637, %v599
  %v3639 = vpop.permute.xlu0 %3638
  %3641 = vset.pattern.permute.xlu0 22
  %3642 = vperm.xlu0 %3641, %v600
  %v3643 = vpop.permute.xlu0 %3642
  %3645 = vset.pattern.permute.xlu0 22
  %3646 = vperm.xlu0 %3645, %v601
  %v3647 = vpop.permute.xlu0 %3646
  %3649 = vset.pattern.permute.xlu0 22
  %3650 = vperm.xlu0 %3649, %v602
  %v3651 = vpop.permute.xlu0 %3650
  %3653 = vset.pattern.permute.xlu0 22
  %3654 = vperm.xlu0 %3653, %v603
  %v3655 = vpop.permute.xlu0 %3654
  %3657 = vset.pattern.permute.xlu0 22
  %3658 = vperm.xlu0 %3657, %v604
  %v3659 = vpop.permute.xlu0 %3658
  %3661 = vset.pattern.permute.xlu0 22
  %3662 = vperm.xlu0 %3661, %v605
  %v3663 = vpop.permute.xlu0 %3662
  %3665 = vset.pattern.permute.xlu0 22
  %3666 = vperm.xlu0 %3665, %v606
  %v3667 = vpop.permute.xlu0 %3666
  %v3669 = vmul.f32 %v3595, %v3574
  %v3670 = vmul.f32 %v3599, %v3575
  %v3671 = vmul.f32 %v3603, %v3576
  %v3672 = vmul.f32 %v3607, %v3577
  %v3673 = vmul.f32 %v3611, %v3578
  %v3674 = vmul.f32 %v3615, %v3579
  %v3675 = vmul.f32 %v3619, %v3580
  %v3676 = vmul.f32 %v3623, %v3581
  %v3677 = vmul.f32 %v3627, %v3582
  %v3678 = vmul.f32 %v3631, %v3583
  %v3679 = vmul.f32 %v3635, %v3584
  %v3680 = vmul.f32 %v3639, %v3585
  %v3681 = vmul.f32 %v3643, %v3586
  %v3682 = vmul.f32 %v3647, %v3587
  %v3683 = vmul.f32 %v3651, %v3588
  %v3684 = vmul.f32 %v3655, %v3589
  %v3685 = vmul.f32 %v3659, %v3590
  %v3686 = vmul.f32 %v3663, %v3591
  %v3687 = vmul.f32 %v3667, %v3592
  %v3688 = vadd.f32 %v3554, %v3669
  %v3689 = vadd.f32 %v3555, %v3670
  %v3690 = vadd.f32 %v3556, %v3671
  %v3691 = vadd.f32 %v3557, %v3672
  %v3692 = vadd.f32 %v3558, %v3673
  %v3693 = vadd.f32 %v3559, %v3674
  %v3694 = vadd.f32 %v3560, %v3675
  %v3695 = vadd.f32 %v3561, %v3676
  %v3696 = vadd.f32 %v3562, %v3677
  %v3697 = vadd.f32 %v3563, %v3678
  %v3698 = vadd.f32 %v3564, %v3679
  %v3699 = vadd.f32 %v3565, %v3680
  %v3700 = vadd.f32 %v3566, %v3681
  %v3701 = vadd.f32 %v3567, %v3682
  %v3702 = vadd.f32 %v3568, %v3683
  %v3703 = vadd.f32 %v3569, %v3684
  %v3704 = vadd.f32 %v3570, %v3685
  %v3705 = vadd.f32 %v3571, %v3686
  %v3706 = vadd.f32 %v3572, %v3687
  %s3707 = scalar_lea.vmem %s3, 3496
  %v3708 = vld [vmem:[%s3707] sm:$0xff]
  %v3709 = vld [vmem:[%s3707 + $0x8] sm:$0xff]
  %v3710 = vld [vmem:[%s3707 + $0x10] sm:$0xff]
  %v3711 = vld [vmem:[%s3707 + $0x18] sm:$0xff]
  %v3712 = vld [vmem:[%s3707 + $0x20] sm:$0xff]
  %v3713 = vld [vmem:[%s3707 + $0x28] sm:$0xff]
  %v3714 = vld [vmem:[%s3707 + $0x30] sm:$0xff]
  %v3715 = vld [vmem:[%s3707 + $0x38] sm:$0xff]
  %v3716 = vld [vmem:[%s3707 + $0x40] sm:$0xff]
  %v3717 = vld [vmem:[%s3707 + $0x48] sm:$0xff]
  %v3718 = vld [vmem:[%s3707 + $0x50] sm:$0xff]
  %v3719 = vld [vmem:[%s3707 + $0x58] sm:$0xff]
  %v3720 = vld [vmem:[%s3707 + $0x60] sm:$0xff]
  %v3721 = vld [vmem:[%s3707 + $0x68] sm:$0xff]
  %v3722 = vld [vmem:[%s3707 + $0x70] sm:$0xff]
  %v3723 = vld [vmem:[%s3707 + $0x78] sm:$0xff]
  %v3724 = vld [vmem:[%s3707 + $0x80] sm:$0xff]
  %v3725 = vld [vmem:[%s3707 + $0x88] sm:$0xff]
  %v3726 = vld [vmem:[%s3707 + $0x90] sm:$0x3f]
  %3727 = vset.pattern.permute.xlu0 23
  %3728 = vperm.xlu0 %3727, %v588
  %v3729 = vpop.permute.xlu0 %3728
  %3731 = vset.pattern.permute.xlu0 23
  %3732 = vperm.xlu0 %3731, %v589
  %v3733 = vpop.permute.xlu0 %3732
  %3735 = vset.pattern.permute.xlu0 23
  %3736 = vperm.xlu0 %3735, %v590
  %v3737 = vpop.permute.xlu0 %3736
  %3739 = vset.pattern.permute.xlu0 23
  %3740 = vperm.xlu0 %3739, %v591
  %v3741 = vpop.permute.xlu0 %3740
  %3743 = vset.pattern.permute.xlu0 23
  %3744 = vperm.xlu0 %3743, %v592
  %v3745 = vpop.permute.xlu0 %3744
  %3747 = vset.pattern.permute.xlu0 23
  %3748 = vperm.xlu0 %3747, %v593
  %v3749 = vpop.permute.xlu0 %3748
  %3751 = vset.pattern.permute.xlu0 23
  %3752 = vperm.xlu0 %3751, %v594
  %v3753 = vpop.permute.xlu0 %3752
  %3755 = vset.pattern.permute.xlu0 23
  %3756 = vperm.xlu0 %3755, %v595
  %v3757 = vpop.permute.xlu0 %3756
  %3759 = vset.pattern.permute.xlu0 23
  %3760 = vperm.xlu0 %3759, %v596
  %v3761 = vpop.permute.xlu0 %3760
  %3763 = vset.pattern.permute.xlu0 23
  %3764 = vperm.xlu0 %3763, %v597
  %v3765 = vpop.permute.xlu0 %3764
  %3767 = vset.pattern.permute.xlu0 23
  %3768 = vperm.xlu0 %3767, %v598
  %v3769 = vpop.permute.xlu0 %3768
  %3771 = vset.pattern.permute.xlu0 23
  %3772 = vperm.xlu0 %3771, %v599
  %v3773 = vpop.permute.xlu0 %3772
  %3775 = vset.pattern.permute.xlu0 23
  %3776 = vperm.xlu0 %3775, %v600
  %v3777 = vpop.permute.xlu0 %3776
  %3779 = vset.pattern.permute.xlu0 23
  %3780 = vperm.xlu0 %3779, %v601
  %v3781 = vpop.permute.xlu0 %3780
  %3783 = vset.pattern.permute.xlu0 23
  %3784 = vperm.xlu0 %3783, %v602
  %v3785 = vpop.permute.xlu0 %3784
  %3787 = vset.pattern.permute.xlu0 23
  %3788 = vperm.xlu0 %3787, %v603
  %v3789 = vpop.permute.xlu0 %3788
  %3791 = vset.pattern.permute.xlu0 23
  %3792 = vperm.xlu0 %3791, %v604
  %v3793 = vpop.permute.xlu0 %3792
  %3795 = vset.pattern.permute.xlu0 23
  %3796 = vperm.xlu0 %3795, %v605
  %v3797 = vpop.permute.xlu0 %3796
  %3799 = vset.pattern.permute.xlu0 23
  %3800 = vperm.xlu0 %3799, %v606
  %v3801 = vpop.permute.xlu0 %3800
  %v3803 = vmul.f32 %v3729, %v3708
  %v3804 = vmul.f32 %v3733, %v3709
  %v3805 = vmul.f32 %v3737, %v3710
  %v3806 = vmul.f32 %v3741, %v3711
  %v3807 = vmul.f32 %v3745, %v3712
  %v3808 = vmul.f32 %v3749, %v3713
  %v3809 = vmul.f32 %v3753, %v3714
  %v3810 = vmul.f32 %v3757, %v3715
  %v3811 = vmul.f32 %v3761, %v3716
  %v3812 = vmul.f32 %v3765, %v3717
  %v3813 = vmul.f32 %v3769, %v3718
  %v3814 = vmul.f32 %v3773, %v3719
  %v3815 = vmul.f32 %v3777, %v3720
  %v3816 = vmul.f32 %v3781, %v3721
  %v3817 = vmul.f32 %v3785, %v3722
  %v3818 = vmul.f32 %v3789, %v3723
  %v3819 = vmul.f32 %v3793, %v3724
  %v3820 = vmul.f32 %v3797, %v3725
  %v3821 = vmul.f32 %v3801, %v3726
  %v3822 = vadd.f32 %v3688, %v3803
  %v3823 = vadd.f32 %v3689, %v3804
  %v3824 = vadd.f32 %v3690, %v3805
  %v3825 = vadd.f32 %v3691, %v3806
  %v3826 = vadd.f32 %v3692, %v3807
  %v3827 = vadd.f32 %v3693, %v3808
  %v3828 = vadd.f32 %v3694, %v3809
  %v3829 = vadd.f32 %v3695, %v3810
  %v3830 = vadd.f32 %v3696, %v3811
  %v3831 = vadd.f32 %v3697, %v3812
  %v3832 = vadd.f32 %v3698, %v3813
  %v3833 = vadd.f32 %v3699, %v3814
  %v3834 = vadd.f32 %v3700, %v3815
  %v3835 = vadd.f32 %v3701, %v3816
  %v3836 = vadd.f32 %v3702, %v3817
  %v3837 = vadd.f32 %v3703, %v3818
  %v3838 = vadd.f32 %v3704, %v3819
  %v3839 = vadd.f32 %v3705, %v3820
  %v3840 = vadd.f32 %v3706, %v3821
  %s3841 = scalar_lea.vmem %s3, 3648
  %v3842 = vld [vmem:[%s3841] sm:$0xff]
  %v3843 = vld [vmem:[%s3841 + $0x8] sm:$0xff]
  %v3844 = vld [vmem:[%s3841 + $0x10] sm:$0xff]
  %v3845 = vld [vmem:[%s3841 + $0x18] sm:$0xff]
  %v3846 = vld [vmem:[%s3841 + $0x20] sm:$0xff]
  %v3847 = vld [vmem:[%s3841 + $0x28] sm:$0xff]
  %v3848 = vld [vmem:[%s3841 + $0x30] sm:$0xff]
  %v3849 = vld [vmem:[%s3841 + $0x38] sm:$0xff]
  %v3850 = vld [vmem:[%s3841 + $0x40] sm:$0xff]
  %v3851 = vld [vmem:[%s3841 + $0x48] sm:$0xff]
  %v3852 = vld [vmem:[%s3841 + $0x50] sm:$0xff]
  %v3853 = vld [vmem:[%s3841 + $0x58] sm:$0xff]
  %v3854 = vld [vmem:[%s3841 + $0x60] sm:$0xff]
  %v3855 = vld [vmem:[%s3841 + $0x68] sm:$0xff]
  %v3856 = vld [vmem:[%s3841 + $0x70] sm:$0xff]
  %v3857 = vld [vmem:[%s3841 + $0x78] sm:$0xff]
  %v3858 = vld [vmem:[%s3841 + $0x80] sm:$0xff]
  %v3859 = vld [vmem:[%s3841 + $0x88] sm:$0xff]
  %v3860 = vld [vmem:[%s3841 + $0x90] sm:$0x3f]
  %3861 = vset.pattern.permute.xlu0 24
  %3862 = vperm.xlu0 %3861, %v588
  %v3863 = vpop.permute.xlu0 %3862
  %3865 = vset.pattern.permute.xlu0 24
  %3866 = vperm.xlu0 %3865, %v589
  %v3867 = vpop.permute.xlu0 %3866
  %3869 = vset.pattern.permute.xlu0 24
  %3870 = vperm.xlu0 %3869, %v590
  %v3871 = vpop.permute.xlu0 %3870
  %3873 = vset.pattern.permute.xlu0 24
  %3874 = vperm.xlu0 %3873, %v591
  %v3875 = vpop.permute.xlu0 %3874
  %3877 = vset.pattern.permute.xlu0 24
  %3878 = vperm.xlu0 %3877, %v592
  %v3879 = vpop.permute.xlu0 %3878
  %3881 = vset.pattern.permute.xlu0 24
  %3882 = vperm.xlu0 %3881, %v593
  %v3883 = vpop.permute.xlu0 %3882
  %3885 = vset.pattern.permute.xlu0 24
  %3886 = vperm.xlu0 %3885, %v594
  %v3887 = vpop.permute.xlu0 %3886
  %3889 = vset.pattern.permute.xlu0 24
  %3890 = vperm.xlu0 %3889, %v595
  %v3891 = vpop.permute.xlu0 %3890
  %3893 = vset.pattern.permute.xlu0 24
  %3894 = vperm.xlu0 %3893, %v596
  %v3895 = vpop.permute.xlu0 %3894
  %3897 = vset.pattern.permute.xlu0 24
  %3898 = vperm.xlu0 %3897, %v597
  %v3899 = vpop.permute.xlu0 %3898
  %3901 = vset.pattern.permute.xlu0 24
  %3902 = vperm.xlu0 %3901, %v598
  %v3903 = vpop.permute.xlu0 %3902
  %3905 = vset.pattern.permute.xlu0 24
  %3906 = vperm.xlu0 %3905, %v599
  %v3907 = vpop.permute.xlu0 %3906
  %3909 = vset.pattern.permute.xlu0 24
  %3910 = vperm.xlu0 %3909, %v600
  %v3911 = vpop.permute.xlu0 %3910
  %3913 = vset.pattern.permute.xlu0 24
  %3914 = vperm.xlu0 %3913, %v601
  %v3915 = vpop.permute.xlu0 %3914
  %3917 = vset.pattern.permute.xlu0 24
  %3918 = vperm.xlu0 %3917, %v602
  %v3919 = vpop.permute.xlu0 %3918
  %3921 = vset.pattern.permute.xlu0 24
  %3922 = vperm.xlu0 %3921, %v603
  %v3923 = vpop.permute.xlu0 %3922
  %3925 = vset.pattern.permute.xlu0 24
  %3926 = vperm.xlu0 %3925, %v604
  %v3927 = vpop.permute.xlu0 %3926
  %3929 = vset.pattern.permute.xlu0 24
  %3930 = vperm.xlu0 %3929, %v605
  %v3931 = vpop.permute.xlu0 %3930
  %3933 = vset.pattern.permute.xlu0 24
  %3934 = vperm.xlu0 %3933, %v606
  %v3935 = vpop.permute.xlu0 %3934
  %v3937 = vmul.f32 %v3863, %v3842
  %v3938 = vmul.f32 %v3867, %v3843
  %v3939 = vmul.f32 %v3871, %v3844
  %v3940 = vmul.f32 %v3875, %v3845
  %v3941 = vmul.f32 %v3879, %v3846
  %v3942 = vmul.f32 %v3883, %v3847
  %v3943 = vmul.f32 %v3887, %v3848
  %v3944 = vmul.f32 %v3891, %v3849
  %v3945 = vmul.f32 %v3895, %v3850
  %v3946 = vmul.f32 %v3899, %v3851
  %v3947 = vmul.f32 %v3903, %v3852
  %v3948 = vmul.f32 %v3907, %v3853
  %v3949 = vmul.f32 %v3911, %v3854
  %v3950 = vmul.f32 %v3915, %v3855
  %v3951 = vmul.f32 %v3919, %v3856
  %v3952 = vmul.f32 %v3923, %v3857
  %v3953 = vmul.f32 %v3927, %v3858
  %v3954 = vmul.f32 %v3931, %v3859
  %v3955 = vmul.f32 %v3935, %v3860
  %v3956 = vadd.f32 %v3822, %v3937
  %v3957 = vadd.f32 %v3823, %v3938
  %v3958 = vadd.f32 %v3824, %v3939
  %v3959 = vadd.f32 %v3825, %v3940
  %v3960 = vadd.f32 %v3826, %v3941
  %v3961 = vadd.f32 %v3827, %v3942
  %v3962 = vadd.f32 %v3828, %v3943
  %v3963 = vadd.f32 %v3829, %v3944
  %v3964 = vadd.f32 %v3830, %v3945
  %v3965 = vadd.f32 %v3831, %v3946
  %v3966 = vadd.f32 %v3832, %v3947
  %v3967 = vadd.f32 %v3833, %v3948
  %v3968 = vadd.f32 %v3834, %v3949
  %v3969 = vadd.f32 %v3835, %v3950
  %v3970 = vadd.f32 %v3836, %v3951
  %v3971 = vadd.f32 %v3837, %v3952
  %v3972 = vadd.f32 %v3838, %v3953
  %v3973 = vadd.f32 %v3839, %v3954
  %v3974 = vadd.f32 %v3840, %v3955
  %s3975 = scalar_lea.vmem %s3, 3800
  %v3976 = vld [vmem:[%s3975] sm:$0xff]
  %v3977 = vld [vmem:[%s3975 + $0x8] sm:$0xff]
  %v3978 = vld [vmem:[%s3975 + $0x10] sm:$0xff]
  %v3979 = vld [vmem:[%s3975 + $0x18] sm:$0xff]
  %v3980 = vld [vmem:[%s3975 + $0x20] sm:$0xff]
  %v3981 = vld [vmem:[%s3975 + $0x28] sm:$0xff]
  %v3982 = vld [vmem:[%s3975 + $0x30] sm:$0xff]
  %v3983 = vld [vmem:[%s3975 + $0x38] sm:$0xff]
  %v3984 = vld [vmem:[%s3975 + $0x40] sm:$0xff]
  %v3985 = vld [vmem:[%s3975 + $0x48] sm:$0xff]
  %v3986 = vld [vmem:[%s3975 + $0x50] sm:$0xff]
  %v3987 = vld [vmem:[%s3975 + $0x58] sm:$0xff]
  %v3988 = vld [vmem:[%s3975 + $0x60] sm:$0xff]
  %v3989 = vld [vmem:[%s3975 + $0x68] sm:$0xff]
  %v3990 = vld [vmem:[%s3975 + $0x70] sm:$0xff]
  %v3991 = vld [vmem:[%s3975 + $0x78] sm:$0xff]
  %v3992 = vld [vmem:[%s3975 + $0x80] sm:$0xff]
  %v3993 = vld [vmem:[%s3975 + $0x88] sm:$0xff]
  %v3994 = vld [vmem:[%s3975 + $0x90] sm:$0x3f]
  %3995 = vset.pattern.permute.xlu0 25
  %3996 = vperm.xlu0 %3995, %v588
  %v3997 = vpop.permute.xlu0 %3996
  %3999 = vset.pattern.permute.xlu0 25
  %4000 = vperm.xlu0 %3999, %v589
  %v4001 = vpop.permute.xlu0 %4000
  %4003 = vset.pattern.permute.xlu0 25
  %4004 = vperm.xlu0 %4003, %v590
  %v4005 = vpop.permute.xlu0 %4004
  %4007 = vset.pattern.permute.xlu0 25
  %4008 = vperm.xlu0 %4007, %v591
  %v4009 = vpop.permute.xlu0 %4008
  %4011 = vset.pattern.permute.xlu0 25
  %4012 = vperm.xlu0 %4011, %v592
  %v4013 = vpop.permute.xlu0 %4012
  %4015 = vset.pattern.permute.xlu0 25
  %4016 = vperm.xlu0 %4015, %v593
  %v4017 = vpop.permute.xlu0 %4016
  %4019 = vset.pattern.permute.xlu0 25
  %4020 = vperm.xlu0 %4019, %v594
  %v4021 = vpop.permute.xlu0 %4020
  %4023 = vset.pattern.permute.xlu0 25
  %4024 = vperm.xlu0 %4023, %v595
  %v4025 = vpop.permute.xlu0 %4024
  %4027 = vset.pattern.permute.xlu0 25
  %4028 = vperm.xlu0 %4027, %v596
  %v4029 = vpop.permute.xlu0 %4028
  %4031 = vset.pattern.permute.xlu0 25
  %4032 = vperm.xlu0 %4031, %v597
  %v4033 = vpop.permute.xlu0 %4032
  %4035 = vset.pattern.permute.xlu0 25
  %4036 = vperm.xlu0 %4035, %v598
  %v4037 = vpop.permute.xlu0 %4036
  %4039 = vset.pattern.permute.xlu0 25
  %4040 = vperm.xlu0 %4039, %v599
  %v4041 = vpop.permute.xlu0 %4040
  %4043 = vset.pattern.permute.xlu0 25
  %4044 = vperm.xlu0 %4043, %v600
  %v4045 = vpop.permute.xlu0 %4044
  %4047 = vset.pattern.permute.xlu0 25
  %4048 = vperm.xlu0 %4047, %v601
  %v4049 = vpop.permute.xlu0 %4048
  %4051 = vset.pattern.permute.xlu0 25
  %4052 = vperm.xlu0 %4051, %v602
  %v4053 = vpop.permute.xlu0 %4052
  %4055 = vset.pattern.permute.xlu0 25
  %4056 = vperm.xlu0 %4055, %v603
  %v4057 = vpop.permute.xlu0 %4056
  %4059 = vset.pattern.permute.xlu0 25
  %4060 = vperm.xlu0 %4059, %v604
  %v4061 = vpop.permute.xlu0 %4060
  %4063 = vset.pattern.permute.xlu0 25
  %4064 = vperm.xlu0 %4063, %v605
  %v4065 = vpop.permute.xlu0 %4064
  %4067 = vset.pattern.permute.xlu0 25
  %4068 = vperm.xlu0 %4067, %v606
  %v4069 = vpop.permute.xlu0 %4068
  %v4071 = vmul.f32 %v3997, %v3976
  %v4072 = vmul.f32 %v4001, %v3977
  %v4073 = vmul.f32 %v4005, %v3978
  %v4074 = vmul.f32 %v4009, %v3979
  %v4075 = vmul.f32 %v4013, %v3980
  %v4076 = vmul.f32 %v4017, %v3981
  %v4077 = vmul.f32 %v4021, %v3982
  %v4078 = vmul.f32 %v4025, %v3983
  %v4079 = vmul.f32 %v4029, %v3984
  %v4080 = vmul.f32 %v4033, %v3985
  %v4081 = vmul.f32 %v4037, %v3986
  %v4082 = vmul.f32 %v4041, %v3987
  %v4083 = vmul.f32 %v4045, %v3988
  %v4084 = vmul.f32 %v4049, %v3989
  %v4085 = vmul.f32 %v4053, %v3990
  %v4086 = vmul.f32 %v4057, %v3991
  %v4087 = vmul.f32 %v4061, %v3992
  %v4088 = vmul.f32 %v4065, %v3993
  %v4089 = vmul.f32 %v4069, %v3994
  %v4090 = vadd.f32 %v3956, %v4071
  %v4091 = vadd.f32 %v3957, %v4072
  %v4092 = vadd.f32 %v3958, %v4073
  %v4093 = vadd.f32 %v3959, %v4074
  %v4094 = vadd.f32 %v3960, %v4075
  %v4095 = vadd.f32 %v3961, %v4076
  %v4096 = vadd.f32 %v3962, %v4077
  %v4097 = vadd.f32 %v3963, %v4078
  %v4098 = vadd.f32 %v3964, %v4079
  %v4099 = vadd.f32 %v3965, %v4080
  %v4100 = vadd.f32 %v3966, %v4081
  %v4101 = vadd.f32 %v3967, %v4082
  %v4102 = vadd.f32 %v3968, %v4083
  %v4103 = vadd.f32 %v3969, %v4084
  %v4104 = vadd.f32 %v3970, %v4085
  %v4105 = vadd.f32 %v3971, %v4086
  %v4106 = vadd.f32 %v3972, %v4087
  %v4107 = vadd.f32 %v3973, %v4088
  %v4108 = vadd.f32 %v3974, %v4089
  %s4109 = scalar_lea.vmem %s3, 3952
  %v4110 = vld [vmem:[%s4109] sm:$0xff]
  %v4111 = vld [vmem:[%s4109 + $0x8] sm:$0xff]
  %v4112 = vld [vmem:[%s4109 + $0x10] sm:$0xff]
  %v4113 = vld [vmem:[%s4109 + $0x18] sm:$0xff]
  %v4114 = vld [vmem:[%s4109 + $0x20] sm:$0xff]
  %v4115 = vld [vmem:[%s4109 + $0x28] sm:$0xff]
  %v4116 = vld [vmem:[%s4109 + $0x30] sm:$0xff]
  %v4117 = vld [vmem:[%s4109 + $0x38] sm:$0xff]
  %v4118 = vld [vmem:[%s4109 + $0x40] sm:$0xff]
  %v4119 = vld [vmem:[%s4109 + $0x48] sm:$0xff]
  %v4120 = vld [vmem:[%s4109 + $0x50] sm:$0xff]
  %v4121 = vld [vmem:[%s4109 + $0x58] sm:$0xff]
  %v4122 = vld [vmem:[%s4109 + $0x60] sm:$0xff]
  %v4123 = vld [vmem:[%s4109 + $0x68] sm:$0xff]
  %v4124 = vld [vmem:[%s4109 + $0x70] sm:$0xff]
  %v4125 = vld [vmem:[%s4109 + $0x78] sm:$0xff]
  %v4126 = vld [vmem:[%s4109 + $0x80] sm:$0xff]
  %v4127 = vld [vmem:[%s4109 + $0x88] sm:$0xff]
  %v4128 = vld [vmem:[%s4109 + $0x90] sm:$0x3f]
  %4129 = vset.pattern.permute.xlu0 26
  %4130 = vperm.xlu0 %4129, %v588
  %v4131 = vpop.permute.xlu0 %4130
  %4133 = vset.pattern.permute.xlu0 26
  %4134 = vperm.xlu0 %4133, %v589
  %v4135 = vpop.permute.xlu0 %4134
  %4137 = vset.pattern.permute.xlu0 26
  %4138 = vperm.xlu0 %4137, %v590
  %v4139 = vpop.permute.xlu0 %4138
  %4141 = vset.pattern.permute.xlu0 26
  %4142 = vperm.xlu0 %4141, %v591
  %v4143 = vpop.permute.xlu0 %4142
  %4145 = vset.pattern.permute.xlu0 26
  %4146 = vperm.xlu0 %4145, %v592
  %v4147 = vpop.permute.xlu0 %4146
  %4149 = vset.pattern.permute.xlu0 26
  %4150 = vperm.xlu0 %4149, %v593
  %v4151 = vpop.permute.xlu0 %4150
  %4153 = vset.pattern.permute.xlu0 26
  %4154 = vperm.xlu0 %4153, %v594
  %v4155 = vpop.permute.xlu0 %4154
  %4157 = vset.pattern.permute.xlu0 26
  %4158 = vperm.xlu0 %4157, %v595
  %v4159 = vpop.permute.xlu0 %4158
  %4161 = vset.pattern.permute.xlu0 26
  %4162 = vperm.xlu0 %4161, %v596
  %v4163 = vpop.permute.xlu0 %4162
  %4165 = vset.pattern.permute.xlu0 26
  %4166 = vperm.xlu0 %4165, %v597
  %v4167 = vpop.permute.xlu0 %4166
  %4169 = vset.pattern.permute.xlu0 26
  %4170 = vperm.xlu0 %4169, %v598
  %v4171 = vpop.permute.xlu0 %4170
  %4173 = vset.pattern.permute.xlu0 26
  %4174 = vperm.xlu0 %4173, %v599
  %v4175 = vpop.permute.xlu0 %4174
  %4177 = vset.pattern.permute.xlu0 26
  %4178 = vperm.xlu0 %4177, %v600
  %v4179 = vpop.permute.xlu0 %4178
  %4181 = vset.pattern.permute.xlu0 26
  %4182 = vperm.xlu0 %4181, %v601
  %v4183 = vpop.permute.xlu0 %4182
  %4185 = vset.pattern.permute.xlu0 26
  %4186 = vperm.xlu0 %4185, %v602
  %v4187 = vpop.permute.xlu0 %4186
  %4189 = vset.pattern.permute.xlu0 26
  %4190 = vperm.xlu0 %4189, %v603
  %v4191 = vpop.permute.xlu0 %4190
  %4193 = vset.pattern.permute.xlu0 26
  %4194 = vperm.xlu0 %4193, %v604
  %v4195 = vpop.permute.xlu0 %4194
  %4197 = vset.pattern.permute.xlu0 26
  %4198 = vperm.xlu0 %4197, %v605
  %v4199 = vpop.permute.xlu0 %4198
  %4201 = vset.pattern.permute.xlu0 26
  %4202 = vperm.xlu0 %4201, %v606
  %v4203 = vpop.permute.xlu0 %4202
  %v4205 = vmul.f32 %v4131, %v4110
  %v4206 = vmul.f32 %v4135, %v4111
  %v4207 = vmul.f32 %v4139, %v4112
  %v4208 = vmul.f32 %v4143, %v4113
  %v4209 = vmul.f32 %v4147, %v4114
  %v4210 = vmul.f32 %v4151, %v4115
  %v4211 = vmul.f32 %v4155, %v4116
  %v4212 = vmul.f32 %v4159, %v4117
  %v4213 = vmul.f32 %v4163, %v4118
  %v4214 = vmul.f32 %v4167, %v4119
  %v4215 = vmul.f32 %v4171, %v4120
  %v4216 = vmul.f32 %v4175, %v4121
  %v4217 = vmul.f32 %v4179, %v4122
  %v4218 = vmul.f32 %v4183, %v4123
  %v4219 = vmul.f32 %v4187, %v4124
  %v4220 = vmul.f32 %v4191, %v4125
  %v4221 = vmul.f32 %v4195, %v4126
  %v4222 = vmul.f32 %v4199, %v4127
  %v4223 = vmul.f32 %v4203, %v4128
  %v4224 = vadd.f32 %v4090, %v4205
  %v4225 = vadd.f32 %v4091, %v4206
  %v4226 = vadd.f32 %v4092, %v4207
  %v4227 = vadd.f32 %v4093, %v4208
  %v4228 = vadd.f32 %v4094, %v4209
  %v4229 = vadd.f32 %v4095, %v4210
  %v4230 = vadd.f32 %v4096, %v4211
  %v4231 = vadd.f32 %v4097, %v4212
  %v4232 = vadd.f32 %v4098, %v4213
  %v4233 = vadd.f32 %v4099, %v4214
  %v4234 = vadd.f32 %v4100, %v4215
  %v4235 = vadd.f32 %v4101, %v4216
  %v4236 = vadd.f32 %v4102, %v4217
  %v4237 = vadd.f32 %v4103, %v4218
  %v4238 = vadd.f32 %v4104, %v4219
  %v4239 = vadd.f32 %v4105, %v4220
  %v4240 = vadd.f32 %v4106, %v4221
  %v4241 = vadd.f32 %v4107, %v4222
  %v4242 = vadd.f32 %v4108, %v4223
  %s4243 = scalar_lea.vmem %s3, 4104
  %v4244 = vld [vmem:[%s4243] sm:$0xff]
  %v4245 = vld [vmem:[%s4243 + $0x8] sm:$0xff]
  %v4246 = vld [vmem:[%s4243 + $0x10] sm:$0xff]
  %v4247 = vld [vmem:[%s4243 + $0x18] sm:$0xff]
  %v4248 = vld [vmem:[%s4243 + $0x20] sm:$0xff]
  %v4249 = vld [vmem:[%s4243 + $0x28] sm:$0xff]
  %v4250 = vld [vmem:[%s4243 + $0x30] sm:$0xff]
  %v4251 = vld [vmem:[%s4243 + $0x38] sm:$0xff]
  %v4252 = vld [vmem:[%s4243 + $0x40] sm:$0xff]
  %v4253 = vld [vmem:[%s4243 + $0x48] sm:$0xff]
  %v4254 = vld [vmem:[%s4243 + $0x50] sm:$0xff]
  %v4255 = vld [vmem:[%s4243 + $0x58] sm:$0xff]
  %v4256 = vld [vmem:[%s4243 + $0x60] sm:$0xff]
  %v4257 = vld [vmem:[%s4243 + $0x68] sm:$0xff]
  %v4258 = vld [vmem:[%s4243 + $0x70] sm:$0xff]
  %v4259 = vld [vmem:[%s4243 + $0x78] sm:$0xff]
  %v4260 = vld [vmem:[%s4243 + $0x80] sm:$0xff]
  %v4261 = vld [vmem:[%s4243 + $0x88] sm:$0xff]
  %v4262 = vld [vmem:[%s4243 + $0x90] sm:$0x3f]
  %4263 = vset.pattern.permute.xlu0 27
  %4264 = vperm.xlu0 %4263, %v588
  %v4265 = vpop.permute.xlu0 %4264
  %4267 = vset.pattern.permute.xlu0 27
  %4268 = vperm.xlu0 %4267, %v589
  %v4269 = vpop.permute.xlu0 %4268
  %4271 = vset.pattern.permute.xlu0 27
  %4272 = vperm.xlu0 %4271, %v590
  %v4273 = vpop.permute.xlu0 %4272
  %4275 = vset.pattern.permute.xlu0 27
  %4276 = vperm.xlu0 %4275, %v591
  %v4277 = vpop.permute.xlu0 %4276
  %4279 = vset.pattern.permute.xlu0 27
  %4280 = vperm.xlu0 %4279, %v592
  %v4281 = vpop.permute.xlu0 %4280
  %4283 = vset.pattern.permute.xlu0 27
  %4284 = vperm.xlu0 %4283, %v593
  %v4285 = vpop.permute.xlu0 %4284
  %4287 = vset.pattern.permute.xlu0 27
  %4288 = vperm.xlu0 %4287, %v594
  %v4289 = vpop.permute.xlu0 %4288
  %4291 = vset.pattern.permute.xlu0 27
  %4292 = vperm.xlu0 %4291, %v595
  %v4293 = vpop.permute.xlu0 %4292
  %4295 = vset.pattern.permute.xlu0 27
  %4296 = vperm.xlu0 %4295, %v596
  %v4297 = vpop.permute.xlu0 %4296
  %4299 = vset.pattern.permute.xlu0 27
  %4300 = vperm.xlu0 %4299, %v597
  %v4301 = vpop.permute.xlu0 %4300
  %4303 = vset.pattern.permute.xlu0 27
  %4304 = vperm.xlu0 %4303, %v598
  %v4305 = vpop.permute.xlu0 %4304
  %4307 = vset.pattern.permute.xlu0 27
  %4308 = vperm.xlu0 %4307, %v599
  %v4309 = vpop.permute.xlu0 %4308
  %4311 = vset.pattern.permute.xlu0 27
  %4312 = vperm.xlu0 %4311, %v600
  %v4313 = vpop.permute.xlu0 %4312
  %4315 = vset.pattern.permute.xlu0 27
  %4316 = vperm.xlu0 %4315, %v601
  %v4317 = vpop.permute.xlu0 %4316
  %4319 = vset.pattern.permute.xlu0 27
  %4320 = vperm.xlu0 %4319, %v602
  %v4321 = vpop.permute.xlu0 %4320
  %4323 = vset.pattern.permute.xlu0 27
  %4324 = vperm.xlu0 %4323, %v603
  %v4325 = vpop.permute.xlu0 %4324
  %4327 = vset.pattern.permute.xlu0 27
  %4328 = vperm.xlu0 %4327, %v604
  %v4329 = vpop.permute.xlu0 %4328
  %4331 = vset.pattern.permute.xlu0 27
  %4332 = vperm.xlu0 %4331, %v605
  %v4333 = vpop.permute.xlu0 %4332
  %4335 = vset.pattern.permute.xlu0 27
  %4336 = vperm.xlu0 %4335, %v606
  %v4337 = vpop.permute.xlu0 %4336
  %v4339 = vmul.f32 %v4265, %v4244
  %v4340 = vmul.f32 %v4269, %v4245
  %v4341 = vmul.f32 %v4273, %v4246
  %v4342 = vmul.f32 %v4277, %v4247
  %v4343 = vmul.f32 %v4281, %v4248
  %v4344 = vmul.f32 %v4285, %v4249
  %v4345 = vmul.f32 %v4289, %v4250
  %v4346 = vmul.f32 %v4293, %v4251
  %v4347 = vmul.f32 %v4297, %v4252
  %v4348 = vmul.f32 %v4301, %v4253
  %v4349 = vmul.f32 %v4305, %v4254
  %v4350 = vmul.f32 %v4309, %v4255
  %v4351 = vmul.f32 %v4313, %v4256
  %v4352 = vmul.f32 %v4317, %v4257
  %v4353 = vmul.f32 %v4321, %v4258
  %v4354 = vmul.f32 %v4325, %v4259
  %v4355 = vmul.f32 %v4329, %v4260
  %v4356 = vmul.f32 %v4333, %v4261
  %v4357 = vmul.f32 %v4337, %v4262
  %v4358 = vadd.f32 %v4224, %v4339
  %v4359 = vadd.f32 %v4225, %v4340
  %v4360 = vadd.f32 %v4226, %v4341
  %v4361 = vadd.f32 %v4227, %v4342
  %v4362 = vadd.f32 %v4228, %v4343
  %v4363 = vadd.f32 %v4229, %v4344
  %v4364 = vadd.f32 %v4230, %v4345
  %v4365 = vadd.f32 %v4231, %v4346
  %v4366 = vadd.f32 %v4232, %v4347
  %v4367 = vadd.f32 %v4233, %v4348
  %v4368 = vadd.f32 %v4234, %v4349
  %v4369 = vadd.f32 %v4235, %v4350
  %v4370 = vadd.f32 %v4236, %v4351
  %v4371 = vadd.f32 %v4237, %v4352
  %v4372 = vadd.f32 %v4238, %v4353
  %v4373 = vadd.f32 %v4239, %v4354
  %v4374 = vadd.f32 %v4240, %v4355
  %v4375 = vadd.f32 %v4241, %v4356
  %v4376 = vadd.f32 %v4242, %v4357
  %s4377 = scalar_lea.vmem %s3, 4256
  %v4378 = vld [vmem:[%s4377] sm:$0xff]
  %v4379 = vld [vmem:[%s4377 + $0x8] sm:$0xff]
  %v4380 = vld [vmem:[%s4377 + $0x10] sm:$0xff]
  %v4381 = vld [vmem:[%s4377 + $0x18] sm:$0xff]
  %v4382 = vld [vmem:[%s4377 + $0x20] sm:$0xff]
  %v4383 = vld [vmem:[%s4377 + $0x28] sm:$0xff]
  %v4384 = vld [vmem:[%s4377 + $0x30] sm:$0xff]
  %v4385 = vld [vmem:[%s4377 + $0x38] sm:$0xff]
  %v4386 = vld [vmem:[%s4377 + $0x40] sm:$0xff]
  %v4387 = vld [vmem:[%s4377 + $0x48] sm:$0xff]
  %v4388 = vld [vmem:[%s4377 + $0x50] sm:$0xff]
  %v4389 = vld [vmem:[%s4377 + $0x58] sm:$0xff]
  %v4390 = vld [vmem:[%s4377 + $0x60] sm:$0xff]
  %v4391 = vld [vmem:[%s4377 + $0x68] sm:$0xff]
  %v4392 = vld [vmem:[%s4377 + $0x70] sm:$0xff]
  %v4393 = vld [vmem:[%s4377 + $0x78] sm:$0xff]
  %v4394 = vld [vmem:[%s4377 + $0x80] sm:$0xff]
  %v4395 = vld [vmem:[%s4377 + $0x88] sm:$0xff]
  %v4396 = vld [vmem:[%s4377 + $0x90] sm:$0x3f]
  %4397 = vset.pattern.permute.xlu0 28
  %4398 = vperm.xlu0 %4397, %v588
  %v4399 = vpop.permute.xlu0 %4398
  %4401 = vset.pattern.permute.xlu0 28
  %4402 = vperm.xlu0 %4401, %v589
  %v4403 = vpop.permute.xlu0 %4402
  %4405 = vset.pattern.permute.xlu0 28
  %4406 = vperm.xlu0 %4405, %v590
  %v4407 = vpop.permute.xlu0 %4406
  %4409 = vset.pattern.permute.xlu0 28
  %4410 = vperm.xlu0 %4409, %v591
  %v4411 = vpop.permute.xlu0 %4410
  %4413 = vset.pattern.permute.xlu0 28
  %4414 = vperm.xlu0 %4413, %v592
  %v4415 = vpop.permute.xlu0 %4414
  %4417 = vset.pattern.permute.xlu0 28
  %4418 = vperm.xlu0 %4417, %v593
  %v4419 = vpop.permute.xlu0 %4418
  %4421 = vset.pattern.permute.xlu0 28
  %4422 = vperm.xlu0 %4421, %v594
  %v4423 = vpop.permute.xlu0 %4422
  %4425 = vset.pattern.permute.xlu0 28
  %4426 = vperm.xlu0 %4425, %v595
  %v4427 = vpop.permute.xlu0 %4426
  %4429 = vset.pattern.permute.xlu0 28
  %4430 = vperm.xlu0 %4429, %v596
  %v4431 = vpop.permute.xlu0 %4430
  %4433 = vset.pattern.permute.xlu0 28
  %4434 = vperm.xlu0 %4433, %v597
  %v4435 = vpop.permute.xlu0 %4434
  %4437 = vset.pattern.permute.xlu0 28
  %4438 = vperm.xlu0 %4437, %v598
  %v4439 = vpop.permute.xlu0 %4438
  %4441 = vset.pattern.permute.xlu0 28
  %4442 = vperm.xlu0 %4441, %v599
  %v4443 = vpop.permute.xlu0 %4442
  %4445 = vset.pattern.permute.xlu0 28
  %4446 = vperm.xlu0 %4445, %v600
  %v4447 = vpop.permute.xlu0 %4446
  %4449 = vset.pattern.permute.xlu0 28
  %4450 = vperm.xlu0 %4449, %v601
  %v4451 = vpop.permute.xlu0 %4450
  %4453 = vset.pattern.permute.xlu0 28
  %4454 = vperm.xlu0 %4453, %v602
  %v4455 = vpop.permute.xlu0 %4454
  %4457 = vset.pattern.permute.xlu0 28
  %4458 = vperm.xlu0 %4457, %v603
  %v4459 = vpop.permute.xlu0 %4458
  %4461 = vset.pattern.permute.xlu0 28
  %4462 = vperm.xlu0 %4461, %v604
  %v4463 = vpop.permute.xlu0 %4462
  %4465 = vset.pattern.permute.xlu0 28
  %4466 = vperm.xlu0 %4465, %v605
  %v4467 = vpop.permute.xlu0 %4466
  %4469 = vset.pattern.permute.xlu0 28
  %4470 = vperm.xlu0 %4469, %v606
  %v4471 = vpop.permute.xlu0 %4470
  %v4473 = vmul.f32 %v4399, %v4378
  %v4474 = vmul.f32 %v4403, %v4379
  %v4475 = vmul.f32 %v4407, %v4380
  %v4476 = vmul.f32 %v4411, %v4381
  %v4477 = vmul.f32 %v4415, %v4382
  %v4478 = vmul.f32 %v4419, %v4383
  %v4479 = vmul.f32 %v4423, %v4384
  %v4480 = vmul.f32 %v4427, %v4385
  %v4481 = vmul.f32 %v4431, %v4386
  %v4482 = vmul.f32 %v4435, %v4387
  %v4483 = vmul.f32 %v4439, %v4388
  %v4484 = vmul.f32 %v4443, %v4389
  %v4485 = vmul.f32 %v4447, %v4390
  %v4486 = vmul.f32 %v4451, %v4391
  %v4487 = vmul.f32 %v4455, %v4392
  %v4488 = vmul.f32 %v4459, %v4393
  %v4489 = vmul.f32 %v4463, %v4394
  %v4490 = vmul.f32 %v4467, %v4395
  %v4491 = vmul.f32 %v4471, %v4396
  %v4492 = vadd.f32 %v4358, %v4473
  %v4493 = vadd.f32 %v4359, %v4474
  %v4494 = vadd.f32 %v4360, %v4475
  %v4495 = vadd.f32 %v4361, %v4476
  %v4496 = vadd.f32 %v4362, %v4477
  %v4497 = vadd.f32 %v4363, %v4478
  %v4498 = vadd.f32 %v4364, %v4479
  %v4499 = vadd.f32 %v4365, %v4480
  %v4500 = vadd.f32 %v4366, %v4481
  %v4501 = vadd.f32 %v4367, %v4482
  %v4502 = vadd.f32 %v4368, %v4483
  %v4503 = vadd.f32 %v4369, %v4484
  %v4504 = vadd.f32 %v4370, %v4485
  %v4505 = vadd.f32 %v4371, %v4486
  %v4506 = vadd.f32 %v4372, %v4487
  %v4507 = vadd.f32 %v4373, %v4488
  %v4508 = vadd.f32 %v4374, %v4489
  %v4509 = vadd.f32 %v4375, %v4490
  %v4510 = vadd.f32 %v4376, %v4491
  %s4511 = scalar_lea.vmem %s3, 4408
  %v4512 = vld [vmem:[%s4511] sm:$0xff]
  %v4513 = vld [vmem:[%s4511 + $0x8] sm:$0xff]
  %v4514 = vld [vmem:[%s4511 + $0x10] sm:$0xff]
  %v4515 = vld [vmem:[%s4511 + $0x18] sm:$0xff]
  %v4516 = vld [vmem:[%s4511 + $0x20] sm:$0xff]
  %v4517 = vld [vmem:[%s4511 + $0x28] sm:$0xff]
  %v4518 = vld [vmem:[%s4511 + $0x30] sm:$0xff]
  %v4519 = vld [vmem:[%s4511 + $0x38] sm:$0xff]
  %v4520 = vld [vmem:[%s4511 + $0x40] sm:$0xff]
  %v4521 = vld [vmem:[%s4511 + $0x48] sm:$0xff]
  %v4522 = vld [vmem:[%s4511 + $0x50] sm:$0xff]
  %v4523 = vld [vmem:[%s4511 + $0x58] sm:$0xff]
  %v4524 = vld [vmem:[%s4511 + $0x60] sm:$0xff]
  %v4525 = vld [vmem:[%s4511 + $0x68] sm:$0xff]
  %v4526 = vld [vmem:[%s4511 + $0x70] sm:$0xff]
  %v4527 = vld [vmem:[%s4511 + $0x78] sm:$0xff]
  %v4528 = vld [vmem:[%s4511 + $0x80] sm:$0xff]
  %v4529 = vld [vmem:[%s4511 + $0x88] sm:$0xff]
  %v4530 = vld [vmem:[%s4511 + $0x90] sm:$0x3f]
  %4531 = vset.pattern.permute.xlu0 29
  %4532 = vperm.xlu0 %4531, %v588
  %v4533 = vpop.permute.xlu0 %4532
  %4535 = vset.pattern.permute.xlu0 29
  %4536 = vperm.xlu0 %4535, %v589
  %v4537 = vpop.permute.xlu0 %4536
  %4539 = vset.pattern.permute.xlu0 29
  %4540 = vperm.xlu0 %4539, %v590
  %v4541 = vpop.permute.xlu0 %4540
  %4543 = vset.pattern.permute.xlu0 29
  %4544 = vperm.xlu0 %4543, %v591
  %v4545 = vpop.permute.xlu0 %4544
  %4547 = vset.pattern.permute.xlu0 29
  %4548 = vperm.xlu0 %4547, %v592
  %v4549 = vpop.permute.xlu0 %4548
  %4551 = vset.pattern.permute.xlu0 29
  %4552 = vperm.xlu0 %4551, %v593
  %v4553 = vpop.permute.xlu0 %4552
  %4555 = vset.pattern.permute.xlu0 29
  %4556 = vperm.xlu0 %4555, %v594
  %v4557 = vpop.permute.xlu0 %4556
  %4559 = vset.pattern.permute.xlu0 29
  %4560 = vperm.xlu0 %4559, %v595
  %v4561 = vpop.permute.xlu0 %4560
  %4563 = vset.pattern.permute.xlu0 29
  %4564 = vperm.xlu0 %4563, %v596
  %v4565 = vpop.permute.xlu0 %4564
  %4567 = vset.pattern.permute.xlu0 29
  %4568 = vperm.xlu0 %4567, %v597
  %v4569 = vpop.permute.xlu0 %4568
  %4571 = vset.pattern.permute.xlu0 29
  %4572 = vperm.xlu0 %4571, %v598
  %v4573 = vpop.permute.xlu0 %4572
  %4575 = vset.pattern.permute.xlu0 29
  %4576 = vperm.xlu0 %4575, %v599
  %v4577 = vpop.permute.xlu0 %4576
  %4579 = vset.pattern.permute.xlu0 29
  %4580 = vperm.xlu0 %4579, %v600
  %v4581 = vpop.permute.xlu0 %4580
  %4583 = vset.pattern.permute.xlu0 29
  %4584 = vperm.xlu0 %4583, %v601
  %v4585 = vpop.permute.xlu0 %4584
  %4587 = vset.pattern.permute.xlu0 29
  %4588 = vperm.xlu0 %4587, %v602
  %v4589 = vpop.permute.xlu0 %4588
  %4591 = vset.pattern.permute.xlu0 29
  %4592 = vperm.xlu0 %4591, %v603
  %v4593 = vpop.permute.xlu0 %4592
  %4595 = vset.pattern.permute.xlu0 29
  %4596 = vperm.xlu0 %4595, %v604
  %v4597 = vpop.permute.xlu0 %4596
  %4599 = vset.pattern.permute.xlu0 29
  %4600 = vperm.xlu0 %4599, %v605
  %v4601 = vpop.permute.xlu0 %4600
  %4603 = vset.pattern.permute.xlu0 29
  %4604 = vperm.xlu0 %4603, %v606
  %v4605 = vpop.permute.xlu0 %4604
  %v4607 = vmul.f32 %v4533, %v4512
  %v4608 = vmul.f32 %v4537, %v4513
  %v4609 = vmul.f32 %v4541, %v4514
  %v4610 = vmul.f32 %v4545, %v4515
  %v4611 = vmul.f32 %v4549, %v4516
  %v4612 = vmul.f32 %v4553, %v4517
  %v4613 = vmul.f32 %v4557, %v4518
  %v4614 = vmul.f32 %v4561, %v4519
  %v4615 = vmul.f32 %v4565, %v4520
  %v4616 = vmul.f32 %v4569, %v4521
  %v4617 = vmul.f32 %v4573, %v4522
  %v4618 = vmul.f32 %v4577, %v4523
  %v4619 = vmul.f32 %v4581, %v4524
  %v4620 = vmul.f32 %v4585, %v4525
  %v4621 = vmul.f32 %v4589, %v4526
  %v4622 = vmul.f32 %v4593, %v4527
  %v4623 = vmul.f32 %v4597, %v4528
  %v4624 = vmul.f32 %v4601, %v4529
  %v4625 = vmul.f32 %v4605, %v4530
  %v4626 = vadd.f32 %v4492, %v4607
  %v4627 = vadd.f32 %v4493, %v4608
  %v4628 = vadd.f32 %v4494, %v4609
  %v4629 = vadd.f32 %v4495, %v4610
  %v4630 = vadd.f32 %v4496, %v4611
  %v4631 = vadd.f32 %v4497, %v4612
  %v4632 = vadd.f32 %v4498, %v4613
  %v4633 = vadd.f32 %v4499, %v4614
  %v4634 = vadd.f32 %v4500, %v4615
  %v4635 = vadd.f32 %v4501, %v4616
  %v4636 = vadd.f32 %v4502, %v4617
  %v4637 = vadd.f32 %v4503, %v4618
  %v4638 = vadd.f32 %v4504, %v4619
  %v4639 = vadd.f32 %v4505, %v4620
  %v4640 = vadd.f32 %v4506, %v4621
  %v4641 = vadd.f32 %v4507, %v4622
  %v4642 = vadd.f32 %v4508, %v4623
  %v4643 = vadd.f32 %v4509, %v4624
  %v4644 = vadd.f32 %v4510, %v4625
  %s4645 = scalar_lea.vmem %s3, 4560
  %v4646 = vld [vmem:[%s4645] sm:$0xff]
  %v4647 = vld [vmem:[%s4645 + $0x8] sm:$0xff]
  %v4648 = vld [vmem:[%s4645 + $0x10] sm:$0xff]
  %v4649 = vld [vmem:[%s4645 + $0x18] sm:$0xff]
  %v4650 = vld [vmem:[%s4645 + $0x20] sm:$0xff]
  %v4651 = vld [vmem:[%s4645 + $0x28] sm:$0xff]
  %v4652 = vld [vmem:[%s4645 + $0x30] sm:$0xff]
  %v4653 = vld [vmem:[%s4645 + $0x38] sm:$0xff]
  %v4654 = vld [vmem:[%s4645 + $0x40] sm:$0xff]
  %v4655 = vld [vmem:[%s4645 + $0x48] sm:$0xff]
  %v4656 = vld [vmem:[%s4645 + $0x50] sm:$0xff]
  %v4657 = vld [vmem:[%s4645 + $0x58] sm:$0xff]
  %v4658 = vld [vmem:[%s4645 + $0x60] sm:$0xff]
  %v4659 = vld [vmem:[%s4645 + $0x68] sm:$0xff]
  %v4660 = vld [vmem:[%s4645 + $0x70] sm:$0xff]
  %v4661 = vld [vmem:[%s4645 + $0x78] sm:$0xff]
  %v4662 = vld [vmem:[%s4645 + $0x80] sm:$0xff]
  %v4663 = vld [vmem:[%s4645 + $0x88] sm:$0xff]
  %v4664 = vld [vmem:[%s4645 + $0x90] sm:$0x3f]
  %4665 = vset.pattern.permute.xlu0 30
  %4666 = vperm.xlu0 %4665, %v588
  %v4667 = vpop.permute.xlu0 %4666
  %4669 = vset.pattern.permute.xlu0 30
  %4670 = vperm.xlu0 %4669, %v589
  %v4671 = vpop.permute.xlu0 %4670
  %4673 = vset.pattern.permute.xlu0 30
  %4674 = vperm.xlu0 %4673, %v590
  %v4675 = vpop.permute.xlu0 %4674
  %4677 = vset.pattern.permute.xlu0 30
  %4678 = vperm.xlu0 %4677, %v591
  %v4679 = vpop.permute.xlu0 %4678
  %4681 = vset.pattern.permute.xlu0 30
  %4682 = vperm.xlu0 %4681, %v592
  %v4683 = vpop.permute.xlu0 %4682
  %4685 = vset.pattern.permute.xlu0 30
  %4686 = vperm.xlu0 %4685, %v593
  %v4687 = vpop.permute.xlu0 %4686
  %4689 = vset.pattern.permute.xlu0 30
  %4690 = vperm.xlu0 %4689, %v594
  %v4691 = vpop.permute.xlu0 %4690
  %4693 = vset.pattern.permute.xlu0 30
  %4694 = vperm.xlu0 %4693, %v595
  %v4695 = vpop.permute.xlu0 %4694
  %4697 = vset.pattern.permute.xlu0 30
  %4698 = vperm.xlu0 %4697, %v596
  %v4699 = vpop.permute.xlu0 %4698
  %4701 = vset.pattern.permute.xlu0 30
  %4702 = vperm.xlu0 %4701, %v597
  %v4703 = vpop.permute.xlu0 %4702
  %4705 = vset.pattern.permute.xlu0 30
  %4706 = vperm.xlu0 %4705, %v598
  %v4707 = vpop.permute.xlu0 %4706
  %4709 = vset.pattern.permute.xlu0 30
  %4710 = vperm.xlu0 %4709, %v599
  %v4711 = vpop.permute.xlu0 %4710
  %4713 = vset.pattern.permute.xlu0 30
  %4714 = vperm.xlu0 %4713, %v600
  %v4715 = vpop.permute.xlu0 %4714
  %4717 = vset.pattern.permute.xlu0 30
  %4718 = vperm.xlu0 %4717, %v601
  %v4719 = vpop.permute.xlu0 %4718
  %4721 = vset.pattern.permute.xlu0 30
  %4722 = vperm.xlu0 %4721, %v602
  %v4723 = vpop.permute.xlu0 %4722
  %4725 = vset.pattern.permute.xlu0 30
  %4726 = vperm.xlu0 %4725, %v603
  %v4727 = vpop.permute.xlu0 %4726
  %4729 = vset.pattern.permute.xlu0 30
  %4730 = vperm.xlu0 %4729, %v604
  %v4731 = vpop.permute.xlu0 %4730
  %4733 = vset.pattern.permute.xlu0 30
  %4734 = vperm.xlu0 %4733, %v605
  %v4735 = vpop.permute.xlu0 %4734
  %4737 = vset.pattern.permute.xlu0 30
  %4738 = vperm.xlu0 %4737, %v606
  %v4739 = vpop.permute.xlu0 %4738
  %v4741 = vmul.f32 %v4667, %v4646
  %v4742 = vmul.f32 %v4671, %v4647
  %v4743 = vmul.f32 %v4675, %v4648
  %v4744 = vmul.f32 %v4679, %v4649
  %v4745 = vmul.f32 %v4683, %v4650
  %v4746 = vmul.f32 %v4687, %v4651
  %v4747 = vmul.f32 %v4691, %v4652
  %v4748 = vmul.f32 %v4695, %v4653
  %v4749 = vmul.f32 %v4699, %v4654
  %v4750 = vmul.f32 %v4703, %v4655
  %v4751 = vmul.f32 %v4707, %v4656
  %v4752 = vmul.f32 %v4711, %v4657
  %v4753 = vmul.f32 %v4715, %v4658
  %v4754 = vmul.f32 %v4719, %v4659
  %v4755 = vmul.f32 %v4723, %v4660
  %v4756 = vmul.f32 %v4727, %v4661
  %v4757 = vmul.f32 %v4731, %v4662
  %v4758 = vmul.f32 %v4735, %v4663
  %v4759 = vmul.f32 %v4739, %v4664
  %v4760 = vadd.f32 %v4626, %v4741
  %v4761 = vadd.f32 %v4627, %v4742
  %v4762 = vadd.f32 %v4628, %v4743
  %v4763 = vadd.f32 %v4629, %v4744
  %v4764 = vadd.f32 %v4630, %v4745
  %v4765 = vadd.f32 %v4631, %v4746
  %v4766 = vadd.f32 %v4632, %v4747
  %v4767 = vadd.f32 %v4633, %v4748
  %v4768 = vadd.f32 %v4634, %v4749
  %v4769 = vadd.f32 %v4635, %v4750
  %v4770 = vadd.f32 %v4636, %v4751
  %v4771 = vadd.f32 %v4637, %v4752
  %v4772 = vadd.f32 %v4638, %v4753
  %v4773 = vadd.f32 %v4639, %v4754
  %v4774 = vadd.f32 %v4640, %v4755
  %v4775 = vadd.f32 %v4641, %v4756
  %v4776 = vadd.f32 %v4642, %v4757
  %v4777 = vadd.f32 %v4643, %v4758
  %v4778 = vadd.f32 %v4644, %v4759
  %s4779 = scalar_lea.vmem %s3, 4712
  %v4780 = vld [vmem:[%s4779] sm:$0xff]
  %v4781 = vld [vmem:[%s4779 + $0x8] sm:$0xff]
  %v4782 = vld [vmem:[%s4779 + $0x10] sm:$0xff]
  %v4783 = vld [vmem:[%s4779 + $0x18] sm:$0xff]
  %v4784 = vld [vmem:[%s4779 + $0x20] sm:$0xff]
  %v4785 = vld [vmem:[%s4779 + $0x28] sm:$0xff]
  %v4786 = vld [vmem:[%s4779 + $0x30] sm:$0xff]
  %v4787 = vld [vmem:[%s4779 + $0x38] sm:$0xff]
  %v4788 = vld [vmem:[%s4779 + $0x40] sm:$0xff]
  %v4789 = vld [vmem:[%s4779 + $0x48] sm:$0xff]
  %v4790 = vld [vmem:[%s4779 + $0x50] sm:$0xff]
  %v4791 = vld [vmem:[%s4779 + $0x58] sm:$0xff]
  %v4792 = vld [vmem:[%s4779 + $0x60] sm:$0xff]
  %v4793 = vld [vmem:[%s4779 + $0x68] sm:$0xff]
  %v4794 = vld [vmem:[%s4779 + $0x70] sm:$0xff]
  %v4795 = vld [vmem:[%s4779 + $0x78] sm:$0xff]
  %v4796 = vld [vmem:[%s4779 + $0x80] sm:$0xff]
  %v4797 = vld [vmem:[%s4779 + $0x88] sm:$0xff]
  %v4798 = vld [vmem:[%s4779 + $0x90] sm:$0x3f]
  %4799 = vset.pattern.permute.xlu0 31
  %4800 = vperm.xlu0 %4799, %v588
  %v4801 = vpop.permute.xlu0 %4800
  %4803 = vset.pattern.permute.xlu0 31
  %4804 = vperm.xlu0 %4803, %v589
  %v4805 = vpop.permute.xlu0 %4804
  %4807 = vset.pattern.permute.xlu0 31
  %4808 = vperm.xlu0 %4807, %v590
  %v4809 = vpop.permute.xlu0 %4808
  %4811 = vset.pattern.permute.xlu0 31
  %4812 = vperm.xlu0 %4811, %v591
  %v4813 = vpop.permute.xlu0 %4812
  %4815 = vset.pattern.permute.xlu0 31
  %4816 = vperm.xlu0 %4815, %v592
  %v4817 = vpop.permute.xlu0 %4816
  %4819 = vset.pattern.permute.xlu0 31
  %4820 = vperm.xlu0 %4819, %v593
  %v4821 = vpop.permute.xlu0 %4820
  %4823 = vset.pattern.permute.xlu0 31
  %4824 = vperm.xlu0 %4823, %v594
  %v4825 = vpop.permute.xlu0 %4824
  %4827 = vset.pattern.permute.xlu0 31
  %4828 = vperm.xlu0 %4827, %v595
  %v4829 = vpop.permute.xlu0 %4828
  %4831 = vset.pattern.permute.xlu0 31
  %4832 = vperm.xlu0 %4831, %v596
  %v4833 = vpop.permute.xlu0 %4832
  %4835 = vset.pattern.permute.xlu0 31
  %4836 = vperm.xlu0 %4835, %v597
  %v4837 = vpop.permute.xlu0 %4836
  %4839 = vset.pattern.permute.xlu0 31
  %4840 = vperm.xlu0 %4839, %v598
  %v4841 = vpop.permute.xlu0 %4840
  %4843 = vset.pattern.permute.xlu0 31
  %4844 = vperm.xlu0 %4843, %v599
  %v4845 = vpop.permute.xlu0 %4844
  %4847 = vset.pattern.permute.xlu0 31
  %4848 = vperm.xlu0 %4847, %v600
  %v4849 = vpop.permute.xlu0 %4848
  %4851 = vset.pattern.permute.xlu0 31
  %4852 = vperm.xlu0 %4851, %v601
  %v4853 = vpop.permute.xlu0 %4852
  %4855 = vset.pattern.permute.xlu0 31
  %4856 = vperm.xlu0 %4855, %v602
  %v4857 = vpop.permute.xlu0 %4856
  %4859 = vset.pattern.permute.xlu0 31
  %4860 = vperm.xlu0 %4859, %v603
  %v4861 = vpop.permute.xlu0 %4860
  %4863 = vset.pattern.permute.xlu0 31
  %4864 = vperm.xlu0 %4863, %v604
  %v4865 = vpop.permute.xlu0 %4864
  %4867 = vset.pattern.permute.xlu0 31
  %4868 = vperm.xlu0 %4867, %v605
  %v4869 = vpop.permute.xlu0 %4868
  %4871 = vset.pattern.permute.xlu0 31
  %4872 = vperm.xlu0 %4871, %v606
  %v4873 = vpop.permute.xlu0 %4872
  %v4875 = vmul.f32 %v4801, %v4780
  %v4876 = vmul.f32 %v4805, %v4781
  %v4877 = vmul.f32 %v4809, %v4782
  %v4878 = vmul.f32 %v4813, %v4783
  %v4879 = vmul.f32 %v4817, %v4784
  %v4880 = vmul.f32 %v4821, %v4785
  %v4881 = vmul.f32 %v4825, %v4786
  %v4882 = vmul.f32 %v4829, %v4787
  %v4883 = vmul.f32 %v4833, %v4788
  %v4884 = vmul.f32 %v4837, %v4789
  %v4885 = vmul.f32 %v4841, %v4790
  %v4886 = vmul.f32 %v4845, %v4791
  %v4887 = vmul.f32 %v4849, %v4792
  %v4888 = vmul.f32 %v4853, %v4793
  %v4889 = vmul.f32 %v4857, %v4794
  %v4890 = vmul.f32 %v4861, %v4795
  %v4891 = vmul.f32 %v4865, %v4796
  %v4892 = vmul.f32 %v4869, %v4797
  %v4893 = vmul.f32 %v4873, %v4798
  %v4894 = vadd.f32 %v4760, %v4875
  %v4895 = vadd.f32 %v4761, %v4876
  %v4896 = vadd.f32 %v4762, %v4877
  %v4897 = vadd.f32 %v4763, %v4878
  %v4898 = vadd.f32 %v4764, %v4879
  %v4899 = vadd.f32 %v4765, %v4880
  %v4900 = vadd.f32 %v4766, %v4881
  %v4901 = vadd.f32 %v4767, %v4882
  %v4902 = vadd.f32 %v4768, %v4883
  %v4903 = vadd.f32 %v4769, %v4884
  %v4904 = vadd.f32 %v4770, %v4885
  %v4905 = vadd.f32 %v4771, %v4886
  %v4906 = vadd.f32 %v4772, %v4887
  %v4907 = vadd.f32 %v4773, %v4888
  %v4908 = vadd.f32 %v4774, %v4889
  %v4909 = vadd.f32 %v4775, %v4890
  %v4910 = vadd.f32 %v4776, %v4891
  %v4911 = vadd.f32 %v4777, %v4892
  %v4912 = vadd.f32 %v4778, %v4893
  %vm4913 = vcmask 523264
  %v4914 = vsel %vm4913, %v4894, 0.0
  %v4915 = vsel %vm4913, %v4895, 0.0
  %v4916 = vadd.f32 %v4914, %v4915
  %v4917 = vsel %vm4913, %v4896, 0.0
  %v4918 = vadd.f32 %v4916, %v4917
  %v4919 = vsel %vm4913, %v4897, 0.0
  %v4920 = vadd.f32 %v4918, %v4919
  %v4921 = vsel %vm4913, %v4898, 0.0
  %v4922 = vadd.f32 %v4920, %v4921
  %v4923 = vsel %vm4913, %v4899, 0.0
  %v4924 = vadd.f32 %v4922, %v4923
  %v4925 = vsel %vm4913, %v4900, 0.0
  %v4926 = vadd.f32 %v4924, %v4925
  %v4927 = vsel %vm4913, %v4901, 0.0
  %v4928 = vadd.f32 %v4926, %v4927
  %v4929 = vsel %vm4913, %v4902, 0.0
  %v4930 = vadd.f32 %v4928, %v4929
  %v4931 = vsel %vm4913, %v4903, 0.0
  %v4932 = vadd.f32 %v4930, %v4931
  %v4933 = vsel %vm4913, %v4904, 0.0
  %v4934 = vadd.f32 %v4932, %v4933
  %v4935 = vsel %vm4913, %v4905, 0.0
  %v4936 = vadd.f32 %v4934, %v4935
  %v4937 = vsel %vm4913, %v4906, 0.0
  %v4938 = vadd.f32 %v4936, %v4937
  %v4939 = vsel %vm4913, %v4907, 0.0
  %v4940 = vadd.f32 %v4938, %v4939
  %v4941 = vsel %vm4913, %v4908, 0.0
  %v4942 = vadd.f32 %v4940, %v4941
  %v4943 = vsel %vm4913, %v4909, 0.0
  %v4944 = vadd.f32 %v4942, %v4943
  %v4945 = vsel %vm4913, %v4910, 0.0
  %v4946 = vadd.f32 %v4944, %v4945
  %v4947 = vsel %vm4913, %v4911, 0.0
  %v4948 = vadd.f32 %v4946, %v4947
  %vm4949 = vcmask 521216
  %v4950 = vsel %vm4949, %v4912, 0.0
  %v4951 = vadd.f32 %v4948, %v4950
  %v4952 = vrot.slane %v4951, 4
  %v4953 = vadd.f32 %v4951, %v4952
  %v4954 = vrot.slane %v4953, 2
  %v4955 = vadd.f32 %v4953, %v4954
  %v4956 = vrot.slane %v4955, 1
  %v4957 = vadd.f32 %v4955, %v4956
  %v4958 = vld [vmem:[%s4] sm:$0x1]
  %v4959 = vadd.f32 %v4957, %v4958
  %v4960 = vmax.f32 %v4959, 0.0
  %v4961 = vld [vmem:[%s5] sm:$0x1]
  %v4962 = vmul.f32 %v4960, %v4961
  %vm4963 = vcmask 516096
  %v4964 = vsel %vm4963, %v4962, 0.0
  %4965 = vadd.xlane.f32.xlu0 %v4964
  %v4966 = vpop.xlane.xlu0 %4965
  %v4967 = vld [vmem:[#allocation2] sm:$0x1]
  %v4968 = vadd.f32 %v4966, %v4967
  %v4969 = vxor.u32 %v4968, 2147483648
  %v4970 = vmul.f32 %v4969, 1.442695
  %v4971 = vpow.pop %v4970
  %v4972 = vadd.f32 %v4971, 1.0
  %v4973 = vrcp.pop %v4972
  %v4974 = vmul.f32 1.0, %v4973
  %s4975 = scalar_lea.vmem %s0, 152
  %v4976 = vld [vmem:[%s4975] sm:$0xff]
  %v4977 = vld [vmem:[%s4975 + $0x8] sm:$0xff]
  %v4978 = vld [vmem:[%s4975 + $0x10] sm:$0xff]
  %v4979 = vld [vmem:[%s4975 + $0x18] sm:$0xff]
  %v4980 = vld [vmem:[%s4975 + $0x20] sm:$0xff]
  %v4981 = vld [vmem:[%s4975 + $0x28] sm:$0xff]
  %v4982 = vld [vmem:[%s4975 + $0x30] sm:$0xff]
  %v4983 = vld [vmem:[%s4975 + $0x38] sm:$0xff]
  %v4984 = vld [vmem:[%s4975 + $0x40] sm:$0xff]
  %v4985 = vld [vmem:[%s4975 + $0x48] sm:$0xff]
  %v4986 = vld [vmem:[%s4975 + $0x50] sm:$0xff]
  %v4987 = vld [vmem:[%s4975 + $0x58] sm:$0xff]
  %v4988 = vld [vmem:[%s4975 + $0x60] sm:$0xff]
  %v4989 = vld [vmem:[%s4975 + $0x68] sm:$0xff]
  %v4990 = vld [vmem:[%s4975 + $0x70] sm:$0xff]
  %v4991 = vld [vmem:[%s4975 + $0x78] sm:$0xff]
  %v4992 = vld [vmem:[%s4975 + $0x80] sm:$0xff]
  %v4993 = vld [vmem:[%s4975 + $0x88] sm:$0xff]
  %v4994 = vld [vmem:[%s4975 + $0x90] sm:$0x3f]
  %v5014 = vrot.slane %v4976, 7
  %v5015 = vrot.slane %v4977, 7
  %v5016 = vsel %vm66, %v5014, %v5015
  %v5017 = vrot.slane %v4978, 7
  %v5018 = vsel %vm66, %v5015, %v5017
  %v5019 = vrot.slane %v4979, 7
  %v5020 = vsel %vm66, %v5017, %v5019
  %v5021 = vrot.slane %v4980, 7
  %v5022 = vsel %vm66, %v5019, %v5021
  %v5023 = vrot.slane %v4981, 7
  %v5024 = vsel %vm66, %v5021, %v5023
  %v5025 = vrot.slane %v4982, 7
  %v5026 = vsel %vm66, %v5023, %v5025
  %v5027 = vrot.slane %v4983, 7
  %v5028 = vsel %vm66, %v5025, %v5027
  %v5029 = vrot.slane %v4984, 7
  %v5030 = vsel %vm66, %v5027, %v5029
  %v5031 = vrot.slane %v4985, 7
  %v5032 = vsel %vm66, %v5029, %v5031
  %v5033 = vrot.slane %v4986, 7
  %v5034 = vsel %vm66, %v5031, %v5033
  %v5035 = vrot.slane %v4987, 7
  %v5036 = vsel %vm66, %v5033, %v5035
  %v5037 = vrot.slane %v4988, 7
  %v5038 = vsel %vm66, %v5035, %v5037
  %v5039 = vrot.slane %v4989, 7
  %v5040 = vsel %vm66, %v5037, %v5039
  %v5041 = vrot.slane %v4990, 7
  %v5042 = vsel %vm66, %v5039, %v5041
  %v5043 = vrot.slane %v4991, 7
  %v5044 = vsel %vm66, %v5041, %v5043
  %v5045 = vrot.slane %v4992, 7
  %v5046 = vsel %vm66, %v5043, %v5045
  %v5047 = vrot.slane %v4993, 7
  %v5048 = vsel %vm66, %v5045, %v5047
  %v5049 = vrot.slane %v4994, 7
  %v5050 = vsel %vm66, %v5047, %v5049
  %v5070 = vsel %vm66, 0.0, %v5014
  %v5071 = vsel %vm124, %v5050, 0.0
  %v5074 = vrot.slane %v5070, 1
  %v5075 = vrot.slane %v5016, 1
  %v5076 = vsel %vm124, %v5074, %v5075
  %v5077 = vrot.slane %v5018, 1
  %v5078 = vsel %vm124, %v5075, %v5077
  %v5079 = vrot.slane %v5020, 1
  %v5080 = vsel %vm124, %v5077, %v5079
  %v5081 = vrot.slane %v5022, 1
  %v5082 = vsel %vm124, %v5079, %v5081
  %v5083 = vrot.slane %v5024, 1
  %v5084 = vsel %vm124, %v5081, %v5083
  %v5085 = vrot.slane %v5026, 1
  %v5086 = vsel %vm124, %v5083, %v5085
  %v5087 = vrot.slane %v5028, 1
  %v5088 = vsel %vm124, %v5085, %v5087
  %v5089 = vrot.slane %v5030, 1
  %v5090 = vsel %vm124, %v5087, %v5089
  %v5091 = vrot.slane %v5032, 1
  %v5092 = vsel %vm124, %v5089, %v5091
  %v5093 = vrot.slane %v5034, 1
  %v5094 = vsel %vm124, %v5091, %v5093
  %v5095 = vrot.slane %v5036, 1
  %v5096 = vsel %vm124, %v5093, %v5095
  %v5097 = vrot.slane %v5038, 1
  %v5098 = vsel %vm124, %v5095, %v5097
  %v5099 = vrot.slane %v5040, 1
  %v5100 = vsel %vm124, %v5097, %v5099
  %v5101 = vrot.slane %v5042, 1
  %v5102 = vsel %vm124, %v5099, %v5101
  %v5103 = vrot.slane %v5044, 1
  %v5104 = vsel %vm124, %v5101, %v5103
  %v5105 = vrot.slane %v5046, 1
  %v5106 = vsel %vm124, %v5103, %v5105
  %v5107 = vrot.slane %v5048, 1
  %v5108 = vsel %vm124, %v5105, %v5107
  %v5109 = vrot.slane %v5071, 1
  %v5110 = vsel %vm124, %v5107, %v5109
  %5111 = vrot.lane.b32.xlu0 %v5076, 4
  %v5112 = vpop.permute.xlu0 %5111
  %5113 = vrot.lane.b32.xlu0 %v5078, 4
  %v5114 = vpop.permute.xlu0 %5113
  %5115 = vrot.lane.b32.xlu0 %v5080, 4
  %v5116 = vpop.permute.xlu0 %5115
  %5117 = vrot.lane.b32.xlu0 %v5082, 4
  %v5118 = vpop.permute.xlu0 %5117
  %5119 = vrot.lane.b32.xlu0 %v5084, 4
  %v5120 = vpop.permute.xlu0 %5119
  %5121 = vrot.lane.b32.xlu0 %v5086, 4
  %v5122 = vpop.permute.xlu0 %5121
  %5123 = vrot.lane.b32.xlu0 %v5088, 4
  %v5124 = vpop.permute.xlu0 %5123
  %5125 = vrot.lane.b32.xlu0 %v5090, 4
  %v5126 = vpop.permute.xlu0 %5125
  %5127 = vrot.lane.b32.xlu0 %v5092, 4
  %v5128 = vpop.permute.xlu0 %5127
  %5129 = vrot.lane.b32.xlu0 %v5094, 4
  %v5130 = vpop.permute.xlu0 %5129
  %5131 = vrot.lane.b32.xlu0 %v5096, 4
  %v5132 = vpop.permute.xlu0 %5131
  %5133 = vrot.lane.b32.xlu0 %v5098, 4
  %v5134 = vpop.permute.xlu0 %5133
  %5135 = vrot.lane.b32.xlu0 %v5100, 4
  %v5136 = vpop.permute.xlu0 %5135
  %5137 = vrot.lane.b32.xlu0 %v5102, 4
  %v5138 = vpop.permute.xlu0 %5137
  %5139 = vrot.lane.b32.xlu0 %v5104, 4
  %v5140 = vpop.permute.xlu0 %5139
  %5141 = vrot.lane.b32.xlu0 %v5106, 4
  %v5142 = vpop.permute.xlu0 %5141
  %5143 = vrot.lane.b32.xlu0 %v5108, 4
  %v5144 = vpop.permute.xlu0 %5143
  %5145 = vrot.lane.b32.xlu0 %v5110, 4
  %v5146 = vpop.permute.xlu0 %5145
  %5147 = vrot.lane.b32.xlu0 %v5109, 4
  %v5148 = vpop.permute.xlu0 %5147
  %v5168 = vrot.slane %v5070, 2
  %v5169 = vrot.slane %v5016, 2
  %v5170 = vsel %vm222, %v5168, %v5169
  %v5171 = vrot.slane %v5018, 2
  %v5172 = vsel %vm222, %v5169, %v5171
  %v5173 = vrot.slane %v5020, 2
  %v5174 = vsel %vm222, %v5171, %v5173
  %v5175 = vrot.slane %v5022, 2
  %v5176 = vsel %vm222, %v5173, %v5175
  %v5177 = vrot.slane %v5024, 2
  %v5178 = vsel %vm222, %v5175, %v5177
  %v5179 = vrot.slane %v5026, 2
  %v5180 = vsel %vm222, %v5177, %v5179
  %v5181 = vrot.slane %v5028, 2
  %v5182 = vsel %vm222, %v5179, %v5181
  %v5183 = vrot.slane %v5030, 2
  %v5184 = vsel %vm222, %v5181, %v5183
  %v5185 = vrot.slane %v5032, 2
  %v5186 = vsel %vm222, %v5183, %v5185
  %v5187 = vrot.slane %v5034, 2
  %v5188 = vsel %vm222, %v5185, %v5187
  %v5189 = vrot.slane %v5036, 2
  %v5190 = vsel %vm222, %v5187, %v5189
  %v5191 = vrot.slane %v5038, 2
  %v5192 = vsel %vm222, %v5189, %v5191
  %v5193 = vrot.slane %v5040, 2
  %v5194 = vsel %vm222, %v5191, %v5193
  %v5195 = vrot.slane %v5042, 2
  %v5196 = vsel %vm222, %v5193, %v5195
  %v5197 = vrot.slane %v5044, 2
  %v5198 = vsel %vm222, %v5195, %v5197
  %v5199 = vrot.slane %v5046, 2
  %v5200 = vsel %vm222, %v5197, %v5199
  %v5201 = vrot.slane %v5048, 2
  %v5202 = vsel %vm222, %v5199, %v5201
  %v5203 = vrot.slane %v5071, 2
  %v5204 = vsel %vm222, %v5201, %v5203
  %5205 = vrot.lane.b32.xlu0 %v5170, 8
  %v5206 = vpop.permute.xlu0 %5205
  %5207 = vrot.lane.b32.xlu0 %v5172, 8
  %v5208 = vpop.permute.xlu0 %5207
  %5209 = vrot.lane.b32.xlu0 %v5174, 8
  %v5210 = vpop.permute.xlu0 %5209
  %5211 = vrot.lane.b32.xlu0 %v5176, 8
  %v5212 = vpop.permute.xlu0 %5211
  %5213 = vrot.lane.b32.xlu0 %v5178, 8
  %v5214 = vpop.permute.xlu0 %5213
  %5215 = vrot.lane.b32.xlu0 %v5180, 8
  %v5216 = vpop.permute.xlu0 %5215
  %5217 = vrot.lane.b32.xlu0 %v5182, 8
  %v5218 = vpop.permute.xlu0 %5217
  %5219 = vrot.lane.b32.xlu0 %v5184, 8
  %v5220 = vpop.permute.xlu0 %5219
  %5221 = vrot.lane.b32.xlu0 %v5186, 8
  %v5222 = vpop.permute.xlu0 %5221
  %5223 = vrot.lane.b32.xlu0 %v5188, 8
  %v5224 = vpop.permute.xlu0 %5223
  %5225 = vrot.lane.b32.xlu0 %v5190, 8
  %v5226 = vpop.permute.xlu0 %5225
  %5227 = vrot.lane.b32.xlu0 %v5192, 8
  %v5228 = vpop.permute.xlu0 %5227
  %5229 = vrot.lane.b32.xlu0 %v5194, 8
  %v5230 = vpop.permute.xlu0 %5229
  %5231 = vrot.lane.b32.xlu0 %v5196, 8
  %v5232 = vpop.permute.xlu0 %5231
  %5233 = vrot.lane.b32.xlu0 %v5198, 8
  %v5234 = vpop.permute.xlu0 %5233
  %5235 = vrot.lane.b32.xlu0 %v5200, 8
  %v5236 = vpop.permute.xlu0 %5235
  %5237 = vrot.lane.b32.xlu0 %v5202, 8
  %v5238 = vpop.permute.xlu0 %5237
  %5239 = vrot.lane.b32.xlu0 %v5204, 8
  %v5240 = vpop.permute.xlu0 %5239
  %5241 = vrot.lane.b32.xlu0 %v5203, 8
  %v5242 = vpop.permute.xlu0 %5241
  %v5262 = vsel %vm317, %v5070, %v5112
  %v5263 = vsel %vm317, %v5016, %v5114
  %v5264 = vsel %vm317, %v5018, %v5116
  %v5265 = vsel %vm317, %v5020, %v5118
  %v5266 = vsel %vm317, %v5022, %v5120
  %v5267 = vsel %vm317, %v5024, %v5122
  %v5268 = vsel %vm317, %v5026, %v5124
  %v5269 = vsel %vm317, %v5028, %v5126
  %v5270 = vsel %vm317, %v5030, %v5128
  %v5271 = vsel %vm317, %v5032, %v5130
  %v5272 = vsel %vm317, %v5034, %v5132
  %v5273 = vsel %vm317, %v5036, %v5134
  %v5274 = vsel %vm317, %v5038, %v5136
  %v5275 = vsel %vm317, %v5040, %v5138
  %v5276 = vsel %vm317, %v5042, %v5140
  %v5277 = vsel %vm317, %v5044, %v5142
  %v5278 = vsel %vm317, %v5046, %v5144
  %v5279 = vsel %vm317, %v5048, %v5146
  %v5280 = vsel %vm317, %v5071, %v5148
  %v5281 = vsel %vm337, %v5262, %v5206
  %v5282 = vsel %vm337, %v5263, %v5208
  %v5283 = vsel %vm337, %v5264, %v5210
  %v5284 = vsel %vm337, %v5265, %v5212
  %v5285 = vsel %vm337, %v5266, %v5214
  %v5286 = vsel %vm337, %v5267, %v5216
  %v5287 = vsel %vm337, %v5268, %v5218
  %v5288 = vsel %vm337, %v5269, %v5220
  %v5289 = vsel %vm337, %v5270, %v5222
  %v5290 = vsel %vm337, %v5271, %v5224
  %v5291 = vsel %vm337, %v5272, %v5226
  %v5292 = vsel %vm337, %v5273, %v5228
  %v5293 = vsel %vm337, %v5274, %v5230
  %v5294 = vsel %vm337, %v5275, %v5232
  %v5295 = vsel %vm337, %v5276, %v5234
  %v5296 = vsel %vm337, %v5277, %v5236
  %v5297 = vsel %vm337, %v5278, %v5238
  %v5298 = vsel %vm337, %v5279, %v5240
  %v5299 = vsel %vm337, %v5280, %v5242
  %v5301 = vsel %vm366, %v5281, 0
  %v5304 = vsel %vm366, %v5282, 0
  %v5307 = vsel %vm366, %v5283, 0
  %v5310 = vsel %vm366, %v5284, 0
  %v5313 = vsel %vm366, %v5285, 0
  %v5316 = vsel %vm366, %v5286, 0
  %v5319 = vsel %vm366, %v5287, 0
  %v5322 = vsel %vm366, %v5288, 0
  %v5325 = vsel %vm366, %v5289, 0
  %v5328 = vsel %vm366, %v5290, 0
  %v5331 = vsel %vm366, %v5291, 0
  %v5334 = vsel %vm366, %v5292, 0
  %v5337 = vsel %vm366, %v5293, 0
  %v5340 = vsel %vm366, %v5294, 0
  %v5343 = vsel %vm366, %v5295, 0
  %v5346 = vsel %vm366, %v5296, 0
  %v5349 = vsel %vm366, %v5297, 0
  %v5352 = vsel %vm366, %v5298, 0
  %v5355 = vsel %vm366, %v5299, 0
  %5357 = vmatprep.subr.mxu0 0.0
  %5358 = vmatpush1.msra.mxu0 %v357
  %5359 = vmatprep.subr.mxu0 0.0
  %5360 = vmatpush1.msra.mxu0 %v426
  %5361 = vmatprep.subr.mxu0 0.0
  %5362 = vmatpush1.msra.mxu0 0.0
  %5363 = vmatprep.subr.mxu0 0.0
  %5364 = vmatpush1.msra.mxu0 0.0
  %5365 = vmatprep.subr.mxu0 0.0
  %5366 = vmatpush1.msra.mxu0 0.0
  %5367 = vmatprep.subr.mxu0 0.0
  %5368 = vmatpush1.msra.mxu0 0.0
  %5369 = vmatprep.subr.mxu0 0.0
  %5370 = vmatpush1.msra.mxu0 0.0
  %5371 = vmatprep.subr.mxu0 0.0
  %5372 = vmatpush1.msra.mxu0 0.0
  %5373 = vmatprep.subr.mxu0 0.0
  %5374 = vmatpush1.msra.mxu0 0.0
  %5375 = vmatprep.subr.mxu0 0.0
  %5376 = vmatpush1.msra.mxu0 0.0
  %5377 = vmatprep.subr.mxu0 0.0
  %5378 = vmatpush1.msra.mxu0 0.0
  %5379 = vmatprep.subr.mxu0 0.0
  %5380 = vmatpush1.msra.mxu0 0.0
  %5381 = vmatprep.subr.mxu0 0.0
  %5382 = vmatpush1.msra.mxu0 0.0
  %5383 = vmatprep.subr.mxu0 0.0
  %5384 = vmatpush1.msra.mxu0 0.0
  %5385 = vmatprep.subr.mxu0 0.0
  %5386 = vmatpush1.msra.mxu0 0.0
  %5387 = vmatprep.subr.mxu0 0.0
  %5388 = vmatpush1.msra.mxu0 0.0
  %5389 = vmatprep.subr.mxu0 0.0
  %5390 = vmatpush1.msra.mxu0 0.0
  %5391 = vmatprep.subr.mxu0 0.0
  %5392 = vmatpush1.msra.mxu0 0.0
  %5393 = vmatprep.subr.mxu0 0.0
  %5394 = vmatpush1.msra.mxu0 0.0
  %5395 = vmatprep.subr.mxu0 0.0
  %5396 = vmatpush1.msra.mxu0 0.0
  %5397 = vmatprep.subr.mxu0 0.0
  %5398 = vmatpush1.msra.mxu0 0.0
  %5399 = vmatprep.subr.mxu0 0.0
  %5400 = vmatpush1.msra.mxu0 0.0
  %5401 = vmatprep.subr.mxu0 0.0
  %5402 = vmatpush1.msra.mxu0 0.0
  %5403 = vmatprep.subr.mxu0 0.0
  %5404 = vmatpush1.msra.mxu0 0.0
  %5405 = vmatprep.subr.mxu0 0.0
  %5406 = vmatpush1.msra.mxu0 0.0
  %5407 = vmatprep.subr.mxu0 0.0
  %5408 = vmatpush1.msra.mxu0 0.0
  %5409 = vmatprep.subr.mxu0 0.0
  %5410 = vmatpush1.msra.mxu0 0.0
  %5411 = vmatprep.subr.mxu0 0.0
  %5412 = vmatpush1.msra.mxu0 0.0
  %5413 = vmatprep.subr.mxu0 0.0
  %5414 = vmatpush1.msra.mxu0 0.0
  %5415 = vmatprep.subr.mxu0 0.0
  %5416 = vmatpush1.msra.mxu0 0.0
  %5417 = vmatprep.subr.mxu0 0.0
  %5418 = vmatpush1.msra.mxu0 0.0
  %5419 = vmatprep.subr.mxu0 0.0
  %5420 = vmatpush1.msra.mxu0 0.0
  %5421 = vmatprep.mubr.f32.mxu0 0.0
  %5422 = vmatmul.mubr.f32.gmra.mrb[0].mxu0 %v5301
  %v5423 = vpop.f32.mrb[0].mxu0
  %v5424 = vadd.f32 %v364, %v5423
  %v5425 = vpop.f32.mrb[0].mxu0
  %5426 = vmatprep.mubr.f32.mxu0 0.0
  %5427 = vmatmul.mubr.f32.gmra.mrb[0].mxu0 %v5304
  %v5428 = vpop.f32.mrb[0].mxu0
  %v5429 = vadd.f32 %v364, %v5428
  %v5430 = vpop.f32.mrb[0].mxu0
  %5431 = vmatprep.mubr.f32.mxu0 0.0
  %5432 = vmatmul.mubr.f32.gmra.mrb[0].mxu0 %v5307
  %v5433 = vpop.f32.mrb[0].mxu0
  %v5434 = vadd.f32 %v364, %v5433
  %v5435 = vpop.f32.mrb[0].mxu0
  %5436 = vmatprep.mubr.f32.mxu0 0.0
  %5437 = vmatmul.mubr.f32.gmra.mrb[0].mxu0 %v5310
  %v5438 = vpop.f32.mrb[0].mxu0
  %v5439 = vadd.f32 %v364, %v5438
  %v5440 = vpop.f32.mrb[0].mxu0
  %5441 = vmatprep.mubr.f32.mxu0 0.0
  %5442 = vmatmul.mubr.f32.gmra.mrb[0].mxu0 %v5313
  %v5443 = vpop.f32.mrb[0].mxu0
  %v5444 = vadd.f32 %v364, %v5443
  %v5445 = vpop.f32.mrb[0].mxu0
  %5446 = vmatprep.mubr.f32.mxu0 0.0
  %5447 = vmatmul.mubr.f32.gmra.mrb[0].mxu0 %v5316
  %v5448 = vpop.f32.mrb[0].mxu0
  %v5449 = vadd.f32 %v364, %v5448
  %v5450 = vpop.f32.mrb[0].mxu0
  %5451 = vmatprep.mubr.f32.mxu0 0.0
  %5452 = vmatmul.mubr.f32.gmra.mrb[0].mxu0 %v5319
  %v5453 = vpop.f32.mrb[0].mxu0
  %v5454 = vadd.f32 %v364, %v5453
  %v5455 = vpop.f32.mrb[0].mxu0
  %5456 = vmatprep.mubr.f32.mxu0 0.0
  %5457 = vmatmul.mubr.f32.gmra.mrb[0].mxu0 %v5322
  %v5458 = vpop.f32.mrb[0].mxu0
  %v5459 = vadd.f32 %v364, %v5458
  %v5460 = vpop.f32.mrb[0].mxu0
  %5461 = vmatprep.mubr.f32.mxu0 0.0
  %5462 = vmatmul.mubr.f32.gmra.mrb[0].mxu0 %v5325
  %v5463 = vpop.f32.mrb[0].mxu0
  %v5464 = vadd.f32 %v364, %v5463
  %v5465 = vpop.f32.mrb[0].mxu0
  %5466 = vmatprep.mubr.f32.mxu0 0.0
  %5467 = vmatmul.mubr.f32.gmra.mrb[0].mxu0 %v5328
  %v5468 = vpop.f32.mrb[0].mxu0
  %v5469 = vadd.f32 %v364, %v5468
  %v5470 = vpop.f32.mrb[0].mxu0
  %5471 = vmatprep.mubr.f32.mxu0 0.0
  %5472 = vmatmul.mubr.f32.gmra.mrb[0].mxu0 %v5331
  %v5473 = vpop.f32.mrb[0].mxu0
  %v5474 = vadd.f32 %v364, %v5473
  %v5475 = vpop.f32.mrb[0].mxu0
  %5476 = vmatprep.mubr.f32.mxu0 0.0
  %5477 = vmatmul.mubr.f32.gmra.mrb[0].mxu0 %v5334
  %v5478 = vpop.f32.mrb[0].mxu0
  %v5479 = vadd.f32 %v364, %v5478
  %v5480 = vpop.f32.mrb[0].mxu0
  %5481 = vmatprep.mubr.f32.mxu0 0.0
  %5482 = vmatmul.mubr.f32.gmra.mrb[0].mxu0 %v5337
  %v5483 = vpop.f32.mrb[0].mxu0
  %v5484 = vadd.f32 %v364, %v5483
  %v5485 = vpop.f32.mrb[0].mxu0
  %5486 = vmatprep.mubr.f32.mxu0 0.0
  %5487 = vmatmul.mubr.f32.gmra.mrb[0].mxu0 %v5340
  %v5488 = vpop.f32.mrb[0].mxu0
  %v5489 = vadd.f32 %v364, %v5488
  %v5490 = vpop.f32.mrb[0].mxu0
  %5491 = vmatprep.mubr.f32.mxu0 0.0
  %5492 = vmatmul.mubr.f32.gmra.mrb[0].mxu0 %v5343
  %v5493 = vpop.f32.mrb[0].mxu0
  %v5494 = vadd.f32 %v364, %v5493
  %v5495 = vpop.f32.mrb[0].mxu0
  %5496 = vmatprep.mubr.f32.mxu0 0.0
  %5497 = vmatmul.mubr.f32.gmra.mrb[0].mxu0 %v5346
  %v5498 = vpop.f32.mrb[0].mxu0
  %v5499 = vadd.f32 %v364, %v5498
  %v5500 = vpop.f32.mrb[0].mxu0
  %5501 = vmatprep.mubr.f32.mxu0 0.0
  %5502 = vmatmul.mubr.f32.gmra.mrb[0].mxu0 %v5349
  %v5503 = vpop.f32.mrb[0].mxu0
  %v5504 = vadd.f32 %v364, %v5503
  %v5505 = vpop.f32.mrb[0].mxu0
  %5506 = vmatprep.mubr.f32.mxu0 0.0
  %5507 = vmatmul.mubr.f32.gmra.mrb[0].mxu0 %v5352
  %v5508 = vpop.f32.mrb[0].mxu0
  %v5509 = vadd.f32 %v364, %v5508
  %v5510 = vpop.f32.mrb[0].mxu0
  %5511 = vmatprep.mubr.f32.mxu0 0.0
  %5512 = vmatmul.mubr.f32.gmra.mrb[0].mxu0 %v5355
  %v5513 = vpop.f32.mrb[0].mxu0
  %v5514 = vadd.f32 %v364, %v5513
  %v5515 = vpop.f32.mrb[0].mxu0
  %5516 = vdwg.mxu0
  %v5517 = vmax.f32 %v5424, 0.0
  %v5518 = vmax.f32 %v5429, 0.0
  %v5519 = vmax.f32 %v5434, 0.0
  %v5520 = vmax.f32 %v5439, 0.0
  %v5521 = vmax.f32 %v5444, 0.0
  %v5522 = vmax.f32 %v5449, 0.0
  %v5523 = vmax.f32 %v5454, 0.0
  %v5524 = vmax.f32 %v5459, 0.0
  %v5525 = vmax.f32 %v5464, 0.0
  %v5526 = vmax.f32 %v5469, 0.0
  %v5527 = vmax.f32 %v5474, 0.0
  %v5528 = vmax.f32 %v5479, 0.0
  %v5529 = vmax.f32 %v5484, 0.0
  %v5530 = vmax.f32 %v5489, 0.0
  %v5531 = vmax.f32 %v5494, 0.0
  %v5532 = vmax.f32 %v5499, 0.0
  %v5533 = vmax.f32 %v5504, 0.0
  %v5534 = vmax.f32 %v5509, 0.0
  %v5535 = vmax.f32 %v5514, 0.0
  %5537 = vset.pattern.permute.xlu0 0
  %5538 = vperm.xlu0 %5537, %v5517
  %v5539 = vpop.permute.xlu0 %5538
  %5542 = vset.pattern.permute.xlu0 0
  %5543 = vperm.xlu0 %5542, %v5518
  %v5544 = vpop.permute.xlu0 %5543
  %5547 = vset.pattern.permute.xlu0 0
  %5548 = vperm.xlu0 %5547, %v5519
  %v5549 = vpop.permute.xlu0 %5548
  %5552 = vset.pattern.permute.xlu0 0
  %5553 = vperm.xlu0 %5552, %v5520
  %v5554 = vpop.permute.xlu0 %5553
  %5557 = vset.pattern.permute.xlu0 0
  %5558 = vperm.xlu0 %5557, %v5521
  %v5559 = vpop.permute.xlu0 %5558
  %5562 = vset.pattern.permute.xlu0 0
  %5563 = vperm.xlu0 %5562, %v5522
  %v5564 = vpop.permute.xlu0 %5563
  %5567 = vset.pattern.permute.xlu0 0
  %5568 = vperm.xlu0 %5567, %v5523
  %v5569 = vpop.permute.xlu0 %5568
  %5572 = vset.pattern.permute.xlu0 0
  %5573 = vperm.xlu0 %5572, %v5524
  %v5574 = vpop.permute.xlu0 %5573
  %5577 = vset.pattern.permute.xlu0 0
  %5578 = vperm.xlu0 %5577, %v5525
  %v5579 = vpop.permute.xlu0 %5578
  %5582 = vset.pattern.permute.xlu0 0
  %5583 = vperm.xlu0 %5582, %v5526
  %v5584 = vpop.permute.xlu0 %5583
  %5587 = vset.pattern.permute.xlu0 0
  %5588 = vperm.xlu0 %5587, %v5527
  %v5589 = vpop.permute.xlu0 %5588
  %5592 = vset.pattern.permute.xlu0 0
  %5593 = vperm.xlu0 %5592, %v5528
  %v5594 = vpop.permute.xlu0 %5593
  %5597 = vset.pattern.permute.xlu0 0
  %5598 = vperm.xlu0 %5597, %v5529
  %v5599 = vpop.permute.xlu0 %5598
  %5602 = vset.pattern.permute.xlu0 0
  %5603 = vperm.xlu0 %5602, %v5530
  %v5604 = vpop.permute.xlu0 %5603
  %5607 = vset.pattern.permute.xlu0 0
  %5608 = vperm.xlu0 %5607, %v5531
  %v5609 = vpop.permute.xlu0 %5608
  %5612 = vset.pattern.permute.xlu0 0
  %5613 = vperm.xlu0 %5612, %v5532
  %v5614 = vpop.permute.xlu0 %5613
  %5617 = vset.pattern.permute.xlu0 0
  %5618 = vperm.xlu0 %5617, %v5533
  %v5619 = vpop.permute.xlu0 %5618
  %5622 = vset.pattern.permute.xlu0 0
  %5623 = vperm.xlu0 %5622, %v5534
  %v5624 = vpop.permute.xlu0 %5623
  %5627 = vset.pattern.permute.xlu0 0
  %5628 = vperm.xlu0 %5627, %v5535
  %v5629 = vpop.permute.xlu0 %5628
  %v5631 = vmul.f32 %v5539, %v607
  %v5632 = vmul.f32 %v5544, %v608
  %v5633 = vmul.f32 %v5549, %v609
  %v5634 = vmul.f32 %v5554, %v610
  %v5635 = vmul.f32 %v5559, %v611
  %v5636 = vmul.f32 %v5564, %v612
  %v5637 = vmul.f32 %v5569, %v613
  %v5638 = vmul.f32 %v5574, %v614
  %v5639 = vmul.f32 %v5579, %v615
  %v5640 = vmul.f32 %v5584, %v616
  %v5641 = vmul.f32 %v5589, %v617
  %v5642 = vmul.f32 %v5594, %v618
  %v5643 = vmul.f32 %v5599, %v619
  %v5644 = vmul.f32 %v5604, %v620
  %v5645 = vmul.f32 %v5609, %v621
  %v5646 = vmul.f32 %v5614, %v622
  %v5647 = vmul.f32 %v5619, %v623
  %v5648 = vmul.f32 %v5624, %v624
  %v5649 = vmul.f32 %v5629, %v625
  %v5650 = vadd.f32 %v5631, 0.0
  %v5651 = vadd.f32 %v5632, 0.0
  %v5652 = vadd.f32 %v5633, 0.0
  %v5653 = vadd.f32 %v5634, 0.0
  %v5654 = vadd.f32 %v5635, 0.0
  %v5655 = vadd.f32 %v5636, 0.0
  %v5656 = vadd.f32 %v5637, 0.0
  %v5657 = vadd.f32 %v5638, 0.0
  %v5658 = vadd.f32 %v5639, 0.0
  %v5659 = vadd.f32 %v5640, 0.0
  %v5660 = vadd.f32 %v5641, 0.0
  %v5661 = vadd.f32 %v5642, 0.0
  %v5662 = vadd.f32 %v5643, 0.0
  %v5663 = vadd.f32 %v5644, 0.0
  %v5664 = vadd.f32 %v5645, 0.0
  %v5665 = vadd.f32 %v5646, 0.0
  %v5666 = vadd.f32 %v5647, 0.0
  %v5667 = vadd.f32 %v5648, 0.0
  %v5668 = vadd.f32 %v5649, 0.0
  %5669 = vset.pattern.permute.xlu0 1
  %5670 = vperm.xlu0 %5669, %v5517
  %v5671 = vpop.permute.xlu0 %5670
  %5673 = vset.pattern.permute.xlu0 1
  %5674 = vperm.xlu0 %5673, %v5518
  %v5675 = vpop.permute.xlu0 %5674
  %5677 = vset.pattern.permute.xlu0 1
  %5678 = vperm.xlu0 %5677, %v5519
  %v5679 = vpop.permute.xlu0 %5678
  %5681 = vset.pattern.permute.xlu0 1
  %5682 = vperm.xlu0 %5681, %v5520
  %v5683 = vpop.permute.xlu0 %5682
  %5685 = vset.pattern.permute.xlu0 1
  %5686 = vperm.xlu0 %5685, %v5521
  %v5687 = vpop.permute.xlu0 %5686
  %5689 = vset.pattern.permute.xlu0 1
  %5690 = vperm.xlu0 %5689, %v5522
  %v5691 = vpop.permute.xlu0 %5690
  %5693 = vset.pattern.permute.xlu0 1
  %5694 = vperm.xlu0 %5693, %v5523
  %v5695 = vpop.permute.xlu0 %5694
  %5697 = vset.pattern.permute.xlu0 1
  %5698 = vperm.xlu0 %5697, %v5524
  %v5699 = vpop.permute.xlu0 %5698
  %5701 = vset.pattern.permute.xlu0 1
  %5702 = vperm.xlu0 %5701, %v5525
  %v5703 = vpop.permute.xlu0 %5702
  %5705 = vset.pattern.permute.xlu0 1
  %5706 = vperm.xlu0 %5705, %v5526
  %v5707 = vpop.permute.xlu0 %5706
  %5709 = vset.pattern.permute.xlu0 1
  %5710 = vperm.xlu0 %5709, %v5527
  %v5711 = vpop.permute.xlu0 %5710
  %5713 = vset.pattern.permute.xlu0 1
  %5714 = vperm.xlu0 %5713, %v5528
  %v5715 = vpop.permute.xlu0 %5714
  %5717 = vset.pattern.permute.xlu0 1
  %5718 = vperm.xlu0 %5717, %v5529
  %v5719 = vpop.permute.xlu0 %5718
  %5721 = vset.pattern.permute.xlu0 1
  %5722 = vperm.xlu0 %5721, %v5530
  %v5723 = vpop.permute.xlu0 %5722
  %5725 = vset.pattern.permute.xlu0 1
  %5726 = vperm.xlu0 %5725, %v5531
  %v5727 = vpop.permute.xlu0 %5726
  %5729 = vset.pattern.permute.xlu0 1
  %5730 = vperm.xlu0 %5729, %v5532
  %v5731 = vpop.permute.xlu0 %5730
  %5733 = vset.pattern.permute.xlu0 1
  %5734 = vperm.xlu0 %5733, %v5533
  %v5735 = vpop.permute.xlu0 %5734
  %5737 = vset.pattern.permute.xlu0 1
  %5738 = vperm.xlu0 %5737, %v5534
  %v5739 = vpop.permute.xlu0 %5738
  %5741 = vset.pattern.permute.xlu0 1
  %5742 = vperm.xlu0 %5741, %v5535
  %v5743 = vpop.permute.xlu0 %5742
  %v5745 = vmul.f32 %v5671, %v760
  %v5746 = vmul.f32 %v5675, %v761
  %v5747 = vmul.f32 %v5679, %v762
  %v5748 = vmul.f32 %v5683, %v763
  %v5749 = vmul.f32 %v5687, %v764
  %v5750 = vmul.f32 %v5691, %v765
  %v5751 = vmul.f32 %v5695, %v766
  %v5752 = vmul.f32 %v5699, %v767
  %v5753 = vmul.f32 %v5703, %v768
  %v5754 = vmul.f32 %v5707, %v769
  %v5755 = vmul.f32 %v5711, %v770
  %v5756 = vmul.f32 %v5715, %v771
  %v5757 = vmul.f32 %v5719, %v772
  %v5758 = vmul.f32 %v5723, %v773
  %v5759 = vmul.f32 %v5727, %v774
  %v5760 = vmul.f32 %v5731, %v775
  %v5761 = vmul.f32 %v5735, %v776
  %v5762 = vmul.f32 %v5739, %v777
  %v5763 = vmul.f32 %v5743, %v778
  %v5764 = vadd.f32 %v5650, %v5745
  %v5765 = vadd.f32 %v5651, %v5746
  %v5766 = vadd.f32 %v5652, %v5747
  %v5767 = vadd.f32 %v5653, %v5748
  %v5768 = vadd.f32 %v5654, %v5749
  %v5769 = vadd.f32 %v5655, %v5750
  %v5770 = vadd.f32 %v5656, %v5751
  %v5771 = vadd.f32 %v5657, %v5752
  %v5772 = vadd.f32 %v5658, %v5753
  %v5773 = vadd.f32 %v5659, %v5754
  %v5774 = vadd.f32 %v5660, %v5755
  %v5775 = vadd.f32 %v5661, %v5756
  %v5776 = vadd.f32 %v5662, %v5757
  %v5777 = vadd.f32 %v5663, %v5758
  %v5778 = vadd.f32 %v5664, %v5759
  %v5779 = vadd.f32 %v5665, %v5760
  %v5780 = vadd.f32 %v5666, %v5761
  %v5781 = vadd.f32 %v5667, %v5762
  %v5782 = vadd.f32 %v5668, %v5763
  %5783 = vset.pattern.permute.xlu0 2
  %5784 = vperm.xlu0 %5783, %v5517
  %v5785 = vpop.permute.xlu0 %5784
  %5787 = vset.pattern.permute.xlu0 2
  %5788 = vperm.xlu0 %5787, %v5518
  %v5789 = vpop.permute.xlu0 %5788
  %5791 = vset.pattern.permute.xlu0 2
  %5792 = vperm.xlu0 %5791, %v5519
  %v5793 = vpop.permute.xlu0 %5792
  %5795 = vset.pattern.permute.xlu0 2
  %5796 = vperm.xlu0 %5795, %v5520
  %v5797 = vpop.permute.xlu0 %5796
  %5799 = vset.pattern.permute.xlu0 2
  %5800 = vperm.xlu0 %5799, %v5521
  %v5801 = vpop.permute.xlu0 %5800
  %5803 = vset.pattern.permute.xlu0 2
  %5804 = vperm.xlu0 %5803, %v5522
  %v5805 = vpop.permute.xlu0 %5804
  %5807 = vset.pattern.permute.xlu0 2
  %5808 = vperm.xlu0 %5807, %v5523
  %v5809 = vpop.permute.xlu0 %5808
  %5811 = vset.pattern.permute.xlu0 2
  %5812 = vperm.xlu0 %5811, %v5524
  %v5813 = vpop.permute.xlu0 %5812
  %5815 = vset.pattern.permute.xlu0 2
  %5816 = vperm.xlu0 %5815, %v5525
  %v5817 = vpop.permute.xlu0 %5816
  %5819 = vset.pattern.permute.xlu0 2
  %5820 = vperm.xlu0 %5819, %v5526
  %v5821 = vpop.permute.xlu0 %5820
  %5823 = vset.pattern.permute.xlu0 2
  %5824 = vperm.xlu0 %5823, %v5527
  %v5825 = vpop.permute.xlu0 %5824
  %5827 = vset.pattern.permute.xlu0 2
  %5828 = vperm.xlu0 %5827, %v5528
  %v5829 = vpop.permute.xlu0 %5828
  %5831 = vset.pattern.permute.xlu0 2
  %5832 = vperm.xlu0 %5831, %v5529
  %v5833 = vpop.permute.xlu0 %5832
  %5835 = vset.pattern.permute.xlu0 2
  %5836 = vperm.xlu0 %5835, %v5530
  %v5837 = vpop.permute.xlu0 %5836
  %5839 = vset.pattern.permute.xlu0 2
  %5840 = vperm.xlu0 %5839, %v5531
  %v5841 = vpop.permute.xlu0 %5840
  %5843 = vset.pattern.permute.xlu0 2
  %5844 = vperm.xlu0 %5843, %v5532
  %v5845 = vpop.permute.xlu0 %5844
  %5847 = vset.pattern.permute.xlu0 2
  %5848 = vperm.xlu0 %5847, %v5533
  %v5849 = vpop.permute.xlu0 %5848
  %5851 = vset.pattern.permute.xlu0 2
  %5852 = vperm.xlu0 %5851, %v5534
  %v5853 = vpop.permute.xlu0 %5852
  %5855 = vset.pattern.permute.xlu0 2
  %5856 = vperm.xlu0 %5855, %v5535
  %v5857 = vpop.permute.xlu0 %5856
  %v5859 = vmul.f32 %v5785, %v894
  %v5860 = vmul.f32 %v5789, %v895
  %v5861 = vmul.f32 %v5793, %v896
  %v5862 = vmul.f32 %v5797, %v897
  %v5863 = vmul.f32 %v5801, %v898
  %v5864 = vmul.f32 %v5805, %v899
  %v5865 = vmul.f32 %v5809, %v900
  %v5866 = vmul.f32 %v5813, %v901
  %v5867 = vmul.f32 %v5817, %v902
  %v5868 = vmul.f32 %v5821, %v903
  %v5869 = vmul.f32 %v5825, %v904
  %v5870 = vmul.f32 %v5829, %v905
  %v5871 = vmul.f32 %v5833, %v906
  %v5872 = vmul.f32 %v5837, %v907
  %v5873 = vmul.f32 %v5841, %v908
  %v5874 = vmul.f32 %v5845, %v909
  %v5875 = vmul.f32 %v5849, %v910
  %v5876 = vmul.f32 %v5853, %v911
  %v5877 = vmul.f32 %v5857, %v912
  %v5878 = vadd.f32 %v5764, %v5859
  %v5879 = vadd.f32 %v5765, %v5860
  %v5880 = vadd.f32 %v5766, %v5861
  %v5881 = vadd.f32 %v5767, %v5862
  %v5882 = vadd.f32 %v5768, %v5863
  %v5883 = vadd.f32 %v5769, %v5864
  %v5884 = vadd.f32 %v5770, %v5865
  %v5885 = vadd.f32 %v5771, %v5866
  %v5886 = vadd.f32 %v5772, %v5867
  %v5887 = vadd.f32 %v5773, %v5868
  %v5888 = vadd.f32 %v5774, %v5869
  %v5889 = vadd.f32 %v5775, %v5870
  %v5890 = vadd.f32 %v5776, %v5871
  %v5891 = vadd.f32 %v5777, %v5872
  %v5892 = vadd.f32 %v5778, %v5873
  %v5893 = vadd.f32 %v5779, %v5874
  %v5894 = vadd.f32 %v5780, %v5875
  %v5895 = vadd.f32 %v5781, %v5876
  %v5896 = vadd.f32 %v5782, %v5877
  %5897 = vset.pattern.permute.xlu0 3
  %5898 = vperm.xlu0 %5897, %v5517
  %v5899 = vpop.permute.xlu0 %5898
  %5901 = vset.pattern.permute.xlu0 3
  %5902 = vperm.xlu0 %5901, %v5518
  %v5903 = vpop.permute.xlu0 %5902
  %5905 = vset.pattern.permute.xlu0 3
  %5906 = vperm.xlu0 %5905, %v5519
  %v5907 = vpop.permute.xlu0 %5906
  %5909 = vset.pattern.permute.xlu0 3
  %5910 = vperm.xlu0 %5909, %v5520
  %v5911 = vpop.permute.xlu0 %5910
  %5913 = vset.pattern.permute.xlu0 3
  %5914 = vperm.xlu0 %5913, %v5521
  %v5915 = vpop.permute.xlu0 %5914
  %5917 = vset.pattern.permute.xlu0 3
  %5918 = vperm.xlu0 %5917, %v5522
  %v5919 = vpop.permute.xlu0 %5918
  %5921 = vset.pattern.permute.xlu0 3
  %5922 = vperm.xlu0 %5921, %v5523
  %v5923 = vpop.permute.xlu0 %5922
  %5925 = vset.pattern.permute.xlu0 3
  %5926 = vperm.xlu0 %5925, %v5524
  %v5927 = vpop.permute.xlu0 %5926
  %5929 = vset.pattern.permute.xlu0 3
  %5930 = vperm.xlu0 %5929, %v5525
  %v5931 = vpop.permute.xlu0 %5930
  %5933 = vset.pattern.permute.xlu0 3
  %5934 = vperm.xlu0 %5933, %v5526
  %v5935 = vpop.permute.xlu0 %5934
  %5937 = vset.pattern.permute.xlu0 3
  %5938 = vperm.xlu0 %5937, %v5527
  %v5939 = vpop.permute.xlu0 %5938
  %5941 = vset.pattern.permute.xlu0 3
  %5942 = vperm.xlu0 %5941, %v5528
  %v5943 = vpop.permute.xlu0 %5942
  %5945 = vset.pattern.permute.xlu0 3
  %5946 = vperm.xlu0 %5945, %v5529
  %v5947 = vpop.permute.xlu0 %5946
  %5949 = vset.pattern.permute.xlu0 3
  %5950 = vperm.xlu0 %5949, %v5530
  %v5951 = vpop.permute.xlu0 %5950
  %5953 = vset.pattern.permute.xlu0 3
  %5954 = vperm.xlu0 %5953, %v5531
  %v5955 = vpop.permute.xlu0 %5954
  %5957 = vset.pattern.permute.xlu0 3
  %5958 = vperm.xlu0 %5957, %v5532
  %v5959 = vpop.permute.xlu0 %5958
  %5961 = vset.pattern.permute.xlu0 3
  %5962 = vperm.xlu0 %5961, %v5533
  %v5963 = vpop.permute.xlu0 %5962
  %5965 = vset.pattern.permute.xlu0 3
  %5966 = vperm.xlu0 %5965, %v5534
  %v5967 = vpop.permute.xlu0 %5966
  %5969 = vset.pattern.permute.xlu0 3
  %5970 = vperm.xlu0 %5969, %v5535
  %v5971 = vpop.permute.xlu0 %5970
  %v5973 = vmul.f32 %v5899, %v1028
  %v5974 = vmul.f32 %v5903, %v1029
  %v5975 = vmul.f32 %v5907, %v1030
  %v5976 = vmul.f32 %v5911, %v1031
  %v5977 = vmul.f32 %v5915, %v1032
  %v5978 = vmul.f32 %v5919, %v1033
  %v5979 = vmul.f32 %v5923, %v1034
  %v5980 = vmul.f32 %v5927, %v1035
  %v5981 = vmul.f32 %v5931, %v1036
  %v5982 = vmul.f32 %v5935, %v1037
  %v5983 = vmul.f32 %v5939, %v1038
  %v5984 = vmul.f32 %v5943, %v1039
  %v5985 = vmul.f32 %v5947, %v1040
  %v5986 = vmul.f32 %v5951, %v1041
  %v5987 = vmul.f32 %v5955, %v1042
  %v5988 = vmul.f32 %v5959, %v1043
  %v5989 = vmul.f32 %v5963, %v1044
  %v5990 = vmul.f32 %v5967, %v1045
  %v5991 = vmul.f32 %v5971, %v1046
  %v5992 = vadd.f32 %v5878, %v5973
  %v5993 = vadd.f32 %v5879, %v5974
  %v5994 = vadd.f32 %v5880, %v5975
  %v5995 = vadd.f32 %v5881, %v5976
  %v5996 = vadd.f32 %v5882, %v5977
  %v5997 = vadd.f32 %v5883, %v5978
  %v5998 = vadd.f32 %v5884, %v5979
  %v5999 = vadd.f32 %v5885, %v5980
  %v6000 = vadd.f32 %v5886, %v5981
  %v6001 = vadd.f32 %v5887, %v5982
  %v6002 = vadd.f32 %v5888, %v5983
  %v6003 = vadd.f32 %v5889, %v5984
  %v6004 = vadd.f32 %v5890, %v5985
  %v6005 = vadd.f32 %v5891, %v5986
  %v6006 = vadd.f32 %v5892, %v5987
  %v6007 = vadd.f32 %v5893, %v5988
  %v6008 = vadd.f32 %v5894, %v5989
  %v6009 = vadd.f32 %v5895, %v5990
  %v6010 = vadd.f32 %v5896, %v5991
  %6011 = vset.pattern.permute.xlu0 4
  %6012 = vperm.xlu0 %6011, %v5517
  %v6013 = vpop.permute.xlu0 %6012
  %6015 = vset.pattern.permute.xlu0 4
  %6016 = vperm.xlu0 %6015, %v5518
  %v6017 = vpop.permute.xlu0 %6016
  %6019 = vset.pattern.permute.xlu0 4
  %6020 = vperm.xlu0 %6019, %v5519
  %v6021 = vpop.permute.xlu0 %6020
  %6023 = vset.pattern.permute.xlu0 4
  %6024 = vperm.xlu0 %6023, %v5520
  %v6025 = vpop.permute.xlu0 %6024
  %6027 = vset.pattern.permute.xlu0 4
  %6028 = vperm.xlu0 %6027, %v5521
  %v6029 = vpop.permute.xlu0 %6028
  %6031 = vset.pattern.permute.xlu0 4
  %6032 = vperm.xlu0 %6031, %v5522
  %v6033 = vpop.permute.xlu0 %6032
  %6035 = vset.pattern.permute.xlu0 4
  %6036 = vperm.xlu0 %6035, %v5523
  %v6037 = vpop.permute.xlu0 %6036
  %6039 = vset.pattern.permute.xlu0 4
  %6040 = vperm.xlu0 %6039, %v5524
  %v6041 = vpop.permute.xlu0 %6040
  %6043 = vset.pattern.permute.xlu0 4
  %6044 = vperm.xlu0 %6043, %v5525
  %v6045 = vpop.permute.xlu0 %6044
  %6047 = vset.pattern.permute.xlu0 4
  %6048 = vperm.xlu0 %6047, %v5526
  %v6049 = vpop.permute.xlu0 %6048
  %6051 = vset.pattern.permute.xlu0 4
  %6052 = vperm.xlu0 %6051, %v5527
  %v6053 = vpop.permute.xlu0 %6052
  %6055 = vset.pattern.permute.xlu0 4
  %6056 = vperm.xlu0 %6055, %v5528
  %v6057 = vpop.permute.xlu0 %6056
  %6059 = vset.pattern.permute.xlu0 4
  %6060 = vperm.xlu0 %6059, %v5529
  %v6061 = vpop.permute.xlu0 %6060
  %6063 = vset.pattern.permute.xlu0 4
  %6064 = vperm.xlu0 %6063, %v5530
  %v6065 = vpop.permute.xlu0 %6064
  %6067 = vset.pattern.permute.xlu0 4
  %6068 = vperm.xlu0 %6067, %v5531
  %v6069 = vpop.permute.xlu0 %6068
  %6071 = vset.pattern.permute.xlu0 4
  %6072 = vperm.xlu0 %6071, %v5532
  %v6073 = vpop.permute.xlu0 %6072
  %6075 = vset.pattern.permute.xlu0 4
  %6076 = vperm.xlu0 %6075, %v5533
  %v6077 = vpop.permute.xlu0 %6076
  %6079 = vset.pattern.permute.xlu0 4
  %6080 = vperm.xlu0 %6079, %v5534
  %v6081 = vpop.permute.xlu0 %6080
  %6083 = vset.pattern.permute.xlu0 4
  %6084 = vperm.xlu0 %6083, %v5535
  %v6085 = vpop.permute.xlu0 %6084
  %v6087 = vmul.f32 %v6013, %v1162
  %v6088 = vmul.f32 %v6017, %v1163
  %v6089 = vmul.f32 %v6021, %v1164
  %v6090 = vmul.f32 %v6025, %v1165
  %v6091 = vmul.f32 %v6029, %v1166
  %v6092 = vmul.f32 %v6033, %v1167
  %v6093 = vmul.f32 %v6037, %v1168
  %v6094 = vmul.f32 %v6041, %v1169
  %v6095 = vmul.f32 %v6045, %v1170
  %v6096 = vmul.f32 %v6049, %v1171
  %v6097 = vmul.f32 %v6053, %v1172
  %v6098 = vmul.f32 %v6057, %v1173
  %v6099 = vmul.f32 %v6061, %v1174
  %v6100 = vmul.f32 %v6065, %v1175
  %v6101 = vmul.f32 %v6069, %v1176
  %v6102 = vmul.f32 %v6073, %v1177
  %v6103 = vmul.f32 %v6077, %v1178
  %v6104 = vmul.f32 %v6081, %v1179
  %v6105 = vmul.f32 %v6085, %v1180
  %v6106 = vadd.f32 %v5992, %v6087
  %v6107 = vadd.f32 %v5993, %v6088
  %v6108 = vadd.f32 %v5994, %v6089
  %v6109 = vadd.f32 %v5995, %v6090
  %v6110 = vadd.f32 %v5996, %v6091
  %v6111 = vadd.f32 %v5997, %v6092
  %v6112 = vadd.f32 %v5998, %v6093
  %v6113 = vadd.f32 %v5999, %v6094
  %v6114 = vadd.f32 %v6000, %v6095
  %v6115 = vadd.f32 %v6001, %v6096
  %v6116 = vadd.f32 %v6002, %v6097
  %v6117 = vadd.f32 %v6003, %v6098
  %v6118 = vadd.f32 %v6004, %v6099
  %v6119 = vadd.f32 %v6005, %v6100
  %v6120 = vadd.f32 %v6006, %v6101
  %v6121 = vadd.f32 %v6007, %v6102
  %v6122 = vadd.f32 %v6008, %v6103
  %v6123 = vadd.f32 %v6009, %v6104
  %v6124 = vadd.f32 %v6010, %v6105
  %6125 = vset.pattern.permute.xlu0 5
  %6126 = vperm.xlu0 %6125, %v5517
  %v6127 = vpop.permute.xlu0 %6126
  %6129 = vset.pattern.permute.xlu0 5
  %6130 = vperm.xlu0 %6129, %v5518
  %v6131 = vpop.permute.xlu0 %6130
  %6133 = vset.pattern.permute.xlu0 5
  %6134 = vperm.xlu0 %6133, %v5519
  %v6135 = vpop.permute.xlu0 %6134
  %6137 = vset.pattern.permute.xlu0 5
  %6138 = vperm.xlu0 %6137, %v5520
  %v6139 = vpop.permute.xlu0 %6138
  %6141 = vset.pattern.permute.xlu0 5
  %6142 = vperm.xlu0 %6141, %v5521
  %v6143 = vpop.permute.xlu0 %6142
  %6145 = vset.pattern.permute.xlu0 5
  %6146 = vperm.xlu0 %6145, %v5522
  %v6147 = vpop.permute.xlu0 %6146
  %6149 = vset.pattern.permute.xlu0 5
  %6150 = vperm.xlu0 %6149, %v5523
  %v6151 = vpop.permute.xlu0 %6150
  %6153 = vset.pattern.permute.xlu0 5
  %6154 = vperm.xlu0 %6153, %v5524
  %v6155 = vpop.permute.xlu0 %6154
  %6157 = vset.pattern.permute.xlu0 5
  %6158 = vperm.xlu0 %6157, %v5525
  %v6159 = vpop.permute.xlu0 %6158
  %6161 = vset.pattern.permute.xlu0 5
  %6162 = vperm.xlu0 %6161, %v5526
  %v6163 = vpop.permute.xlu0 %6162
  %6165 = vset.pattern.permute.xlu0 5
  %6166 = vperm.xlu0 %6165, %v5527
  %v6167 = vpop.permute.xlu0 %6166
  %6169 = vset.pattern.permute.xlu0 5
  %6170 = vperm.xlu0 %6169, %v5528
  %v6171 = vpop.permute.xlu0 %6170
  %6173 = vset.pattern.permute.xlu0 5
  %6174 = vperm.xlu0 %6173, %v5529
  %v6175 = vpop.permute.xlu0 %6174
  %6177 = vset.pattern.permute.xlu0 5
  %6178 = vperm.xlu0 %6177, %v5530
  %v6179 = vpop.permute.xlu0 %6178
  %6181 = vset.pattern.permute.xlu0 5
  %6182 = vperm.xlu0 %6181, %v5531
  %v6183 = vpop.permute.xlu0 %6182
  %6185 = vset.pattern.permute.xlu0 5
  %6186 = vperm.xlu0 %6185, %v5532
  %v6187 = vpop.permute.xlu0 %6186
  %6189 = vset.pattern.permute.xlu0 5
  %6190 = vperm.xlu0 %6189, %v5533
  %v6191 = vpop.permute.xlu0 %6190
  %6193 = vset.pattern.permute.xlu0 5
  %6194 = vperm.xlu0 %6193, %v5534
  %v6195 = vpop.permute.xlu0 %6194
  %6197 = vset.pattern.permute.xlu0 5
  %6198 = vperm.xlu0 %6197, %v5535
  %v6199 = vpop.permute.xlu0 %6198
  %v6201 = vmul.f32 %v6127, %v1296
  %v6202 = vmul.f32 %v6131, %v1297
  %v6203 = vmul.f32 %v6135, %v1298
  %v6204 = vmul.f32 %v6139, %v1299
  %v6205 = vmul.f32 %v6143, %v1300
  %v6206 = vmul.f32 %v6147, %v1301
  %v6207 = vmul.f32 %v6151, %v1302
  %v6208 = vmul.f32 %v6155, %v1303
  %v6209 = vmul.f32 %v6159, %v1304
  %v6210 = vmul.f32 %v6163, %v1305
  %v6211 = vmul.f32 %v6167, %v1306
  %v6212 = vmul.f32 %v6171, %v1307
  %v6213 = vmul.f32 %v6175, %v1308
  %v6214 = vmul.f32 %v6179, %v1309
  %v6215 = vmul.f32 %v6183, %v1310
  %v6216 = vmul.f32 %v6187, %v1311
  %v6217 = vmul.f32 %v6191, %v1312
  %v6218 = vmul.f32 %v6195, %v1313
  %v6219 = vmul.f32 %v6199, %v1314
  %v6220 = vadd.f32 %v6106, %v6201
  %v6221 = vadd.f32 %v6107, %v6202
  %v6222 = vadd.f32 %v6108, %v6203
  %v6223 = vadd.f32 %v6109, %v6204
  %v6224 = vadd.f32 %v6110, %v6205
  %v6225 = vadd.f32 %v6111, %v6206
  %v6226 = vadd.f32 %v6112, %v6207
  %v6227 = vadd.f32 %v6113, %v6208
  %v6228 = vadd.f32 %v6114, %v6209
  %v6229 = vadd.f32 %v6115, %v6210
  %v6230 = vadd.f32 %v6116, %v6211
  %v6231 = vadd.f32 %v6117, %v6212
  %v6232 = vadd.f32 %v6118, %v6213
  %v6233 = vadd.f32 %v6119, %v6214
  %v6234 = vadd.f32 %v6120, %v6215
  %v6235 = vadd.f32 %v6121, %v6216
  %v6236 = vadd.f32 %v6122, %v6217
  %v6237 = vadd.f32 %v6123, %v6218
  %v6238 = vadd.f32 %v6124, %v6219
  %6239 = vset.pattern.permute.xlu0 6
  %6240 = vperm.xlu0 %6239, %v5517
  %v6241 = vpop.permute.xlu0 %6240
  %6243 = vset.pattern.permute.xlu0 6
  %6244 = vperm.xlu0 %6243, %v5518
  %v6245 = vpop.permute.xlu0 %6244
  %6247 = vset.pattern.permute.xlu0 6
  %6248 = vperm.xlu0 %6247, %v5519
  %v6249 = vpop.permute.xlu0 %6248
  %6251 = vset.pattern.permute.xlu0 6
  %6252 = vperm.xlu0 %6251, %v5520
  %v6253 = vpop.permute.xlu0 %6252
  %6255 = vset.pattern.permute.xlu0 6
  %6256 = vperm.xlu0 %6255, %v5521
  %v6257 = vpop.permute.xlu0 %6256
  %6259 = vset.pattern.permute.xlu0 6
  %6260 = vperm.xlu0 %6259, %v5522
  %v6261 = vpop.permute.xlu0 %6260
  %6263 = vset.pattern.permute.xlu0 6
  %6264 = vperm.xlu0 %6263, %v5523
  %v6265 = vpop.permute.xlu0 %6264
  %6267 = vset.pattern.permute.xlu0 6
  %6268 = vperm.xlu0 %6267, %v5524
  %v6269 = vpop.permute.xlu0 %6268
  %6271 = vset.pattern.permute.xlu0 6
  %6272 = vperm.xlu0 %6271, %v5525
  %v6273 = vpop.permute.xlu0 %6272
  %6275 = vset.pattern.permute.xlu0 6
  %6276 = vperm.xlu0 %6275, %v5526
  %v6277 = vpop.permute.xlu0 %6276
  %6279 = vset.pattern.permute.xlu0 6
  %6280 = vperm.xlu0 %6279, %v5527
  %v6281 = vpop.permute.xlu0 %6280
  %6283 = vset.pattern.permute.xlu0 6
  %6284 = vperm.xlu0 %6283, %v5528
  %v6285 = vpop.permute.xlu0 %6284
  %6287 = vset.pattern.permute.xlu0 6
  %6288 = vperm.xlu0 %6287, %v5529
  %v6289 = vpop.permute.xlu0 %6288
  %6291 = vset.pattern.permute.xlu0 6
  %6292 = vperm.xlu0 %6291, %v5530
  %v6293 = vpop.permute.xlu0 %6292
  %6295 = vset.pattern.permute.xlu0 6
  %6296 = vperm.xlu0 %6295, %v5531
  %v6297 = vpop.permute.xlu0 %6296
  %6299 = vset.pattern.permute.xlu0 6
  %6300 = vperm.xlu0 %6299, %v5532
  %v6301 = vpop.permute.xlu0 %6300
  %6303 = vset.pattern.permute.xlu0 6
  %6304 = vperm.xlu0 %6303, %v5533
  %v6305 = vpop.permute.xlu0 %6304
  %6307 = vset.pattern.permute.xlu0 6
  %6308 = vperm.xlu0 %6307, %v5534
  %v6309 = vpop.permute.xlu0 %6308
  %6311 = vset.pattern.permute.xlu0 6
  %6312 = vperm.xlu0 %6311, %v5535
  %v6313 = vpop.permute.xlu0 %6312
  %v6315 = vmul.f32 %v6241, %v1430
  %v6316 = vmul.f32 %v6245, %v1431
  %v6317 = vmul.f32 %v6249, %v1432
  %v6318 = vmul.f32 %v6253, %v1433
  %v6319 = vmul.f32 %v6257, %v1434
  %v6320 = vmul.f32 %v6261, %v1435
  %v6321 = vmul.f32 %v6265, %v1436
  %v6322 = vmul.f32 %v6269, %v1437
  %v6323 = vmul.f32 %v6273, %v1438
  %v6324 = vmul.f32 %v6277, %v1439
  %v6325 = vmul.f32 %v6281, %v1440
  %v6326 = vmul.f32 %v6285, %v1441
  %v6327 = vmul.f32 %v6289, %v1442
  %v6328 = vmul.f32 %v6293, %v1443
  %v6329 = vmul.f32 %v6297, %v1444
  %v6330 = vmul.f32 %v6301, %v1445
  %v6331 = vmul.f32 %v6305, %v1446
  %v6332 = vmul.f32 %v6309, %v1447
  %v6333 = vmul.f32 %v6313, %v1448
  %v6334 = vadd.f32 %v6220, %v6315
  %v6335 = vadd.f32 %v6221, %v6316
  %v6336 = vadd.f32 %v6222, %v6317
  %v6337 = vadd.f32 %v6223, %v6318
  %v6338 = vadd.f32 %v6224, %v6319
  %v6339 = vadd.f32 %v6225, %v6320
  %v6340 = vadd.f32 %v6226, %v6321
  %v6341 = vadd.f32 %v6227, %v6322
  %v6342 = vadd.f32 %v6228, %v6323
  %v6343 = vadd.f32 %v6229, %v6324
  %v6344 = vadd.f32 %v6230, %v6325
  %v6345 = vadd.f32 %v6231, %v6326
  %v6346 = vadd.f32 %v6232, %v6327
  %v6347 = vadd.f32 %v6233, %v6328
  %v6348 = vadd.f32 %v6234, %v6329
  %v6349 = vadd.f32 %v6235, %v6330
  %v6350 = vadd.f32 %v6236, %v6331
  %v6351 = vadd.f32 %v6237, %v6332
  %v6352 = vadd.f32 %v6238, %v6333
  %6353 = vset.pattern.permute.xlu0 7
  %6354 = vperm.xlu0 %6353, %v5517
  %v6355 = vpop.permute.xlu0 %6354
  %6357 = vset.pattern.permute.xlu0 7
  %6358 = vperm.xlu0 %6357, %v5518
  %v6359 = vpop.permute.xlu0 %6358
  %6361 = vset.pattern.permute.xlu0 7
  %6362 = vperm.xlu0 %6361, %v5519
  %v6363 = vpop.permute.xlu0 %6362
  %6365 = vset.pattern.permute.xlu0 7
  %6366 = vperm.xlu0 %6365, %v5520
  %v6367 = vpop.permute.xlu0 %6366
  %6369 = vset.pattern.permute.xlu0 7
  %6370 = vperm.xlu0 %6369, %v5521
  %v6371 = vpop.permute.xlu0 %6370
  %6373 = vset.pattern.permute.xlu0 7
  %6374 = vperm.xlu0 %6373, %v5522
  %v6375 = vpop.permute.xlu0 %6374
  %6377 = vset.pattern.permute.xlu0 7
  %6378 = vperm.xlu0 %6377, %v5523
  %v6379 = vpop.permute.xlu0 %6378
  %6381 = vset.pattern.permute.xlu0 7
  %6382 = vperm.xlu0 %6381, %v5524
  %v6383 = vpop.permute.xlu0 %6382
  %6385 = vset.pattern.permute.xlu0 7
  %6386 = vperm.xlu0 %6385, %v5525
  %v6387 = vpop.permute.xlu0 %6386
  %6389 = vset.pattern.permute.xlu0 7
  %6390 = vperm.xlu0 %6389, %v5526
  %v6391 = vpop.permute.xlu0 %6390
  %6393 = vset.pattern.permute.xlu0 7
  %6394 = vperm.xlu0 %6393, %v5527
  %v6395 = vpop.permute.xlu0 %6394
  %6397 = vset.pattern.permute.xlu0 7
  %6398 = vperm.xlu0 %6397, %v5528
  %v6399 = vpop.permute.xlu0 %6398
  %6401 = vset.pattern.permute.xlu0 7
  %6402 = vperm.xlu0 %6401, %v5529
  %v6403 = vpop.permute.xlu0 %6402
  %6405 = vset.pattern.permute.xlu0 7
  %6406 = vperm.xlu0 %6405, %v5530
  %v6407 = vpop.permute.xlu0 %6406
  %6409 = vset.pattern.permute.xlu0 7
  %6410 = vperm.xlu0 %6409, %v5531
  %v6411 = vpop.permute.xlu0 %6410
  %6413 = vset.pattern.permute.xlu0 7
  %6414 = vperm.xlu0 %6413, %v5532
  %v6415 = vpop.permute.xlu0 %6414
  %6417 = vset.pattern.permute.xlu0 7
  %6418 = vperm.xlu0 %6417, %v5533
  %v6419 = vpop.permute.xlu0 %6418
  %6421 = vset.pattern.permute.xlu0 7
  %6422 = vperm.xlu0 %6421, %v5534
  %v6423 = vpop.permute.xlu0 %6422
  %6425 = vset.pattern.permute.xlu0 7
  %6426 = vperm.xlu0 %6425, %v5535
  %v6427 = vpop.permute.xlu0 %6426
  %v6429 = vmul.f32 %v6355, %v1564
  %v6430 = vmul.f32 %v6359, %v1565
  %v6431 = vmul.f32 %v6363, %v1566
  %v6432 = vmul.f32 %v6367, %v1567
  %v6433 = vmul.f32 %v6371, %v1568
  %v6434 = vmul.f32 %v6375, %v1569
  %v6435 = vmul.f32 %v6379, %v1570
  %v6436 = vmul.f32 %v6383, %v1571
  %v6437 = vmul.f32 %v6387, %v1572
  %v6438 = vmul.f32 %v6391, %v1573
  %v6439 = vmul.f32 %v6395, %v1574
  %v6440 = vmul.f32 %v6399, %v1575
  %v6441 = vmul.f32 %v6403, %v1576
  %v6442 = vmul.f32 %v6407, %v1577
  %v6443 = vmul.f32 %v6411, %v1578
  %v6444 = vmul.f32 %v6415, %v1579
  %v6445 = vmul.f32 %v6419, %v1580
  %v6446 = vmul.f32 %v6423, %v1581
  %v6447 = vmul.f32 %v6427, %v1582
  %v6448 = vadd.f32 %v6334, %v6429
  %v6449 = vadd.f32 %v6335, %v6430
  %v6450 = vadd.f32 %v6336, %v6431
  %v6451 = vadd.f32 %v6337, %v6432
  %v6452 = vadd.f32 %v6338, %v6433
  %v6453 = vadd.f32 %v6339, %v6434
  %v6454 = vadd.f32 %v6340, %v6435
  %v6455 = vadd.f32 %v6341, %v6436
  %v6456 = vadd.f32 %v6342, %v6437
  %v6457 = vadd.f32 %v6343, %v6438
  %v6458 = vadd.f32 %v6344, %v6439
  %v6459 = vadd.f32 %v6345, %v6440
  %v6460 = vadd.f32 %v6346, %v6441
  %v6461 = vadd.f32 %v6347, %v6442
  %v6462 = vadd.f32 %v6348, %v6443
  %v6463 = vadd.f32 %v6349, %v6444
  %v6464 = vadd.f32 %v6350, %v6445
  %v6465 = vadd.f32 %v6351, %v6446
  %v6466 = vadd.f32 %v6352, %v6447
  %6467 = vset.pattern.permute.xlu0 8
  %6468 = vperm.xlu0 %6467, %v5517
  %v6469 = vpop.permute.xlu0 %6468
  %6471 = vset.pattern.permute.xlu0 8
  %6472 = vperm.xlu0 %6471, %v5518
  %v6473 = vpop.permute.xlu0 %6472
  %6475 = vset.pattern.permute.xlu0 8
  %6476 = vperm.xlu0 %6475, %v5519
  %v6477 = vpop.permute.xlu0 %6476
  %6479 = vset.pattern.permute.xlu0 8
  %6480 = vperm.xlu0 %6479, %v5520
  %v6481 = vpop.permute.xlu0 %6480
  %6483 = vset.pattern.permute.xlu0 8
  %6484 = vperm.xlu0 %6483, %v5521
  %v6485 = vpop.permute.xlu0 %6484
  %6487 = vset.pattern.permute.xlu0 8
  %6488 = vperm.xlu0 %6487, %v5522
  %v6489 = vpop.permute.xlu0 %6488
  %6491 = vset.pattern.permute.xlu0 8
  %6492 = vperm.xlu0 %6491, %v5523
  %v6493 = vpop.permute.xlu0 %6492
  %6495 = vset.pattern.permute.xlu0 8
  %6496 = vperm.xlu0 %6495, %v5524
  %v6497 = vpop.permute.xlu0 %6496
  %6499 = vset.pattern.permute.xlu0 8
  %6500 = vperm.xlu0 %6499, %v5525
  %v6501 = vpop.permute.xlu0 %6500
  %6503 = vset.pattern.permute.xlu0 8
  %6504 = vperm.xlu0 %6503, %v5526
  %v6505 = vpop.permute.xlu0 %6504
  %6507 = vset.pattern.permute.xlu0 8
  %6508 = vperm.xlu0 %6507, %v5527
  %v6509 = vpop.permute.xlu0 %6508
  %6511 = vset.pattern.permute.xlu0 8
  %6512 = vperm.xlu0 %6511, %v5528
  %v6513 = vpop.permute.xlu0 %6512
  %6515 = vset.pattern.permute.xlu0 8
  %6516 = vperm.xlu0 %6515, %v5529
  %v6517 = vpop.permute.xlu0 %6516
  %6519 = vset.pattern.permute.xlu0 8
  %6520 = vperm.xlu0 %6519, %v5530
  %v6521 = vpop.permute.xlu0 %6520
  %6523 = vset.pattern.permute.xlu0 8
  %6524 = vperm.xlu0 %6523, %v5531
  %v6525 = vpop.permute.xlu0 %6524
  %6527 = vset.pattern.permute.xlu0 8
  %6528 = vperm.xlu0 %6527, %v5532
  %v6529 = vpop.permute.xlu0 %6528
  %6531 = vset.pattern.permute.xlu0 8
  %6532 = vperm.xlu0 %6531, %v5533
  %v6533 = vpop.permute.xlu0 %6532
  %6535 = vset.pattern.permute.xlu0 8
  %6536 = vperm.xlu0 %6535, %v5534
  %v6537 = vpop.permute.xlu0 %6536
  %6539 = vset.pattern.permute.xlu0 8
  %6540 = vperm.xlu0 %6539, %v5535
  %v6541 = vpop.permute.xlu0 %6540
  %v6543 = vmul.f32 %v6469, %v1698
  %v6544 = vmul.f32 %v6473, %v1699
  %v6545 = vmul.f32 %v6477, %v1700
  %v6546 = vmul.f32 %v6481, %v1701
  %v6547 = vmul.f32 %v6485, %v1702
  %v6548 = vmul.f32 %v6489, %v1703
  %v6549 = vmul.f32 %v6493, %v1704
  %v6550 = vmul.f32 %v6497, %v1705
  %v6551 = vmul.f32 %v6501, %v1706
  %v6552 = vmul.f32 %v6505, %v1707
  %v6553 = vmul.f32 %v6509, %v1708
  %v6554 = vmul.f32 %v6513, %v1709
  %v6555 = vmul.f32 %v6517, %v1710
  %v6556 = vmul.f32 %v6521, %v1711
  %v6557 = vmul.f32 %v6525, %v1712
  %v6558 = vmul.f32 %v6529, %v1713
  %v6559 = vmul.f32 %v6533, %v1714
  %v6560 = vmul.f32 %v6537, %v1715
  %v6561 = vmul.f32 %v6541, %v1716
  %v6562 = vadd.f32 %v6448, %v6543
  %v6563 = vadd.f32 %v6449, %v6544
  %v6564 = vadd.f32 %v6450, %v6545
  %v6565 = vadd.f32 %v6451, %v6546
  %v6566 = vadd.f32 %v6452, %v6547
  %v6567 = vadd.f32 %v6453, %v6548
  %v6568 = vadd.f32 %v6454, %v6549
  %v6569 = vadd.f32 %v6455, %v6550
  %v6570 = vadd.f32 %v6456, %v6551
  %v6571 = vadd.f32 %v6457, %v6552
  %v6572 = vadd.f32 %v6458, %v6553
  %v6573 = vadd.f32 %v6459, %v6554
  %v6574 = vadd.f32 %v6460, %v6555
  %v6575 = vadd.f32 %v6461, %v6556
  %v6576 = vadd.f32 %v6462, %v6557
  %v6577 = vadd.f32 %v6463, %v6558
  %v6578 = vadd.f32 %v6464, %v6559
  %v6579 = vadd.f32 %v6465, %v6560
  %v6580 = vadd.f32 %v6466, %v6561
  %6581 = vset.pattern.permute.xlu0 9
  %6582 = vperm.xlu0 %6581, %v5517
  %v6583 = vpop.permute.xlu0 %6582
  %6585 = vset.pattern.permute.xlu0 9
  %6586 = vperm.xlu0 %6585, %v5518
  %v6587 = vpop.permute.xlu0 %6586
  %6589 = vset.pattern.permute.xlu0 9
  %6590 = vperm.xlu0 %6589, %v5519
  %v6591 = vpop.permute.xlu0 %6590
  %6593 = vset.pattern.permute.xlu0 9
  %6594 = vperm.xlu0 %6593, %v5520
  %v6595 = vpop.permute.xlu0 %6594
  %6597 = vset.pattern.permute.xlu0 9
  %6598 = vperm.xlu0 %6597, %v5521
  %v6599 = vpop.permute.xlu0 %6598
  %6601 = vset.pattern.permute.xlu0 9
  %6602 = vperm.xlu0 %6601, %v5522
  %v6603 = vpop.permute.xlu0 %6602
  %6605 = vset.pattern.permute.xlu0 9
  %6606 = vperm.xlu0 %6605, %v5523
  %v6607 = vpop.permute.xlu0 %6606
  %6609 = vset.pattern.permute.xlu0 9
  %6610 = vperm.xlu0 %6609, %v5524
  %v6611 = vpop.permute.xlu0 %6610
  %6613 = vset.pattern.permute.xlu0 9
  %6614 = vperm.xlu0 %6613, %v5525
  %v6615 = vpop.permute.xlu0 %6614
  %6617 = vset.pattern.permute.xlu0 9
  %6618 = vperm.xlu0 %6617, %v5526
  %v6619 = vpop.permute.xlu0 %6618
  %6621 = vset.pattern.permute.xlu0 9
  %6622 = vperm.xlu0 %6621, %v5527
  %v6623 = vpop.permute.xlu0 %6622
  %6625 = vset.pattern.permute.xlu0 9
  %6626 = vperm.xlu0 %6625, %v5528
  %v6627 = vpop.permute.xlu0 %6626
  %6629 = vset.pattern.permute.xlu0 9
  %6630 = vperm.xlu0 %6629, %v5529
  %v6631 = vpop.permute.xlu0 %6630
  %6633 = vset.pattern.permute.xlu0 9
  %6634 = vperm.xlu0 %6633, %v5530
  %v6635 = vpop.permute.xlu0 %6634
  %6637 = vset.pattern.permute.xlu0 9
  %6638 = vperm.xlu0 %6637, %v5531
  %v6639 = vpop.permute.xlu0 %6638
  %6641 = vset.pattern.permute.xlu0 9
  %6642 = vperm.xlu0 %6641, %v5532
  %v6643 = vpop.permute.xlu0 %6642
  %6645 = vset.pattern.permute.xlu0 9
  %6646 = vperm.xlu0 %6645, %v5533
  %v6647 = vpop.permute.xlu0 %6646
  %6649 = vset.pattern.permute.xlu0 9
  %6650 = vperm.xlu0 %6649, %v5534
  %v6651 = vpop.permute.xlu0 %6650
  %6653 = vset.pattern.permute.xlu0 9
  %6654 = vperm.xlu0 %6653, %v5535
  %v6655 = vpop.permute.xlu0 %6654
  %v6657 = vmul.f32 %v6583, %v1832
  %v6658 = vmul.f32 %v6587, %v1833
  %v6659 = vmul.f32 %v6591, %v1834
  %v6660 = vmul.f32 %v6595, %v1835
  %v6661 = vmul.f32 %v6599, %v1836
  %v6662 = vmul.f32 %v6603, %v1837
  %v6663 = vmul.f32 %v6607, %v1838
  %v6664 = vmul.f32 %v6611, %v1839
  %v6665 = vmul.f32 %v6615, %v1840
  %v6666 = vmul.f32 %v6619, %v1841
  %v6667 = vmul.f32 %v6623, %v1842
  %v6668 = vmul.f32 %v6627, %v1843
  %v6669 = vmul.f32 %v6631, %v1844
  %v6670 = vmul.f32 %v6635, %v1845
  %v6671 = vmul.f32 %v6639, %v1846
  %v6672 = vmul.f32 %v6643, %v1847
  %v6673 = vmul.f32 %v6647, %v1848
  %v6674 = vmul.f32 %v6651, %v1849
  %v6675 = vmul.f32 %v6655, %v1850
  %v6676 = vadd.f32 %v6562, %v6657
  %v6677 = vadd.f32 %v6563, %v6658
  %v6678 = vadd.f32 %v6564, %v6659
  %v6679 = vadd.f32 %v6565, %v6660
  %v6680 = vadd.f32 %v6566, %v6661
  %v6681 = vadd.f32 %v6567, %v6662
  %v6682 = vadd.f32 %v6568, %v6663
  %v6683 = vadd.f32 %v6569, %v6664
  %v6684 = vadd.f32 %v6570, %v6665
  %v6685 = vadd.f32 %v6571, %v6666
  %v6686 = vadd.f32 %v6572, %v6667
  %v6687 = vadd.f32 %v6573, %v6668
  %v6688 = vadd.f32 %v6574, %v6669
  %v6689 = vadd.f32 %v6575, %v6670
  %v6690 = vadd.f32 %v6576, %v6671
  %v6691 = vadd.f32 %v6577, %v6672
  %v6692 = vadd.f32 %v6578, %v6673
  %v6693 = vadd.f32 %v6579, %v6674
  %v6694 = vadd.f32 %v6580, %v6675
  %6695 = vset.pattern.permute.xlu0 10
  %6696 = vperm.xlu0 %6695, %v5517
  %v6697 = vpop.permute.xlu0 %6696
  %6699 = vset.pattern.permute.xlu0 10
  %6700 = vperm.xlu0 %6699, %v5518
  %v6701 = vpop.permute.xlu0 %6700
  %6703 = vset.pattern.permute.xlu0 10
  %6704 = vperm.xlu0 %6703, %v5519
  %v6705 = vpop.permute.xlu0 %6704
  %6707 = vset.pattern.permute.xlu0 10
  %6708 = vperm.xlu0 %6707, %v5520
  %v6709 = vpop.permute.xlu0 %6708
  %6711 = vset.pattern.permute.xlu0 10
  %6712 = vperm.xlu0 %6711, %v5521
  %v6713 = vpop.permute.xlu0 %6712
  %6715 = vset.pattern.permute.xlu0 10
  %6716 = vperm.xlu0 %6715, %v5522
  %v6717 = vpop.permute.xlu0 %6716
  %6719 = vset.pattern.permute.xlu0 10
  %6720 = vperm.xlu0 %6719, %v5523
  %v6721 = vpop.permute.xlu0 %6720
  %6723 = vset.pattern.permute.xlu0 10
  %6724 = vperm.xlu0 %6723, %v5524
  %v6725 = vpop.permute.xlu0 %6724
  %6727 = vset.pattern.permute.xlu0 10
  %6728 = vperm.xlu0 %6727, %v5525
  %v6729 = vpop.permute.xlu0 %6728
  %6731 = vset.pattern.permute.xlu0 10
  %6732 = vperm.xlu0 %6731, %v5526
  %v6733 = vpop.permute.xlu0 %6732
  %6735 = vset.pattern.permute.xlu0 10
  %6736 = vperm.xlu0 %6735, %v5527
  %v6737 = vpop.permute.xlu0 %6736
  %6739 = vset.pattern.permute.xlu0 10
  %6740 = vperm.xlu0 %6739, %v5528
  %v6741 = vpop.permute.xlu0 %6740
  %6743 = vset.pattern.permute.xlu0 10
  %6744 = vperm.xlu0 %6743, %v5529
  %v6745 = vpop.permute.xlu0 %6744
  %6747 = vset.pattern.permute.xlu0 10
  %6748 = vperm.xlu0 %6747, %v5530
  %v6749 = vpop.permute.xlu0 %6748
  %6751 = vset.pattern.permute.xlu0 10
  %6752 = vperm.xlu0 %6751, %v5531
  %v6753 = vpop.permute.xlu0 %6752
  %6755 = vset.pattern.permute.xlu0 10
  %6756 = vperm.xlu0 %6755, %v5532
  %v6757 = vpop.permute.xlu0 %6756
  %6759 = vset.pattern.permute.xlu0 10
  %6760 = vperm.xlu0 %6759, %v5533
  %v6761 = vpop.permute.xlu0 %6760
  %6763 = vset.pattern.permute.xlu0 10
  %6764 = vperm.xlu0 %6763, %v5534
  %v6765 = vpop.permute.xlu0 %6764
  %6767 = vset.pattern.permute.xlu0 10
  %6768 = vperm.xlu0 %6767, %v5535
  %v6769 = vpop.permute.xlu0 %6768
  %v6771 = vmul.f32 %v6697, %v1966
  %v6772 = vmul.f32 %v6701, %v1967
  %v6773 = vmul.f32 %v6705, %v1968
  %v6774 = vmul.f32 %v6709, %v1969
  %v6775 = vmul.f32 %v6713, %v1970
  %v6776 = vmul.f32 %v6717, %v1971
  %v6777 = vmul.f32 %v6721, %v1972
  %v6778 = vmul.f32 %v6725, %v1973
  %v6779 = vmul.f32 %v6729, %v1974
  %v6780 = vmul.f32 %v6733, %v1975
  %v6781 = vmul.f32 %v6737, %v1976
  %v6782 = vmul.f32 %v6741, %v1977
  %v6783 = vmul.f32 %v6745, %v1978
  %v6784 = vmul.f32 %v6749, %v1979
  %v6785 = vmul.f32 %v6753, %v1980
  %v6786 = vmul.f32 %v6757, %v1981
  %v6787 = vmul.f32 %v6761, %v1982
  %v6788 = vmul.f32 %v6765, %v1983
  %v6789 = vmul.f32 %v6769, %v1984
  %v6790 = vadd.f32 %v6676, %v6771
  %v6791 = vadd.f32 %v6677, %v6772
  %v6792 = vadd.f32 %v6678, %v6773
  %v6793 = vadd.f32 %v6679, %v6774
  %v6794 = vadd.f32 %v6680, %v6775
  %v6795 = vadd.f32 %v6681, %v6776
  %v6796 = vadd.f32 %v6682, %v6777
  %v6797 = vadd.f32 %v6683, %v6778
  %v6798 = vadd.f32 %v6684, %v6779
  %v6799 = vadd.f32 %v6685, %v6780
  %v6800 = vadd.f32 %v6686, %v6781
  %v6801 = vadd.f32 %v6687, %v6782
  %v6802 = vadd.f32 %v6688, %v6783
  %v6803 = vadd.f32 %v6689, %v6784
  %v6804 = vadd.f32 %v6690, %v6785
  %v6805 = vadd.f32 %v6691, %v6786
  %v6806 = vadd.f32 %v6692, %v6787
  %v6807 = vadd.f32 %v6693, %v6788
  %v6808 = vadd.f32 %v6694, %v6789
  %6809 = vset.pattern.permute.xlu0 11
  %6810 = vperm.xlu0 %6809, %v5517
  %v6811 = vpop.permute.xlu0 %6810
  %6813 = vset.pattern.permute.xlu0 11
  %6814 = vperm.xlu0 %6813, %v5518
  %v6815 = vpop.permute.xlu0 %6814
  %6817 = vset.pattern.permute.xlu0 11
  %6818 = vperm.xlu0 %6817, %v5519
  %v6819 = vpop.permute.xlu0 %6818
  %6821 = vset.pattern.permute.xlu0 11
  %6822 = vperm.xlu0 %6821, %v5520
  %v6823 = vpop.permute.xlu0 %6822
  %6825 = vset.pattern.permute.xlu0 11
  %6826 = vperm.xlu0 %6825, %v5521
  %v6827 = vpop.permute.xlu0 %6826
  %6829 = vset.pattern.permute.xlu0 11
  %6830 = vperm.xlu0 %6829, %v5522
  %v6831 = vpop.permute.xlu0 %6830
  %6833 = vset.pattern.permute.xlu0 11
  %6834 = vperm.xlu0 %6833, %v5523
  %v6835 = vpop.permute.xlu0 %6834
  %6837 = vset.pattern.permute.xlu0 11
  %6838 = vperm.xlu0 %6837, %v5524
  %v6839 = vpop.permute.xlu0 %6838
  %6841 = vset.pattern.permute.xlu0 11
  %6842 = vperm.xlu0 %6841, %v5525
  %v6843 = vpop.permute.xlu0 %6842
  %6845 = vset.pattern.permute.xlu0 11
  %6846 = vperm.xlu0 %6845, %v5526
  %v6847 = vpop.permute.xlu0 %6846
  %6849 = vset.pattern.permute.xlu0 11
  %6850 = vperm.xlu0 %6849, %v5527
  %v6851 = vpop.permute.xlu0 %6850
  %6853 = vset.pattern.permute.xlu0 11
  %6854 = vperm.xlu0 %6853, %v5528
  %v6855 = vpop.permute.xlu0 %6854
  %6857 = vset.pattern.permute.xlu0 11
  %6858 = vperm.xlu0 %6857, %v5529
  %v6859 = vpop.permute.xlu0 %6858
  %6861 = vset.pattern.permute.xlu0 11
  %6862 = vperm.xlu0 %6861, %v5530
  %v6863 = vpop.permute.xlu0 %6862
  %6865 = vset.pattern.permute.xlu0 11
  %6866 = vperm.xlu0 %6865, %v5531
  %v6867 = vpop.permute.xlu0 %6866
  %6869 = vset.pattern.permute.xlu0 11
  %6870 = vperm.xlu0 %6869, %v5532
  %v6871 = vpop.permute.xlu0 %6870
  %6873 = vset.pattern.permute.xlu0 11
  %6874 = vperm.xlu0 %6873, %v5533
  %v6875 = vpop.permute.xlu0 %6874
  %6877 = vset.pattern.permute.xlu0 11
  %6878 = vperm.xlu0 %6877, %v5534
  %v6879 = vpop.permute.xlu0 %6878
  %6881 = vset.pattern.permute.xlu0 11
  %6882 = vperm.xlu0 %6881, %v5535
  %v6883 = vpop.permute.xlu0 %6882
  %v6885 = vmul.f32 %v6811, %v2100
  %v6886 = vmul.f32 %v6815, %v2101
  %v6887 = vmul.f32 %v6819, %v2102
  %v6888 = vmul.f32 %v6823, %v2103
  %v6889 = vmul.f32 %v6827, %v2104
  %v6890 = vmul.f32 %v6831, %v2105
  %v6891 = vmul.f32 %v6835, %v2106
  %v6892 = vmul.f32 %v6839, %v2107
  %v6893 = vmul.f32 %v6843, %v2108
  %v6894 = vmul.f32 %v6847, %v2109
  %v6895 = vmul.f32 %v6851, %v2110
  %v6896 = vmul.f32 %v6855, %v2111
  %v6897 = vmul.f32 %v6859, %v2112
  %v6898 = vmul.f32 %v6863, %v2113
  %v6899 = vmul.f32 %v6867, %v2114
  %v6900 = vmul.f32 %v6871, %v2115
  %v6901 = vmul.f32 %v6875, %v2116
  %v6902 = vmul.f32 %v6879, %v2117
  %v6903 = vmul.f32 %v6883, %v2118
  %v6904 = vadd.f32 %v6790, %v6885
  %v6905 = vadd.f32 %v6791, %v6886
  %v6906 = vadd.f32 %v6792, %v6887
  %v6907 = vadd.f32 %v6793, %v6888
  %v6908 = vadd.f32 %v6794, %v6889
  %v6909 = vadd.f32 %v6795, %v6890
  %v6910 = vadd.f32 %v6796, %v6891
  %v6911 = vadd.f32 %v6797, %v6892
  %v6912 = vadd.f32 %v6798, %v6893
  %v6913 = vadd.f32 %v6799, %v6894
  %v6914 = vadd.f32 %v6800, %v6895
  %v6915 = vadd.f32 %v6801, %v6896
  %v6916 = vadd.f32 %v6802, %v6897
  %v6917 = vadd.f32 %v6803, %v6898
  %v6918 = vadd.f32 %v6804, %v6899
  %v6919 = vadd.f32 %v6805, %v6900
  %v6920 = vadd.f32 %v6806, %v6901
  %v6921 = vadd.f32 %v6807, %v6902
  %v6922 = vadd.f32 %v6808, %v6903
  %6923 = vset.pattern.permute.xlu0 12
  %6924 = vperm.xlu0 %6923, %v5517
  %v6925 = vpop.permute.xlu0 %6924
  %6927 = vset.pattern.permute.xlu0 12
  %6928 = vperm.xlu0 %6927, %v5518
  %v6929 = vpop.permute.xlu0 %6928
  %6931 = vset.pattern.permute.xlu0 12
  %6932 = vperm.xlu0 %6931, %v5519
  %v6933 = vpop.permute.xlu0 %6932
  %6935 = vset.pattern.permute.xlu0 12
  %6936 = vperm.xlu0 %6935, %v5520
  %v6937 = vpop.permute.xlu0 %6936
  %6939 = vset.pattern.permute.xlu0 12
  %6940 = vperm.xlu0 %6939, %v5521
  %v6941 = vpop.permute.xlu0 %6940
  %6943 = vset.pattern.permute.xlu0 12
  %6944 = vperm.xlu0 %6943, %v5522
  %v6945 = vpop.permute.xlu0 %6944
  %6947 = vset.pattern.permute.xlu0 12
  %6948 = vperm.xlu0 %6947, %v5523
  %v6949 = vpop.permute.xlu0 %6948
  %6951 = vset.pattern.permute.xlu0 12
  %6952 = vperm.xlu0 %6951, %v5524
  %v6953 = vpop.permute.xlu0 %6952
  %6955 = vset.pattern.permute.xlu0 12
  %6956 = vperm.xlu0 %6955, %v5525
  %v6957 = vpop.permute.xlu0 %6956
  %6959 = vset.pattern.permute.xlu0 12
  %6960 = vperm.xlu0 %6959, %v5526
  %v6961 = vpop.permute.xlu0 %6960
  %6963 = vset.pattern.permute.xlu0 12
  %6964 = vperm.xlu0 %6963, %v5527
  %v6965 = vpop.permute.xlu0 %6964
  %6967 = vset.pattern.permute.xlu0 12
  %6968 = vperm.xlu0 %6967, %v5528
  %v6969 = vpop.permute.xlu0 %6968
  %6971 = vset.pattern.permute.xlu0 12
  %6972 = vperm.xlu0 %6971, %v5529
  %v6973 = vpop.permute.xlu0 %6972
  %6975 = vset.pattern.permute.xlu0 12
  %6976 = vperm.xlu0 %6975, %v5530
  %v6977 = vpop.permute.xlu0 %6976
  %6979 = vset.pattern.permute.xlu0 12
  %6980 = vperm.xlu0 %6979, %v5531
  %v6981 = vpop.permute.xlu0 %6980
  %6983 = vset.pattern.permute.xlu0 12
  %6984 = vperm.xlu0 %6983, %v5532
  %v6985 = vpop.permute.xlu0 %6984
  %6987 = vset.pattern.permute.xlu0 12
  %6988 = vperm.xlu0 %6987, %v5533
  %v6989 = vpop.permute.xlu0 %6988
  %6991 = vset.pattern.permute.xlu0 12
  %6992 = vperm.xlu0 %6991, %v5534
  %v6993 = vpop.permute.xlu0 %6992
  %6995 = vset.pattern.permute.xlu0 12
  %6996 = vperm.xlu0 %6995, %v5535
  %v6997 = vpop.permute.xlu0 %6996
  %v6999 = vmul.f32 %v6925, %v2234
  %v7000 = vmul.f32 %v6929, %v2235
  %v7001 = vmul.f32 %v6933, %v2236
  %v7002 = vmul.f32 %v6937, %v2237
  %v7003 = vmul.f32 %v6941, %v2238
  %v7004 = vmul.f32 %v6945, %v2239
  %v7005 = vmul.f32 %v6949, %v2240
  %v7006 = vmul.f32 %v6953, %v2241
  %v7007 = vmul.f32 %v6957, %v2242
  %v7008 = vmul.f32 %v6961, %v2243
  %v7009 = vmul.f32 %v6965, %v2244
  %v7010 = vmul.f32 %v6969, %v2245
  %v7011 = vmul.f32 %v6973, %v2246
  %v7012 = vmul.f32 %v6977, %v2247
  %v7013 = vmul.f32 %v6981, %v2248
  %v7014 = vmul.f32 %v6985, %v2249
  %v7015 = vmul.f32 %v6989, %v2250
  %v7016 = vmul.f32 %v6993, %v2251
  %v7017 = vmul.f32 %v6997, %v2252
  %v7018 = vadd.f32 %v6904, %v6999
  %v7019 = vadd.f32 %v6905, %v7000
  %v7020 = vadd.f32 %v6906, %v7001
  %v7021 = vadd.f32 %v6907, %v7002
  %v7022 = vadd.f32 %v6908, %v7003
  %v7023 = vadd.f32 %v6909, %v7004
  %v7024 = vadd.f32 %v6910, %v7005
  %v7025 = vadd.f32 %v6911, %v7006
  %v7026 = vadd.f32 %v6912, %v7007
  %v7027 = vadd.f32 %v6913, %v7008
  %v7028 = vadd.f32 %v6914, %v7009
  %v7029 = vadd.f32 %v6915, %v7010
  %v7030 = vadd.f32 %v6916, %v7011
  %v7031 = vadd.f32 %v6917, %v7012
  %v7032 = vadd.f32 %v6918, %v7013
  %v7033 = vadd.f32 %v6919, %v7014
  %v7034 = vadd.f32 %v6920, %v7015
  %v7035 = vadd.f32 %v6921, %v7016
  %v7036 = vadd.f32 %v6922, %v7017
  %7037 = vset.pattern.permute.xlu0 13
  %7038 = vperm.xlu0 %7037, %v5517
  %v7039 = vpop.permute.xlu0 %7038
  %7041 = vset.pattern.permute.xlu0 13
  %7042 = vperm.xlu0 %7041, %v5518
  %v7043 = vpop.permute.xlu0 %7042
  %7045 = vset.pattern.permute.xlu0 13
  %7046 = vperm.xlu0 %7045, %v5519
  %v7047 = vpop.permute.xlu0 %7046
  %7049 = vset.pattern.permute.xlu0 13
  %7050 = vperm.xlu0 %7049, %v5520
  %v7051 = vpop.permute.xlu0 %7050
  %7053 = vset.pattern.permute.xlu0 13
  %7054 = vperm.xlu0 %7053, %v5521
  %v7055 = vpop.permute.xlu0 %7054
  %7057 = vset.pattern.permute.xlu0 13
  %7058 = vperm.xlu0 %7057, %v5522
  %v7059 = vpop.permute.xlu0 %7058
  %7061 = vset.pattern.permute.xlu0 13
  %7062 = vperm.xlu0 %7061, %v5523
  %v7063 = vpop.permute.xlu0 %7062
  %7065 = vset.pattern.permute.xlu0 13
  %7066 = vperm.xlu0 %7065, %v5524
  %v7067 = vpop.permute.xlu0 %7066
  %7069 = vset.pattern.permute.xlu0 13
  %7070 = vperm.xlu0 %7069, %v5525
  %v7071 = vpop.permute.xlu0 %7070
  %7073 = vset.pattern.permute.xlu0 13
  %7074 = vperm.xlu0 %7073, %v5526
  %v7075 = vpop.permute.xlu0 %7074
  %7077 = vset.pattern.permute.xlu0 13
  %7078 = vperm.xlu0 %7077, %v5527
  %v7079 = vpop.permute.xlu0 %7078
  %7081 = vset.pattern.permute.xlu0 13
  %7082 = vperm.xlu0 %7081, %v5528
  %v7083 = vpop.permute.xlu0 %7082
  %7085 = vset.pattern.permute.xlu0 13
  %7086 = vperm.xlu0 %7085, %v5529
  %v7087 = vpop.permute.xlu0 %7086
  %7089 = vset.pattern.permute.xlu0 13
  %7090 = vperm.xlu0 %7089, %v5530
  %v7091 = vpop.permute.xlu0 %7090
  %7093 = vset.pattern.permute.xlu0 13
  %7094 = vperm.xlu0 %7093, %v5531
  %v7095 = vpop.permute.xlu0 %7094
  %7097 = vset.pattern.permute.xlu0 13
  %7098 = vperm.xlu0 %7097, %v5532
  %v7099 = vpop.permute.xlu0 %7098
  %7101 = vset.pattern.permute.xlu0 13
  %7102 = vperm.xlu0 %7101, %v5533
  %v7103 = vpop.permute.xlu0 %7102
  %7105 = vset.pattern.permute.xlu0 13
  %7106 = vperm.xlu0 %7105, %v5534
  %v7107 = vpop.permute.xlu0 %7106
  %7109 = vset.pattern.permute.xlu0 13
  %7110 = vperm.xlu0 %7109, %v5535
  %v7111 = vpop.permute.xlu0 %7110
  %v7113 = vmul.f32 %v7039, %v2368
  %v7114 = vmul.f32 %v7043, %v2369
  %v7115 = vmul.f32 %v7047, %v2370
  %v7116 = vmul.f32 %v7051, %v2371
  %v7117 = vmul.f32 %v7055, %v2372
  %v7118 = vmul.f32 %v7059, %v2373
  %v7119 = vmul.f32 %v7063, %v2374
  %v7120 = vmul.f32 %v7067, %v2375
  %v7121 = vmul.f32 %v7071, %v2376
  %v7122 = vmul.f32 %v7075, %v2377
  %v7123 = vmul.f32 %v7079, %v2378
  %v7124 = vmul.f32 %v7083, %v2379
  %v7125 = vmul.f32 %v7087, %v2380
  %v7126 = vmul.f32 %v7091, %v2381
  %v7127 = vmul.f32 %v7095, %v2382
  %v7128 = vmul.f32 %v7099, %v2383
  %v7129 = vmul.f32 %v7103, %v2384
  %v7130 = vmul.f32 %v7107, %v2385
  %v7131 = vmul.f32 %v7111, %v2386
  %v7132 = vadd.f32 %v7018, %v7113
  %v7133 = vadd.f32 %v7019, %v7114
  %v7134 = vadd.f32 %v7020, %v7115
  %v7135 = vadd.f32 %v7021, %v7116
  %v7136 = vadd.f32 %v7022, %v7117
  %v7137 = vadd.f32 %v7023, %v7118
  %v7138 = vadd.f32 %v7024, %v7119
  %v7139 = vadd.f32 %v7025, %v7120
  %v7140 = vadd.f32 %v7026, %v7121
  %v7141 = vadd.f32 %v7027, %v7122
  %v7142 = vadd.f32 %v7028, %v7123
  %v7143 = vadd.f32 %v7029, %v7124
  %v7144 = vadd.f32 %v7030, %v7125
  %v7145 = vadd.f32 %v7031, %v7126
  %v7146 = vadd.f32 %v7032, %v7127
  %v7147 = vadd.f32 %v7033, %v7128
  %v7148 = vadd.f32 %v7034, %v7129
  %v7149 = vadd.f32 %v7035, %v7130
  %v7150 = vadd.f32 %v7036, %v7131
  %7151 = vset.pattern.permute.xlu0 14
  %7152 = vperm.xlu0 %7151, %v5517
  %v7153 = vpop.permute.xlu0 %7152
  %7155 = vset.pattern.permute.xlu0 14
  %7156 = vperm.xlu0 %7155, %v5518
  %v7157 = vpop.permute.xlu0 %7156
  %7159 = vset.pattern.permute.xlu0 14
  %7160 = vperm.xlu0 %7159, %v5519
  %v7161 = vpop.permute.xlu0 %7160
  %7163 = vset.pattern.permute.xlu0 14
  %7164 = vperm.xlu0 %7163, %v5520
  %v7165 = vpop.permute.xlu0 %7164
  %7167 = vset.pattern.permute.xlu0 14
  %7168 = vperm.xlu0 %7167, %v5521
  %v7169 = vpop.permute.xlu0 %7168
  %7171 = vset.pattern.permute.xlu0 14
  %7172 = vperm.xlu0 %7171, %v5522
  %v7173 = vpop.permute.xlu0 %7172
  %7175 = vset.pattern.permute.xlu0 14
  %7176 = vperm.xlu0 %7175, %v5523
  %v7177 = vpop.permute.xlu0 %7176
  %7179 = vset.pattern.permute.xlu0 14
  %7180 = vperm.xlu0 %7179, %v5524
  %v7181 = vpop.permute.xlu0 %7180
  %7183 = vset.pattern.permute.xlu0 14
  %7184 = vperm.xlu0 %7183, %v5525
  %v7185 = vpop.permute.xlu0 %7184
  %7187 = vset.pattern.permute.xlu0 14
  %7188 = vperm.xlu0 %7187, %v5526
  %v7189 = vpop.permute.xlu0 %7188
  %7191 = vset.pattern.permute.xlu0 14
  %7192 = vperm.xlu0 %7191, %v5527
  %v7193 = vpop.permute.xlu0 %7192
  %7195 = vset.pattern.permute.xlu0 14
  %7196 = vperm.xlu0 %7195, %v5528
  %v7197 = vpop.permute.xlu0 %7196
  %7199 = vset.pattern.permute.xlu0 14
  %7200 = vperm.xlu0 %7199, %v5529
  %v7201 = vpop.permute.xlu0 %7200
  %7203 = vset.pattern.permute.xlu0 14
  %7204 = vperm.xlu0 %7203, %v5530
  %v7205 = vpop.permute.xlu0 %7204
  %7207 = vset.pattern.permute.xlu0 14
  %7208 = vperm.xlu0 %7207, %v5531
  %v7209 = vpop.permute.xlu0 %7208
  %7211 = vset.pattern.permute.xlu0 14
  %7212 = vperm.xlu0 %7211, %v5532
  %v7213 = vpop.permute.xlu0 %7212
  %7215 = vset.pattern.permute.xlu0 14
  %7216 = vperm.xlu0 %7215, %v5533
  %v7217 = vpop.permute.xlu0 %7216
  %7219 = vset.pattern.permute.xlu0 14
  %7220 = vperm.xlu0 %7219, %v5534
  %v7221 = vpop.permute.xlu0 %7220
  %7223 = vset.pattern.permute.xlu0 14
  %7224 = vperm.xlu0 %7223, %v5535
  %v7225 = vpop.permute.xlu0 %7224
  %v7227 = vmul.f32 %v7153, %v2502
  %v7228 = vmul.f32 %v7157, %v2503
  %v7229 = vmul.f32 %v7161, %v2504
  %v7230 = vmul.f32 %v7165, %v2505
  %v7231 = vmul.f32 %v7169, %v2506
  %v7232 = vmul.f32 %v7173, %v2507
  %v7233 = vmul.f32 %v7177, %v2508
  %v7234 = vmul.f32 %v7181, %v2509
  %v7235 = vmul.f32 %v7185, %v2510
  %v7236 = vmul.f32 %v7189, %v2511
  %v7237 = vmul.f32 %v7193, %v2512
  %v7238 = vmul.f32 %v7197, %v2513
  %v7239 = vmul.f32 %v7201, %v2514
  %v7240 = vmul.f32 %v7205, %v2515
  %v7241 = vmul.f32 %v7209, %v2516
  %v7242 = vmul.f32 %v7213, %v2517
  %v7243 = vmul.f32 %v7217, %v2518
  %v7244 = vmul.f32 %v7221, %v2519
  %v7245 = vmul.f32 %v7225, %v2520
  %v7246 = vadd.f32 %v7132, %v7227
  %v7247 = vadd.f32 %v7133, %v7228
  %v7248 = vadd.f32 %v7134, %v7229
  %v7249 = vadd.f32 %v7135, %v7230
  %v7250 = vadd.f32 %v7136, %v7231
  %v7251 = vadd.f32 %v7137, %v7232
  %v7252 = vadd.f32 %v7138, %v7233
  %v7253 = vadd.f32 %v7139, %v7234
  %v7254 = vadd.f32 %v7140, %v7235
  %v7255 = vadd.f32 %v7141, %v7236
  %v7256 = vadd.f32 %v7142, %v7237
  %v7257 = vadd.f32 %v7143, %v7238
  %v7258 = vadd.f32 %v7144, %v7239
  %v7259 = vadd.f32 %v7145, %v7240
  %v7260 = vadd.f32 %v7146, %v7241
  %v7261 = vadd.f32 %v7147, %v7242
  %v7262 = vadd.f32 %v7148, %v7243
  %v7263 = vadd.f32 %v7149, %v7244
  %v7264 = vadd.f32 %v7150, %v7245
  %7265 = vset.pattern.permute.xlu0 15
  %7266 = vperm.xlu0 %7265, %v5517
  %v7267 = vpop.permute.xlu0 %7266
  %7269 = vset.pattern.permute.xlu0 15
  %7270 = vperm.xlu0 %7269, %v5518
  %v7271 = vpop.permute.xlu0 %7270
  %7273 = vset.pattern.permute.xlu0 15
  %7274 = vperm.xlu0 %7273, %v5519
  %v7275 = vpop.permute.xlu0 %7274
  %7277 = vset.pattern.permute.xlu0 15
  %7278 = vperm.xlu0 %7277, %v5520
  %v7279 = vpop.permute.xlu0 %7278
  %7281 = vset.pattern.permute.xlu0 15
  %7282 = vperm.xlu0 %7281, %v5521
  %v7283 = vpop.permute.xlu0 %7282
  %7285 = vset.pattern.permute.xlu0 15
  %7286 = vperm.xlu0 %7285, %v5522
  %v7287 = vpop.permute.xlu0 %7286
  %7289 = vset.pattern.permute.xlu0 15
  %7290 = vperm.xlu0 %7289, %v5523
  %v7291 = vpop.permute.xlu0 %7290
  %7293 = vset.pattern.permute.xlu0 15
  %7294 = vperm.xlu0 %7293, %v5524
  %v7295 = vpop.permute.xlu0 %7294
  %7297 = vset.pattern.permute.xlu0 15
  %7298 = vperm.xlu0 %7297, %v5525
  %v7299 = vpop.permute.xlu0 %7298
  %7301 = vset.pattern.permute.xlu0 15
  %7302 = vperm.xlu0 %7301, %v5526
  %v7303 = vpop.permute.xlu0 %7302
  %7305 = vset.pattern.permute.xlu0 15
  %7306 = vperm.xlu0 %7305, %v5527
  %v7307 = vpop.permute.xlu0 %7306
  %7309 = vset.pattern.permute.xlu0 15
  %7310 = vperm.xlu0 %7309, %v5528
  %v7311 = vpop.permute.xlu0 %7310
  %7313 = vset.pattern.permute.xlu0 15
  %7314 = vperm.xlu0 %7313, %v5529
  %v7315 = vpop.permute.xlu0 %7314
  %7317 = vset.pattern.permute.xlu0 15
  %7318 = vperm.xlu0 %7317, %v5530
  %v7319 = vpop.permute.xlu0 %7318
  %7321 = vset.pattern.permute.xlu0 15
  %7322 = vperm.xlu0 %7321, %v5531
  %v7323 = vpop.permute.xlu0 %7322
  %7325 = vset.pattern.permute.xlu0 15
  %7326 = vperm.xlu0 %7325, %v5532
  %v7327 = vpop.permute.xlu0 %7326
  %7329 = vset.pattern.permute.xlu0 15
  %7330 = vperm.xlu0 %7329, %v5533
  %v7331 = vpop.permute.xlu0 %7330
  %7333 = vset.pattern.permute.xlu0 15
  %7334 = vperm.xlu0 %7333, %v5534
  %v7335 = vpop.permute.xlu0 %7334
  %7337 = vset.pattern.permute.xlu0 15
  %7338 = vperm.xlu0 %7337, %v5535
  %v7339 = vpop.permute.xlu0 %7338
  %v7341 = vmul.f32 %v7267, %v2636
  %v7342 = vmul.f32 %v7271, %v2637
  %v7343 = vmul.f32 %v7275, %v2638
  %v7344 = vmul.f32 %v7279, %v2639
  %v7345 = vmul.f32 %v7283, %v2640
  %v7346 = vmul.f32 %v7287, %v2641
  %v7347 = vmul.f32 %v7291, %v2642
  %v7348 = vmul.f32 %v7295, %v2643
  %v7349 = vmul.f32 %v7299, %v2644
  %v7350 = vmul.f32 %v7303, %v2645
  %v7351 = vmul.f32 %v7307, %v2646
  %v7352 = vmul.f32 %v7311, %v2647
  %v7353 = vmul.f32 %v7315, %v2648
  %v7354 = vmul.f32 %v7319, %v2649
  %v7355 = vmul.f32 %v7323, %v2650
  %v7356 = vmul.f32 %v7327, %v2651
  %v7357 = vmul.f32 %v7331, %v2652
  %v7358 = vmul.f32 %v7335, %v2653
  %v7359 = vmul.f32 %v7339, %v2654
  %v7360 = vadd.f32 %v7246, %v7341
  %v7361 = vadd.f32 %v7247, %v7342
  %v7362 = vadd.f32 %v7248, %v7343
  %v7363 = vadd.f32 %v7249, %v7344
  %v7364 = vadd.f32 %v7250, %v7345
  %v7365 = vadd.f32 %v7251, %v7346
  %v7366 = vadd.f32 %v7252, %v7347
  %v7367 = vadd.f32 %v7253, %v7348
  %v7368 = vadd.f32 %v7254, %v7349
  %v7369 = vadd.f32 %v7255, %v7350
  %v7370 = vadd.f32 %v7256, %v7351
  %v7371 = vadd.f32 %v7257, %v7352
  %v7372 = vadd.f32 %v7258, %v7353
  %v7373 = vadd.f32 %v7259, %v7354
  %v7374 = vadd.f32 %v7260, %v7355
  %v7375 = vadd.f32 %v7261, %v7356
  %v7376 = vadd.f32 %v7262, %v7357
  %v7377 = vadd.f32 %v7263, %v7358
  %v7378 = vadd.f32 %v7264, %v7359
  %7379 = vset.pattern.permute.xlu0 16
  %7380 = vperm.xlu0 %7379, %v5517
  %v7381 = vpop.permute.xlu0 %7380
  %7383 = vset.pattern.permute.xlu0 16
  %7384 = vperm.xlu0 %7383, %v5518
  %v7385 = vpop.permute.xlu0 %7384
  %7387 = vset.pattern.permute.xlu0 16
  %7388 = vperm.xlu0 %7387, %v5519
  %v7389 = vpop.permute.xlu0 %7388
  %7391 = vset.pattern.permute.xlu0 16
  %7392 = vperm.xlu0 %7391, %v5520
  %v7393 = vpop.permute.xlu0 %7392
  %7395 = vset.pattern.permute.xlu0 16
  %7396 = vperm.xlu0 %7395, %v5521
  %v7397 = vpop.permute.xlu0 %7396
  %7399 = vset.pattern.permute.xlu0 16
  %7400 = vperm.xlu0 %7399, %v5522
  %v7401 = vpop.permute.xlu0 %7400
  %7403 = vset.pattern.permute.xlu0 16
  %7404 = vperm.xlu0 %7403, %v5523
  %v7405 = vpop.permute.xlu0 %7404
  %7407 = vset.pattern.permute.xlu0 16
  %7408 = vperm.xlu0 %7407, %v5524
  %v7409 = vpop.permute.xlu0 %7408
  %7411 = vset.pattern.permute.xlu0 16
  %7412 = vperm.xlu0 %7411, %v5525
  %v7413 = vpop.permute.xlu0 %7412
  %7415 = vset.pattern.permute.xlu0 16
  %7416 = vperm.xlu0 %7415, %v5526
  %v7417 = vpop.permute.xlu0 %7416
  %7419 = vset.pattern.permute.xlu0 16
  %7420 = vperm.xlu0 %7419, %v5527
  %v7421 = vpop.permute.xlu0 %7420
  %7423 = vset.pattern.permute.xlu0 16
  %7424 = vperm.xlu0 %7423, %v5528
  %v7425 = vpop.permute.xlu0 %7424
  %7427 = vset.pattern.permute.xlu0 16
  %7428 = vperm.xlu0 %7427, %v5529
  %v7429 = vpop.permute.xlu0 %7428
  %7431 = vset.pattern.permute.xlu0 16
  %7432 = vperm.xlu0 %7431, %v5530
  %v7433 = vpop.permute.xlu0 %7432
  %7435 = vset.pattern.permute.xlu0 16
  %7436 = vperm.xlu0 %7435, %v5531
  %v7437 = vpop.permute.xlu0 %7436
  %7439 = vset.pattern.permute.xlu0 16
  %7440 = vperm.xlu0 %7439, %v5532
  %v7441 = vpop.permute.xlu0 %7440
  %7443 = vset.pattern.permute.xlu0 16
  %7444 = vperm.xlu0 %7443, %v5533
  %v7445 = vpop.permute.xlu0 %7444
  %7447 = vset.pattern.permute.xlu0 16
  %7448 = vperm.xlu0 %7447, %v5534
  %v7449 = vpop.permute.xlu0 %7448
  %7451 = vset.pattern.permute.xlu0 16
  %7452 = vperm.xlu0 %7451, %v5535
  %v7453 = vpop.permute.xlu0 %7452
  %v7455 = vmul.f32 %v7381, %v2770
  %v7456 = vmul.f32 %v7385, %v2771
  %v7457 = vmul.f32 %v7389, %v2772
  %v7458 = vmul.f32 %v7393, %v2773
  %v7459 = vmul.f32 %v7397, %v2774
  %v7460 = vmul.f32 %v7401, %v2775
  %v7461 = vmul.f32 %v7405, %v2776
  %v7462 = vmul.f32 %v7409, %v2777
  %v7463 = vmul.f32 %v7413, %v2778
  %v7464 = vmul.f32 %v7417, %v2779
  %v7465 = vmul.f32 %v7421, %v2780
  %v7466 = vmul.f32 %v7425, %v2781
  %v7467 = vmul.f32 %v7429, %v2782
  %v7468 = vmul.f32 %v7433, %v2783
  %v7469 = vmul.f32 %v7437, %v2784
  %v7470 = vmul.f32 %v7441, %v2785
  %v7471 = vmul.f32 %v7445, %v2786
  %v7472 = vmul.f32 %v7449, %v2787
  %v7473 = vmul.f32 %v7453, %v2788
  %v7474 = vadd.f32 %v7360, %v7455
  %v7475 = vadd.f32 %v7361, %v7456
  %v7476 = vadd.f32 %v7362, %v7457
  %v7477 = vadd.f32 %v7363, %v7458
  %v7478 = vadd.f32 %v7364, %v7459
  %v7479 = vadd.f32 %v7365, %v7460
  %v7480 = vadd.f32 %v7366, %v7461
  %v7481 = vadd.f32 %v7367, %v7462
  %v7482 = vadd.f32 %v7368, %v7463
  %v7483 = vadd.f32 %v7369, %v7464
  %v7484 = vadd.f32 %v7370, %v7465
  %v7485 = vadd.f32 %v7371, %v7466
  %v7486 = vadd.f32 %v7372, %v7467
  %v7487 = vadd.f32 %v7373, %v7468
  %v7488 = vadd.f32 %v7374, %v7469
  %v7489 = vadd.f32 %v7375, %v7470
  %v7490 = vadd.f32 %v7376, %v7471
  %v7491 = vadd.f32 %v7377, %v7472
  %v7492 = vadd.f32 %v7378, %v7473
  %7493 = vset.pattern.permute.xlu0 17
  %7494 = vperm.xlu0 %7493, %v5517
  %v7495 = vpop.permute.xlu0 %7494
  %7497 = vset.pattern.permute.xlu0 17
  %7498 = vperm.xlu0 %7497, %v5518
  %v7499 = vpop.permute.xlu0 %7498
  %7501 = vset.pattern.permute.xlu0 17
  %7502 = vperm.xlu0 %7501, %v5519
  %v7503 = vpop.permute.xlu0 %7502
  %7505 = vset.pattern.permute.xlu0 17
  %7506 = vperm.xlu0 %7505, %v5520
  %v7507 = vpop.permute.xlu0 %7506
  %7509 = vset.pattern.permute.xlu0 17
  %7510 = vperm.xlu0 %7509, %v5521
  %v7511 = vpop.permute.xlu0 %7510
  %7513 = vset.pattern.permute.xlu0 17
  %7514 = vperm.xlu0 %7513, %v5522
  %v7515 = vpop.permute.xlu0 %7514
  %7517 = vset.pattern.permute.xlu0 17
  %7518 = vperm.xlu0 %7517, %v5523
  %v7519 = vpop.permute.xlu0 %7518
  %7521 = vset.pattern.permute.xlu0 17
  %7522 = vperm.xlu0 %7521, %v5524
  %v7523 = vpop.permute.xlu0 %7522
  %7525 = vset.pattern.permute.xlu0 17
  %7526 = vperm.xlu0 %7525, %v5525
  %v7527 = vpop.permute.xlu0 %7526
  %7529 = vset.pattern.permute.xlu0 17
  %7530 = vperm.xlu0 %7529, %v5526
  %v7531 = vpop.permute.xlu0 %7530
  %7533 = vset.pattern.permute.xlu0 17
  %7534 = vperm.xlu0 %7533, %v5527
  %v7535 = vpop.permute.xlu0 %7534
  %7537 = vset.pattern.permute.xlu0 17
  %7538 = vperm.xlu0 %7537, %v5528
  %v7539 = vpop.permute.xlu0 %7538
  %7541 = vset.pattern.permute.xlu0 17
  %7542 = vperm.xlu0 %7541, %v5529
  %v7543 = vpop.permute.xlu0 %7542
  %7545 = vset.pattern.permute.xlu0 17
  %7546 = vperm.xlu0 %7545, %v5530
  %v7547 = vpop.permute.xlu0 %7546
  %7549 = vset.pattern.permute.xlu0 17
  %7550 = vperm.xlu0 %7549, %v5531
  %v7551 = vpop.permute.xlu0 %7550
  %7553 = vset.pattern.permute.xlu0 17
  %7554 = vperm.xlu0 %7553, %v5532
  %v7555 = vpop.permute.xlu0 %7554
  %7557 = vset.pattern.permute.xlu0 17
  %7558 = vperm.xlu0 %7557, %v5533
  %v7559 = vpop.permute.xlu0 %7558
  %7561 = vset.pattern.permute.xlu0 17
  %7562 = vperm.xlu0 %7561, %v5534
  %v7563 = vpop.permute.xlu0 %7562
  %7565 = vset.pattern.permute.xlu0 17
  %7566 = vperm.xlu0 %7565, %v5535
  %v7567 = vpop.permute.xlu0 %7566
  %v7569 = vmul.f32 %v7495, %v2904
  %v7570 = vmul.f32 %v7499, %v2905
  %v7571 = vmul.f32 %v7503, %v2906
  %v7572 = vmul.f32 %v7507, %v2907
  %v7573 = vmul.f32 %v7511, %v2908
  %v7574 = vmul.f32 %v7515, %v2909
  %v7575 = vmul.f32 %v7519, %v2910
  %v7576 = vmul.f32 %v7523, %v2911
  %v7577 = vmul.f32 %v7527, %v2912
  %v7578 = vmul.f32 %v7531, %v2913
  %v7579 = vmul.f32 %v7535, %v2914
  %v7580 = vmul.f32 %v7539, %v2915
  %v7581 = vmul.f32 %v7543, %v2916
  %v7582 = vmul.f32 %v7547, %v2917
  %v7583 = vmul.f32 %v7551, %v2918
  %v7584 = vmul.f32 %v7555, %v2919
  %v7585 = vmul.f32 %v7559, %v2920
  %v7586 = vmul.f32 %v7563, %v2921
  %v7587 = vmul.f32 %v7567, %v2922
  %v7588 = vadd.f32 %v7474, %v7569
  %v7589 = vadd.f32 %v7475, %v7570
  %v7590 = vadd.f32 %v7476, %v7571
  %v7591 = vadd.f32 %v7477, %v7572
  %v7592 = vadd.f32 %v7478, %v7573
  %v7593 = vadd.f32 %v7479, %v7574
  %v7594 = vadd.f32 %v7480, %v7575
  %v7595 = vadd.f32 %v7481, %v7576
  %v7596 = vadd.f32 %v7482, %v7577
  %v7597 = vadd.f32 %v7483, %v7578
  %v7598 = vadd.f32 %v7484, %v7579
  %v7599 = vadd.f32 %v7485, %v7580
  %v7600 = vadd.f32 %v7486, %v7581
  %v7601 = vadd.f32 %v7487, %v7582
  %v7602 = vadd.f32 %v7488, %v7583
  %v7603 = vadd.f32 %v7489, %v7584
  %v7604 = vadd.f32 %v7490, %v7585
  %v7605 = vadd.f32 %v7491, %v7586
  %v7606 = vadd.f32 %v7492, %v7587
  %7607 = vset.pattern.permute.xlu0 18
  %7608 = vperm.xlu0 %7607, %v5517
  %v7609 = vpop.permute.xlu0 %7608
  %7611 = vset.pattern.permute.xlu0 18
  %7612 = vperm.xlu0 %7611, %v5518
  %v7613 = vpop.permute.xlu0 %7612
  %7615 = vset.pattern.permute.xlu0 18
  %7616 = vperm.xlu0 %7615, %v5519
  %v7617 = vpop.permute.xlu0 %7616
  %7619 = vset.pattern.permute.xlu0 18
  %7620 = vperm.xlu0 %7619, %v5520
  %v7621 = vpop.permute.xlu0 %7620
  %7623 = vset.pattern.permute.xlu0 18
  %7624 = vperm.xlu0 %7623, %v5521
  %v7625 = vpop.permute.xlu0 %7624
  %7627 = vset.pattern.permute.xlu0 18
  %7628 = vperm.xlu0 %7627, %v5522
  %v7629 = vpop.permute.xlu0 %7628
  %7631 = vset.pattern.permute.xlu0 18
  %7632 = vperm.xlu0 %7631, %v5523
  %v7633 = vpop.permute.xlu0 %7632
  %7635 = vset.pattern.permute.xlu0 18
  %7636 = vperm.xlu0 %7635, %v5524
  %v7637 = vpop.permute.xlu0 %7636
  %7639 = vset.pattern.permute.xlu0 18
  %7640 = vperm.xlu0 %7639, %v5525
  %v7641 = vpop.permute.xlu0 %7640
  %7643 = vset.pattern.permute.xlu0 18
  %7644 = vperm.xlu0 %7643, %v5526
  %v7645 = vpop.permute.xlu0 %7644
  %7647 = vset.pattern.permute.xlu0 18
  %7648 = vperm.xlu0 %7647, %v5527
  %v7649 = vpop.permute.xlu0 %7648
  %7651 = vset.pattern.permute.xlu0 18
  %7652 = vperm.xlu0 %7651, %v5528
  %v7653 = vpop.permute.xlu0 %7652
  %7655 = vset.pattern.permute.xlu0 18
  %7656 = vperm.xlu0 %7655, %v5529
  %v7657 = vpop.permute.xlu0 %7656
  %7659 = vset.pattern.permute.xlu0 18
  %7660 = vperm.xlu0 %7659, %v5530
  %v7661 = vpop.permute.xlu0 %7660
  %7663 = vset.pattern.permute.xlu0 18
  %7664 = vperm.xlu0 %7663, %v5531
  %v7665 = vpop.permute.xlu0 %7664
  %7667 = vset.pattern.permute.xlu0 18
  %7668 = vperm.xlu0 %7667, %v5532
  %v7669 = vpop.permute.xlu0 %7668
  %7671 = vset.pattern.permute.xlu0 18
  %7672 = vperm.xlu0 %7671, %v5533
  %v7673 = vpop.permute.xlu0 %7672
  %7675 = vset.pattern.permute.xlu0 18
  %7676 = vperm.xlu0 %7675, %v5534
  %v7677 = vpop.permute.xlu0 %7676
  %7679 = vset.pattern.permute.xlu0 18
  %7680 = vperm.xlu0 %7679, %v5535
  %v7681 = vpop.permute.xlu0 %7680
  %v7683 = vmul.f32 %v7609, %v3038
  %v7684 = vmul.f32 %v7613, %v3039
  %v7685 = vmul.f32 %v7617, %v3040
  %v7686 = vmul.f32 %v7621, %v3041
  %v7687 = vmul.f32 %v7625, %v3042
  %v7688 = vmul.f32 %v7629, %v3043
  %v7689 = vmul.f32 %v7633, %v3044
  %v7690 = vmul.f32 %v7637, %v3045
  %v7691 = vmul.f32 %v7641, %v3046
  %v7692 = vmul.f32 %v7645, %v3047
  %v7693 = vmul.f32 %v7649, %v3048
  %v7694 = vmul.f32 %v7653, %v3049
  %v7695 = vmul.f32 %v7657, %v3050
  %v7696 = vmul.f32 %v7661, %v3051
  %v7697 = vmul.f32 %v7665, %v3052
  %v7698 = vmul.f32 %v7669, %v3053
  %v7699 = vmul.f32 %v7673, %v3054
  %v7700 = vmul.f32 %v7677, %v3055
  %v7701 = vmul.f32 %v7681, %v3056
  %v7702 = vadd.f32 %v7588, %v7683
  %v7703 = vadd.f32 %v7589, %v7684
  %v7704 = vadd.f32 %v7590, %v7685
  %v7705 = vadd.f32 %v7591, %v7686
  %v7706 = vadd.f32 %v7592, %v7687
  %v7707 = vadd.f32 %v7593, %v7688
  %v7708 = vadd.f32 %v7594, %v7689
  %v7709 = vadd.f32 %v7595, %v7690
  %v7710 = vadd.f32 %v7596, %v7691
  %v7711 = vadd.f32 %v7597, %v7692
  %v7712 = vadd.f32 %v7598, %v7693
  %v7713 = vadd.f32 %v7599, %v7694
  %v7714 = vadd.f32 %v7600, %v7695
  %v7715 = vadd.f32 %v7601, %v7696
  %v7716 = vadd.f32 %v7602, %v7697
  %v7717 = vadd.f32 %v7603, %v7698
  %v7718 = vadd.f32 %v7604, %v7699
  %v7719 = vadd.f32 %v7605, %v7700
  %v7720 = vadd.f32 %v7606, %v7701
  %7721 = vset.pattern.permute.xlu0 19
  %7722 = vperm.xlu0 %7721, %v5517
  %v7723 = vpop.permute.xlu0 %7722
  %7725 = vset.pattern.permute.xlu0 19
  %7726 = vperm.xlu0 %7725, %v5518
  %v7727 = vpop.permute.xlu0 %7726
  %7729 = vset.pattern.permute.xlu0 19
  %7730 = vperm.xlu0 %7729, %v5519
  %v7731 = vpop.permute.xlu0 %7730
  %7733 = vset.pattern.permute.xlu0 19
  %7734 = vperm.xlu0 %7733, %v5520
  %v7735 = vpop.permute.xlu0 %7734
  %7737 = vset.pattern.permute.xlu0 19
  %7738 = vperm.xlu0 %7737, %v5521
  %v7739 = vpop.permute.xlu0 %7738
  %7741 = vset.pattern.permute.xlu0 19
  %7742 = vperm.xlu0 %7741, %v5522
  %v7743 = vpop.permute.xlu0 %7742
  %7745 = vset.pattern.permute.xlu0 19
  %7746 = vperm.xlu0 %7745, %v5523
  %v7747 = vpop.permute.xlu0 %7746
  %7749 = vset.pattern.permute.xlu0 19
  %7750 = vperm.xlu0 %7749, %v5524
  %v7751 = vpop.permute.xlu0 %7750
  %7753 = vset.pattern.permute.xlu0 19
  %7754 = vperm.xlu0 %7753, %v5525
  %v7755 = vpop.permute.xlu0 %7754
  %7757 = vset.pattern.permute.xlu0 19
  %7758 = vperm.xlu0 %7757, %v5526
  %v7759 = vpop.permute.xlu0 %7758
  %7761 = vset.pattern.permute.xlu0 19
  %7762 = vperm.xlu0 %7761, %v5527
  %v7763 = vpop.permute.xlu0 %7762
  %7765 = vset.pattern.permute.xlu0 19
  %7766 = vperm.xlu0 %7765, %v5528
  %v7767 = vpop.permute.xlu0 %7766
  %7769 = vset.pattern.permute.xlu0 19
  %7770 = vperm.xlu0 %7769, %v5529
  %v7771 = vpop.permute.xlu0 %7770
  %7773 = vset.pattern.permute.xlu0 19
  %7774 = vperm.xlu0 %7773, %v5530
  %v7775 = vpop.permute.xlu0 %7774
  %7777 = vset.pattern.permute.xlu0 19
  %7778 = vperm.xlu0 %7777, %v5531
  %v7779 = vpop.permute.xlu0 %7778
  %7781 = vset.pattern.permute.xlu0 19
  %7782 = vperm.xlu0 %7781, %v5532
  %v7783 = vpop.permute.xlu0 %7782
  %7785 = vset.pattern.permute.xlu0 19
  %7786 = vperm.xlu0 %7785, %v5533
  %v7787 = vpop.permute.xlu0 %7786
  %7789 = vset.pattern.permute.xlu0 19
  %7790 = vperm.xlu0 %7789, %v5534
  %v7791 = vpop.permute.xlu0 %7790
  %7793 = vset.pattern.permute.xlu0 19
  %7794 = vperm.xlu0 %7793, %v5535
  %v7795 = vpop.permute.xlu0 %7794
  %v7797 = vmul.f32 %v7723, %v3172
  %v7798 = vmul.f32 %v7727, %v3173
  %v7799 = vmul.f32 %v7731, %v3174
  %v7800 = vmul.f32 %v7735, %v3175
  %v7801 = vmul.f32 %v7739, %v3176
  %v7802 = vmul.f32 %v7743, %v3177
  %v7803 = vmul.f32 %v7747, %v3178
  %v7804 = vmul.f32 %v7751, %v3179
  %v7805 = vmul.f32 %v7755, %v3180
  %v7806 = vmul.f32 %v7759, %v3181
  %v7807 = vmul.f32 %v7763, %v3182
  %v7808 = vmul.f32 %v7767, %v3183
  %v7809 = vmul.f32 %v7771, %v3184
  %v7810 = vmul.f32 %v7775, %v3185
  %v7811 = vmul.f32 %v7779, %v3186
  %v7812 = vmul.f32 %v7783, %v3187
  %v7813 = vmul.f32 %v7787, %v3188
  %v7814 = vmul.f32 %v7791, %v3189
  %v7815 = vmul.f32 %v7795, %v3190
  %v7816 = vadd.f32 %v7702, %v7797
  %v7817 = vadd.f32 %v7703, %v7798
  %v7818 = vadd.f32 %v7704, %v7799
  %v7819 = vadd.f32 %v7705, %v7800
  %v7820 = vadd.f32 %v7706, %v7801
  %v7821 = vadd.f32 %v7707, %v7802
  %v7822 = vadd.f32 %v7708, %v7803
  %v7823 = vadd.f32 %v7709, %v7804
  %v7824 = vadd.f32 %v7710, %v7805
  %v7825 = vadd.f32 %v7711, %v7806
  %v7826 = vadd.f32 %v7712, %v7807
  %v7827 = vadd.f32 %v7713, %v7808
  %v7828 = vadd.f32 %v7714, %v7809
  %v7829 = vadd.f32 %v7715, %v7810
  %v7830 = vadd.f32 %v7716, %v7811
  %v7831 = vadd.f32 %v7717, %v7812
  %v7832 = vadd.f32 %v7718, %v7813
  %v7833 = vadd.f32 %v7719, %v7814
  %v7834 = vadd.f32 %v7720, %v7815
  %7835 = vset.pattern.permute.xlu0 20
  %7836 = vperm.xlu0 %7835, %v5517
  %v7837 = vpop.permute.xlu0 %7836
  %7839 = vset.pattern.permute.xlu0 20
  %7840 = vperm.xlu0 %7839, %v5518
  %v7841 = vpop.permute.xlu0 %7840
  %7843 = vset.pattern.permute.xlu0 20
  %7844 = vperm.xlu0 %7843, %v5519
  %v7845 = vpop.permute.xlu0 %7844
  %7847 = vset.pattern.permute.xlu0 20
  %7848 = vperm.xlu0 %7847, %v5520
  %v7849 = vpop.permute.xlu0 %7848
  %7851 = vset.pattern.permute.xlu0 20
  %7852 = vperm.xlu0 %7851, %v5521
  %v7853 = vpop.permute.xlu0 %7852
  %7855 = vset.pattern.permute.xlu0 20
  %7856 = vperm.xlu0 %7855, %v5522
  %v7857 = vpop.permute.xlu0 %7856
  %7859 = vset.pattern.permute.xlu0 20
  %7860 = vperm.xlu0 %7859, %v5523
  %v7861 = vpop.permute.xlu0 %7860
  %7863 = vset.pattern.permute.xlu0 20
  %7864 = vperm.xlu0 %7863, %v5524
  %v7865 = vpop.permute.xlu0 %7864
  %7867 = vset.pattern.permute.xlu0 20
  %7868 = vperm.xlu0 %7867, %v5525
  %v7869 = vpop.permute.xlu0 %7868
  %7871 = vset.pattern.permute.xlu0 20
  %7872 = vperm.xlu0 %7871, %v5526
  %v7873 = vpop.permute.xlu0 %7872
  %7875 = vset.pattern.permute.xlu0 20
  %7876 = vperm.xlu0 %7875, %v5527
  %v7877 = vpop.permute.xlu0 %7876
  %7879 = vset.pattern.permute.xlu0 20
  %7880 = vperm.xlu0 %7879, %v5528
  %v7881 = vpop.permute.xlu0 %7880
  %7883 = vset.pattern.permute.xlu0 20
  %7884 = vperm.xlu0 %7883, %v5529
  %v7885 = vpop.permute.xlu0 %7884
  %7887 = vset.pattern.permute.xlu0 20
  %7888 = vperm.xlu0 %7887, %v5530
  %v7889 = vpop.permute.xlu0 %7888
  %7891 = vset.pattern.permute.xlu0 20
  %7892 = vperm.xlu0 %7891, %v5531
  %v7893 = vpop.permute.xlu0 %7892
  %7895 = vset.pattern.permute.xlu0 20
  %7896 = vperm.xlu0 %7895, %v5532
  %v7897 = vpop.permute.xlu0 %7896
  %7899 = vset.pattern.permute.xlu0 20
  %7900 = vperm.xlu0 %7899, %v5533
  %v7901 = vpop.permute.xlu0 %7900
  %7903 = vset.pattern.permute.xlu0 20
  %7904 = vperm.xlu0 %7903, %v5534
  %v7905 = vpop.permute.xlu0 %7904
  %7907 = vset.pattern.permute.xlu0 20
  %7908 = vperm.xlu0 %7907, %v5535
  %v7909 = vpop.permute.xlu0 %7908
  %v7911 = vmul.f32 %v7837, %v3306
  %v7912 = vmul.f32 %v7841, %v3307
  %v7913 = vmul.f32 %v7845, %v3308
  %v7914 = vmul.f32 %v7849, %v3309
  %v7915 = vmul.f32 %v7853, %v3310
  %v7916 = vmul.f32 %v7857, %v3311
  %v7917 = vmul.f32 %v7861, %v3312
  %v7918 = vmul.f32 %v7865, %v3313
  %v7919 = vmul.f32 %v7869, %v3314
  %v7920 = vmul.f32 %v7873, %v3315
  %v7921 = vmul.f32 %v7877, %v3316
  %v7922 = vmul.f32 %v7881, %v3317
  %v7923 = vmul.f32 %v7885, %v3318
  %v7924 = vmul.f32 %v7889, %v3319
  %v7925 = vmul.f32 %v7893, %v3320
  %v7926 = vmul.f32 %v7897, %v3321
  %v7927 = vmul.f32 %v7901, %v3322
  %v7928 = vmul.f32 %v7905, %v3323
  %v7929 = vmul.f32 %v7909, %v3324
  %v7930 = vadd.f32 %v7816, %v7911
  %v7931 = vadd.f32 %v7817, %v7912
  %v7932 = vadd.f32 %v7818, %v7913
  %v7933 = vadd.f32 %v7819, %v7914
  %v7934 = vadd.f32 %v7820, %v7915
  %v7935 = vadd.f32 %v7821, %v7916
  %v7936 = vadd.f32 %v7822, %v7917
  %v7937 = vadd.f32 %v7823, %v7918
  %v7938 = vadd.f32 %v7824, %v7919
  %v7939 = vadd.f32 %v7825, %v7920
  %v7940 = vadd.f32 %v7826, %v7921
  %v7941 = vadd.f32 %v7827, %v7922
  %v7942 = vadd.f32 %v7828, %v7923
  %v7943 = vadd.f32 %v7829, %v7924
  %v7944 = vadd.f32 %v7830, %v7925
  %v7945 = vadd.f32 %v7831, %v7926
  %v7946 = vadd.f32 %v7832, %v7927
  %v7947 = vadd.f32 %v7833, %v7928
  %v7948 = vadd.f32 %v7834, %v7929
  %7949 = vset.pattern.permute.xlu0 21
  %7950 = vperm.xlu0 %7949, %v5517
  %v7951 = vpop.permute.xlu0 %7950
  %7953 = vset.pattern.permute.xlu0 21
  %7954 = vperm.xlu0 %7953, %v5518
  %v7955 = vpop.permute.xlu0 %7954
  %7957 = vset.pattern.permute.xlu0 21
  %7958 = vperm.xlu0 %7957, %v5519
  %v7959 = vpop.permute.xlu0 %7958
  %7961 = vset.pattern.permute.xlu0 21
  %7962 = vperm.xlu0 %7961, %v5520
  %v7963 = vpop.permute.xlu0 %7962
  %7965 = vset.pattern.permute.xlu0 21
  %7966 = vperm.xlu0 %7965, %v5521
  %v7967 = vpop.permute.xlu0 %7966
  %7969 = vset.pattern.permute.xlu0 21
  %7970 = vperm.xlu0 %7969, %v5522
  %v7971 = vpop.permute.xlu0 %7970
  %7973 = vset.pattern.permute.xlu0 21
  %7974 = vperm.xlu0 %7973, %v5523
  %v7975 = vpop.permute.xlu0 %7974
  %7977 = vset.pattern.permute.xlu0 21
  %7978 = vperm.xlu0 %7977, %v5524
  %v7979 = vpop.permute.xlu0 %7978
  %7981 = vset.pattern.permute.xlu0 21
  %7982 = vperm.xlu0 %7981, %v5525
  %v7983 = vpop.permute.xlu0 %7982
  %7985 = vset.pattern.permute.xlu0 21
  %7986 = vperm.xlu0 %7985, %v5526
  %v7987 = vpop.permute.xlu0 %7986
  %7989 = vset.pattern.permute.xlu0 21
  %7990 = vperm.xlu0 %7989, %v5527
  %v7991 = vpop.permute.xlu0 %7990
  %7993 = vset.pattern.permute.xlu0 21
  %7994 = vperm.xlu0 %7993, %v5528
  %v7995 = vpop.permute.xlu0 %7994
  %7997 = vset.pattern.permute.xlu0 21
  %7998 = vperm.xlu0 %7997, %v5529
  %v7999 = vpop.permute.xlu0 %7998
  %8001 = vset.pattern.permute.xlu0 21
  %8002 = vperm.xlu0 %8001, %v5530
  %v8003 = vpop.permute.xlu0 %8002
  %8005 = vset.pattern.permute.xlu0 21
  %8006 = vperm.xlu0 %8005, %v5531
  %v8007 = vpop.permute.xlu0 %8006
  %8009 = vset.pattern.permute.xlu0 21
  %8010 = vperm.xlu0 %8009, %v5532
  %v8011 = vpop.permute.xlu0 %8010
  %8013 = vset.pattern.permute.xlu0 21
  %8014 = vperm.xlu0 %8013, %v5533
  %v8015 = vpop.permute.xlu0 %8014
  %8017 = vset.pattern.permute.xlu0 21
  %8018 = vperm.xlu0 %8017, %v5534
  %v8019 = vpop.permute.xlu0 %8018
  %8021 = vset.pattern.permute.xlu0 21
  %8022 = vperm.xlu0 %8021, %v5535
  %v8023 = vpop.permute.xlu0 %8022
  %v8025 = vmul.f32 %v7951, %v3440
  %v8026 = vmul.f32 %v7955, %v3441
  %v8027 = vmul.f32 %v7959, %v3442
  %v8028 = vmul.f32 %v7963, %v3443
  %v8029 = vmul.f32 %v7967, %v3444
  %v8030 = vmul.f32 %v7971, %v3445
  %v8031 = vmul.f32 %v7975, %v3446
  %v8032 = vmul.f32 %v7979, %v3447
  %v8033 = vmul.f32 %v7983, %v3448
  %v8034 = vmul.f32 %v7987, %v3449
  %v8035 = vmul.f32 %v7991, %v3450
  %v8036 = vmul.f32 %v7995, %v3451
  %v8037 = vmul.f32 %v7999, %v3452
  %v8038 = vmul.f32 %v8003, %v3453
  %v8039 = vmul.f32 %v8007, %v3454
  %v8040 = vmul.f32 %v8011, %v3455
  %v8041 = vmul.f32 %v8015, %v3456
  %v8042 = vmul.f32 %v8019, %v3457
  %v8043 = vmul.f32 %v8023, %v3458
  %v8044 = vadd.f32 %v7930, %v8025
  %v8045 = vadd.f32 %v7931, %v8026
  %v8046 = vadd.f32 %v7932, %v8027
  %v8047 = vadd.f32 %v7933, %v8028
  %v8048 = vadd.f32 %v7934, %v8029
  %v8049 = vadd.f32 %v7935, %v8030
  %v8050 = vadd.f32 %v7936, %v8031
  %v8051 = vadd.f32 %v7937, %v8032
  %v8052 = vadd.f32 %v7938, %v8033
  %v8053 = vadd.f32 %v7939, %v8034
  %v8054 = vadd.f32 %v7940, %v8035
  %v8055 = vadd.f32 %v7941, %v8036
  %v8056 = vadd.f32 %v7942, %v8037
  %v8057 = vadd.f32 %v7943, %v8038
  %v8058 = vadd.f32 %v7944, %v8039
  %v8059 = vadd.f32 %v7945, %v8040
  %v8060 = vadd.f32 %v7946, %v8041
  %v8061 = vadd.f32 %v7947, %v8042
  %v8062 = vadd.f32 %v7948, %v8043
  %8063 = vset.pattern.permute.xlu0 22
  %8064 = vperm.xlu0 %8063, %v5517
  %v8065 = vpop.permute.xlu0 %8064
  %8067 = vset.pattern.permute.xlu0 22
  %8068 = vperm.xlu0 %8067, %v5518
  %v8069 = vpop.permute.xlu0 %8068
  %8071 = vset.pattern.permute.xlu0 22
  %8072 = vperm.xlu0 %8071, %v5519
  %v8073 = vpop.permute.xlu0 %8072
  %8075 = vset.pattern.permute.xlu0 22
  %8076 = vperm.xlu0 %8075, %v5520
  %v8077 = vpop.permute.xlu0 %8076
  %8079 = vset.pattern.permute.xlu0 22
  %8080 = vperm.xlu0 %8079, %v5521
  %v8081 = vpop.permute.xlu0 %8080
  %8083 = vset.pattern.permute.xlu0 22
  %8084 = vperm.xlu0 %8083, %v5522
  %v8085 = vpop.permute.xlu0 %8084
  %8087 = vset.pattern.permute.xlu0 22
  %8088 = vperm.xlu0 %8087, %v5523
  %v8089 = vpop.permute.xlu0 %8088
  %8091 = vset.pattern.permute.xlu0 22
  %8092 = vperm.xlu0 %8091, %v5524
  %v8093 = vpop.permute.xlu0 %8092
  %8095 = vset.pattern.permute.xlu0 22
  %8096 = vperm.xlu0 %8095, %v5525
  %v8097 = vpop.permute.xlu0 %8096
  %8099 = vset.pattern.permute.xlu0 22
  %8100 = vperm.xlu0 %8099, %v5526
  %v8101 = vpop.permute.xlu0 %8100
  %8103 = vset.pattern.permute.xlu0 22
  %8104 = vperm.xlu0 %8103, %v5527
  %v8105 = vpop.permute.xlu0 %8104
  %8107 = vset.pattern.permute.xlu0 22
  %8108 = vperm.xlu0 %8107, %v5528
  %v8109 = vpop.permute.xlu0 %8108
  %8111 = vset.pattern.permute.xlu0 22
  %8112 = vperm.xlu0 %8111, %v5529
  %v8113 = vpop.permute.xlu0 %8112
  %8115 = vset.pattern.permute.xlu0 22
  %8116 = vperm.xlu0 %8115, %v5530
  %v8117 = vpop.permute.xlu0 %8116
  %8119 = vset.pattern.permute.xlu0 22
  %8120 = vperm.xlu0 %8119, %v5531
  %v8121 = vpop.permute.xlu0 %8120
  %8123 = vset.pattern.permute.xlu0 22
  %8124 = vperm.xlu0 %8123, %v5532
  %v8125 = vpop.permute.xlu0 %8124
  %8127 = vset.pattern.permute.xlu0 22
  %8128 = vperm.xlu0 %8127, %v5533
  %v8129 = vpop.permute.xlu0 %8128
  %8131 = vset.pattern.permute.xlu0 22
  %8132 = vperm.xlu0 %8131, %v5534
  %v8133 = vpop.permute.xlu0 %8132
  %8135 = vset.pattern.permute.xlu0 22
  %8136 = vperm.xlu0 %8135, %v5535
  %v8137 = vpop.permute.xlu0 %8136
  %v8139 = vmul.f32 %v8065, %v3574
  %v8140 = vmul.f32 %v8069, %v3575
  %v8141 = vmul.f32 %v8073, %v3576
  %v8142 = vmul.f32 %v8077, %v3577
  %v8143 = vmul.f32 %v8081, %v3578
  %v8144 = vmul.f32 %v8085, %v3579
  %v8145 = vmul.f32 %v8089, %v3580
  %v8146 = vmul.f32 %v8093, %v3581
  %v8147 = vmul.f32 %v8097, %v3582
  %v8148 = vmul.f32 %v8101, %v3583
  %v8149 = vmul.f32 %v8105, %v3584
  %v8150 = vmul.f32 %v8109, %v3585
  %v8151 = vmul.f32 %v8113, %v3586
  %v8152 = vmul.f32 %v8117, %v3587
  %v8153 = vmul.f32 %v8121, %v3588
  %v8154 = vmul.f32 %v8125, %v3589
  %v8155 = vmul.f32 %v8129, %v3590
  %v8156 = vmul.f32 %v8133, %v3591
  %v8157 = vmul.f32 %v8137, %v3592
  %v8158 = vadd.f32 %v8044, %v8139
  %v8159 = vadd.f32 %v8045, %v8140
  %v8160 = vadd.f32 %v8046, %v8141
  %v8161 = vadd.f32 %v8047, %v8142
  %v8162 = vadd.f32 %v8048, %v8143
  %v8163 = vadd.f32 %v8049, %v8144
  %v8164 = vadd.f32 %v8050, %v8145
  %v8165 = vadd.f32 %v8051, %v8146
  %v8166 = vadd.f32 %v8052, %v8147
  %v8167 = vadd.f32 %v8053, %v8148
  %v8168 = vadd.f32 %v8054, %v8149
  %v8169 = vadd.f32 %v8055, %v8150
  %v8170 = vadd.f32 %v8056, %v8151
  %v8171 = vadd.f32 %v8057, %v8152
  %v8172 = vadd.f32 %v8058, %v8153
  %v8173 = vadd.f32 %v8059, %v8154
  %v8174 = vadd.f32 %v8060, %v8155
  %v8175 = vadd.f32 %v8061, %v8156
  %v8176 = vadd.f32 %v8062, %v8157
  %8177 = vset.pattern.permute.xlu0 23
  %8178 = vperm.xlu0 %8177, %v5517
  %v8179 = vpop.permute.xlu0 %8178
  %8181 = vset.pattern.permute.xlu0 23
  %8182 = vperm.xlu0 %8181, %v5518
  %v8183 = vpop.permute.xlu0 %8182
  %8185 = vset.pattern.permute.xlu0 23
  %8186 = vperm.xlu0 %8185, %v5519
  %v8187 = vpop.permute.xlu0 %8186
  %8189 = vset.pattern.permute.xlu0 23
  %8190 = vperm.xlu0 %8189, %v5520
  %v8191 = vpop.permute.xlu0 %8190
  %8193 = vset.pattern.permute.xlu0 23
  %8194 = vperm.xlu0 %8193, %v5521
  %v8195 = vpop.permute.xlu0 %8194
  %8197 = vset.pattern.permute.xlu0 23
  %8198 = vperm.xlu0 %8197, %v5522
  %v8199 = vpop.permute.xlu0 %8198
  %8201 = vset.pattern.permute.xlu0 23
  %8202 = vperm.xlu0 %8201, %v5523
  %v8203 = vpop.permute.xlu0 %8202
  %8205 = vset.pattern.permute.xlu0 23
  %8206 = vperm.xlu0 %8205, %v5524
  %v8207 = vpop.permute.xlu0 %8206
  %8209 = vset.pattern.permute.xlu0 23
  %8210 = vperm.xlu0 %8209, %v5525
  %v8211 = vpop.permute.xlu0 %8210
  %8213 = vset.pattern.permute.xlu0 23
  %8214 = vperm.xlu0 %8213, %v5526
  %v8215 = vpop.permute.xlu0 %8214
  %8217 = vset.pattern.permute.xlu0 23
  %8218 = vperm.xlu0 %8217, %v5527
  %v8219 = vpop.permute.xlu0 %8218
  %8221 = vset.pattern.permute.xlu0 23
  %8222 = vperm.xlu0 %8221, %v5528
  %v8223 = vpop.permute.xlu0 %8222
  %8225 = vset.pattern.permute.xlu0 23
  %8226 = vperm.xlu0 %8225, %v5529
  %v8227 = vpop.permute.xlu0 %8226
  %8229 = vset.pattern.permute.xlu0 23
  %8230 = vperm.xlu0 %8229, %v5530
  %v8231 = vpop.permute.xlu0 %8230
  %8233 = vset.pattern.permute.xlu0 23
  %8234 = vperm.xlu0 %8233, %v5531
  %v8235 = vpop.permute.xlu0 %8234
  %8237 = vset.pattern.permute.xlu0 23
  %8238 = vperm.xlu0 %8237, %v5532
  %v8239 = vpop.permute.xlu0 %8238
  %8241 = vset.pattern.permute.xlu0 23
  %8242 = vperm.xlu0 %8241, %v5533
  %v8243 = vpop.permute.xlu0 %8242
  %8245 = vset.pattern.permute.xlu0 23
  %8246 = vperm.xlu0 %8245, %v5534
  %v8247 = vpop.permute.xlu0 %8246
  %8249 = vset.pattern.permute.xlu0 23
  %8250 = vperm.xlu0 %8249, %v5535
  %v8251 = vpop.permute.xlu0 %8250
  %v8253 = vmul.f32 %v8179, %v3708
  %v8254 = vmul.f32 %v8183, %v3709
  %v8255 = vmul.f32 %v8187, %v3710
  %v8256 = vmul.f32 %v8191, %v3711
  %v8257 = vmul.f32 %v8195, %v3712
  %v8258 = vmul.f32 %v8199, %v3713
  %v8259 = vmul.f32 %v8203, %v3714
  %v8260 = vmul.f32 %v8207, %v3715
  %v8261 = vmul.f32 %v8211, %v3716
  %v8262 = vmul.f32 %v8215, %v3717
  %v8263 = vmul.f32 %v8219, %v3718
  %v8264 = vmul.f32 %v8223, %v3719
  %v8265 = vmul.f32 %v8227, %v3720
  %v8266 = vmul.f32 %v8231, %v3721
  %v8267 = vmul.f32 %v8235, %v3722
  %v8268 = vmul.f32 %v8239, %v3723
  %v8269 = vmul.f32 %v8243, %v3724
  %v8270 = vmul.f32 %v8247, %v3725
  %v8271 = vmul.f32 %v8251, %v3726
  %v8272 = vadd.f32 %v8158, %v8253
  %v8273 = vadd.f32 %v8159, %v8254
  %v8274 = vadd.f32 %v8160, %v8255
  %v8275 = vadd.f32 %v8161, %v8256
  %v8276 = vadd.f32 %v8162, %v8257
  %v8277 = vadd.f32 %v8163, %v8258
  %v8278 = vadd.f32 %v8164, %v8259
  %v8279 = vadd.f32 %v8165, %v8260
  %v8280 = vadd.f32 %v8166, %v8261
  %v8281 = vadd.f32 %v8167, %v8262
  %v8282 = vadd.f32 %v8168, %v8263
  %v8283 = vadd.f32 %v8169, %v8264
  %v8284 = vadd.f32 %v8170, %v8265
  %v8285 = vadd.f32 %v8171, %v8266
  %v8286 = vadd.f32 %v8172, %v8267
  %v8287 = vadd.f32 %v8173, %v8268
  %v8288 = vadd.f32 %v8174, %v8269
  %v8289 = vadd.f32 %v8175, %v8270
  %v8290 = vadd.f32 %v8176, %v8271
  %8291 = vset.pattern.permute.xlu0 24
  %8292 = vperm.xlu0 %8291, %v5517
  %v8293 = vpop.permute.xlu0 %8292
  %8295 = vset.pattern.permute.xlu0 24
  %8296 = vperm.xlu0 %8295, %v5518
  %v8297 = vpop.permute.xlu0 %8296
  %8299 = vset.pattern.permute.xlu0 24
  %8300 = vperm.xlu0 %8299, %v5519
  %v8301 = vpop.permute.xlu0 %8300
  %8303 = vset.pattern.permute.xlu0 24
  %8304 = vperm.xlu0 %8303, %v5520
  %v8305 = vpop.permute.xlu0 %8304
  %8307 = vset.pattern.permute.xlu0 24
  %8308 = vperm.xlu0 %8307, %v5521
  %v8309 = vpop.permute.xlu0 %8308
  %8311 = vset.pattern.permute.xlu0 24
  %8312 = vperm.xlu0 %8311, %v5522
  %v8313 = vpop.permute.xlu0 %8312
  %8315 = vset.pattern.permute.xlu0 24
  %8316 = vperm.xlu0 %8315, %v5523
  %v8317 = vpop.permute.xlu0 %8316
  %8319 = vset.pattern.permute.xlu0 24
  %8320 = vperm.xlu0 %8319, %v5524
  %v8321 = vpop.permute.xlu0 %8320
  %8323 = vset.pattern.permute.xlu0 24
  %8324 = vperm.xlu0 %8323, %v5525
  %v8325 = vpop.permute.xlu0 %8324
  %8327 = vset.pattern.permute.xlu0 24
  %8328 = vperm.xlu0 %8327, %v5526
  %v8329 = vpop.permute.xlu0 %8328
  %8331 = vset.pattern.permute.xlu0 24
  %8332 = vperm.xlu0 %8331, %v5527
  %v8333 = vpop.permute.xlu0 %8332
  %8335 = vset.pattern.permute.xlu0 24
  %8336 = vperm.xlu0 %8335, %v5528
  %v8337 = vpop.permute.xlu0 %8336
  %8339 = vset.pattern.permute.xlu0 24
  %8340 = vperm.xlu0 %8339, %v5529
  %v8341 = vpop.permute.xlu0 %8340
  %8343 = vset.pattern.permute.xlu0 24
  %8344 = vperm.xlu0 %8343, %v5530
  %v8345 = vpop.permute.xlu0 %8344
  %8347 = vset.pattern.permute.xlu0 24
  %8348 = vperm.xlu0 %8347, %v5531
  %v8349 = vpop.permute.xlu0 %8348
  %8351 = vset.pattern.permute.xlu0 24
  %8352 = vperm.xlu0 %8351, %v5532
  %v8353 = vpop.permute.xlu0 %8352
  %8355 = vset.pattern.permute.xlu0 24
  %8356 = vperm.xlu0 %8355, %v5533
  %v8357 = vpop.permute.xlu0 %8356
  %8359 = vset.pattern.permute.xlu0 24
  %8360 = vperm.xlu0 %8359, %v5534
  %v8361 = vpop.permute.xlu0 %8360
  %8363 = vset.pattern.permute.xlu0 24
  %8364 = vperm.xlu0 %8363, %v5535
  %v8365 = vpop.permute.xlu0 %8364
  %v8367 = vmul.f32 %v8293, %v3842
  %v8368 = vmul.f32 %v8297, %v3843
  %v8369 = vmul.f32 %v8301, %v3844
  %v8370 = vmul.f32 %v8305, %v3845
  %v8371 = vmul.f32 %v8309, %v3846
  %v8372 = vmul.f32 %v8313, %v3847
  %v8373 = vmul.f32 %v8317, %v3848
  %v8374 = vmul.f32 %v8321, %v3849
  %v8375 = vmul.f32 %v8325, %v3850
  %v8376 = vmul.f32 %v8329, %v3851
  %v8377 = vmul.f32 %v8333, %v3852
  %v8378 = vmul.f32 %v8337, %v3853
  %v8379 = vmul.f32 %v8341, %v3854
  %v8380 = vmul.f32 %v8345, %v3855
  %v8381 = vmul.f32 %v8349, %v3856
  %v8382 = vmul.f32 %v8353, %v3857
  %v8383 = vmul.f32 %v8357, %v3858
  %v8384 = vmul.f32 %v8361, %v3859
  %v8385 = vmul.f32 %v8365, %v3860
  %v8386 = vadd.f32 %v8272, %v8367
  %v8387 = vadd.f32 %v8273, %v8368
  %v8388 = vadd.f32 %v8274, %v8369
  %v8389 = vadd.f32 %v8275, %v8370
  %v8390 = vadd.f32 %v8276, %v8371
  %v8391 = vadd.f32 %v8277, %v8372
  %v8392 = vadd.f32 %v8278, %v8373
  %v8393 = vadd.f32 %v8279, %v8374
  %v8394 = vadd.f32 %v8280, %v8375
  %v8395 = vadd.f32 %v8281, %v8376
  %v8396 = vadd.f32 %v8282, %v8377
  %v8397 = vadd.f32 %v8283, %v8378
  %v8398 = vadd.f32 %v8284, %v8379
  %v8399 = vadd.f32 %v8285, %v8380
  %v8400 = vadd.f32 %v8286, %v8381
  %v8401 = vadd.f32 %v8287, %v8382
  %v8402 = vadd.f32 %v8288, %v8383
  %v8403 = vadd.f32 %v8289, %v8384
  %v8404 = vadd.f32 %v8290, %v8385
  %8405 = vset.pattern.permute.xlu0 25
  %8406 = vperm.xlu0 %8405, %v5517
  %v8407 = vpop.permute.xlu0 %8406
  %8409 = vset.pattern.permute.xlu0 25
  %8410 = vperm.xlu0 %8409, %v5518
  %v8411 = vpop.permute.xlu0 %8410
  %8413 = vset.pattern.permute.xlu0 25
  %8414 = vperm.xlu0 %8413, %v5519
  %v8415 = vpop.permute.xlu0 %8414
  %8417 = vset.pattern.permute.xlu0 25
  %8418 = vperm.xlu0 %8417, %v5520
  %v8419 = vpop.permute.xlu0 %8418
  %8421 = vset.pattern.permute.xlu0 25
  %8422 = vperm.xlu0 %8421, %v5521
  %v8423 = vpop.permute.xlu0 %8422
  %8425 = vset.pattern.permute.xlu0 25
  %8426 = vperm.xlu0 %8425, %v5522
  %v8427 = vpop.permute.xlu0 %8426
  %8429 = vset.pattern.permute.xlu0 25
  %8430 = vperm.xlu0 %8429, %v5523
  %v8431 = vpop.permute.xlu0 %8430
  %8433 = vset.pattern.permute.xlu0 25
  %8434 = vperm.xlu0 %8433, %v5524
  %v8435 = vpop.permute.xlu0 %8434
  %8437 = vset.pattern.permute.xlu0 25
  %8438 = vperm.xlu0 %8437, %v5525
  %v8439 = vpop.permute.xlu0 %8438
  %8441 = vset.pattern.permute.xlu0 25
  %8442 = vperm.xlu0 %8441, %v5526
  %v8443 = vpop.permute.xlu0 %8442
  %8445 = vset.pattern.permute.xlu0 25
  %8446 = vperm.xlu0 %8445, %v5527
  %v8447 = vpop.permute.xlu0 %8446
  %8449 = vset.pattern.permute.xlu0 25
  %8450 = vperm.xlu0 %8449, %v5528
  %v8451 = vpop.permute.xlu0 %8450
  %8453 = vset.pattern.permute.xlu0 25
  %8454 = vperm.xlu0 %8453, %v5529
  %v8455 = vpop.permute.xlu0 %8454
  %8457 = vset.pattern.permute.xlu0 25
  %8458 = vperm.xlu0 %8457, %v5530
  %v8459 = vpop.permute.xlu0 %8458
  %8461 = vset.pattern.permute.xlu0 25
  %8462 = vperm.xlu0 %8461, %v5531
  %v8463 = vpop.permute.xlu0 %8462
  %8465 = vset.pattern.permute.xlu0 25
  %8466 = vperm.xlu0 %8465, %v5532
  %v8467 = vpop.permute.xlu0 %8466
  %8469 = vset.pattern.permute.xlu0 25
  %8470 = vperm.xlu0 %8469, %v5533
  %v8471 = vpop.permute.xlu0 %8470
  %8473 = vset.pattern.permute.xlu0 25
  %8474 = vperm.xlu0 %8473, %v5534
  %v8475 = vpop.permute.xlu0 %8474
  %8477 = vset.pattern.permute.xlu0 25
  %8478 = vperm.xlu0 %8477, %v5535
  %v8479 = vpop.permute.xlu0 %8478
  %v8481 = vmul.f32 %v8407, %v3976
  %v8482 = vmul.f32 %v8411, %v3977
  %v8483 = vmul.f32 %v8415, %v3978
  %v8484 = vmul.f32 %v8419, %v3979
  %v8485 = vmul.f32 %v8423, %v3980
  %v8486 = vmul.f32 %v8427, %v3981
  %v8487 = vmul.f32 %v8431, %v3982
  %v8488 = vmul.f32 %v8435, %v3983
  %v8489 = vmul.f32 %v8439, %v3984
  %v8490 = vmul.f32 %v8443, %v3985
  %v8491 = vmul.f32 %v8447, %v3986
  %v8492 = vmul.f32 %v8451, %v3987
  %v8493 = vmul.f32 %v8455, %v3988
  %v8494 = vmul.f32 %v8459, %v3989
  %v8495 = vmul.f32 %v8463, %v3990
  %v8496 = vmul.f32 %v8467, %v3991
  %v8497 = vmul.f32 %v8471, %v3992
  %v8498 = vmul.f32 %v8475, %v3993
  %v8499 = vmul.f32 %v8479, %v3994
  %v8500 = vadd.f32 %v8386, %v8481
  %v8501 = vadd.f32 %v8387, %v8482
  %v8502 = vadd.f32 %v8388, %v8483
  %v8503 = vadd.f32 %v8389, %v8484
  %v8504 = vadd.f32 %v8390, %v8485
  %v8505 = vadd.f32 %v8391, %v8486
  %v8506 = vadd.f32 %v8392, %v8487
  %v8507 = vadd.f32 %v8393, %v8488
  %v8508 = vadd.f32 %v8394, %v8489
  %v8509 = vadd.f32 %v8395, %v8490
  %v8510 = vadd.f32 %v8396, %v8491
  %v8511 = vadd.f32 %v8397, %v8492
  %v8512 = vadd.f32 %v8398, %v8493
  %v8513 = vadd.f32 %v8399, %v8494
  %v8514 = vadd.f32 %v8400, %v8495
  %v8515 = vadd.f32 %v8401, %v8496
  %v8516 = vadd.f32 %v8402, %v8497
  %v8517 = vadd.f32 %v8403, %v8498
  %v8518 = vadd.f32 %v8404, %v8499
  %8519 = vset.pattern.permute.xlu0 26
  %8520 = vperm.xlu0 %8519, %v5517
  %v8521 = vpop.permute.xlu0 %8520
  %8523 = vset.pattern.permute.xlu0 26
  %8524 = vperm.xlu0 %8523, %v5518
  %v8525 = vpop.permute.xlu0 %8524
  %8527 = vset.pattern.permute.xlu0 26
  %8528 = vperm.xlu0 %8527, %v5519
  %v8529 = vpop.permute.xlu0 %8528
  %8531 = vset.pattern.permute.xlu0 26
  %8532 = vperm.xlu0 %8531, %v5520
  %v8533 = vpop.permute.xlu0 %8532
  %8535 = vset.pattern.permute.xlu0 26
  %8536 = vperm.xlu0 %8535, %v5521
  %v8537 = vpop.permute.xlu0 %8536
  %8539 = vset.pattern.permute.xlu0 26
  %8540 = vperm.xlu0 %8539, %v5522
  %v8541 = vpop.permute.xlu0 %8540
  %8543 = vset.pattern.permute.xlu0 26
  %8544 = vperm.xlu0 %8543, %v5523
  %v8545 = vpop.permute.xlu0 %8544
  %8547 = vset.pattern.permute.xlu0 26
  %8548 = vperm.xlu0 %8547, %v5524
  %v8549 = vpop.permute.xlu0 %8548
  %8551 = vset.pattern.permute.xlu0 26
  %8552 = vperm.xlu0 %8551, %v5525
  %v8553 = vpop.permute.xlu0 %8552
  %8555 = vset.pattern.permute.xlu0 26
  %8556 = vperm.xlu0 %8555, %v5526
  %v8557 = vpop.permute.xlu0 %8556
  %8559 = vset.pattern.permute.xlu0 26
  %8560 = vperm.xlu0 %8559, %v5527
  %v8561 = vpop.permute.xlu0 %8560
  %8563 = vset.pattern.permute.xlu0 26
  %8564 = vperm.xlu0 %8563, %v5528
  %v8565 = vpop.permute.xlu0 %8564
  %8567 = vset.pattern.permute.xlu0 26
  %8568 = vperm.xlu0 %8567, %v5529
  %v8569 = vpop.permute.xlu0 %8568
  %8571 = vset.pattern.permute.xlu0 26
  %8572 = vperm.xlu0 %8571, %v5530
  %v8573 = vpop.permute.xlu0 %8572
  %8575 = vset.pattern.permute.xlu0 26
  %8576 = vperm.xlu0 %8575, %v5531
  %v8577 = vpop.permute.xlu0 %8576
  %8579 = vset.pattern.permute.xlu0 26
  %8580 = vperm.xlu0 %8579, %v5532
  %v8581 = vpop.permute.xlu0 %8580
  %8583 = vset.pattern.permute.xlu0 26
  %8584 = vperm.xlu0 %8583, %v5533
  %v8585 = vpop.permute.xlu0 %8584
  %8587 = vset.pattern.permute.xlu0 26
  %8588 = vperm.xlu0 %8587, %v5534
  %v8589 = vpop.permute.xlu0 %8588
  %8591 = vset.pattern.permute.xlu0 26
  %8592 = vperm.xlu0 %8591, %v5535
  %v8593 = vpop.permute.xlu0 %8592
  %v8595 = vmul.f32 %v8521, %v4110
  %v8596 = vmul.f32 %v8525, %v4111
  %v8597 = vmul.f32 %v8529, %v4112
  %v8598 = vmul.f32 %v8533, %v4113
  %v8599 = vmul.f32 %v8537, %v4114
  %v8600 = vmul.f32 %v8541, %v4115
  %v8601 = vmul.f32 %v8545, %v4116
  %v8602 = vmul.f32 %v8549, %v4117
  %v8603 = vmul.f32 %v8553, %v4118
  %v8604 = vmul.f32 %v8557, %v4119
  %v8605 = vmul.f32 %v8561, %v4120
  %v8606 = vmul.f32 %v8565, %v4121
  %v8607 = vmul.f32 %v8569, %v4122
  %v8608 = vmul.f32 %v8573, %v4123
  %v8609 = vmul.f32 %v8577, %v4124
  %v8610 = vmul.f32 %v8581, %v4125
  %v8611 = vmul.f32 %v8585, %v4126
  %v8612 = vmul.f32 %v8589, %v4127
  %v8613 = vmul.f32 %v8593, %v4128
  %v8614 = vadd.f32 %v8500, %v8595
  %v8615 = vadd.f32 %v8501, %v8596
  %v8616 = vadd.f32 %v8502, %v8597
  %v8617 = vadd.f32 %v8503, %v8598
  %v8618 = vadd.f32 %v8504, %v8599
  %v8619 = vadd.f32 %v8505, %v8600
  %v8620 = vadd.f32 %v8506, %v8601
  %v8621 = vadd.f32 %v8507, %v8602
  %v8622 = vadd.f32 %v8508, %v8603
  %v8623 = vadd.f32 %v8509, %v8604
  %v8624 = vadd.f32 %v8510, %v8605
  %v8625 = vadd.f32 %v8511, %v8606
  %v8626 = vadd.f32 %v8512, %v8607
  %v8627 = vadd.f32 %v8513, %v8608
  %v8628 = vadd.f32 %v8514, %v8609
  %v8629 = vadd.f32 %v8515, %v8610
  %v8630 = vadd.f32 %v8516, %v8611
  %v8631 = vadd.f32 %v8517, %v8612
  %v8632 = vadd.f32 %v8518, %v8613
  %8633 = vset.pattern.permute.xlu0 27
  %8634 = vperm.xlu0 %8633, %v5517
  %v8635 = vpop.permute.xlu0 %8634
  %8637 = vset.pattern.permute.xlu0 27
  %8638 = vperm.xlu0 %8637, %v5518
  %v8639 = vpop.permute.xlu0 %8638
  %8641 = vset.pattern.permute.xlu0 27
  %8642 = vperm.xlu0 %8641, %v5519
  %v8643 = vpop.permute.xlu0 %8642
  %8645 = vset.pattern.permute.xlu0 27
  %8646 = vperm.xlu0 %8645, %v5520
  %v8647 = vpop.permute.xlu0 %8646
  %8649 = vset.pattern.permute.xlu0 27
  %8650 = vperm.xlu0 %8649, %v5521
  %v8651 = vpop.permute.xlu0 %8650
  %8653 = vset.pattern.permute.xlu0 27
  %8654 = vperm.xlu0 %8653, %v5522
  %v8655 = vpop.permute.xlu0 %8654
  %8657 = vset.pattern.permute.xlu0 27
  %8658 = vperm.xlu0 %8657, %v5523
  %v8659 = vpop.permute.xlu0 %8658
  %8661 = vset.pattern.permute.xlu0 27
  %8662 = vperm.xlu0 %8661, %v5524
  %v8663 = vpop.permute.xlu0 %8662
  %8665 = vset.pattern.permute.xlu0 27
  %8666 = vperm.xlu0 %8665, %v5525
  %v8667 = vpop.permute.xlu0 %8666
  %8669 = vset.pattern.permute.xlu0 27
  %8670 = vperm.xlu0 %8669, %v5526
  %v8671 = vpop.permute.xlu0 %8670
  %8673 = vset.pattern.permute.xlu0 27
  %8674 = vperm.xlu0 %8673, %v5527
  %v8675 = vpop.permute.xlu0 %8674
  %8677 = vset.pattern.permute.xlu0 27
  %8678 = vperm.xlu0 %8677, %v5528
  %v8679 = vpop.permute.xlu0 %8678
  %8681 = vset.pattern.permute.xlu0 27
  %8682 = vperm.xlu0 %8681, %v5529
  %v8683 = vpop.permute.xlu0 %8682
  %8685 = vset.pattern.permute.xlu0 27
  %8686 = vperm.xlu0 %8685, %v5530
  %v8687 = vpop.permute.xlu0 %8686
  %8689 = vset.pattern.permute.xlu0 27
  %8690 = vperm.xlu0 %8689, %v5531
  %v8691 = vpop.permute.xlu0 %8690
  %8693 = vset.pattern.permute.xlu0 27
  %8694 = vperm.xlu0 %8693, %v5532
  %v8695 = vpop.permute.xlu0 %8694
  %8697 = vset.pattern.permute.xlu0 27
  %8698 = vperm.xlu0 %8697, %v5533
  %v8699 = vpop.permute.xlu0 %8698
  %8701 = vset.pattern.permute.xlu0 27
  %8702 = vperm.xlu0 %8701, %v5534
  %v8703 = vpop.permute.xlu0 %8702
  %8705 = vset.pattern.permute.xlu0 27
  %8706 = vperm.xlu0 %8705, %v5535
  %v8707 = vpop.permute.xlu0 %8706
  %v8709 = vmul.f32 %v8635, %v4244
  %v8710 = vmul.f32 %v8639, %v4245
  %v8711 = vmul.f32 %v8643, %v4246
  %v8712 = vmul.f32 %v8647, %v4247
  %v8713 = vmul.f32 %v8651, %v4248
  %v8714 = vmul.f32 %v8655, %v4249
  %v8715 = vmul.f32 %v8659, %v4250
  %v8716 = vmul.f32 %v8663, %v4251
  %v8717 = vmul.f32 %v8667, %v4252
  %v8718 = vmul.f32 %v8671, %v4253
  %v8719 = vmul.f32 %v8675, %v4254
  %v8720 = vmul.f32 %v8679, %v4255
  %v8721 = vmul.f32 %v8683, %v4256
  %v8722 = vmul.f32 %v8687, %v4257
  %v8723 = vmul.f32 %v8691, %v4258
  %v8724 = vmul.f32 %v8695, %v4259
  %v8725 = vmul.f32 %v8699, %v4260
  %v8726 = vmul.f32 %v8703, %v4261
  %v8727 = vmul.f32 %v8707, %v4262
  %v8728 = vadd.f32 %v8614, %v8709
  %v8729 = vadd.f32 %v8615, %v8710
  %v8730 = vadd.f32 %v8616, %v8711
  %v8731 = vadd.f32 %v8617, %v8712
  %v8732 = vadd.f32 %v8618, %v8713
  %v8733 = vadd.f32 %v8619, %v8714
  %v8734 = vadd.f32 %v8620, %v8715
  %v8735 = vadd.f32 %v8621, %v8716
  %v8736 = vadd.f32 %v8622, %v8717
  %v8737 = vadd.f32 %v8623, %v8718
  %v8738 = vadd.f32 %v8624, %v8719
  %v8739 = vadd.f32 %v8625, %v8720
  %v8740 = vadd.f32 %v8626, %v8721
  %v8741 = vadd.f32 %v8627, %v8722
  %v8742 = vadd.f32 %v8628, %v8723
  %v8743 = vadd.f32 %v8629, %v8724
  %v8744 = vadd.f32 %v8630, %v8725
  %v8745 = vadd.f32 %v8631, %v8726
  %v8746 = vadd.f32 %v8632, %v8727
  %8747 = vset.pattern.permute.xlu0 28
  %8748 = vperm.xlu0 %8747, %v5517
  %v8749 = vpop.permute.xlu0 %8748
  %8751 = vset.pattern.permute.xlu0 28
  %8752 = vperm.xlu0 %8751, %v5518
  %v8753 = vpop.permute.xlu0 %8752
  %8755 = vset.pattern.permute.xlu0 28
  %8756 = vperm.xlu0 %8755, %v5519
  %v8757 = vpop.permute.xlu0 %8756
  %8759 = vset.pattern.permute.xlu0 28
  %8760 = vperm.xlu0 %8759, %v5520
  %v8761 = vpop.permute.xlu0 %8760
  %8763 = vset.pattern.permute.xlu0 28
  %8764 = vperm.xlu0 %8763, %v5521
  %v8765 = vpop.permute.xlu0 %8764
  %8767 = vset.pattern.permute.xlu0 28
  %8768 = vperm.xlu0 %8767, %v5522
  %v8769 = vpop.permute.xlu0 %8768
  %8771 = vset.pattern.permute.xlu0 28
  %8772 = vperm.xlu0 %8771, %v5523
  %v8773 = vpop.permute.xlu0 %8772
  %8775 = vset.pattern.permute.xlu0 28
  %8776 = vperm.xlu0 %8775, %v5524
  %v8777 = vpop.permute.xlu0 %8776
  %8779 = vset.pattern.permute.xlu0 28
  %8780 = vperm.xlu0 %8779, %v5525
  %v8781 = vpop.permute.xlu0 %8780
  %8783 = vset.pattern.permute.xlu0 28
  %8784 = vperm.xlu0 %8783, %v5526
  %v8785 = vpop.permute.xlu0 %8784
  %8787 = vset.pattern.permute.xlu0 28
  %8788 = vperm.xlu0 %8787, %v5527
  %v8789 = vpop.permute.xlu0 %8788
  %8791 = vset.pattern.permute.xlu0 28
  %8792 = vperm.xlu0 %8791, %v5528
  %v8793 = vpop.permute.xlu0 %8792
  %8795 = vset.pattern.permute.xlu0 28
  %8796 = vperm.xlu0 %8795, %v5529
  %v8797 = vpop.permute.xlu0 %8796
  %8799 = vset.pattern.permute.xlu0 28
  %8800 = vperm.xlu0 %8799, %v5530
  %v8801 = vpop.permute.xlu0 %8800
  %8803 = vset.pattern.permute.xlu0 28
  %8804 = vperm.xlu0 %8803, %v5531
  %v8805 = vpop.permute.xlu0 %8804
  %8807 = vset.pattern.permute.xlu0 28
  %8808 = vperm.xlu0 %8807, %v5532
  %v8809 = vpop.permute.xlu0 %8808
  %8811 = vset.pattern.permute.xlu0 28
  %8812 = vperm.xlu0 %8811, %v5533
  %v8813 = vpop.permute.xlu0 %8812
  %8815 = vset.pattern.permute.xlu0 28
  %8816 = vperm.xlu0 %8815, %v5534
  %v8817 = vpop.permute.xlu0 %8816
  %8819 = vset.pattern.permute.xlu0 28
  %8820 = vperm.xlu0 %8819, %v5535
  %v8821 = vpop.permute.xlu0 %8820
  %v8823 = vmul.f32 %v8749, %v4378
  %v8824 = vmul.f32 %v8753, %v4379
  %v8825 = vmul.f32 %v8757, %v4380
  %v8826 = vmul.f32 %v8761, %v4381
  %v8827 = vmul.f32 %v8765, %v4382
  %v8828 = vmul.f32 %v8769, %v4383
  %v8829 = vmul.f32 %v8773, %v4384
  %v8830 = vmul.f32 %v8777, %v4385
  %v8831 = vmul.f32 %v8781, %v4386
  %v8832 = vmul.f32 %v8785, %v4387
  %v8833 = vmul.f32 %v8789, %v4388
  %v8834 = vmul.f32 %v8793, %v4389
  %v8835 = vmul.f32 %v8797, %v4390
  %v8836 = vmul.f32 %v8801, %v4391
  %v8837 = vmul.f32 %v8805, %v4392
  %v8838 = vmul.f32 %v8809, %v4393
  %v8839 = vmul.f32 %v8813, %v4394
  %v8840 = vmul.f32 %v8817, %v4395
  %v8841 = vmul.f32 %v8821, %v4396
  %v8842 = vadd.f32 %v8728, %v8823
  %v8843 = vadd.f32 %v8729, %v8824
  %v8844 = vadd.f32 %v8730, %v8825
  %v8845 = vadd.f32 %v8731, %v8826
  %v8846 = vadd.f32 %v8732, %v8827
  %v8847 = vadd.f32 %v8733, %v8828
  %v8848 = vadd.f32 %v8734, %v8829
  %v8849 = vadd.f32 %v8735, %v8830
  %v8850 = vadd.f32 %v8736, %v8831
  %v8851 = vadd.f32 %v8737, %v8832
  %v8852 = vadd.f32 %v8738, %v8833
  %v8853 = vadd.f32 %v8739, %v8834
  %v8854 = vadd.f32 %v8740, %v8835
  %v8855 = vadd.f32 %v8741, %v8836
  %v8856 = vadd.f32 %v8742, %v8837
  %v8857 = vadd.f32 %v8743, %v8838
  %v8858 = vadd.f32 %v8744, %v8839
  %v8859 = vadd.f32 %v8745, %v8840
  %v8860 = vadd.f32 %v8746, %v8841
  %8861 = vset.pattern.permute.xlu0 29
  %8862 = vperm.xlu0 %8861, %v5517
  %v8863 = vpop.permute.xlu0 %8862
  %8865 = vset.pattern.permute.xlu0 29
  %8866 = vperm.xlu0 %8865, %v5518
  %v8867 = vpop.permute.xlu0 %8866
  %8869 = vset.pattern.permute.xlu0 29
  %8870 = vperm.xlu0 %8869, %v5519
  %v8871 = vpop.permute.xlu0 %8870
  %8873 = vset.pattern.permute.xlu0 29
  %8874 = vperm.xlu0 %8873, %v5520
  %v8875 = vpop.permute.xlu0 %8874
  %8877 = vset.pattern.permute.xlu0 29
  %8878 = vperm.xlu0 %8877, %v5521
  %v8879 = vpop.permute.xlu0 %8878
  %8881 = vset.pattern.permute.xlu0 29
  %8882 = vperm.xlu0 %8881, %v5522
  %v8883 = vpop.permute.xlu0 %8882
  %8885 = vset.pattern.permute.xlu0 29
  %8886 = vperm.xlu0 %8885, %v5523
  %v8887 = vpop.permute.xlu0 %8886
  %8889 = vset.pattern.permute.xlu0 29
  %8890 = vperm.xlu0 %8889, %v5524
  %v8891 = vpop.permute.xlu0 %8890
  %8893 = vset.pattern.permute.xlu0 29
  %8894 = vperm.xlu0 %8893, %v5525
  %v8895 = vpop.permute.xlu0 %8894
  %8897 = vset.pattern.permute.xlu0 29
  %8898 = vperm.xlu0 %8897, %v5526
  %v8899 = vpop.permute.xlu0 %8898
  %8901 = vset.pattern.permute.xlu0 29
  %8902 = vperm.xlu0 %8901, %v5527
  %v8903 = vpop.permute.xlu0 %8902
  %8905 = vset.pattern.permute.xlu0 29
  %8906 = vperm.xlu0 %8905, %v5528
  %v8907 = vpop.permute.xlu0 %8906
  %8909 = vset.pattern.permute.xlu0 29
  %8910 = vperm.xlu0 %8909, %v5529
  %v8911 = vpop.permute.xlu0 %8910
  %8913 = vset.pattern.permute.xlu0 29
  %8914 = vperm.xlu0 %8913, %v5530
  %v8915 = vpop.permute.xlu0 %8914
  %8917 = vset.pattern.permute.xlu0 29
  %8918 = vperm.xlu0 %8917, %v5531
  %v8919 = vpop.permute.xlu0 %8918
  %8921 = vset.pattern.permute.xlu0 29
  %8922 = vperm.xlu0 %8921, %v5532
  %v8923 = vpop.permute.xlu0 %8922
  %8925 = vset.pattern.permute.xlu0 29
  %8926 = vperm.xlu0 %8925, %v5533
  %v8927 = vpop.permute.xlu0 %8926
  %8929 = vset.pattern.permute.xlu0 29
  %8930 = vperm.xlu0 %8929, %v5534
  %v8931 = vpop.permute.xlu0 %8930
  %8933 = vset.pattern.permute.xlu0 29
  %8934 = vperm.xlu0 %8933, %v5535
  %v8935 = vpop.permute.xlu0 %8934
  %v8937 = vmul.f32 %v8863, %v4512
  %v8938 = vmul.f32 %v8867, %v4513
  %v8939 = vmul.f32 %v8871, %v4514
  %v8940 = vmul.f32 %v8875, %v4515
  %v8941 = vmul.f32 %v8879, %v4516
  %v8942 = vmul.f32 %v8883, %v4517
  %v8943 = vmul.f32 %v8887, %v4518
  %v8944 = vmul.f32 %v8891, %v4519
  %v8945 = vmul.f32 %v8895, %v4520
  %v8946 = vmul.f32 %v8899, %v4521
  %v8947 = vmul.f32 %v8903, %v4522
  %v8948 = vmul.f32 %v8907, %v4523
  %v8949 = vmul.f32 %v8911, %v4524
  %v8950 = vmul.f32 %v8915, %v4525
  %v8951 = vmul.f32 %v8919, %v4526
  %v8952 = vmul.f32 %v8923, %v4527
  %v8953 = vmul.f32 %v8927, %v4528
  %v8954 = vmul.f32 %v8931, %v4529
  %v8955 = vmul.f32 %v8935, %v4530
  %v8956 = vadd.f32 %v8842, %v8937
  %v8957 = vadd.f32 %v8843, %v8938
  %v8958 = vadd.f32 %v8844, %v8939
  %v8959 = vadd.f32 %v8845, %v8940
  %v8960 = vadd.f32 %v8846, %v8941
  %v8961 = vadd.f32 %v8847, %v8942
  %v8962 = vadd.f32 %v8848, %v8943
  %v8963 = vadd.f32 %v8849, %v8944
  %v8964 = vadd.f32 %v8850, %v8945
  %v8965 = vadd.f32 %v8851, %v8946
  %v8966 = vadd.f32 %v8852, %v8947
  %v8967 = vadd.f32 %v8853, %v8948
  %v8968 = vadd.f32 %v8854, %v8949
  %v8969 = vadd.f32 %v8855, %v8950
  %v8970 = vadd.f32 %v8856, %v8951
  %v8971 = vadd.f32 %v8857, %v8952
  %v8972 = vadd.f32 %v8858, %v8953
  %v8973 = vadd.f32 %v8859, %v8954
  %v8974 = vadd.f32 %v8860, %v8955
  %8975 = vset.pattern.permute.xlu0 30
  %8976 = vperm.xlu0 %8975, %v5517
  %v8977 = vpop.permute.xlu0 %8976
  %8979 = vset.pattern.permute.xlu0 30
  %8980 = vperm.xlu0 %8979, %v5518
  %v8981 = vpop.permute.xlu0 %8980
  %8983 = vset.pattern.permute.xlu0 30
  %8984 = vperm.xlu0 %8983, %v5519
  %v8985 = vpop.permute.xlu0 %8984
  %8987 = vset.pattern.permute.xlu0 30
  %8988 = vperm.xlu0 %8987, %v5520
  %v8989 = vpop.permute.xlu0 %8988
  %8991 = vset.pattern.permute.xlu0 30
  %8992 = vperm.xlu0 %8991, %v5521
  %v8993 = vpop.permute.xlu0 %8992
  %8995 = vset.pattern.permute.xlu0 30
  %8996 = vperm.xlu0 %8995, %v5522
  %v8997 = vpop.permute.xlu0 %8996
  %8999 = vset.pattern.permute.xlu0 30
  %9000 = vperm.xlu0 %8999, %v5523
  %v9001 = vpop.permute.xlu0 %9000
  %9003 = vset.pattern.permute.xlu0 30
  %9004 = vperm.xlu0 %9003, %v5524
  %v9005 = vpop.permute.xlu0 %9004
  %9007 = vset.pattern.permute.xlu0 30
  %9008 = vperm.xlu0 %9007, %v5525
  %v9009 = vpop.permute.xlu0 %9008
  %9011 = vset.pattern.permute.xlu0 30
  %9012 = vperm.xlu0 %9011, %v5526
  %v9013 = vpop.permute.xlu0 %9012
  %9015 = vset.pattern.permute.xlu0 30
  %9016 = vperm.xlu0 %9015, %v5527
  %v9017 = vpop.permute.xlu0 %9016
  %9019 = vset.pattern.permute.xlu0 30
  %9020 = vperm.xlu0 %9019, %v5528
  %v9021 = vpop.permute.xlu0 %9020
  %9023 = vset.pattern.permute.xlu0 30
  %9024 = vperm.xlu0 %9023, %v5529
  %v9025 = vpop.permute.xlu0 %9024
  %9027 = vset.pattern.permute.xlu0 30
  %9028 = vperm.xlu0 %9027, %v5530
  %v9029 = vpop.permute.xlu0 %9028
  %9031 = vset.pattern.permute.xlu0 30
  %9032 = vperm.xlu0 %9031, %v5531
  %v9033 = vpop.permute.xlu0 %9032
  %9035 = vset.pattern.permute.xlu0 30
  %9036 = vperm.xlu0 %9035, %v5532
  %v9037 = vpop.permute.xlu0 %9036
  %9039 = vset.pattern.permute.xlu0 30
  %9040 = vperm.xlu0 %9039, %v5533
  %v9041 = vpop.permute.xlu0 %9040
  %9043 = vset.pattern.permute.xlu0 30
  %9044 = vperm.xlu0 %9043, %v5534
  %v9045 = vpop.permute.xlu0 %9044
  %9047 = vset.pattern.permute.xlu0 30
  %9048 = vperm.xlu0 %9047, %v5535
  %v9049 = vpop.permute.xlu0 %9048
  %v9051 = vmul.f32 %v8977, %v4646
  %v9052 = vmul.f32 %v8981, %v4647
  %v9053 = vmul.f32 %v8985, %v4648
  %v9054 = vmul.f32 %v8989, %v4649
  %v9055 = vmul.f32 %v8993, %v4650
  %v9056 = vmul.f32 %v8997, %v4651
  %v9057 = vmul.f32 %v9001, %v4652
  %v9058 = vmul.f32 %v9005, %v4653
  %v9059 = vmul.f32 %v9009, %v4654
  %v9060 = vmul.f32 %v9013, %v4655
  %v9061 = vmul.f32 %v9017, %v4656
  %v9062 = vmul.f32 %v9021, %v4657
  %v9063 = vmul.f32 %v9025, %v4658
  %v9064 = vmul.f32 %v9029, %v4659
  %v9065 = vmul.f32 %v9033, %v4660
  %v9066 = vmul.f32 %v9037, %v4661
  %v9067 = vmul.f32 %v9041, %v4662
  %v9068 = vmul.f32 %v9045, %v4663
  %v9069 = vmul.f32 %v9049, %v4664
  %v9070 = vadd.f32 %v8956, %v9051
  %v9071 = vadd.f32 %v8957, %v9052
  %v9072 = vadd.f32 %v8958, %v9053
  %v9073 = vadd.f32 %v8959, %v9054
  %v9074 = vadd.f32 %v8960, %v9055
  %v9075 = vadd.f32 %v8961, %v9056
  %v9076 = vadd.f32 %v8962, %v9057
  %v9077 = vadd.f32 %v8963, %v9058
  %v9078 = vadd.f32 %v8964, %v9059
  %v9079 = vadd.f32 %v8965, %v9060
  %v9080 = vadd.f32 %v8966, %v9061
  %v9081 = vadd.f32 %v8967, %v9062
  %v9082 = vadd.f32 %v8968, %v9063
  %v9083 = vadd.f32 %v8969, %v9064
  %v9084 = vadd.f32 %v8970, %v9065
  %v9085 = vadd.f32 %v8971, %v9066
  %v9086 = vadd.f32 %v8972, %v9067
  %v9087 = vadd.f32 %v8973, %v9068
  %v9088 = vadd.f32 %v8974, %v9069
  %9089 = vset.pattern.permute.xlu0 31
  %9090 = vperm.xlu0 %9089, %v5517
  %v9091 = vpop.permute.xlu0 %9090
  %9093 = vset.pattern.permute.xlu0 31
  %9094 = vperm.xlu0 %9093, %v5518
  %v9095 = vpop.permute.xlu0 %9094
  %9097 = vset.pattern.permute.xlu0 31
  %9098 = vperm.xlu0 %9097, %v5519
  %v9099 = vpop.permute.xlu0 %9098
  %9101 = vset.pattern.permute.xlu0 31
  %9102 = vperm.xlu0 %9101, %v5520
  %v9103 = vpop.permute.xlu0 %9102
  %9105 = vset.pattern.permute.xlu0 31
  %9106 = vperm.xlu0 %9105, %v5521
  %v9107 = vpop.permute.xlu0 %9106
  %9109 = vset.pattern.permute.xlu0 31
  %9110 = vperm.xlu0 %9109, %v5522
  %v9111 = vpop.permute.xlu0 %9110
  %9113 = vset.pattern.permute.xlu0 31
  %9114 = vperm.xlu0 %9113, %v5523
  %v9115 = vpop.permute.xlu0 %9114
  %9117 = vset.pattern.permute.xlu0 31
  %9118 = vperm.xlu0 %9117, %v5524
  %v9119 = vpop.permute.xlu0 %9118
  %9121 = vset.pattern.permute.xlu0 31
  %9122 = vperm.xlu0 %9121, %v5525
  %v9123 = vpop.permute.xlu0 %9122
  %9125 = vset.pattern.permute.xlu0 31
  %9126 = vperm.xlu0 %9125, %v5526
  %v9127 = vpop.permute.xlu0 %9126
  %9129 = vset.pattern.permute.xlu0 31
  %9130 = vperm.xlu0 %9129, %v5527
  %v9131 = vpop.permute.xlu0 %9130
  %9133 = vset.pattern.permute.xlu0 31
  %9134 = vperm.xlu0 %9133, %v5528
  %v9135 = vpop.permute.xlu0 %9134
  %9137 = vset.pattern.permute.xlu0 31
  %9138 = vperm.xlu0 %9137, %v5529
  %v9139 = vpop.permute.xlu0 %9138
  %9141 = vset.pattern.permute.xlu0 31
  %9142 = vperm.xlu0 %9141, %v5530
  %v9143 = vpop.permute.xlu0 %9142
  %9145 = vset.pattern.permute.xlu0 31
  %9146 = vperm.xlu0 %9145, %v5531
  %v9147 = vpop.permute.xlu0 %9146
  %9149 = vset.pattern.permute.xlu0 31
  %9150 = vperm.xlu0 %9149, %v5532
  %v9151 = vpop.permute.xlu0 %9150
  %9153 = vset.pattern.permute.xlu0 31
  %9154 = vperm.xlu0 %9153, %v5533
  %v9155 = vpop.permute.xlu0 %9154
  %9157 = vset.pattern.permute.xlu0 31
  %9158 = vperm.xlu0 %9157, %v5534
  %v9159 = vpop.permute.xlu0 %9158
  %9161 = vset.pattern.permute.xlu0 31
  %9162 = vperm.xlu0 %9161, %v5535
  %v9163 = vpop.permute.xlu0 %9162
  %v9165 = vmul.f32 %v9091, %v4780
  %v9166 = vmul.f32 %v9095, %v4781
  %v9167 = vmul.f32 %v9099, %v4782
  %v9168 = vmul.f32 %v9103, %v4783
  %v9169 = vmul.f32 %v9107, %v4784
  %v9170 = vmul.f32 %v9111, %v4785
  %v9171 = vmul.f32 %v9115, %v4786
  %v9172 = vmul.f32 %v9119, %v4787
  %v9173 = vmul.f32 %v9123, %v4788
  %v9174 = vmul.f32 %v9127, %v4789
  %v9175 = vmul.f32 %v9131, %v4790
  %v9176 = vmul.f32 %v9135, %v4791
  %v9177 = vmul.f32 %v9139, %v4792
  %v9178 = vmul.f32 %v9143, %v4793
  %v9179 = vmul.f32 %v9147, %v4794
  %v9180 = vmul.f32 %v9151, %v4795
  %v9181 = vmul.f32 %v9155, %v4796
  %v9182 = vmul.f32 %v9159, %v4797
  %v9183 = vmul.f32 %v9163, %v4798
  %v9184 = vadd.f32 %v9070, %v9165
  %v9185 = vadd.f32 %v9071, %v9166
  %v9186 = vadd.f32 %v9072, %v9167
  %v9187 = vadd.f32 %v9073, %v9168
  %v9188 = vadd.f32 %v9074, %v9169
  %v9189 = vadd.f32 %v9075, %v9170
  %v9190 = vadd.f32 %v9076, %v9171
  %v9191 = vadd.f32 %v9077, %v9172
  %v9192 = vadd.f32 %v9078, %v9173
  %v9193 = vadd.f32 %v9079, %v9174
  %v9194 = vadd.f32 %v9080, %v9175
  %v9195 = vadd.f32 %v9081, %v9176
  %v9196 = vadd.f32 %v9082, %v9177
  %v9197 = vadd.f32 %v9083, %v9178
  %v9198 = vadd.f32 %v9084, %v9179
  %v9199 = vadd.f32 %v9085, %v9180
  %v9200 = vadd.f32 %v9086, %v9181
  %v9201 = vadd.f32 %v9087, %v9182
  %v9202 = vadd.f32 %v9088, %v9183
  %v9203 = vsel %vm4913, %v9184, 0.0
  %v9204 = vsel %vm4913, %v9185, 0.0
  %v9205 = vadd.f32 %v9203, %v9204
  %v9206 = vsel %vm4913, %v9186, 0.0
  %v9207 = vadd.f32 %v9205, %v9206
  %v9208 = vsel %vm4913, %v9187, 0.0
  %v9209 = vadd.f32 %v9207, %v9208
  %v9210 = vsel %vm4913, %v9188, 0.0
  %v9211 = vadd.f32 %v9209, %v9210
  %v9212 = vsel %vm4913, %v9189, 0.0
  %v9213 = vadd.f32 %v9211, %v9212
  %v9214 = vsel %vm4913, %v9190, 0.0
  %v9215 = vadd.f32 %v9213, %v9214
  %v9216 = vsel %vm4913, %v9191, 0.0
  %v9217 = vadd.f32 %v9215, %v9216
  %v9218 = vsel %vm4913, %v9192, 0.0
  %v9219 = vadd.f32 %v9217, %v9218
  %v9220 = vsel %vm4913, %v9193, 0.0
  %v9221 = vadd.f32 %v9219, %v9220
  %v9222 = vsel %vm4913, %v9194, 0.0
  %v9223 = vadd.f32 %v9221, %v9222
  %v9224 = vsel %vm4913, %v9195, 0.0
  %v9225 = vadd.f32 %v9223, %v9224
  %v9226 = vsel %vm4913, %v9196, 0.0
  %v9227 = vadd.f32 %v9225, %v9226
  %v9228 = vsel %vm4913, %v9197, 0.0
  %v9229 = vadd.f32 %v9227, %v9228
  %v9230 = vsel %vm4913, %v9198, 0.0
  %v9231 = vadd.f32 %v9229, %v9230
  %v9232 = vsel %vm4913, %v9199, 0.0
  %v9233 = vadd.f32 %v9231, %v9232
  %v9234 = vsel %vm4913, %v9200, 0.0
  %v9235 = vadd.f32 %v9233, %v9234
  %v9236 = vsel %vm4913, %v9201, 0.0
  %v9237 = vadd.f32 %v9235, %v9236
  %v9238 = vsel %vm4949, %v9202, 0.0
  %v9239 = vadd.f32 %v9237, %v9238
  %v9240 = vrot.slane %v9239, 4
  %v9241 = vadd.f32 %v9239, %v9240
  %v9242 = vrot.slane %v9241, 2
  %v9243 = vadd.f32 %v9241, %v9242
  %v9244 = vrot.slane %v9243, 1
  %v9245 = vadd.f32 %v9243, %v9244
  %v9246 = vadd.f32 %v9245, %v4958
  %v9247 = vmax.f32 %v9246, 0.0
  %v9248 = vmul.f32 %v9247, %v4961
  %v9249 = vsel %vm4963, %v9248, 0.0
  %9250 = vadd.xlane.f32.xlu0 %v9249
  %v9251 = vpop.xlane.xlu0 %9250
  %v9252 = vadd.f32 %v9251, %v4967
  %v9253 = vxor.u32 %v9252, 2147483648
  %v9254 = vmul.f32 %v9253, 1.442695
  %v9255 = vpow.pop %v9254
  %v9256 = vadd.f32 %v9255, 1.0
  %v9257 = vrcp.pop %v9256
  %v9258 = vmul.f32 1.0, %v9257
  %v9260 = vrot.slane %v9258, 7
  %v9262 = vsel %vm66, %v4974, %v9260
  %vm9263 = vcmask 1024
  %9264 = vst.msk [vmem:[%s7] sm:$0x3] %vm9263, %v9262
  // Predicated region
  $region30: #{discriminator_forward.1} parent=0 // pred_check
    _
  $region31: #{discriminator_forward.1} parent=0 // pred_check_branch
    %9266 = sbr.rel (0) target = $region33
  $region32: #{discriminator_forward.1} parent=0 // pred_region
    _
  $region33: #{discriminator_forward.1} parent=0 // pred_fallthru
    _
  // Predicated region
  $region34: #{discriminator_forward.1} parent=0 // pred_check
    _
  $region35: #{discriminator_forward.1} parent=0 // pred_check_branch
    %9268 = sbr.rel (0) target = $region37
  $region36: #{discriminator_forward.1} parent=0 // pred_region
    _
  $region37: #{discriminator_forward.1} parent=0 // pred_fallthru
    _

</llo_original>
